<compile_context>
chip_gen: v5e
topology: v5e:2x2
jax: 0.10.0
libtpu: 0.0.40
codegen_flags: <defaults>
</compile_context>

<pallas_src>
import jax
import jax.numpy as jnp
from jax.experimental import pallas as pl
from jax.experimental.pallas import tpu as pltpu


def _round_up(n, m):
    return (n + m - 1) // m * m


def _pick_divisor_tile(dim, preferred, align):
    """Largest multiple of `align` <= preferred that divides `dim` (else dim)."""
    if dim % align != 0:
        return dim
    t = max(align, (min(preferred, dim) // align) * align)
    while dim % t != 0:
        t -= align
    return t


def _chip_config():
    """Per-generation tile / VMEM defaults."""
    try:
        kind = jax.devices()[0].device_kind.lower()
    except Exception:
        kind = ""
    if "v7" in kind:
        # 64 MiB VMEM per TC, 2 TCs/chip, ~3.2 TB/s HBM: tm=512 already compute
        # bound; keep VMEM limit <= 48 MiB and make sure both cores get tiles.
        return dict(tm=512, th=1024, vmem_limit=48 * 2**20,
                    resident_budget=36 * 2**20, two_cores=True)
    if "v6" in kind:
        # 128 MiB VMEM, ~1.4 TB/s: needs a large row tile to hit the MXU roofline.
        return dict(tm=1024, th=1024, vmem_limit=100 * 2**20,
                    resident_budget=80 * 2**20, two_cores=False)
    if "v5" in kind:
        # Lower HBM BW but lower peak too; tm=256 is already above the intensity
        # threshold, keep the pipeline deep instead of growing tiles.
        return dict(tm=256, th=512, vmem_limit=64 * 2**20,
                    resident_budget=80 * 2**20, two_cores=False)
    # Unknown chip: conservative.
    return dict(tm=512, th=512, vmem_limit=48 * 2**20,
                resident_budget=32 * 2**20, two_cores=False)


def _ffn_kernel_resident(x_ref, w1_ref, b1_ref, w2_ref, b2_ref, o_ref):
    # W1/W2 fully VMEM-resident (constant block index); one fused pass per row tile.
    h = jnp.dot(x_ref[...], w1_ref[...], preferred_element_type=jnp.float32)
    h = jnp.maximum(h + b1_ref[...], 0.0)
    y = jnp.dot(h.astype(w2_ref.dtype), w2_ref[...],
                preferred_element_type=jnp.float32)
    # TODO(synk): training-mode Dropout(0.2) (prng mask + 1/(1-p) scale) omitted;
    # forward implemented in eval mode (identity).
    o_ref[...] = (y + b2_ref[...]).astype(o_ref.dtype)


def _ffn_kernel_streamed(x_ref, w1_ref, b1_ref, w2_ref, b2_ref, o_ref):
    # H-tiled reduction.  o_ref (f32) is VMEM-resident across the h axis and is
    # used directly as the accumulator -- no scratch buffer.
    h_idx = pl.program_id(1)

    @pl.when(h_idx == 0)
    def _():
        o_ref[...] = jnp.zeros_like(o_ref)

    h = jnp.dot(x_ref[...], w1_ref[...], preferred_element_type=jnp.float32)
    h = jnp.maximum(h + b1_ref[...], 0.0)
    o_ref[...] += jnp.dot(h.astype(w2_ref.dtype), w2_ref[...],
                          preferred_element_type=jnp.float32)

    @pl.when(h_idx == pl.num_programs(1) - 1)
    def _():
        # TODO(synk): training-mode Dropout(0.2) omitted (eval-mode identity).
        o_ref[...] = o_ref[...] + b2_ref[...]


def feed_forward(x, w1, b1, w2, b2, *, tm=None, th=None):
    """x: (B, T, C).  w1: (C, 4C), b1: (4C,), w2: (4C, C), b2: (C,).

    Returns (B, T, C) float32 (eval-mode dropout == identity).
    Pass w1/w2 already cast to bfloat16 to skip the per-call cast."""
    B, T, C = x.shape
    H = w1.shape[1]  # 4 * C
    M = B * T

    cfg = _chip_config()
    tm = cfg["tm"] if tm is None else tm
    th = cfg["th"] if th is None else th

    # Row tile: multiple of 128 (bf16 sublane packing / MXU row fill), shrunk
    # for tiny inputs, never larger than the per-chip default.
    tm_eff = min(tm, _round_up(M, 128))
    # v7x has 2 TensorCores: make sure the "parallel" row axis has >= 2 tiles
    # whenever there is enough work to split.
    if cfg["two_cores"]:
        while M > tm_eff and _round_up(M, tm_eff) // tm_eff < 2 and tm_eff > 256:
            tm_eff //= 2
    M_pad = _round_up(M, tm_eff)
    n_row_tiles = M_pad // tm_eff

    # bf16 MXU operands; cast only if the caller didn't already supply bf16.
    x2d = x.reshape(M, C)
    if x2d.dtype != jnp.bfloat16:
        x2d = x2d.astype(jnp.bfloat16)
    if M_pad != M:
        x2d = jnp.pad(x2d, ((0, M_pad - M), (0, 0)))
    w1_b = w1 if w1.dtype == jnp.bfloat16 else w1.astype(jnp.bfloat16)
    w2_b = w2 if w2.dtype == jnp.bfloat16 else w2.astype(jnp.bfloat16)
    b1_2d = b1.reshape(1, H).astype(jnp.float32)
    b2_2d = b2.reshape(1, C).astype(jnp.float32)

    # ---------------- Weights-resident path ----------------
    # Estimated VMEM: double-buffered bf16 weights + double-buffered x/out row
    # tiles + the (tm, H) f32 intermediate + biases.
    resident_bytes = (2 * (w1_b.size + w2_b.size) * 2
                      + 2 * tm_eff * C * 2 + 2 * tm_eff * C * 4
                      + tm_eff * H * 4
                      + 2 * (b1_2d.size + b2_2d.size) * 4)
    if resident_bytes <= cfg["resident_budget"]:
        cost = pl.CostEstimate(
            flops=4 * M_pad * C * H,  # two matmuls: 2*M*C*H each
            transcendentals=0,
            bytes_accessed=(x2d.size * 2 + w1_b.size * 2 + w2_b.size * 2
                            + b1_2d.size * 4 + b2_2d.size * 4 + M_pad * C * 4),
        )
        out2d = pl.pallas_call(
            _ffn_kernel_resident,
            out_shape=jax.ShapeDtypeStruct((M_pad, C), jnp.float32),
            grid_spec=pltpu.PrefetchScalarGridSpec(
                num_scalar_prefetch=0,
                grid=(n_row_tiles,),
                in_specs=[
                    pl.BlockSpec((tm_eff, C), lambda i: (i, 0)),  # x rows
                    pl.BlockSpec((C, H), lambda i: (0, 0)),       # W1 (resident)
                    pl.BlockSpec((1, H), lambda i: (0, 0)),       # b1 (resident)
                    pl.BlockSpec((H, C), lambda i: (0, 0)),       # W2 (resident)
                    pl.BlockSpec((1, C), lambda i: (0, 0)),       # b2 (resident)
                ],
                out_specs=pl.BlockSpec((tm_eff, C), lambda i: (i, 0)),
            ),
            compiler_params=pltpu.CompilerParams(
                dimension_semantics=("parallel",),
                vmem_limit_bytes=cfg["vmem_limit"],
            ),
            cost_estimate=cost,
        )(x2d, w1_b, b1_2d, w2_b, b2_2d)
        return out2d[:M].reshape(B, T, C)

    # ---------------- Streamed (H-tiled) path ----------------
    th_eff = _pick_divisor_tile(H, th, 128)
    grid = (n_row_tiles, H // th_eff)
    cost = pl.CostEstimate(
        flops=4 * M_pad * C * H,
        transcendentals=0,
        bytes_accessed=(x2d.size * 2
                        + n_row_tiles * (w1_b.size * 2 + w2_b.size * 2
                                         + b1_2d.size * 4)
                        + b2_2d.size * 4 + M_pad * C * 4),
    )
    out2d = pl.pallas_call(
        _ffn_kernel_streamed,
        out_shape=jax.ShapeDtypeStruct((M_pad, C), jnp.float32),
        grid_spec=pltpu.PrefetchScalarGridSpec(
            num_scalar_prefetch=0,
            grid=grid,
            in_specs=[
                pl.BlockSpec((tm_eff, C), lambda i, h: (i, 0)),   # x rows (resident over h)
                pl.BlockSpec((C, th_eff), lambda i, h: (0, h)),   # W1 tile
                pl.BlockSpec((1, th_eff), lambda i, h: (0, h)),   # b1 tile
                pl.BlockSpec((th_eff, C), lambda i, h: (h, 0)),   # W2 tile
                pl.BlockSpec((1, C), lambda i, h: (0, 0)),        # b2
            ],
            out_specs=pl.BlockSpec((tm_eff, C), lambda i, h: (i, 0)),
        ),
        compiler_params=pltpu.CompilerParams(
            dimension_semantics=("parallel", "arbitrary"),
            vmem_limit_bytes=cfg["vmem_limit"],
        ),
        cost_estimate=cost,
    )(x2d, w1_b, b1_2d, w2_b, b2_2d)
    return out2d[:M].reshape(B, T, C)


if __name__ == "__main__":
    # Small shapes consistent with the module: n_embd = 384, hidden = 4*n_embd.
    B, T, n_embd = 2, 8, 384
    hidden = 4 * n_embd

    key = jax.random.PRNGKey(0)
    kx, k1, k2, k3, k4 = jax.random.split(key, 5)

    x = jax.random.normal(kx, (B, T, n_embd), dtype=jnp.float32)
    # Deterministic parameter init (kaiming-uniform-ish scale).
    w1 = jax.random.uniform(k1, (n_embd, hidden), jnp.float32,
                            -1.0 / jnp.sqrt(n_embd), 1.0 / jnp.sqrt(n_embd))
    b1 = jax.random.uniform(k2, (hidden,), jnp.float32,
                            -1.0 / jnp.sqrt(n_embd), 1.0 / jnp.sqrt(n_embd))
    w2 = jax.random.uniform(k3, (hidden, n_embd), jnp.float32,
                            -1.0 / jnp.sqrt(hidden), 1.0 / jnp.sqrt(hidden))
    b2 = jax.random.uniform(k4, (n_embd,), jnp.float32,
                            -1.0 / jnp.sqrt(hidden), 1.0 / jnp.sqrt(hidden))

    out = feed_forward(x, w1, b1, w2, b2)
    out = jax.block_until_ready(out)

    # Pure-JAX reference mirroring the kernel's numerics (bf16 matmul inputs,
    # f32 accumulation; eval-mode dropout == identity).
    xb = x.reshape(-1, n_embd).astype(jnp.bfloat16).astype(jnp.float32)
    w1b = w1.astype(jnp.bfloat16).astype(jnp.float32)
    w2b = w2.astype(jnp.bfloat16).astype(jnp.float32)
    h_ref = jnp.maximum(xb @ w1b + b1, 0.0)
    h_ref = h_ref.astype(jnp.bfloat16).astype(jnp.float32)
    ref = (h_ref @ w2b + b2).reshape(B, T, n_embd)
    assert out.shape == (B, T, n_embd)
    assert jnp.allclose(out, ref, atol=2e-2, rtol=2e-2), "mismatch vs reference"

    print("KERNEL_OK")
</pallas_src>

<mosaic_0001>
module attributes {stable_mosaic.version = 11 : i64} {
  func.func @_ffn_kernel_resident(%arg0: i32, %arg1: memref<128x384xbf16, #tpu.memory_space<vmem>>, %arg2: memref<384x1536xbf16, #tpu.memory_space<vmem>>, %arg3: memref<1x1536xf32, #tpu.memory_space<vmem>>, %arg4: memref<1536x384xbf16, #tpu.memory_space<vmem>>, %arg5: memref<1x384xf32, #tpu.memory_space<vmem>>, %arg6: memref<128x384xf32, #tpu.memory_space<vmem>>) attributes {dimension_semantics = [#tpu.dimension_semantics<parallel>], iteration_bounds = array<i64: 1>, scalar_prefetch = 0 : i64, scratch_operands = 0 : i64, tpu.core_type = #tpu.core_type<tc>, window_params = [{transform_indices = @transform_0, window_bounds = array<i64: 128, 384>}, {pipeline_mode = #tpu.pipeline_mode<synchronous>, transform_indices = @transform_1, window_bounds = array<i64: 384, 1536>}, {pipeline_mode = #tpu.pipeline_mode<synchronous>, transform_indices = @transform_2, window_bounds = array<i64: 1, 1536>}, {pipeline_mode = #tpu.pipeline_mode<synchronous>, transform_indices = @transform_3, window_bounds = array<i64: 1536, 384>}, {pipeline_mode = #tpu.pipeline_mode<synchronous>, transform_indices = @transform_4, window_bounds = array<i64: 1, 384>}, {transform_indices = @transform_5, window_bounds = array<i64: 128, 384>}]} {
    %c0 = arith.constant 0 : index
    %c0_0 = arith.constant 0 : index
    %0 = vector.load %arg1[%c0, %c0_0] : memref<128x384xbf16, #tpu.memory_space<vmem>>, vector<128x384xbf16>
    %c0_1 = arith.constant 0 : index
    %c0_2 = arith.constant 0 : index
    %1 = vector.load %arg2[%c0_1, %c0_2] : memref<384x1536xbf16, #tpu.memory_space<vmem>>, vector<384x1536xbf16>
    %cst = arith.constant dense<0.000000e+00> : vector<128x1536xf32>
    %2 = tpu.matmul %0, %1, %cst {dimension_numbers = #tpu.dot_dimension_numbers<[1], [0], [0], [1], [0, 0, 1, 1], [], []>} : vector<128x384xbf16>, vector<384x1536xbf16>, vector<128x1536xf32> -> vector<128x1536xf32>
    %c0_3 = arith.constant 0 : index
    %c0_4 = arith.constant 0 : index
    %3 = vector.load %arg3[%c0_3, %c0_4] : memref<1x1536xf32, #tpu.memory_space<vmem>>, vector<1x1536xf32>
    %4 = vector.broadcast %3 : vector<1x1536xf32> to vector<128x1536xf32>
    %5 = arith.addf %2, %4 : vector<128x1536xf32>
    %cst_5 = arith.constant 0.000000e+00 : f32
    %6 = vector.broadcast %cst_5 : f32 to vector<128x1536xf32>
    %7 = arith.maximumf %5, %6 : vector<128x1536xf32>
    %8 = arith.truncf %7 : vector<128x1536xf32> to vector<128x1536xbf16>
    %c0_6 = arith.constant 0 : index
    %c0_7 = arith.constant 0 : index
    %9 = vector.load %arg4[%c0_6, %c0_7] : memref<1536x384xbf16, #tpu.memory_space<vmem>>, vector<1536x384xbf16>
    %cst_8 = arith.constant dense<0.000000e+00> : vector<128x384xf32>
    %10 = tpu.matmul %8, %9, %cst_8 {dimension_numbers = #tpu.dot_dimension_numbers<[1], [0], [0], [1], [0, 0, 1, 1], [], []>} : vector<128x1536xbf16>, vector<1536x384xbf16>, vector<128x384xf32> -> vector<128x384xf32>
    %c0_9 = arith.constant 0 : index
    %c0_10 = arith.constant 0 : index
    %11 = vector.load %arg5[%c0_9, %c0_10] : memref<1x384xf32, #tpu.memory_space<vmem>>, vector<1x384xf32>
    %12 = vector.broadcast %11 : vector<1x384xf32> to vector<128x384xf32>
    %13 = arith.addf %10, %12 : vector<128x384xf32>
    %c0_11 = arith.constant 0 : index
    %c0_12 = arith.constant 0 : index
    %14 = vector.load %arg6[%c0_11, %c0_12] : memref<128x384xf32, #tpu.memory_space<vmem>>, vector<128x384xf32>
    tpu.vector_store %arg6[%c0_11, %c0_12], %13 {strides = array<i32>} : memref<128x384xf32, #tpu.memory_space<vmem>>, vector<128x384xf32>,
    return
  }
  func.func @transform_0(%arg0: i32) -> (i32, i32) {
    %c0_i32 = arith.constant 0 : i32
    %c0_i32_0 = arith.constant 0 : i32
    return %arg0, %c0_i32 : i32, i32
  }
  func.func @transform_1(%arg0: i32) -> (i32, i32) {
    %c0_i32 = arith.constant 0 : i32
    %c0_i32_0 = arith.constant 0 : i32
    %c0_i32_1 = arith.constant 0 : i32
    return %c0_i32, %c0_i32_0 : i32, i32
  }
  func.func @transform_2(%arg0: i32) -> (i32, i32) {
    %c0_i32 = arith.constant 0 : i32
    %c0_i32_0 = arith.constant 0 : i32
    %c0_i32_1 = arith.constant 0 : i32
    return %c0_i32, %c0_i32_0 : i32, i32
  }
  func.func @transform_3(%arg0: i32) -> (i32, i32) {
    %c0_i32 = arith.constant 0 : i32
    %c0_i32_0 = arith.constant 0 : i32
    %c0_i32_1 = arith.constant 0 : i32
    return %c0_i32, %c0_i32_0 : i32, i32
  }
  func.func @transform_4(%arg0: i32) -> (i32, i32) {
    %c0_i32 = arith.constant 0 : i32
    %c0_i32_0 = arith.constant 0 : i32
    %c0_i32_1 = arith.constant 0 : i32
    return %c0_i32, %c0_i32_0 : i32, i32
  }
  func.func @transform_5(%arg0: i32) -> (i32, i32) {
    %c0_i32 = arith.constant 0 : i32
    %c0_i32_0 = arith.constant 0 : i32
    return %arg0, %c0_i32 : i32, i32
  }
}

</mosaic_0001>

<llo_original>
// kernel: tpu_custom_call.1
$region0: #{tpu_custom_call.1}
  #allocation0 [shape = 'u32[]', space=smem, size = 0x4, offset = 0x4, fixed_abs, tag = 'smem constant byte address 0x4 - core index']
  #allocation1 [shape = 'u32[72,128]{1,0:T(1,128)}', space=vmem, size = 0x9000, scoped, tag = 'internal scratch']
  %s0 = inlined_call_operand.hbm [shape: bf16[128,384], index: 0, kind: input, shape index: {}]
  %s1 = inlined_call_operand.hbm [shape: bf16[384,1536], index: 1, kind: input, shape index: {}]
  %s2 = inlined_call_operand.hbm [shape: f32[1,1536], index: 2, kind: input, shape index: {}]
  %s3 = inlined_call_operand.hbm [shape: bf16[1536,384], index: 3, kind: input, shape index: {}]
  %s4 = inlined_call_operand.hbm [shape: f32[1,384], index: 4, kind: input, shape index: {}]
  %s5 = inlined_call_operand.hbm [shape: f32[128,384], index: 5, kind: output, shape index: {}]
  %s6 = sld [smem:[#allocation0]]
  $region50: #{tpu_custom_call.1} parent=0
    _
  %s8 = ssub.s32 1, %s6
  %s9 = scalar_select 0, %s8, %s6
  $region1: #{tpu_custom_call.1} parent=0
    #allocation2 [shape = 'u8[98304]{0}', space=vmem, size = 0x18000, scoped, tag = 'input window, operand 0, single buffered']
    #allocation3 [shape = 's32[1]{0}', space=sflag, size = 0x4, scoped, tag = 'scoped memory for tpu_custom_call.1']
    #allocation4 [shape = 's32[1]{0}', space=sflag, size = 0x4, scoped, tag = 'scoped memory for tpu_custom_call.1']
    #allocation5 [shape = 'u8[1179648]{0}', space=vmem, size = 0x120000, scoped, tag = 'input window, operand 1, single buffered']
    #allocation6 [shape = 's32[1]{0}', space=sflag, size = 0x4, scoped, tag = 'scoped memory for tpu_custom_call.1']
    #allocation7 [shape = 'u8[6144]{0}', space=vmem, size = 0x1800, scoped, tag = 'input window, operand 2, single buffered']
    #allocation8 [shape = 'u8[1179648]{0}', space=vmem, size = 0x120000, scoped, tag = 'input window, operand 3, single buffered']
    #allocation9 [shape = 's32[1]{0}', space=sflag, size = 0x4, scoped, tag = 'scoped memory for tpu_custom_call.1']
    #allocation10 [shape = 'u8[1536]{0}', space=vmem, size = 0x800, scoped, tag = 'input window, operand 4, single buffered']
    #allocation11 [shape = 'u8[196608]{0}', space=vmem, size = 0x30000, scoped, tag = 'output window, operand 0, single buffered']
    %10 = vsyncpa [#allocation3], 0
    %11 = vsyncpa [#allocation6], 0
    %12 = vsyncpa [#allocation9], 0
    %13 = vsyncpa [#allocation4], 0
    // Predicated region
    $region2: #{tpu_custom_call.1} parent=1 // pred_check
      _
    $region3: #{tpu_custom_call.1} parent=1 // pred_check_branch
      %15 = sbr.rel (0) target = $region5
    $region4: #{tpu_custom_call.1} parent=1 // pred_region
      %17 = vsyncadd [#allocation3], 0
      %s18 = sshll.u32 %s0, 4
      %s19 = int_to_ptr.hbm [resolvable:$true] %s18
      %s20 = sshll.u32 [#allocation2], 4
      %s21 = int_to_ptr.vmem [resolvable:$true] %s20
      %26 = dma.hbm_to_vmem [thread:$0]  %s19, 3072, %s21, [#allocation3], 192, 192, 12
    $region5: #{tpu_custom_call.1} parent=1 // pred_fallthru
      _
    // Predicated region
    $region6: #{tpu_custom_call.1} parent=1 // pred_check
      _
    $region7: #{tpu_custom_call.1} parent=1 // pred_check_branch
      %28 = sbr.rel (0) target = $region9
    $region8: #{tpu_custom_call.1} parent=1 // pred_region
      %30 = vsyncadd [#allocation6], 0
      %s31 = sshll.u32 %s1, 4
      %s32 = int_to_ptr.hbm [resolvable:$true] %s31
      %s33 = sshll.u32 [#allocation5], 4
      %s34 = int_to_ptr.vmem [resolvable:$true] %s33
      %39 = dma.hbm_to_vmem [thread:$0]  %s32, 36864, %s34, [#allocation6], 768, 768, 48
    $region9: #{tpu_custom_call.1} parent=1 // pred_fallthru
      _
    // Predicated region
    $region10: #{tpu_custom_call.1} parent=1 // pred_check
      _
    $region11: #{tpu_custom_call.1} parent=1 // pred_check_branch
      %41 = sbr.rel (0) target = $region13
    $region12: #{tpu_custom_call.1} parent=1 // pred_region
      %43 = vsyncadd [#allocation6], 0
      %s45 = sshll.u32 %s2, 4
      %s46 = int_to_ptr.hbm [resolvable:$true] %s45
      %s47 = sshll.u32 [#allocation7], 4
      %s48 = int_to_ptr.vmem [resolvable:$true] %s47
      %50 = dma.hbm_to_vmem [thread:$0]  %s46, 192, %s48, [#allocation6]
    $region13: #{tpu_custom_call.1} parent=1 // pred_fallthru
      _
    // Predicated region
    $region14: #{tpu_custom_call.1} parent=1 // pred_check
      _
    $region15: #{tpu_custom_call.1} parent=1 // pred_check_branch
      %52 = sbr.rel (0) target = $region17
    $region16: #{tpu_custom_call.1} parent=1 // pred_region
      %54 = vsyncadd [#allocation9], 0
      %s55 = sshll.u32 %s3, 4
      %s56 = int_to_ptr.hbm [resolvable:$true] %s55
      %s57 = sshll.u32 [#allocation8], 4
      %s58 = int_to_ptr.vmem [resolvable:$true] %s57
      %63 = dma.hbm_to_vmem [thread:$0]  %s56, 36864, %s58, [#allocation9], 192, 192, 12
    $region17: #{tpu_custom_call.1} parent=1 // pred_fallthru
      _
    // Predicated region
    $region18: #{tpu_custom_call.1} parent=1 // pred_check
      _
    $region19: #{tpu_custom_call.1} parent=1 // pred_check_branch
      %65 = sbr.rel (0) target = $region21
    $region20: #{tpu_custom_call.1} parent=1 // pred_region
      %67 = vsyncadd [#allocation9], 0
      %s69 = sshll.u32 %s4, 4
      %s70 = int_to_ptr.hbm [resolvable:$true] %s69
      %s71 = sshll.u32 [#allocation10], 4
      %s72 = int_to_ptr.vmem [resolvable:$true] %s71
      %74 = dma.hbm_to_vmem [thread:$0]  %s70, 48, %s72, [#allocation9]
    $region21: #{tpu_custom_call.1} parent=1 // pred_fallthru
      _
    // Predicated region
    $region22: #{tpu_custom_call.1} parent=1 // pred_check
      _
    $region23: #{tpu_custom_call.1} parent=1 // pred_check_branch
      %76 = sbr.rel (0) target = $region25
    $region24: #{tpu_custom_call.1} parent=1 // pred_region
      %78 = dma.done [#allocation3], 3072
    $region25: #{tpu_custom_call.1} parent=1 // pred_fallthru
      _
    // Predicated region
    $region26: #{tpu_custom_call.1} parent=1 // pred_check
      _
    $region27: #{tpu_custom_call.1} parent=1 // pred_check_branch
      %80 = sbr.rel (0) target = $region29
    $region28: #{tpu_custom_call.1} parent=1 // pred_region
      %82 = dma.done [#allocation6], 36864
    $region29: #{tpu_custom_call.1} parent=1 // pred_fallthru
      _
    // Predicated region
    $region30: #{tpu_custom_call.1} parent=1 // pred_check
      _
    $region31: #{tpu_custom_call.1} parent=1 // pred_check_branch
      %84 = sbr.rel (0) target = $region33
    $region32: #{tpu_custom_call.1} parent=1 // pred_region
      %86 = dma.done [#allocation6], 192
    $region33: #{tpu_custom_call.1} parent=1 // pred_fallthru
      _
    // Predicated region
    $region34: #{tpu_custom_call.1} parent=1 // pred_check
      _
    $region35: #{tpu_custom_call.1} parent=1 // pred_check_branch
      %88 = sbr.rel (0) target = $region37
    $region36: #{tpu_custom_call.1} parent=1 // pred_region
      %90 = dma.done [#allocation9], 36864
    $region37: #{tpu_custom_call.1} parent=1 // pred_fallthru
      _
    // Predicated region
    $region38: #{tpu_custom_call.1} parent=1 // pred_check
      _
    $region39: #{tpu_custom_call.1} parent=1 // pred_check_branch
      %92 = sbr.rel (0) target = $region41
    $region40: #{tpu_custom_call.1} parent=1 // pred_region
      %94 = dma.done [#allocation9], 48
    $region41: #{tpu_custom_call.1} parent=1 // pred_fallthru
      _
    %v95 = vld [vmem:[#allocation2] sm:$0xff]
    %v96 = vld [vmem:[#allocation2 + $0x8] sm:$0xf]
    %v97 = vld [vmem:[#allocation2 + $0xc] sm:$0xff]
    %v98 = vld [vmem:[#allocation2 + $0x14] sm:$0xf]
    %v99 = vld [vmem:[#allocation2 + $0x18] sm:$0xff]
    %v100 = vld [vmem:[#allocation2 + $0x20] sm:$0xf]
    %v101 = vld [vmem:[#allocation2 + $0x24] sm:$0xff]
    %v102 = vld [vmem:[#allocation2 + $0x2c] sm:$0xf]
    %v103 = vld [vmem:[#allocation2 + $0x30] sm:$0xff]
    %v104 = vld [vmem:[#allocation2 + $0x38] sm:$0xf]
    %v105 = vld [vmem:[#allocation2 + $0x3c] sm:$0xff]
    %v106 = vld [vmem:[#allocation2 + $0x44] sm:$0xf]
    %v107 = vld [vmem:[#allocation2 + $0x48] sm:$0xff]
    %v108 = vld [vmem:[#allocation2 + $0x50] sm:$0xf]
    %v109 = vld [vmem:[#allocation2 + $0x54] sm:$0xff]
    %v110 = vld [vmem:[#allocation2 + $0x5c] sm:$0xf]
    %v111 = vld [vmem:[#allocation2 + $0x60] sm:$0xff]
    %v112 = vld [vmem:[#allocation2 + $0x68] sm:$0xf]
    %v113 = vld [vmem:[#allocation2 + $0x6c] sm:$0xff]
    %v114 = vld [vmem:[#allocation2 + $0x74] sm:$0xf]
    %v115 = vld [vmem:[#allocation2 + $0x78] sm:$0xff]
    %v116 = vld [vmem:[#allocation2 + $0x80] sm:$0xf]
    %v117 = vld [vmem:[#allocation2 + $0x84] sm:$0xff]
    %v118 = vld [vmem:[#allocation2 + $0x8c] sm:$0xf]
    %v119 = vld [vmem:[#allocation2 + $0x90] sm:$0xff]
    %v120 = vld [vmem:[#allocation2 + $0x98] sm:$0xf]
    %v121 = vld [vmem:[#allocation2 + $0x9c] sm:$0xff]
    %v122 = vld [vmem:[#allocation2 + $0xa4] sm:$0xf]
    %v123 = vld [vmem:[#allocation2 + $0xa8] sm:$0xff]
    %v124 = vld [vmem:[#allocation2 + $0xb0] sm:$0xf]
    %v125 = vld [vmem:[#allocation2 + $0xb4] sm:$0xff]
    %v126 = vld [vmem:[#allocation2 + $0xbc] sm:$0xf]
    %v127 = vld [vmem:[#allocation5] sm:$0xff]
    %v128 = vld [vmem:[#allocation5 + $0x8] sm:$0xff]
    %v129 = vld [vmem:[#allocation5 + $0x10] sm:$0xff]
    %v130 = vld [vmem:[#allocation5 + $0x18] sm:$0xff]
    %v131 = vld [vmem:[#allocation5 + $0x20] sm:$0xff]
    %v132 = vld [vmem:[#allocation5 + $0x28] sm:$0xff]
    %v133 = vld [vmem:[#allocation5 + $0x30] sm:$0xff]
    %v134 = vld [vmem:[#allocation5 + $0x38] sm:$0xff]
    %v135 = vld [vmem:[#allocation5 + $0x40] sm:$0xff]
    %v136 = vld [vmem:[#allocation5 + $0x48] sm:$0xff]
    %v137 = vld [vmem:[#allocation5 + $0x50] sm:$0xff]
    %v138 = vld [vmem:[#allocation5 + $0x58] sm:$0xff]
    %v139 = vld [vmem:[#allocation5 + $0x60] sm:$0xff]
    %v140 = vld [vmem:[#allocation5 + $0x68] sm:$0xff]
    %v141 = vld [vmem:[#allocation5 + $0x70] sm:$0xff]
    %v142 = vld [vmem:[#allocation5 + $0x78] sm:$0xff]
    %v143 = vld [vmem:[#allocation5 + $0x80] sm:$0xff]
    %v144 = vld [vmem:[#allocation5 + $0x88] sm:$0xff]
    %v145 = vld [vmem:[#allocation5 + $0x90] sm:$0xff]
    %v146 = vld [vmem:[#allocation5 + $0x98] sm:$0xff]
    %v147 = vld [vmem:[#allocation5 + $0xa0] sm:$0xff]
    %v148 = vld [vmem:[#allocation5 + $0xa8] sm:$0xff]
    %v149 = vld [vmem:[#allocation5 + $0xb0] sm:$0xff]
    %v150 = vld [vmem:[#allocation5 + $0xb8] sm:$0xff]
    %v151 = vld [vmem:[#allocation5 + $0xc0] sm:$0xff]
    %v152 = vld [vmem:[#allocation5 + $0xc8] sm:$0xff]
    %v153 = vld [vmem:[#allocation5 + $0xd0] sm:$0xff]
    %v154 = vld [vmem:[#allocation5 + $0xd8] sm:$0xff]
    %v155 = vld [vmem:[#allocation5 + $0xe0] sm:$0xff]
    %v156 = vld [vmem:[#allocation5 + $0xe8] sm:$0xff]
    %v157 = vld [vmem:[#allocation5 + $0xf0] sm:$0xff]
    %v158 = vld [vmem:[#allocation5 + $0xf8] sm:$0xff]
    %v159 = vld [vmem:[#allocation5 + $0x100] sm:$0xff]
    %v160 = vld [vmem:[#allocation5 + $0x108] sm:$0xff]
    %v161 = vld [vmem:[#allocation5 + $0x110] sm:$0xff]
    %v162 = vld [vmem:[#allocation5 + $0x118] sm:$0xff]
    %v163 = vld [vmem:[#allocation5 + $0x120] sm:$0xff]
    %v164 = vld [vmem:[#allocation5 + $0x128] sm:$0xff]
    %v165 = vld [vmem:[#allocation5 + $0x130] sm:$0xff]
    %v166 = vld [vmem:[#allocation5 + $0x138] sm:$0xff]
    %v167 = vld [vmem:[#allocation5 + $0x140] sm:$0xff]
    %v168 = vld [vmem:[#allocation5 + $0x148] sm:$0xff]
    %v169 = vld [vmem:[#allocation5 + $0x150] sm:$0xff]
    %v170 = vld [vmem:[#allocation5 + $0x158] sm:$0xff]
    %v171 = vld [vmem:[#allocation5 + $0x160] sm:$0xff]
    %v172 = vld [vmem:[#allocation5 + $0x168] sm:$0xff]
    %v173 = vld [vmem:[#allocation5 + $0x170] sm:$0xff]
    %v174 = vld [vmem:[#allocation5 + $0x178] sm:$0xff]
    %v175 = vld [vmem:[#allocation5 + $0x180] sm:$0xff]
    %v176 = vld [vmem:[#allocation5 + $0x188] sm:$0xff]
    %v177 = vld [vmem:[#allocation5 + $0x190] sm:$0xff]
    %v178 = vld [vmem:[#allocation5 + $0x198] sm:$0xff]
    %v179 = vld [vmem:[#allocation5 + $0x1a0] sm:$0xff]
    %v180 = vld [vmem:[#allocation5 + $0x1a8] sm:$0xff]
    %v181 = vld [vmem:[#allocation5 + $0x1b0] sm:$0xff]
    %v182 = vld [vmem:[#allocation5 + $0x1b8] sm:$0xff]
    %v183 = vld [vmem:[#allocation5 + $0x1c0] sm:$0xff]
    %v184 = vld [vmem:[#allocation5 + $0x1c8] sm:$0xff]
    %v185 = vld [vmem:[#allocation5 + $0x1d0] sm:$0xff]
    %v186 = vld [vmem:[#allocation5 + $0x1d8] sm:$0xff]
    %v187 = vld [vmem:[#allocation5 + $0x1e0] sm:$0xff]
    %v188 = vld [vmem:[#allocation5 + $0x1e8] sm:$0xff]
    %v189 = vld [vmem:[#allocation5 + $0x1f0] sm:$0xff]
    %v190 = vld [vmem:[#allocation5 + $0x1f8] sm:$0xff]
    %v191 = vld [vmem:[#allocation5 + $0x200] sm:$0xff]
    %v192 = vld [vmem:[#allocation5 + $0x208] sm:$0xff]
    %v193 = vld [vmem:[#allocation5 + $0x210] sm:$0xff]
    %v194 = vld [vmem:[#allocation5 + $0x218] sm:$0xff]
    %v195 = vld [vmem:[#allocation5 + $0x220] sm:$0xff]
    %v196 = vld [vmem:[#allocation5 + $0x228] sm:$0xff]
    %v197 = vld [vmem:[#allocation5 + $0x230] sm:$0xff]
    %v198 = vld [vmem:[#allocation5 + $0x238] sm:$0xff]
    %v199 = vld [vmem:[#allocation5 + $0x240] sm:$0xff]
    %v200 = vld [vmem:[#allocation5 + $0x248] sm:$0xff]
    %v201 = vld [vmem:[#allocation5 + $0x250] sm:$0xff]
    %v202 = vld [vmem:[#allocation5 + $0x258] sm:$0xff]
    %v203 = vld [vmem:[#allocation5 + $0x260] sm:$0xff]
    %v204 = vld [vmem:[#allocation5 + $0x268] sm:$0xff]
    %v205 = vld [vmem:[#allocation5 + $0x270] sm:$0xff]
    %v206 = vld [vmem:[#allocation5 + $0x278] sm:$0xff]
    %v207 = vld [vmem:[#allocation5 + $0x280] sm:$0xff]
    %v208 = vld [vmem:[#allocation5 + $0x288] sm:$0xff]
    %v209 = vld [vmem:[#allocation5 + $0x290] sm:$0xff]
    %v210 = vld [vmem:[#allocation5 + $0x298] sm:$0xff]
    %v211 = vld [vmem:[#allocation5 + $0x2a0] sm:$0xff]
    %v212 = vld [vmem:[#allocation5 + $0x2a8] sm:$0xff]
    %v213 = vld [vmem:[#allocation5 + $0x2b0] sm:$0xff]
    %v214 = vld [vmem:[#allocation5 + $0x2b8] sm:$0xff]
    %v215 = vld [vmem:[#allocation5 + $0x2c0] sm:$0xff]
    %v216 = vld [vmem:[#allocation5 + $0x2c8] sm:$0xff]
    %v217 = vld [vmem:[#allocation5 + $0x2d0] sm:$0xff]
    %v218 = vld [vmem:[#allocation5 + $0x2d8] sm:$0xff]
    %v219 = vld [vmem:[#allocation5 + $0x2e0] sm:$0xff]
    %v220 = vld [vmem:[#allocation5 + $0x2e8] sm:$0xff]
    %v221 = vld [vmem:[#allocation5 + $0x2f0] sm:$0xff]
    %v222 = vld [vmem:[#allocation5 + $0x2f8] sm:$0xff]
    %v223 = vld [vmem:[#allocation5 + $0x300] sm:$0xff]
    %v224 = vld [vmem:[#allocation5 + $0x308] sm:$0xff]
    %v225 = vld [vmem:[#allocation5 + $0x310] sm:$0xff]
    %v226 = vld [vmem:[#allocation5 + $0x318] sm:$0xff]
    %v227 = vld [vmem:[#allocation5 + $0x320] sm:$0xff]
    %v228 = vld [vmem:[#allocation5 + $0x328] sm:$0xff]
    %v229 = vld [vmem:[#allocation5 + $0x330] sm:$0xff]
    %v230 = vld [vmem:[#allocation5 + $0x338] sm:$0xff]
    %v231 = vld [vmem:[#allocation5 + $0x340] sm:$0xff]
    %v232 = vld [vmem:[#allocation5 + $0x348] sm:$0xff]
    %v233 = vld [vmem:[#allocation5 + $0x350] sm:$0xff]
    %v234 = vld [vmem:[#allocation5 + $0x358] sm:$0xff]
    %v235 = vld [vmem:[#allocation5 + $0x360] sm:$0xff]
    %v236 = vld [vmem:[#allocation5 + $0x368] sm:$0xff]
    %v237 = vld [vmem:[#allocation5 + $0x370] sm:$0xff]
    %v238 = vld [vmem:[#allocation5 + $0x378] sm:$0xff]
    %v239 = vld [vmem:[#allocation5 + $0x380] sm:$0xff]
    %v240 = vld [vmem:[#allocation5 + $0x388] sm:$0xff]
    %v241 = vld [vmem:[#allocation5 + $0x390] sm:$0xff]
    %v242 = vld [vmem:[#allocation5 + $0x398] sm:$0xff]
    %v243 = vld [vmem:[#allocation5 + $0x3a0] sm:$0xff]
    %v244 = vld [vmem:[#allocation5 + $0x3a8] sm:$0xff]
    %v245 = vld [vmem:[#allocation5 + $0x3b0] sm:$0xff]
    %v246 = vld [vmem:[#allocation5 + $0x3b8] sm:$0xff]
    %v247 = vld [vmem:[#allocation5 + $0x3c0] sm:$0xff]
    %v248 = vld [vmem:[#allocation5 + $0x3c8] sm:$0xff]
    %v249 = vld [vmem:[#allocation5 + $0x3d0] sm:$0xff]
    %v250 = vld [vmem:[#allocation5 + $0x3d8] sm:$0xff]
    %v251 = vld [vmem:[#allocation5 + $0x3e0] sm:$0xff]
    %v252 = vld [vmem:[#allocation5 + $0x3e8] sm:$0xff]
    %v253 = vld [vmem:[#allocation5 + $0x3f0] sm:$0xff]
    %v254 = vld [vmem:[#allocation5 + $0x3f8] sm:$0xff]
    %v255 = vld [vmem:[#allocation5 + $0x400] sm:$0xff]
    %v256 = vld [vmem:[#allocation5 + $0x408] sm:$0xff]
    %v257 = vld [vmem:[#allocation5 + $0x410] sm:$0xff]
    %v258 = vld [vmem:[#allocation5 + $0x418] sm:$0xff]
    %v259 = vld [vmem:[#allocation5 + $0x420] sm:$0xff]
    %v260 = vld [vmem:[#allocation5 + $0x428] sm:$0xff]
    %v261 = vld [vmem:[#allocation5 + $0x430] sm:$0xff]
    %v262 = vld [vmem:[#allocation5 + $0x438] sm:$0xff]
    %v263 = vld [vmem:[#allocation5 + $0x440] sm:$0xff]
    %v264 = vld [vmem:[#allocation5 + $0x448] sm:$0xff]
    %v265 = vld [vmem:[#allocation5 + $0x450] sm:$0xff]
    %v266 = vld [vmem:[#allocation5 + $0x458] sm:$0xff]
    %v267 = vld [vmem:[#allocation5 + $0x460] sm:$0xff]
    %v268 = vld [vmem:[#allocation5 + $0x468] sm:$0xff]
    %v269 = vld [vmem:[#allocation5 + $0x470] sm:$0xff]
    %v270 = vld [vmem:[#allocation5 + $0x478] sm:$0xff]
    %v271 = vld [vmem:[#allocation5 + $0x480] sm:$0xff]
    %v272 = vld [vmem:[#allocation5 + $0x488] sm:$0xff]
    %v273 = vld [vmem:[#allocation5 + $0x490] sm:$0xff]
    %v274 = vld [vmem:[#allocation5 + $0x498] sm:$0xff]
    %v275 = vld [vmem:[#allocation5 + $0x4a0] sm:$0xff]
    %v276 = vld [vmem:[#allocation5 + $0x4a8] sm:$0xff]
    %v277 = vld [vmem:[#allocation5 + $0x4b0] sm:$0xff]
    %v278 = vld [vmem:[#allocation5 + $0x4b8] sm:$0xff]
    %v279 = vld [vmem:[#allocation5 + $0x4c0] sm:$0xff]
    %v280 = vld [vmem:[#allocation5 + $0x4c8] sm:$0xff]
    %v281 = vld [vmem:[#allocation5 + $0x4d0] sm:$0xff]
    %v282 = vld [vmem:[#allocation5 + $0x4d8] sm:$0xff]
    %v283 = vld [vmem:[#allocation5 + $0x4e0] sm:$0xff]
    %v284 = vld [vmem:[#allocation5 + $0x4e8] sm:$0xff]
    %v285 = vld [vmem:[#allocation5 + $0x4f0] sm:$0xff]
    %v286 = vld [vmem:[#allocation5 + $0x4f8] sm:$0xff]
    %v287 = vld [vmem:[#allocation5 + $0x500] sm:$0xff]
    %v288 = vld [vmem:[#allocation5 + $0x508] sm:$0xff]
    %v289 = vld [vmem:[#allocation5 + $0x510] sm:$0xff]
    %v290 = vld [vmem:[#allocation5 + $0x518] sm:$0xff]
    %v291 = vld [vmem:[#allocation5 + $0x520] sm:$0xff]
    %v292 = vld [vmem:[#allocation5 + $0x528] sm:$0xff]
    %v293 = vld [vmem:[#allocation5 + $0x530] sm:$0xff]
    %v294 = vld [vmem:[#allocation5 + $0x538] sm:$0xff]
    %v295 = vld [vmem:[#allocation5 + $0x540] sm:$0xff]
    %v296 = vld [vmem:[#allocation5 + $0x548] sm:$0xff]
    %v297 = vld [vmem:[#allocation5 + $0x550] sm:$0xff]
    %v298 = vld [vmem:[#allocation5 + $0x558] sm:$0xff]
    %v299 = vld [vmem:[#allocation5 + $0x560] sm:$0xff]
    %v300 = vld [vmem:[#allocation5 + $0x568] sm:$0xff]
    %v301 = vld [vmem:[#allocation5 + $0x570] sm:$0xff]
    %v302 = vld [vmem:[#allocation5 + $0x578] sm:$0xff]
    %v303 = vld [vmem:[#allocation5 + $0x580] sm:$0xff]
    %v304 = vld [vmem:[#allocation5 + $0x588] sm:$0xff]
    %v305 = vld [vmem:[#allocation5 + $0x590] sm:$0xff]
    %v306 = vld [vmem:[#allocation5 + $0x598] sm:$0xff]
    %v307 = vld [vmem:[#allocation5 + $0x5a0] sm:$0xff]
    %v308 = vld [vmem:[#allocation5 + $0x5a8] sm:$0xff]
    %v309 = vld [vmem:[#allocation5 + $0x5b0] sm:$0xff]
    %v310 = vld [vmem:[#allocation5 + $0x5b8] sm:$0xff]
    %v311 = vld [vmem:[#allocation5 + $0x5c0] sm:$0xff]
    %v312 = vld [vmem:[#allocation5 + $0x5c8] sm:$0xff]
    %v313 = vld [vmem:[#allocation5 + $0x5d0] sm:$0xff]
    %v314 = vld [vmem:[#allocation5 + $0x5d8] sm:$0xff]
    %v315 = vld [vmem:[#allocation5 + $0x5e0] sm:$0xff]
    %v316 = vld [vmem:[#allocation5 + $0x5e8] sm:$0xff]
    %v317 = vld [vmem:[#allocation5 + $0x5f0] sm:$0xff]
    %v318 = vld [vmem:[#allocation5 + $0x5f8] sm:$0xff]
    %v319 = vld [vmem:[#allocation5 + $0x600] sm:$0xff]
    %v320 = vld [vmem:[#allocation5 + $0x608] sm:$0xff]
    %v321 = vld [vmem:[#allocation5 + $0x610] sm:$0xff]
    %v322 = vld [vmem:[#allocation5 + $0x618] sm:$0xff]
    %v323 = vld [vmem:[#allocation5 + $0x620] sm:$0xff]
    %v324 = vld [vmem:[#allocation5 + $0x628] sm:$0xff]
    %v325 = vld [vmem:[#allocation5 + $0x630] sm:$0xff]
    %v326 = vld [vmem:[#allocation5 + $0x638] sm:$0xff]
    %v327 = vld [vmem:[#allocation5 + $0x640] sm:$0xff]
    %v328 = vld [vmem:[#allocation5 + $0x648] sm:$0xff]
    %v329 = vld [vmem:[#allocation5 + $0x650] sm:$0xff]
    %v330 = vld [vmem:[#allocation5 + $0x658] sm:$0xff]
    %v331 = vld [vmem:[#allocation5 + $0x660] sm:$0xff]
    %v332 = vld [vmem:[#allocation5 + $0x668] sm:$0xff]
    %v333 = vld [vmem:[#allocation5 + $0x670] sm:$0xff]
    %v334 = vld [vmem:[#allocation5 + $0x678] sm:$0xff]
    %v335 = vld [vmem:[#allocation5 + $0x680] sm:$0xff]
    %v336 = vld [vmem:[#allocation5 + $0x688] sm:$0xff]
    %v337 = vld [vmem:[#allocation5 + $0x690] sm:$0xff]
    %v338 = vld [vmem:[#allocation5 + $0x698] sm:$0xff]
    %v339 = vld [vmem:[#allocation5 + $0x6a0] sm:$0xff]
    %v340 = vld [vmem:[#allocation5 + $0x6a8] sm:$0xff]
    %v341 = vld [vmem:[#allocation5 + $0x6b0] sm:$0xff]
    %v342 = vld [vmem:[#allocation5 + $0x6b8] sm:$0xff]
    %v343 = vld [vmem:[#allocation5 + $0x6c0] sm:$0xff]
    %v344 = vld [vmem:[#allocation5 + $0x6c8] sm:$0xff]
    %v345 = vld [vmem:[#allocation5 + $0x6d0] sm:$0xff]
    %v346 = vld [vmem:[#allocation5 + $0x6d8] sm:$0xff]
    %v347 = vld [vmem:[#allocation5 + $0x6e0] sm:$0xff]
    %v348 = vld [vmem:[#allocation5 + $0x6e8] sm:$0xff]
    %v349 = vld [vmem:[#allocation5 + $0x6f0] sm:$0xff]
    %v350 = vld [vmem:[#allocation5 + $0x6f8] sm:$0xff]
    %v351 = vld [vmem:[#allocation5 + $0x700] sm:$0xff]
    %v352 = vld [vmem:[#allocation5 + $0x708] sm:$0xff]
    %v353 = vld [vmem:[#allocation5 + $0x710] sm:$0xff]
    %v354 = vld [vmem:[#allocation5 + $0x718] sm:$0xff]
    %v355 = vld [vmem:[#allocation5 + $0x720] sm:$0xff]
    %v356 = vld [vmem:[#allocation5 + $0x728] sm:$0xff]
    %v357 = vld [vmem:[#allocation5 + $0x730] sm:$0xff]
    %v358 = vld [vmem:[#allocation5 + $0x738] sm:$0xff]
    %v359 = vld [vmem:[#allocation5 + $0x740] sm:$0xff]
    %v360 = vld [vmem:[#allocation5 + $0x748] sm:$0xff]
    %v361 = vld [vmem:[#allocation5 + $0x750] sm:$0xff]
    %v362 = vld [vmem:[#allocation5 + $0x758] sm:$0xff]
    %v363 = vld [vmem:[#allocation5 + $0x760] sm:$0xff]
    %v364 = vld [vmem:[#allocation5 + $0x768] sm:$0xff]
    %v365 = vld [vmem:[#allocation5 + $0x770] sm:$0xff]
    %v366 = vld [vmem:[#allocation5 + $0x778] sm:$0xff]
    %v367 = vld [vmem:[#allocation5 + $0x780] sm:$0xff]
    %v368 = vld [vmem:[#allocation5 + $0x788] sm:$0xff]
    %v369 = vld [vmem:[#allocation5 + $0x790] sm:$0xff]
    %v370 = vld [vmem:[#allocation5 + $0x798] sm:$0xff]
    %v371 = vld [vmem:[#allocation5 + $0x7a0] sm:$0xff]
    %v372 = vld [vmem:[#allocation5 + $0x7a8] sm:$0xff]
    %v373 = vld [vmem:[#allocation5 + $0x7b0] sm:$0xff]
    %v374 = vld [vmem:[#allocation5 + $0x7b8] sm:$0xff]
    %v375 = vld [vmem:[#allocation5 + $0x7c0] sm:$0xff]
    %v376 = vld [vmem:[#allocation5 + $0x7c8] sm:$0xff]
    %v377 = vld [vmem:[#allocation5 + $0x7d0] sm:$0xff]
    %v378 = vld [vmem:[#allocation5 + $0x7d8] sm:$0xff]
    %v379 = vld [vmem:[#allocation5 + $0x7e0] sm:$0xff]
    %v380 = vld [vmem:[#allocation5 + $0x7e8] sm:$0xff]
    %v381 = vld [vmem:[#allocation5 + $0x7f0] sm:$0xff]
    %v382 = vld [vmem:[#allocation5 + $0x7f8] sm:$0xff]
    %v383 = vld [vmem:[#allocation5 + $0x800] sm:$0xff]
    %v384 = vld [vmem:[#allocation5 + $0x808] sm:$0xff]
    %v385 = vld [vmem:[#allocation5 + $0x810] sm:$0xff]
    %v386 = vld [vmem:[#allocation5 + $0x818] sm:$0xff]
    %v387 = vld [vmem:[#allocation5 + $0x820] sm:$0xff]
    %v388 = vld [vmem:[#allocation5 + $0x828] sm:$0xff]
    %v389 = vld [vmem:[#allocation5 + $0x830] sm:$0xff]
    %v390 = vld [vmem:[#allocation5 + $0x838] sm:$0xff]
    %v391 = vld [vmem:[#allocation5 + $0x840] sm:$0xff]
    %v392 = vld [vmem:[#allocation5 + $0x848] sm:$0xff]
    %v393 = vld [vmem:[#allocation5 + $0x850] sm:$0xff]
    %v394 = vld [vmem:[#allocation5 + $0x858] sm:$0xff]
    %v395 = vld [vmem:[#allocation5 + $0x860] sm:$0xff]
    %v396 = vld [vmem:[#allocation5 + $0x868] sm:$0xff]
    %v397 = vld [vmem:[#allocation5 + $0x870] sm:$0xff]
    %v398 = vld [vmem:[#allocation5 + $0x878] sm:$0xff]
    %v399 = vld [vmem:[#allocation5 + $0x880] sm:$0xff]
    %v400 = vld [vmem:[#allocation5 + $0x888] sm:$0xff]
    %v401 = vld [vmem:[#allocation5 + $0x890] sm:$0xff]
    %v402 = vld [vmem:[#allocation5 + $0x898] sm:$0xff]
    %v403 = vld [vmem:[#allocation5 + $0x8a0] sm:$0xff]
    %v404 = vld [vmem:[#allocation5 + $0x8a8] sm:$0xff]
    %v405 = vld [vmem:[#allocation5 + $0x8b0] sm:$0xff]
    %v406 = vld [vmem:[#allocation5 + $0x8b8] sm:$0xff]
    %v407 = vld [vmem:[#allocation5 + $0x8c0] sm:$0xff]
    %v408 = vld [vmem:[#allocation5 + $0x8c8] sm:$0xff]
    %v409 = vld [vmem:[#allocation5 + $0x8d0] sm:$0xff]
    %v410 = vld [vmem:[#allocation5 + $0x8d8] sm:$0xff]
    %v411 = vld [vmem:[#allocation5 + $0x8e0] sm:$0xff]
    %v412 = vld [vmem:[#allocation5 + $0x8e8] sm:$0xff]
    %v413 = vld [vmem:[#allocation5 + $0x8f0] sm:$0xff]
    %v414 = vld [vmem:[#allocation5 + $0x8f8] sm:$0xff]
    %v415 = vld [vmem:[#allocation7] sm:$0xff]
    %v416 = vld [vmem:[#allocation7 + $0x8] sm:$0xf]
    %v419 = vperm.slane %v415, 0
    %v420 = vperm.slane %v415, 1
    %v421 = vperm.slane %v415, 2
    %v422 = vperm.slane %v415, 3
    %v423 = vperm.slane %v415, 4
    %v424 = vperm.slane %v415, 5
    %v425 = vperm.slane %v415, 6
    %v426 = vperm.slane %v415, 7
    %v427 = vperm.slane %v416, 0
    %v428 = vperm.slane %v416, 1
    %v429 = vperm.slane %v416, 2
    %v430 = vperm.slane %v416, 3
    %v475 = vunpack.c.l.b16 %v95
    %v476 = vunpack.c.h.b16 %v95
    %v477 = vunpack.c.l.b16 %v96
    %v478 = vunpack.c.l.b16 %v97
    %v479 = vunpack.c.h.b16 %v97
    %v480 = vunpack.c.l.b16 %v98
    %v481 = vunpack.c.l.b16 %v99
    %v482 = vunpack.c.h.b16 %v99
    %v483 = vunpack.c.l.b16 %v100
    %v484 = vunpack.c.l.b16 %v101
    %v485 = vunpack.c.h.b16 %v101
    %v486 = vunpack.c.l.b16 %v102
    %v487 = vunpack.c.l.b16 %v103
    %v488 = vunpack.c.h.b16 %v103
    %v489 = vunpack.c.l.b16 %v104
    %v490 = vunpack.c.l.b16 %v105
    %v491 = vunpack.c.h.b16 %v105
    %v492 = vunpack.c.l.b16 %v106
    %v493 = vunpack.c.l.b16 %v107
    %v494 = vunpack.c.h.b16 %v107
    %v495 = vunpack.c.l.b16 %v108
    %v496 = vunpack.c.l.b16 %v109
    %v497 = vunpack.c.h.b16 %v109
    %v498 = vunpack.c.l.b16 %v110
    %v499 = vunpack.c.l.b16 %v111
    %v500 = vunpack.c.h.b16 %v111
    %v501 = vunpack.c.l.b16 %v112
    %v502 = vunpack.c.l.b16 %v113
    %v503 = vunpack.c.h.b16 %v113
    %v504 = vunpack.c.l.b16 %v114
    %v505 = vunpack.c.l.b16 %v115
    %v506 = vunpack.c.h.b16 %v115
    %v507 = vunpack.c.l.b16 %v116
    %v508 = vunpack.c.l.b16 %v117
    %v509 = vunpack.c.h.b16 %v117
    %v510 = vunpack.c.l.b16 %v118
    %v511 = vunpack.c.l.b16 %v119
    %v512 = vunpack.c.h.b16 %v119
    %v513 = vunpack.c.l.b16 %v120
    %v514 = vunpack.c.l.b16 %v121
    %v515 = vunpack.c.h.b16 %v121
    %v516 = vunpack.c.l.b16 %v122
    %v517 = vunpack.c.l.b16 %v123
    %v518 = vunpack.c.h.b16 %v123
    %v519 = vunpack.c.l.b16 %v124
    %v520 = vunpack.c.l.b16 %v125
    %v521 = vunpack.c.h.b16 %v125
    %v522 = vunpack.c.l.b16 %v126
    %v523 = vpack.c.b16 %v478, %v475
    %v524 = vpack.c.b16 %v479, %v476
    %v525 = vpack.c.b16 %v480, %v477
    %v526 = vpack.c.b16 %v484, %v481
    %v527 = vpack.c.b16 %v485, %v482
    %v528 = vpack.c.b16 %v486, %v483
    %v529 = vpack.c.b16 %v490, %v487
    %v530 = vpack.c.b16 %v491, %v488
    %v531 = vpack.c.b16 %v492, %v489
    %v532 = vpack.c.b16 %v496, %v493
    %v533 = vpack.c.b16 %v497, %v494
    %v534 = vpack.c.b16 %v498, %v495
    %v535 = vpack.c.b16 %v502, %v499
    %v536 = vpack.c.b16 %v503, %v500
    %v537 = vpack.c.b16 %v504, %v501
    %v538 = vpack.c.b16 %v508, %v505
    %v539 = vpack.c.b16 %v509, %v506
    %v540 = vpack.c.b16 %v510, %v507
    %v541 = vpack.c.b16 %v514, %v511
    %v542 = vpack.c.b16 %v515, %v512
    %v543 = vpack.c.b16 %v516, %v513
    %v544 = vpack.c.b16 %v520, %v517
    %v545 = vpack.c.b16 %v521, %v518
    %v546 = vpack.c.b16 %v522, %v519
    %v859 = vunpack.c.l.b16 %v127
    %v860 = vunpack.c.h.b16 %v127
    %v861 = vunpack.c.l.b16 %v128
    %v862 = vunpack.c.h.b16 %v128
    %v863 = vunpack.c.l.b16 %v129
    %v864 = vunpack.c.h.b16 %v129
    %v865 = vunpack.c.l.b16 %v130
    %v866 = vunpack.c.h.b16 %v130
    %v867 = vunpack.c.l.b16 %v131
    %v868 = vunpack.c.h.b16 %v131
    %v869 = vunpack.c.l.b16 %v132
    %v870 = vunpack.c.h.b16 %v132
    %v871 = vunpack.c.l.b16 %v133
    %v872 = vunpack.c.h.b16 %v133
    %v873 = vunpack.c.l.b16 %v134
    %v874 = vunpack.c.h.b16 %v134
    %v875 = vunpack.c.l.b16 %v135
    %v876 = vunpack.c.h.b16 %v135
    %v877 = vunpack.c.l.b16 %v136
    %v878 = vunpack.c.h.b16 %v136
    %v879 = vunpack.c.l.b16 %v137
    %v880 = vunpack.c.h.b16 %v137
    %v881 = vunpack.c.l.b16 %v138
    %v882 = vunpack.c.h.b16 %v138
    %v883 = vunpack.c.l.b16 %v139
    %v884 = vunpack.c.h.b16 %v139
    %v885 = vunpack.c.l.b16 %v140
    %v886 = vunpack.c.h.b16 %v140
    %v887 = vunpack.c.l.b16 %v141
    %v888 = vunpack.c.h.b16 %v141
    %v889 = vunpack.c.l.b16 %v142
    %v890 = vunpack.c.h.b16 %v142
    %v891 = vunpack.c.l.b16 %v143
    %v892 = vunpack.c.h.b16 %v143
    %v893 = vunpack.c.l.b16 %v144
    %v894 = vunpack.c.h.b16 %v144
    %v895 = vunpack.c.l.b16 %v145
    %v896 = vunpack.c.h.b16 %v145
    %v897 = vunpack.c.l.b16 %v146
    %v898 = vunpack.c.h.b16 %v146
    %v899 = vunpack.c.l.b16 %v147
    %v900 = vunpack.c.h.b16 %v147
    %v901 = vunpack.c.l.b16 %v148
    %v902 = vunpack.c.h.b16 %v148
    %v903 = vunpack.c.l.b16 %v149
    %v904 = vunpack.c.h.b16 %v149
    %v905 = vunpack.c.l.b16 %v150
    %v906 = vunpack.c.h.b16 %v150
    %v907 = vunpack.c.l.b16 %v151
    %v908 = vunpack.c.h.b16 %v151
    %v909 = vunpack.c.l.b16 %v152
    %v910 = vunpack.c.h.b16 %v152
    %v911 = vunpack.c.l.b16 %v153
    %v912 = vunpack.c.h.b16 %v153
    %v913 = vunpack.c.l.b16 %v154
    %v914 = vunpack.c.h.b16 %v154
    %v915 = vunpack.c.l.b16 %v155
    %v916 = vunpack.c.h.b16 %v155
    %v917 = vunpack.c.l.b16 %v156
    %v918 = vunpack.c.h.b16 %v156
    %v919 = vunpack.c.l.b16 %v157
    %v920 = vunpack.c.h.b16 %v157
    %v921 = vunpack.c.l.b16 %v158
    %v922 = vunpack.c.h.b16 %v158
    %v923 = vunpack.c.l.b16 %v159
    %v924 = vunpack.c.h.b16 %v159
    %v925 = vunpack.c.l.b16 %v160
    %v926 = vunpack.c.h.b16 %v160
    %v927 = vunpack.c.l.b16 %v161
    %v928 = vunpack.c.h.b16 %v161
    %v929 = vunpack.c.l.b16 %v162
    %v930 = vunpack.c.h.b16 %v162
    %v931 = vunpack.c.l.b16 %v163
    %v932 = vunpack.c.h.b16 %v163
    %v933 = vunpack.c.l.b16 %v164
    %v934 = vunpack.c.h.b16 %v164
    %v935 = vunpack.c.l.b16 %v165
    %v936 = vunpack.c.h.b16 %v165
    %v937 = vunpack.c.l.b16 %v166
    %v938 = vunpack.c.h.b16 %v166
    %v939 = vunpack.c.l.b16 %v167
    %v940 = vunpack.c.h.b16 %v167
    %v941 = vunpack.c.l.b16 %v168
    %v942 = vunpack.c.h.b16 %v168
    %v943 = vunpack.c.l.b16 %v169
    %v944 = vunpack.c.h.b16 %v169
    %v945 = vunpack.c.l.b16 %v170
    %v946 = vunpack.c.h.b16 %v170
    %v947 = vunpack.c.l.b16 %v171
    %v948 = vunpack.c.h.b16 %v171
    %v949 = vunpack.c.l.b16 %v172
    %v950 = vunpack.c.h.b16 %v172
    %v951 = vunpack.c.l.b16 %v173
    %v952 = vunpack.c.h.b16 %v173
    %v953 = vunpack.c.l.b16 %v174
    %v954 = vunpack.c.h.b16 %v174
    %v955 = vunpack.c.l.b16 %v175
    %v956 = vunpack.c.h.b16 %v175
    %v957 = vunpack.c.l.b16 %v176
    %v958 = vunpack.c.h.b16 %v176
    %v959 = vunpack.c.l.b16 %v177
    %v960 = vunpack.c.h.b16 %v177
    %v961 = vunpack.c.l.b16 %v178
    %v962 = vunpack.c.h.b16 %v178
    %v963 = vunpack.c.l.b16 %v179
    %v964 = vunpack.c.h.b16 %v179
    %v965 = vunpack.c.l.b16 %v180
    %v966 = vunpack.c.h.b16 %v180
    %v967 = vunpack.c.l.b16 %v181
    %v968 = vunpack.c.h.b16 %v181
    %v969 = vunpack.c.l.b16 %v182
    %v970 = vunpack.c.h.b16 %v182
    %v971 = vunpack.c.l.b16 %v183
    %v972 = vunpack.c.h.b16 %v183
    %v973 = vunpack.c.l.b16 %v184
    %v974 = vunpack.c.h.b16 %v184
    %v975 = vunpack.c.l.b16 %v185
    %v976 = vunpack.c.h.b16 %v185
    %v977 = vunpack.c.l.b16 %v186
    %v978 = vunpack.c.h.b16 %v186
    %v979 = vunpack.c.l.b16 %v187
    %v980 = vunpack.c.h.b16 %v187
    %v981 = vunpack.c.l.b16 %v188
    %v982 = vunpack.c.h.b16 %v188
    %v983 = vunpack.c.l.b16 %v189
    %v984 = vunpack.c.h.b16 %v189
    %v985 = vunpack.c.l.b16 %v190
    %v986 = vunpack.c.h.b16 %v190
    %v987 = vunpack.c.l.b16 %v191
    %v988 = vunpack.c.h.b16 %v191
    %v989 = vunpack.c.l.b16 %v192
    %v990 = vunpack.c.h.b16 %v192
    %v991 = vunpack.c.l.b16 %v193
    %v992 = vunpack.c.h.b16 %v193
    %v993 = vunpack.c.l.b16 %v194
    %v994 = vunpack.c.h.b16 %v194
    %v995 = vunpack.c.l.b16 %v195
    %v996 = vunpack.c.h.b16 %v195
    %v997 = vunpack.c.l.b16 %v196
    %v998 = vunpack.c.h.b16 %v196
    %v999 = vunpack.c.l.b16 %v197
    %v1000 = vunpack.c.h.b16 %v197
    %v1001 = vunpack.c.l.b16 %v198
    %v1002 = vunpack.c.h.b16 %v198
    %v1003 = vunpack.c.l.b16 %v199
    %v1004 = vunpack.c.h.b16 %v199
    %v1005 = vunpack.c.l.b16 %v200
    %v1006 = vunpack.c.h.b16 %v200
    %v1007 = vunpack.c.l.b16 %v201
    %v1008 = vunpack.c.h.b16 %v201
    %v1009 = vunpack.c.l.b16 %v202
    %v1010 = vunpack.c.h.b16 %v202
    %v1011 = vunpack.c.l.b16 %v203
    %v1012 = vunpack.c.h.b16 %v203
    %v1013 = vunpack.c.l.b16 %v204
    %v1014 = vunpack.c.h.b16 %v204
    %v1015 = vunpack.c.l.b16 %v205
    %v1016 = vunpack.c.h.b16 %v205
    %v1017 = vunpack.c.l.b16 %v206
    %v1018 = vunpack.c.h.b16 %v206
    %v1019 = vunpack.c.l.b16 %v207
    %v1020 = vunpack.c.h.b16 %v207
    %v1021 = vunpack.c.l.b16 %v208
    %v1022 = vunpack.c.h.b16 %v208
    %v1023 = vunpack.c.l.b16 %v209
    %v1024 = vunpack.c.h.b16 %v209
    %v1025 = vunpack.c.l.b16 %v210
    %v1026 = vunpack.c.h.b16 %v210
    %v1027 = vunpack.c.l.b16 %v211
    %v1028 = vunpack.c.h.b16 %v211
    %v1029 = vunpack.c.l.b16 %v212
    %v1030 = vunpack.c.h.b16 %v212
    %v1031 = vunpack.c.l.b16 %v213
    %v1032 = vunpack.c.h.b16 %v213
    %v1033 = vunpack.c.l.b16 %v214
    %v1034 = vunpack.c.h.b16 %v214
    %v1035 = vunpack.c.l.b16 %v215
    %v1036 = vunpack.c.h.b16 %v215
    %v1037 = vunpack.c.l.b16 %v216
    %v1038 = vunpack.c.h.b16 %v216
    %v1039 = vunpack.c.l.b16 %v217
    %v1040 = vunpack.c.h.b16 %v217
    %v1041 = vunpack.c.l.b16 %v218
    %v1042 = vunpack.c.h.b16 %v218
    %v1043 = vunpack.c.l.b16 %v219
    %v1044 = vunpack.c.h.b16 %v219
    %v1045 = vunpack.c.l.b16 %v220
    %v1046 = vunpack.c.h.b16 %v220
    %v1047 = vunpack.c.l.b16 %v221
    %v1048 = vunpack.c.h.b16 %v221
    %v1049 = vunpack.c.l.b16 %v222
    %v1050 = vunpack.c.h.b16 %v222
    %v1051 = vunpack.c.l.b16 %v223
    %v1052 = vunpack.c.h.b16 %v223
    %v1053 = vunpack.c.l.b16 %v224
    %v1054 = vunpack.c.h.b16 %v224
    %v1055 = vunpack.c.l.b16 %v225
    %v1056 = vunpack.c.h.b16 %v225
    %v1057 = vunpack.c.l.b16 %v226
    %v1058 = vunpack.c.h.b16 %v226
    %v1059 = vunpack.c.l.b16 %v227
    %v1060 = vunpack.c.h.b16 %v227
    %v1061 = vunpack.c.l.b16 %v228
    %v1062 = vunpack.c.h.b16 %v228
    %v1063 = vunpack.c.l.b16 %v229
    %v1064 = vunpack.c.h.b16 %v229
    %v1065 = vunpack.c.l.b16 %v230
    %v1066 = vunpack.c.h.b16 %v230
    %v1067 = vunpack.c.l.b16 %v231
    %v1068 = vunpack.c.h.b16 %v231
    %v1069 = vunpack.c.l.b16 %v232
    %v1070 = vunpack.c.h.b16 %v232
    %v1071 = vunpack.c.l.b16 %v233
    %v1072 = vunpack.c.h.b16 %v233
    %v1073 = vunpack.c.l.b16 %v234
    %v1074 = vunpack.c.h.b16 %v234
    %v1075 = vunpack.c.l.b16 %v235
    %v1076 = vunpack.c.h.b16 %v235
    %v1077 = vunpack.c.l.b16 %v236
    %v1078 = vunpack.c.h.b16 %v236
    %v1079 = vunpack.c.l.b16 %v237
    %v1080 = vunpack.c.h.b16 %v237
    %v1081 = vunpack.c.l.b16 %v238
    %v1082 = vunpack.c.h.b16 %v238
    %v1083 = vunpack.c.l.b16 %v239
    %v1084 = vunpack.c.h.b16 %v239
    %v1085 = vunpack.c.l.b16 %v240
    %v1086 = vunpack.c.h.b16 %v240
    %v1087 = vunpack.c.l.b16 %v241
    %v1088 = vunpack.c.h.b16 %v241
    %v1089 = vunpack.c.l.b16 %v242
    %v1090 = vunpack.c.h.b16 %v242
    %v1091 = vunpack.c.l.b16 %v243
    %v1092 = vunpack.c.h.b16 %v243
    %v1093 = vunpack.c.l.b16 %v244
    %v1094 = vunpack.c.h.b16 %v244
    %v1095 = vunpack.c.l.b16 %v245
    %v1096 = vunpack.c.h.b16 %v245
    %v1097 = vunpack.c.l.b16 %v246
    %v1098 = vunpack.c.h.b16 %v246
    %v1099 = vunpack.c.l.b16 %v247
    %v1100 = vunpack.c.h.b16 %v247
    %v1101 = vunpack.c.l.b16 %v248
    %v1102 = vunpack.c.h.b16 %v248
    %v1103 = vunpack.c.l.b16 %v249
    %v1104 = vunpack.c.h.b16 %v249
    %v1105 = vunpack.c.l.b16 %v250
    %v1106 = vunpack.c.h.b16 %v250
    %v1107 = vunpack.c.l.b16 %v251
    %v1108 = vunpack.c.h.b16 %v251
    %v1109 = vunpack.c.l.b16 %v252
    %v1110 = vunpack.c.h.b16 %v252
    %v1111 = vunpack.c.l.b16 %v253
    %v1112 = vunpack.c.h.b16 %v253
    %v1113 = vunpack.c.l.b16 %v254
    %v1114 = vunpack.c.h.b16 %v254
    %v1115 = vunpack.c.l.b16 %v255
    %v1116 = vunpack.c.h.b16 %v255
    %v1117 = vunpack.c.l.b16 %v256
    %v1118 = vunpack.c.h.b16 %v256
    %v1119 = vunpack.c.l.b16 %v257
    %v1120 = vunpack.c.h.b16 %v257
    %v1121 = vunpack.c.l.b16 %v258
    %v1122 = vunpack.c.h.b16 %v258
    %v1123 = vunpack.c.l.b16 %v259
    %v1124 = vunpack.c.h.b16 %v259
    %v1125 = vunpack.c.l.b16 %v260
    %v1126 = vunpack.c.h.b16 %v260
    %v1127 = vunpack.c.l.b16 %v261
    %v1128 = vunpack.c.h.b16 %v261
    %v1129 = vunpack.c.l.b16 %v262
    %v1130 = vunpack.c.h.b16 %v262
    %v1131 = vunpack.c.l.b16 %v263
    %v1132 = vunpack.c.h.b16 %v263
    %v1133 = vunpack.c.l.b16 %v264
    %v1134 = vunpack.c.h.b16 %v264
    %v1135 = vunpack.c.l.b16 %v265
    %v1136 = vunpack.c.h.b16 %v265
    %v1137 = vunpack.c.l.b16 %v266
    %v1138 = vunpack.c.h.b16 %v266
    %v1139 = vunpack.c.l.b16 %v267
    %v1140 = vunpack.c.h.b16 %v267
    %v1141 = vunpack.c.l.b16 %v268
    %v1142 = vunpack.c.h.b16 %v268
    %v1143 = vunpack.c.l.b16 %v269
    %v1144 = vunpack.c.h.b16 %v269
    %v1145 = vunpack.c.l.b16 %v270
    %v1146 = vunpack.c.h.b16 %v270
    %v1147 = vunpack.c.l.b16 %v271
    %v1148 = vunpack.c.h.b16 %v271
    %v1149 = vunpack.c.l.b16 %v272
    %v1150 = vunpack.c.h.b16 %v272
    %v1151 = vunpack.c.l.b16 %v273
    %v1152 = vunpack.c.h.b16 %v273
    %v1153 = vunpack.c.l.b16 %v274
    %v1154 = vunpack.c.h.b16 %v274
    %v1155 = vunpack.c.l.b16 %v275
    %v1156 = vunpack.c.h.b16 %v275
    %v1157 = vunpack.c.l.b16 %v276
    %v1158 = vunpack.c.h.b16 %v276
    %v1159 = vunpack.c.l.b16 %v277
    %v1160 = vunpack.c.h.b16 %v277
    %v1161 = vunpack.c.l.b16 %v278
    %v1162 = vunpack.c.h.b16 %v278
    %v1163 = vunpack.c.l.b16 %v279
    %v1164 = vunpack.c.h.b16 %v279
    %v1165 = vunpack.c.l.b16 %v280
    %v1166 = vunpack.c.h.b16 %v280
    %v1167 = vunpack.c.l.b16 %v281
    %v1168 = vunpack.c.h.b16 %v281
    %v1169 = vunpack.c.l.b16 %v282
    %v1170 = vunpack.c.h.b16 %v282
    %v1171 = vunpack.c.l.b16 %v283
    %v1172 = vunpack.c.h.b16 %v283
    %v1173 = vunpack.c.l.b16 %v284
    %v1174 = vunpack.c.h.b16 %v284
    %v1175 = vunpack.c.l.b16 %v285
    %v1176 = vunpack.c.h.b16 %v285
    %v1177 = vunpack.c.l.b16 %v286
    %v1178 = vunpack.c.h.b16 %v286
    %v1179 = vunpack.c.l.b16 %v287
    %v1180 = vunpack.c.h.b16 %v287
    %v1181 = vunpack.c.l.b16 %v288
    %v1182 = vunpack.c.h.b16 %v288
    %v1183 = vunpack.c.l.b16 %v289
    %v1184 = vunpack.c.h.b16 %v289
    %v1185 = vunpack.c.l.b16 %v290
    %v1186 = vunpack.c.h.b16 %v290
    %v1187 = vunpack.c.l.b16 %v291
    %v1188 = vunpack.c.h.b16 %v291
    %v1189 = vunpack.c.l.b16 %v292
    %v1190 = vunpack.c.h.b16 %v292
    %v1191 = vunpack.c.l.b16 %v293
    %v1192 = vunpack.c.h.b16 %v293
    %v1193 = vunpack.c.l.b16 %v294
    %v1194 = vunpack.c.h.b16 %v294
    %v1195 = vunpack.c.l.b16 %v295
    %v1196 = vunpack.c.h.b16 %v295
    %v1197 = vunpack.c.l.b16 %v296
    %v1198 = vunpack.c.h.b16 %v296
    %v1199 = vunpack.c.l.b16 %v297
    %v1200 = vunpack.c.h.b16 %v297
    %v1201 = vunpack.c.l.b16 %v298
    %v1202 = vunpack.c.h.b16 %v298
    %v1203 = vunpack.c.l.b16 %v299
    %v1204 = vunpack.c.h.b16 %v299
    %v1205 = vunpack.c.l.b16 %v300
    %v1206 = vunpack.c.h.b16 %v300
    %v1207 = vunpack.c.l.b16 %v301
    %v1208 = vunpack.c.h.b16 %v301
    %v1209 = vunpack.c.l.b16 %v302
    %v1210 = vunpack.c.h.b16 %v302
    %v1211 = vunpack.c.l.b16 %v303
    %v1212 = vunpack.c.h.b16 %v303
    %v1213 = vunpack.c.l.b16 %v304
    %v1214 = vunpack.c.h.b16 %v304
    %v1215 = vunpack.c.l.b16 %v305
    %v1216 = vunpack.c.h.b16 %v305
    %v1217 = vunpack.c.l.b16 %v306
    %v1218 = vunpack.c.h.b16 %v306
    %v1219 = vunpack.c.l.b16 %v307
    %v1220 = vunpack.c.h.b16 %v307
    %v1221 = vunpack.c.l.b16 %v308
    %v1222 = vunpack.c.h.b16 %v308
    %v1223 = vunpack.c.l.b16 %v309
    %v1224 = vunpack.c.h.b16 %v309
    %v1225 = vunpack.c.l.b16 %v310
    %v1226 = vunpack.c.h.b16 %v310
    %v1227 = vunpack.c.l.b16 %v311
    %v1228 = vunpack.c.h.b16 %v311
    %v1229 = vunpack.c.l.b16 %v312
    %v1230 = vunpack.c.h.b16 %v312
    %v1231 = vunpack.c.l.b16 %v313
    %v1232 = vunpack.c.h.b16 %v313
    %v1233 = vunpack.c.l.b16 %v314
    %v1234 = vunpack.c.h.b16 %v314
    %v1235 = vunpack.c.l.b16 %v315
    %v1236 = vunpack.c.h.b16 %v315
    %v1237 = vunpack.c.l.b16 %v316
    %v1238 = vunpack.c.h.b16 %v316
    %v1239 = vunpack.c.l.b16 %v317
    %v1240 = vunpack.c.h.b16 %v317
    %v1241 = vunpack.c.l.b16 %v318
    %v1242 = vunpack.c.h.b16 %v318
    %v1243 = vunpack.c.l.b16 %v319
    %v1244 = vunpack.c.h.b16 %v319
    %v1245 = vunpack.c.l.b16 %v320
    %v1246 = vunpack.c.h.b16 %v320
    %v1247 = vunpack.c.l.b16 %v321
    %v1248 = vunpack.c.h.b16 %v321
    %v1249 = vunpack.c.l.b16 %v322
    %v1250 = vunpack.c.h.b16 %v322
    %v1251 = vunpack.c.l.b16 %v323
    %v1252 = vunpack.c.h.b16 %v323
    %v1253 = vunpack.c.l.b16 %v324
    %v1254 = vunpack.c.h.b16 %v324
    %v1255 = vunpack.c.l.b16 %v325
    %v1256 = vunpack.c.h.b16 %v325
    %v1257 = vunpack.c.l.b16 %v326
    %v1258 = vunpack.c.h.b16 %v326
    %v1259 = vunpack.c.l.b16 %v327
    %v1260 = vunpack.c.h.b16 %v327
    %v1261 = vunpack.c.l.b16 %v328
    %v1262 = vunpack.c.h.b16 %v328
    %v1263 = vunpack.c.l.b16 %v329
    %v1264 = vunpack.c.h.b16 %v329
    %v1265 = vunpack.c.l.b16 %v330
    %v1266 = vunpack.c.h.b16 %v330
    %v1267 = vunpack.c.l.b16 %v331
    %v1268 = vunpack.c.h.b16 %v331
    %v1269 = vunpack.c.l.b16 %v332
    %v1270 = vunpack.c.h.b16 %v332
    %v1271 = vunpack.c.l.b16 %v333
    %v1272 = vunpack.c.h.b16 %v333
    %v1273 = vunpack.c.l.b16 %v334
    %v1274 = vunpack.c.h.b16 %v334
    %v1275 = vunpack.c.l.b16 %v335
    %v1276 = vunpack.c.h.b16 %v335
    %v1277 = vunpack.c.l.b16 %v336
    %v1278 = vunpack.c.h.b16 %v336
    %v1279 = vunpack.c.l.b16 %v337
    %v1280 = vunpack.c.h.b16 %v337
    %v1281 = vunpack.c.l.b16 %v338
    %v1282 = vunpack.c.h.b16 %v338
    %v1283 = vunpack.c.l.b16 %v339
    %v1284 = vunpack.c.h.b16 %v339
    %v1285 = vunpack.c.l.b16 %v340
    %v1286 = vunpack.c.h.b16 %v340
    %v1287 = vunpack.c.l.b16 %v341
    %v1288 = vunpack.c.h.b16 %v341
    %v1289 = vunpack.c.l.b16 %v342
    %v1290 = vunpack.c.h.b16 %v342
    %v1291 = vunpack.c.l.b16 %v343
    %v1292 = vunpack.c.h.b16 %v343
    %v1293 = vunpack.c.l.b16 %v344
    %v1294 = vunpack.c.h.b16 %v344
    %v1295 = vunpack.c.l.b16 %v345
    %v1296 = vunpack.c.h.b16 %v345
    %v1297 = vunpack.c.l.b16 %v346
    %v1298 = vunpack.c.h.b16 %v346
    %v1299 = vunpack.c.l.b16 %v347
    %v1300 = vunpack.c.h.b16 %v347
    %v1301 = vunpack.c.l.b16 %v348
    %v1302 = vunpack.c.h.b16 %v348
    %v1303 = vunpack.c.l.b16 %v349
    %v1304 = vunpack.c.h.b16 %v349
    %v1305 = vunpack.c.l.b16 %v350
    %v1306 = vunpack.c.h.b16 %v350
    %v1307 = vunpack.c.l.b16 %v351
    %v1308 = vunpack.c.h.b16 %v351
    %v1309 = vunpack.c.l.b16 %v352
    %v1310 = vunpack.c.h.b16 %v352
    %v1311 = vunpack.c.l.b16 %v353
    %v1312 = vunpack.c.h.b16 %v353
    %v1313 = vunpack.c.l.b16 %v354
    %v1314 = vunpack.c.h.b16 %v354
    %v1315 = vunpack.c.l.b16 %v355
    %v1316 = vunpack.c.h.b16 %v355
    %v1317 = vunpack.c.l.b16 %v356
    %v1318 = vunpack.c.h.b16 %v356
    %v1319 = vunpack.c.l.b16 %v357
    %v1320 = vunpack.c.h.b16 %v357
    %v1321 = vunpack.c.l.b16 %v358
    %v1322 = vunpack.c.h.b16 %v358
    %v1323 = vunpack.c.l.b16 %v359
    %v1324 = vunpack.c.h.b16 %v359
    %v1325 = vunpack.c.l.b16 %v360
    %v1326 = vunpack.c.h.b16 %v360
    %v1327 = vunpack.c.l.b16 %v361
    %v1328 = vunpack.c.h.b16 %v361
    %v1329 = vunpack.c.l.b16 %v362
    %v1330 = vunpack.c.h.b16 %v362
    %v1331 = vunpack.c.l.b16 %v363
    %v1332 = vunpack.c.h.b16 %v363
    %v1333 = vunpack.c.l.b16 %v364
    %v1334 = vunpack.c.h.b16 %v364
    %v1335 = vunpack.c.l.b16 %v365
    %v1336 = vunpack.c.h.b16 %v365
    %v1337 = vunpack.c.l.b16 %v366
    %v1338 = vunpack.c.h.b16 %v366
    %v1339 = vunpack.c.l.b16 %v367
    %v1340 = vunpack.c.h.b16 %v367
    %v1341 = vunpack.c.l.b16 %v368
    %v1342 = vunpack.c.h.b16 %v368
    %v1343 = vunpack.c.l.b16 %v369
    %v1344 = vunpack.c.h.b16 %v369
    %v1345 = vunpack.c.l.b16 %v370
    %v1346 = vunpack.c.h.b16 %v370
    %v1347 = vunpack.c.l.b16 %v371
    %v1348 = vunpack.c.h.b16 %v371
    %v1349 = vunpack.c.l.b16 %v372
    %v1350 = vunpack.c.h.b16 %v372
    %v1351 = vunpack.c.l.b16 %v373
    %v1352 = vunpack.c.h.b16 %v373
    %v1353 = vunpack.c.l.b16 %v374
    %v1354 = vunpack.c.h.b16 %v374
    %v1355 = vunpack.c.l.b16 %v375
    %v1356 = vunpack.c.h.b16 %v375
    %v1357 = vunpack.c.l.b16 %v376
    %v1358 = vunpack.c.h.b16 %v376
    %v1359 = vunpack.c.l.b16 %v377
    %v1360 = vunpack.c.h.b16 %v377
    %v1361 = vunpack.c.l.b16 %v378
    %v1362 = vunpack.c.h.b16 %v378
    %v1363 = vunpack.c.l.b16 %v379
    %v1364 = vunpack.c.h.b16 %v379
    %v1365 = vunpack.c.l.b16 %v380
    %v1366 = vunpack.c.h.b16 %v380
    %v1367 = vunpack.c.l.b16 %v381
    %v1368 = vunpack.c.h.b16 %v381
    %v1369 = vunpack.c.l.b16 %v382
    %v1370 = vunpack.c.h.b16 %v382
    %v1371 = vunpack.c.l.b16 %v383
    %v1372 = vunpack.c.h.b16 %v383
    %v1373 = vunpack.c.l.b16 %v384
    %v1374 = vunpack.c.h.b16 %v384
    %v1375 = vunpack.c.l.b16 %v385
    %v1376 = vunpack.c.h.b16 %v385
    %v1377 = vunpack.c.l.b16 %v386
    %v1378 = vunpack.c.h.b16 %v386
    %v1379 = vunpack.c.l.b16 %v387
    %v1380 = vunpack.c.h.b16 %v387
    %v1381 = vunpack.c.l.b16 %v388
    %v1382 = vunpack.c.h.b16 %v388
    %v1383 = vunpack.c.l.b16 %v389
    %v1384 = vunpack.c.h.b16 %v389
    %v1385 = vunpack.c.l.b16 %v390
    %v1386 = vunpack.c.h.b16 %v390
    %v1387 = vunpack.c.l.b16 %v391
    %v1388 = vunpack.c.h.b16 %v391
    %v1389 = vunpack.c.l.b16 %v392
    %v1390 = vunpack.c.h.b16 %v392
    %v1391 = vunpack.c.l.b16 %v393
    %v1392 = vunpack.c.h.b16 %v393
    %v1393 = vunpack.c.l.b16 %v394
    %v1394 = vunpack.c.h.b16 %v394
    %v1395 = vunpack.c.l.b16 %v395
    %v1396 = vunpack.c.h.b16 %v395
    %v1397 = vunpack.c.l.b16 %v396
    %v1398 = vunpack.c.h.b16 %v396
    %v1399 = vunpack.c.l.b16 %v397
    %v1400 = vunpack.c.h.b16 %v397
    %v1401 = vunpack.c.l.b16 %v398
    %v1402 = vunpack.c.h.b16 %v398
    %v1403 = vunpack.c.l.b16 %v399
    %v1404 = vunpack.c.h.b16 %v399
    %v1405 = vunpack.c.l.b16 %v400
    %v1406 = vunpack.c.h.b16 %v400
    %v1407 = vunpack.c.l.b16 %v401
    %v1408 = vunpack.c.h.b16 %v401
    %v1409 = vunpack.c.l.b16 %v402
    %v1410 = vunpack.c.h.b16 %v402
    %v1411 = vunpack.c.l.b16 %v403
    %v1412 = vunpack.c.h.b16 %v403
    %v1413 = vunpack.c.l.b16 %v404
    %v1414 = vunpack.c.h.b16 %v404
    %v1415 = vunpack.c.l.b16 %v405
    %v1416 = vunpack.c.h.b16 %v405
    %v1417 = vunpack.c.l.b16 %v406
    %v1418 = vunpack.c.h.b16 %v406
    %v1419 = vunpack.c.l.b16 %v407
    %v1420 = vunpack.c.h.b16 %v407
    %v1421 = vunpack.c.l.b16 %v408
    %v1422 = vunpack.c.h.b16 %v408
    %v1423 = vunpack.c.l.b16 %v409
    %v1424 = vunpack.c.h.b16 %v409
    %v1425 = vunpack.c.l.b16 %v410
    %v1426 = vunpack.c.h.b16 %v410
    %v1427 = vunpack.c.l.b16 %v411
    %v1428 = vunpack.c.h.b16 %v411
    %v1429 = vunpack.c.l.b16 %v412
    %v1430 = vunpack.c.h.b16 %v412
    %v1431 = vunpack.c.l.b16 %v413
    %v1432 = vunpack.c.h.b16 %v413
    %v1433 = vunpack.c.l.b16 %v414
    %v1434 = vunpack.c.h.b16 %v414
    %v1435 = vpack.c.b16 %v871, %v859
    %v1436 = vpack.c.b16 %v872, %v860
    %v1437 = vpack.c.b16 %v873, %v861
    %v1438 = vpack.c.b16 %v874, %v862
    %v1439 = vpack.c.b16 %v875, %v863
    %v1440 = vpack.c.b16 %v876, %v864
    %v1441 = vpack.c.b16 %v877, %v865
    %v1442 = vpack.c.b16 %v878, %v866
    %v1443 = vpack.c.b16 %v879, %v867
    %v1444 = vpack.c.b16 %v880, %v868
    %v1445 = vpack.c.b16 %v881, %v869
    %v1446 = vpack.c.b16 %v882, %v870
    %v1447 = vpack.c.b16 %v895, %v883
    %v1448 = vpack.c.b16 %v896, %v884
    %v1449 = vpack.c.b16 %v897, %v885
    %v1450 = vpack.c.b16 %v898, %v886
    %v1451 = vpack.c.b16 %v899, %v887
    %v1452 = vpack.c.b16 %v900, %v888
    %v1453 = vpack.c.b16 %v901, %v889
    %v1454 = vpack.c.b16 %v902, %v890
    %v1455 = vpack.c.b16 %v903, %v891
    %v1456 = vpack.c.b16 %v904, %v892
    %v1457 = vpack.c.b16 %v905, %v893
    %v1458 = vpack.c.b16 %v906, %v894
    %v1459 = vpack.c.b16 %v919, %v907
    %v1460 = vpack.c.b16 %v920, %v908
    %v1461 = vpack.c.b16 %v921, %v909
    %v1462 = vpack.c.b16 %v922, %v910
    %v1463 = vpack.c.b16 %v923, %v911
    %v1464 = vpack.c.b16 %v924, %v912
    %v1465 = vpack.c.b16 %v925, %v913
    %v1466 = vpack.c.b16 %v926, %v914
    %v1467 = vpack.c.b16 %v927, %v915
    %v1468 = vpack.c.b16 %v928, %v916
    %v1469 = vpack.c.b16 %v929, %v917
    %v1470 = vpack.c.b16 %v930, %v918
    %v1471 = vpack.c.b16 %v943, %v931
    %v1472 = vpack.c.b16 %v944, %v932
    %v1473 = vpack.c.b16 %v945, %v933
    %v1474 = vpack.c.b16 %v946, %v934
    %v1475 = vpack.c.b16 %v947, %v935
    %v1476 = vpack.c.b16 %v948, %v936
    %v1477 = vpack.c.b16 %v949, %v937
    %v1478 = vpack.c.b16 %v950, %v938
    %v1479 = vpack.c.b16 %v951, %v939
    %v1480 = vpack.c.b16 %v952, %v940
    %v1481 = vpack.c.b16 %v953, %v941
    %v1482 = vpack.c.b16 %v954, %v942
    %v1483 = vpack.c.b16 %v967, %v955
    %v1484 = vpack.c.b16 %v968, %v956
    %v1485 = vpack.c.b16 %v969, %v957
    %v1486 = vpack.c.b16 %v970, %v958
    %v1487 = vpack.c.b16 %v971, %v959
    %v1488 = vpack.c.b16 %v972, %v960
    %v1489 = vpack.c.b16 %v973, %v961
    %v1490 = vpack.c.b16 %v974, %v962
    %v1491 = vpack.c.b16 %v975, %v963
    %v1492 = vpack.c.b16 %v976, %v964
    %v1493 = vpack.c.b16 %v977, %v965
    %v1494 = vpack.c.b16 %v978, %v966
    %v1495 = vpack.c.b16 %v991, %v979
    %v1496 = vpack.c.b16 %v992, %v980
    %v1497 = vpack.c.b16 %v993, %v981
    %v1498 = vpack.c.b16 %v994, %v982
    %v1499 = vpack.c.b16 %v995, %v983
    %v1500 = vpack.c.b16 %v996, %v984
    %v1501 = vpack.c.b16 %v997, %v985
    %v1502 = vpack.c.b16 %v998, %v986
    %v1503 = vpack.c.b16 %v999, %v987
    %v1504 = vpack.c.b16 %v1000, %v988
    %v1505 = vpack.c.b16 %v1001, %v989
    %v1506 = vpack.c.b16 %v1002, %v990
    %v1507 = vpack.c.b16 %v1015, %v1003
    %v1508 = vpack.c.b16 %v1016, %v1004
    %v1509 = vpack.c.b16 %v1017, %v1005
    %v1510 = vpack.c.b16 %v1018, %v1006
    %v1511 = vpack.c.b16 %v1019, %v1007
    %v1512 = vpack.c.b16 %v1020, %v1008
    %v1513 = vpack.c.b16 %v1021, %v1009
    %v1514 = vpack.c.b16 %v1022, %v1010
    %v1515 = vpack.c.b16 %v1023, %v1011
    %v1516 = vpack.c.b16 %v1024, %v1012
    %v1517 = vpack.c.b16 %v1025, %v1013
    %v1518 = vpack.c.b16 %v1026, %v1014
    %v1519 = vpack.c.b16 %v1039, %v1027
    %v1520 = vpack.c.b16 %v1040, %v1028
    %v1521 = vpack.c.b16 %v1041, %v1029
    %v1522 = vpack.c.b16 %v1042, %v1030
    %v1523 = vpack.c.b16 %v1043, %v1031
    %v1524 = vpack.c.b16 %v1044, %v1032
    %v1525 = vpack.c.b16 %v1045, %v1033
    %v1526 = vpack.c.b16 %v1046, %v1034
    %v1527 = vpack.c.b16 %v1047, %v1035
    %v1528 = vpack.c.b16 %v1048, %v1036
    %v1529 = vpack.c.b16 %v1049, %v1037
    %v1530 = vpack.c.b16 %v1050, %v1038
    %v1531 = vpack.c.b16 %v1063, %v1051
    %v1532 = vpack.c.b16 %v1064, %v1052
    %v1533 = vpack.c.b16 %v1065, %v1053
    %v1534 = vpack.c.b16 %v1066, %v1054
    %v1535 = vpack.c.b16 %v1067, %v1055
    %v1536 = vpack.c.b16 %v1068, %v1056
    %v1537 = vpack.c.b16 %v1069, %v1057
    %v1538 = vpack.c.b16 %v1070, %v1058
    %v1539 = vpack.c.b16 %v1071, %v1059
    %v1540 = vpack.c.b16 %v1072, %v1060
    %v1541 = vpack.c.b16 %v1073, %v1061
    %v1542 = vpack.c.b16 %v1074, %v1062
    %v1543 = vpack.c.b16 %v1087, %v1075
    %v1544 = vpack.c.b16 %v1088, %v1076
    %v1545 = vpack.c.b16 %v1089, %v1077
    %v1546 = vpack.c.b16 %v1090, %v1078
    %v1547 = vpack.c.b16 %v1091, %v1079
    %v1548 = vpack.c.b16 %v1092, %v1080
    %v1549 = vpack.c.b16 %v1093, %v1081
    %v1550 = vpack.c.b16 %v1094, %v1082
    %v1551 = vpack.c.b16 %v1095, %v1083
    %v1552 = vpack.c.b16 %v1096, %v1084
    %v1553 = vpack.c.b16 %v1097, %v1085
    %v1554 = vpack.c.b16 %v1098, %v1086
    %v1555 = vpack.c.b16 %v1111, %v1099
    %v1556 = vpack.c.b16 %v1112, %v1100
    %v1557 = vpack.c.b16 %v1113, %v1101
    %v1558 = vpack.c.b16 %v1114, %v1102
    %v1559 = vpack.c.b16 %v1115, %v1103
    %v1560 = vpack.c.b16 %v1116, %v1104
    %v1561 = vpack.c.b16 %v1117, %v1105
    %v1562 = vpack.c.b16 %v1118, %v1106
    %v1563 = vpack.c.b16 %v1119, %v1107
    %v1564 = vpack.c.b16 %v1120, %v1108
    %v1565 = vpack.c.b16 %v1121, %v1109
    %v1566 = vpack.c.b16 %v1122, %v1110
    %v1567 = vpack.c.b16 %v1135, %v1123
    %v1568 = vpack.c.b16 %v1136, %v1124
    %v1569 = vpack.c.b16 %v1137, %v1125
    %v1570 = vpack.c.b16 %v1138, %v1126
    %v1571 = vpack.c.b16 %v1139, %v1127
    %v1572 = vpack.c.b16 %v1140, %v1128
    %v1573 = vpack.c.b16 %v1141, %v1129
    %v1574 = vpack.c.b16 %v1142, %v1130
    %v1575 = vpack.c.b16 %v1143, %v1131
    %v1576 = vpack.c.b16 %v1144, %v1132
    %v1577 = vpack.c.b16 %v1145, %v1133
    %v1578 = vpack.c.b16 %v1146, %v1134
    %v1579 = vpack.c.b16 %v1159, %v1147
    %v1580 = vpack.c.b16 %v1160, %v1148
    %v1581 = vpack.c.b16 %v1161, %v1149
    %v1582 = vpack.c.b16 %v1162, %v1150
    %v1583 = vpack.c.b16 %v1163, %v1151
    %v1584 = vpack.c.b16 %v1164, %v1152
    %v1585 = vpack.c.b16 %v1165, %v1153
    %v1586 = vpack.c.b16 %v1166, %v1154
    %v1587 = vpack.c.b16 %v1167, %v1155
    %v1588 = vpack.c.b16 %v1168, %v1156
    %v1589 = vpack.c.b16 %v1169, %v1157
    %v1590 = vpack.c.b16 %v1170, %v1158
    %v1591 = vpack.c.b16 %v1183, %v1171
    %v1592 = vpack.c.b16 %v1184, %v1172
    %v1593 = vpack.c.b16 %v1185, %v1173
    %v1594 = vpack.c.b16 %v1186, %v1174
    %v1595 = vpack.c.b16 %v1187, %v1175
    %v1596 = vpack.c.b16 %v1188, %v1176
    %v1597 = vpack.c.b16 %v1189, %v1177
    %v1598 = vpack.c.b16 %v1190, %v1178
    %v1599 = vpack.c.b16 %v1191, %v1179
    %v1600 = vpack.c.b16 %v1192, %v1180
    %v1601 = vpack.c.b16 %v1193, %v1181
    %v1602 = vpack.c.b16 %v1194, %v1182
    %v1603 = vpack.c.b16 %v1207, %v1195
    %v1604 = vpack.c.b16 %v1208, %v1196
    %v1605 = vpack.c.b16 %v1209, %v1197
    %v1606 = vpack.c.b16 %v1210, %v1198
    %v1607 = vpack.c.b16 %v1211, %v1199
    %v1608 = vpack.c.b16 %v1212, %v1200
    %v1609 = vpack.c.b16 %v1213, %v1201
    %v1610 = vpack.c.b16 %v1214, %v1202
    %v1611 = vpack.c.b16 %v1215, %v1203
    %v1612 = vpack.c.b16 %v1216, %v1204
    %v1613 = vpack.c.b16 %v1217, %v1205
    %v1614 = vpack.c.b16 %v1218, %v1206
    %v1615 = vpack.c.b16 %v1231, %v1219
    %v1616 = vpack.c.b16 %v1232, %v1220
    %v1617 = vpack.c.b16 %v1233, %v1221
    %v1618 = vpack.c.b16 %v1234, %v1222
    %v1619 = vpack.c.b16 %v1235, %v1223
    %v1620 = vpack.c.b16 %v1236, %v1224
    %v1621 = vpack.c.b16 %v1237, %v1225
    %v1622 = vpack.c.b16 %v1238, %v1226
    %v1623 = vpack.c.b16 %v1239, %v1227
    %v1624 = vpack.c.b16 %v1240, %v1228
    %v1625 = vpack.c.b16 %v1241, %v1229
    %v1626 = vpack.c.b16 %v1242, %v1230
    %v1627 = vpack.c.b16 %v1255, %v1243
    %v1628 = vpack.c.b16 %v1256, %v1244
    %v1629 = vpack.c.b16 %v1257, %v1245
    %v1630 = vpack.c.b16 %v1258, %v1246
    %v1631 = vpack.c.b16 %v1259, %v1247
    %v1632 = vpack.c.b16 %v1260, %v1248
    %v1633 = vpack.c.b16 %v1261, %v1249
    %v1634 = vpack.c.b16 %v1262, %v1250
    %v1635 = vpack.c.b16 %v1263, %v1251
    %v1636 = vpack.c.b16 %v1264, %v1252
    %v1637 = vpack.c.b16 %v1265, %v1253
    %v1638 = vpack.c.b16 %v1266, %v1254
    %v1639 = vpack.c.b16 %v1279, %v1267
    %v1640 = vpack.c.b16 %v1280, %v1268
    %v1641 = vpack.c.b16 %v1281, %v1269
    %v1642 = vpack.c.b16 %v1282, %v1270
    %v1643 = vpack.c.b16 %v1283, %v1271
    %v1644 = vpack.c.b16 %v1284, %v1272
    %v1645 = vpack.c.b16 %v1285, %v1273
    %v1646 = vpack.c.b16 %v1286, %v1274
    %v1647 = vpack.c.b16 %v1287, %v1275
    %v1648 = vpack.c.b16 %v1288, %v1276
    %v1649 = vpack.c.b16 %v1289, %v1277
    %v1650 = vpack.c.b16 %v1290, %v1278
    %v1651 = vpack.c.b16 %v1303, %v1291
    %v1652 = vpack.c.b16 %v1304, %v1292
    %v1653 = vpack.c.b16 %v1305, %v1293
    %v1654 = vpack.c.b16 %v1306, %v1294
    %v1655 = vpack.c.b16 %v1307, %v1295
    %v1656 = vpack.c.b16 %v1308, %v1296
    %v1657 = vpack.c.b16 %v1309, %v1297
    %v1658 = vpack.c.b16 %v1310, %v1298
    %v1659 = vpack.c.b16 %v1311, %v1299
    %v1660 = vpack.c.b16 %v1312, %v1300
    %v1661 = vpack.c.b16 %v1313, %v1301
    %v1662 = vpack.c.b16 %v1314, %v1302
    %v1663 = vpack.c.b16 %v1327, %v1315
    %v1664 = vpack.c.b16 %v1328, %v1316
    %v1665 = vpack.c.b16 %v1329, %v1317
    %v1666 = vpack.c.b16 %v1330, %v1318
    %v1667 = vpack.c.b16 %v1331, %v1319
    %v1668 = vpack.c.b16 %v1332, %v1320
    %v1669 = vpack.c.b16 %v1333, %v1321
    %v1670 = vpack.c.b16 %v1334, %v1322
    %v1671 = vpack.c.b16 %v1335, %v1323
    %v1672 = vpack.c.b16 %v1336, %v1324
    %v1673 = vpack.c.b16 %v1337, %v1325
    %v1674 = vpack.c.b16 %v1338, %v1326
    %v1675 = vpack.c.b16 %v1351, %v1339
    %v1676 = vpack.c.b16 %v1352, %v1340
    %v1677 = vpack.c.b16 %v1353, %v1341
    %v1678 = vpack.c.b16 %v1354, %v1342
    %v1679 = vpack.c.b16 %v1355, %v1343
    %v1680 = vpack.c.b16 %v1356, %v1344
    %v1681 = vpack.c.b16 %v1357, %v1345
    %v1682 = vpack.c.b16 %v1358, %v1346
    %v1683 = vpack.c.b16 %v1359, %v1347
    %v1684 = vpack.c.b16 %v1360, %v1348
    %v1685 = vpack.c.b16 %v1361, %v1349
    %v1686 = vpack.c.b16 %v1362, %v1350
    %v1687 = vpack.c.b16 %v1375, %v1363
    %v1688 = vpack.c.b16 %v1376, %v1364
    %v1689 = vpack.c.b16 %v1377, %v1365
    %v1690 = vpack.c.b16 %v1378, %v1366
    %v1691 = vpack.c.b16 %v1379, %v1367
    %v1692 = vpack.c.b16 %v1380, %v1368
    %v1693 = vpack.c.b16 %v1381, %v1369
    %v1694 = vpack.c.b16 %v1382, %v1370
    %v1695 = vpack.c.b16 %v1383, %v1371
    %v1696 = vpack.c.b16 %v1384, %v1372
    %v1697 = vpack.c.b16 %v1385, %v1373
    %v1698 = vpack.c.b16 %v1386, %v1374
    %v1699 = vpack.c.b16 %v1399, %v1387
    %v1700 = vpack.c.b16 %v1400, %v1388
    %v1701 = vpack.c.b16 %v1401, %v1389
    %v1702 = vpack.c.b16 %v1402, %v1390
    %v1703 = vpack.c.b16 %v1403, %v1391
    %v1704 = vpack.c.b16 %v1404, %v1392
    %v1705 = vpack.c.b16 %v1405, %v1393
    %v1706 = vpack.c.b16 %v1406, %v1394
    %v1707 = vpack.c.b16 %v1407, %v1395
    %v1708 = vpack.c.b16 %v1408, %v1396
    %v1709 = vpack.c.b16 %v1409, %v1397
    %v1710 = vpack.c.b16 %v1410, %v1398
    %v1711 = vpack.c.b16 %v1423, %v1411
    %v1712 = vpack.c.b16 %v1424, %v1412
    %v1713 = vpack.c.b16 %v1425, %v1413
    %v1714 = vpack.c.b16 %v1426, %v1414
    %v1715 = vpack.c.b16 %v1427, %v1415
    %v1716 = vpack.c.b16 %v1428, %v1416
    %v1717 = vpack.c.b16 %v1429, %v1417
    %v1718 = vpack.c.b16 %v1430, %v1418
    %v1719 = vpack.c.b16 %v1431, %v1419
    %v1720 = vpack.c.b16 %v1432, %v1420
    %v1721 = vpack.c.b16 %v1433, %v1421
    %v1722 = vpack.c.b16 %v1434, %v1422
    %2011 = vmatpush.bf16.msra.mxu0 %v1519
    %2012 = vmatpush.bf16.msra.mxu0 %v1507
    %2013 = vmatpush.bf16.msra.mxu0 %v1495
    %2014 = vmatpush.bf16.msra.mxu0 %v1483
    %2015 = vmatpush.bf16.msra.mxu0 %v1471
    %2016 = vmatpush.bf16.msra.mxu0 %v1459
    %2017 = vmatpush.bf16.msra.mxu0 %v1447
    %2018 = vmatpush.bf16.msra.mxu0 %v1435
    %2019 = vmatmul.bf16.gmra.mxu0 %v523
    %v2020 = vpop.f32.mrf.mxu0
    %v2021 = vadd.f32 %v419, %v2020
    %v2022 = vpop.f32.mrf.mxu0
    %v2023 = vadd.f32 %v419, %v2022
    %2024 = vmatmul.bf16.gmra.mxu0 %v526
    %v2025 = vpop.f32.mrf.mxu0
    %v2026 = vadd.f32 %v419, %v2025
    %v2027 = vpop.f32.mrf.mxu0
    %v2028 = vadd.f32 %v419, %v2027
    %2029 = vmatmul.bf16.gmra.mxu0 %v529
    %v2030 = vpop.f32.mrf.mxu0
    %v2031 = vadd.f32 %v419, %v2030
    %v2032 = vpop.f32.mrf.mxu0
    %v2033 = vadd.f32 %v419, %v2032
    %2034 = vmatmul.bf16.gmra.mxu0 %v532
    %v2035 = vpop.f32.mrf.mxu0
    %v2036 = vadd.f32 %v419, %v2035
    %v2037 = vpop.f32.mrf.mxu0
    %v2038 = vadd.f32 %v419, %v2037
    %2039 = vmatmul.bf16.gmra.mxu0 %v535
    %v2040 = vpop.f32.mrf.mxu0
    %v2041 = vadd.f32 %v419, %v2040
    %v2042 = vpop.f32.mrf.mxu0
    %v2043 = vadd.f32 %v419, %v2042
    %2044 = vmatmul.bf16.gmra.mxu0 %v538
    %v2045 = vpop.f32.mrf.mxu0
    %v2046 = vadd.f32 %v419, %v2045
    %v2047 = vpop.f32.mrf.mxu0
    %v2048 = vadd.f32 %v419, %v2047
    %2049 = vmatmul.bf16.gmra.mxu0 %v541
    %v2050 = vpop.f32.mrf.mxu0
    %v2051 = vadd.f32 %v419, %v2050
    %v2052 = vpop.f32.mrf.mxu0
    %v2053 = vadd.f32 %v419, %v2052
    %2054 = vmatmul.bf16.gmra.mxu0 %v544
    %v2055 = vpop.f32.mrf.mxu0
    %v2056 = vadd.f32 %v419, %v2055
    %v2057 = vpop.f32.mrf.mxu0
    %v2058 = vadd.f32 %v419, %v2057
    %2059 = vdwg.mxu0
    %2060 = vmatpush.bf16.msra.mxu0 %v1615
    %2061 = vmatpush.bf16.msra.mxu0 %v1603
    %2062 = vmatpush.bf16.msra.mxu0 %v1591
    %2063 = vmatpush.bf16.msra.mxu0 %v1579
    %2064 = vmatpush.bf16.msra.mxu0 %v1567
    %2065 = vmatpush.bf16.msra.mxu0 %v1555
    %2066 = vmatpush.bf16.msra.mxu0 %v1543
    %2067 = vmatpush.bf16.msra.mxu0 %v1531
    %2068 = vmatmul.bf16.gmra.mxu0 %v524
    %v2069 = vpop.f32.mrf.mxu0
    %v2070 = vadd.f32 %v2021, %v2069
    %v2071 = vpop.f32.mrf.mxu0
    %v2072 = vadd.f32 %v2023, %v2071
    %2073 = vmatmul.bf16.gmra.mxu0 %v527
    %v2074 = vpop.f32.mrf.mxu0
    %v2075 = vadd.f32 %v2026, %v2074
    %v2076 = vpop.f32.mrf.mxu0
    %v2077 = vadd.f32 %v2028, %v2076
    %2078 = vmatmul.bf16.gmra.mxu0 %v530
    %v2079 = vpop.f32.mrf.mxu0
    %v2080 = vadd.f32 %v2031, %v2079
    %v2081 = vpop.f32.mrf.mxu0
    %v2082 = vadd.f32 %v2033, %v2081
    %2083 = vmatmul.bf16.gmra.mxu0 %v533
    %v2084 = vpop.f32.mrf.mxu0
    %v2085 = vadd.f32 %v2036, %v2084
    %v2086 = vpop.f32.mrf.mxu0
    %v2087 = vadd.f32 %v2038, %v2086
    %2088 = vmatmul.bf16.gmra.mxu0 %v536
    %v2089 = vpop.f32.mrf.mxu0
    %v2090 = vadd.f32 %v2041, %v2089
    %v2091 = vpop.f32.mrf.mxu0
    %v2092 = vadd.f32 %v2043, %v2091
    %2093 = vmatmul.bf16.gmra.mxu0 %v539
    %v2094 = vpop.f32.mrf.mxu0
    %v2095 = vadd.f32 %v2046, %v2094
    %v2096 = vpop.f32.mrf.mxu0
    %v2097 = vadd.f32 %v2048, %v2096
    %2098 = vmatmul.bf16.gmra.mxu0 %v542
    %v2099 = vpop.f32.mrf.mxu0
    %v2100 = vadd.f32 %v2051, %v2099
    %v2101 = vpop.f32.mrf.mxu0
    %v2102 = vadd.f32 %v2053, %v2101
    %2103 = vmatmul.bf16.gmra.mxu0 %v545
    %v2104 = vpop.f32.mrf.mxu0
    %v2105 = vadd.f32 %v2056, %v2104
    %v2106 = vpop.f32.mrf.mxu0
    %v2107 = vadd.f32 %v2058, %v2106
    %2108 = vdwg.mxu0
    %2109 = vmatpush.bf16.msra.mxu0 %v1711
    %2110 = vmatpush.bf16.msra.mxu0 %v1699
    %2111 = vmatpush.bf16.msra.mxu0 %v1687
    %2112 = vmatpush.bf16.msra.mxu0 %v1675
    %2113 = vmatpush.bf16.msra.mxu0 %v1663
    %2114 = vmatpush.bf16.msra.mxu0 %v1651
    %2115 = vmatpush.bf16.msra.mxu0 %v1639
    %2116 = vmatpush.bf16.msra.mxu0 %v1627
    %2117 = vmatmul.bf16.gmra.mxu0 %v525
    %v2118 = vpop.f32.mrf.mxu0
    %v2119 = vadd.f32 %v2070, %v2118
    %v2120 = vpop.f32.mrf.mxu0
    %v2121 = vadd.f32 %v2072, %v2120
    %2122 = vmatmul.bf16.gmra.mxu0 %v528
    %v2123 = vpop.f32.mrf.mxu0
    %v2124 = vadd.f32 %v2075, %v2123
    %v2125 = vpop.f32.mrf.mxu0
    %v2126 = vadd.f32 %v2077, %v2125
    %2127 = vmatmul.bf16.gmra.mxu0 %v531
    %v2128 = vpop.f32.mrf.mxu0
    %v2129 = vadd.f32 %v2080, %v2128
    %v2130 = vpop.f32.mrf.mxu0
    %v2131 = vadd.f32 %v2082, %v2130
    %2132 = vmatmul.bf16.gmra.mxu0 %v534
    %v2133 = vpop.f32.mrf.mxu0
    %v2134 = vadd.f32 %v2085, %v2133
    %v2135 = vpop.f32.mrf.mxu0
    %v2136 = vadd.f32 %v2087, %v2135
    %2137 = vmatmul.bf16.gmra.mxu0 %v537
    %v2138 = vpop.f32.mrf.mxu0
    %v2139 = vadd.f32 %v2090, %v2138
    %v2140 = vpop.f32.mrf.mxu0
    %v2141 = vadd.f32 %v2092, %v2140
    %2142 = vmatmul.bf16.gmra.mxu0 %v540
    %v2143 = vpop.f32.mrf.mxu0
    %v2144 = vadd.f32 %v2095, %v2143
    %v2145 = vpop.f32.mrf.mxu0
    %v2146 = vadd.f32 %v2097, %v2145
    %2147 = vmatmul.bf16.gmra.mxu0 %v543
    %v2148 = vpop.f32.mrf.mxu0
    %v2149 = vadd.f32 %v2100, %v2148
    %v2150 = vpop.f32.mrf.mxu0
    %v2151 = vadd.f32 %v2102, %v2150
    %2152 = vmatmul.bf16.gmra.mxu0 %v546
    %v2153 = vpop.f32.mrf.mxu0
    %v2154 = vadd.f32 %v2105, %v2153
    %v2155 = vpop.f32.mrf.mxu0
    %v2156 = vadd.f32 %v2107, %v2155
    %2157 = vdwg.mxu0
    %2158 = vmatpush.bf16.msra.mxu0 %v1520
    %2159 = vmatpush.bf16.msra.mxu0 %v1508
    %2160 = vmatpush.bf16.msra.mxu0 %v1496
    %2161 = vmatpush.bf16.msra.mxu0 %v1484
    %2162 = vmatpush.bf16.msra.mxu0 %v1472
    %2163 = vmatpush.bf16.msra.mxu0 %v1460
    %2164 = vmatpush.bf16.msra.mxu0 %v1448
    %2165 = vmatpush.bf16.msra.mxu0 %v1436
    %2166 = vmatmul.bf16.gmra.mxu0 %v523
    %v2167 = vpop.f32.mrf.mxu0
    %v2168 = vadd.f32 %v420, %v2167
    %v2169 = vpop.f32.mrf.mxu0
    %v2170 = vadd.f32 %v420, %v2169
    %2171 = vmatmul.bf16.gmra.mxu0 %v526
    %v2172 = vpop.f32.mrf.mxu0
    %v2173 = vadd.f32 %v420, %v2172
    %v2174 = vpop.f32.mrf.mxu0
    %v2175 = vadd.f32 %v420, %v2174
    %2176 = vmatmul.bf16.gmra.mxu0 %v529
    %v2177 = vpop.f32.mrf.mxu0
    %v2178 = vadd.f32 %v420, %v2177
    %v2179 = vpop.f32.mrf.mxu0
    %v2180 = vadd.f32 %v420, %v2179
    %2181 = vmatmul.bf16.gmra.mxu0 %v532
    %v2182 = vpop.f32.mrf.mxu0
    %v2183 = vadd.f32 %v420, %v2182
    %v2184 = vpop.f32.mrf.mxu0
    %v2185 = vadd.f32 %v420, %v2184
    %2186 = vmatmul.bf16.gmra.mxu0 %v535
    %v2187 = vpop.f32.mrf.mxu0
    %v2188 = vadd.f32 %v420, %v2187
    %v2189 = vpop.f32.mrf.mxu0
    %v2190 = vadd.f32 %v420, %v2189
    %2191 = vmatmul.bf16.gmra.mxu0 %v538
    %v2192 = vpop.f32.mrf.mxu0
    %v2193 = vadd.f32 %v420, %v2192
    %v2194 = vpop.f32.mrf.mxu0
    %v2195 = vadd.f32 %v420, %v2194
    %2196 = vmatmul.bf16.gmra.mxu0 %v541
    %v2197 = vpop.f32.mrf.mxu0
    %v2198 = vadd.f32 %v420, %v2197
    %v2199 = vpop.f32.mrf.mxu0
    %v2200 = vadd.f32 %v420, %v2199
    %2201 = vmatmul.bf16.gmra.mxu0 %v544
    %v2202 = vpop.f32.mrf.mxu0
    %v2203 = vadd.f32 %v420, %v2202
    %v2204 = vpop.f32.mrf.mxu0
    %v2205 = vadd.f32 %v420, %v2204
    %2206 = vdwg.mxu0
    %2207 = vmatpush.bf16.msra.mxu0 %v1616
    %2208 = vmatpush.bf16.msra.mxu0 %v1604
    %2209 = vmatpush.bf16.msra.mxu0 %v1592
    %2210 = vmatpush.bf16.msra.mxu0 %v1580
    %2211 = vmatpush.bf16.msra.mxu0 %v1568
    %2212 = vmatpush.bf16.msra.mxu0 %v1556
    %2213 = vmatpush.bf16.msra.mxu0 %v1544
    %2214 = vmatpush.bf16.msra.mxu0 %v1532
    %2215 = vmatmul.bf16.gmra.mxu0 %v524
    %v2216 = vpop.f32.mrf.mxu0
    %v2217 = vadd.f32 %v2168, %v2216
    %v2218 = vpop.f32.mrf.mxu0
    %v2219 = vadd.f32 %v2170, %v2218
    %2220 = vmatmul.bf16.gmra.mxu0 %v527
    %v2221 = vpop.f32.mrf.mxu0
    %v2222 = vadd.f32 %v2173, %v2221
    %v2223 = vpop.f32.mrf.mxu0
    %v2224 = vadd.f32 %v2175, %v2223
    %2225 = vmatmul.bf16.gmra.mxu0 %v530
    %v2226 = vpop.f32.mrf.mxu0
    %v2227 = vadd.f32 %v2178, %v2226
    %v2228 = vpop.f32.mrf.mxu0
    %v2229 = vadd.f32 %v2180, %v2228
    %2230 = vmatmul.bf16.gmra.mxu0 %v533
    %v2231 = vpop.f32.mrf.mxu0
    %v2232 = vadd.f32 %v2183, %v2231
    %v2233 = vpop.f32.mrf.mxu0
    %v2234 = vadd.f32 %v2185, %v2233
    %2235 = vmatmul.bf16.gmra.mxu0 %v536
    %v2236 = vpop.f32.mrf.mxu0
    %v2237 = vadd.f32 %v2188, %v2236
    %v2238 = vpop.f32.mrf.mxu0
    %v2239 = vadd.f32 %v2190, %v2238
    %2240 = vmatmul.bf16.gmra.mxu0 %v539
    %v2241 = vpop.f32.mrf.mxu0
    %v2242 = vadd.f32 %v2193, %v2241
    %v2243 = vpop.f32.mrf.mxu0
    %v2244 = vadd.f32 %v2195, %v2243
    %2245 = vmatmul.bf16.gmra.mxu0 %v542
    %v2246 = vpop.f32.mrf.mxu0
    %v2247 = vadd.f32 %v2198, %v2246
    %v2248 = vpop.f32.mrf.mxu0
    %v2249 = vadd.f32 %v2200, %v2248
    %2250 = vmatmul.bf16.gmra.mxu0 %v545
    %v2251 = vpop.f32.mrf.mxu0
    %v2252 = vadd.f32 %v2203, %v2251
    %v2253 = vpop.f32.mrf.mxu0
    %v2254 = vadd.f32 %v2205, %v2253
    %2255 = vdwg.mxu0
    %2256 = vmatpush.bf16.msra.mxu0 %v1712
    %2257 = vmatpush.bf16.msra.mxu0 %v1700
    %2258 = vmatpush.bf16.msra.mxu0 %v1688
    %2259 = vmatpush.bf16.msra.mxu0 %v1676
    %2260 = vmatpush.bf16.msra.mxu0 %v1664
    %2261 = vmatpush.bf16.msra.mxu0 %v1652
    %2262 = vmatpush.bf16.msra.mxu0 %v1640
    %2263 = vmatpush.bf16.msra.mxu0 %v1628
    %2264 = vmatmul.bf16.gmra.mxu0 %v525
    %v2265 = vpop.f32.mrf.mxu0
    %v2266 = vadd.f32 %v2217, %v2265
    %v2267 = vpop.f32.mrf.mxu0
    %v2268 = vadd.f32 %v2219, %v2267
    %2269 = vmatmul.bf16.gmra.mxu0 %v528
    %v2270 = vpop.f32.mrf.mxu0
    %v2271 = vadd.f32 %v2222, %v2270
    %v2272 = vpop.f32.mrf.mxu0
    %v2273 = vadd.f32 %v2224, %v2272
    %2274 = vmatmul.bf16.gmra.mxu0 %v531
    %v2275 = vpop.f32.mrf.mxu0
    %v2276 = vadd.f32 %v2227, %v2275
    %v2277 = vpop.f32.mrf.mxu0
    %v2278 = vadd.f32 %v2229, %v2277
    %2279 = vmatmul.bf16.gmra.mxu0 %v534
    %v2280 = vpop.f32.mrf.mxu0
    %v2281 = vadd.f32 %v2232, %v2280
    %v2282 = vpop.f32.mrf.mxu0
    %v2283 = vadd.f32 %v2234, %v2282
    %2284 = vmatmul.bf16.gmra.mxu0 %v537
    %v2285 = vpop.f32.mrf.mxu0
    %v2286 = vadd.f32 %v2237, %v2285
    %v2287 = vpop.f32.mrf.mxu0
    %v2288 = vadd.f32 %v2239, %v2287
    %2289 = vmatmul.bf16.gmra.mxu0 %v540
    %v2290 = vpop.f32.mrf.mxu0
    %v2291 = vadd.f32 %v2242, %v2290
    %v2292 = vpop.f32.mrf.mxu0
    %v2293 = vadd.f32 %v2244, %v2292
    %2294 = vmatmul.bf16.gmra.mxu0 %v543
    %v2295 = vpop.f32.mrf.mxu0
    %v2296 = vadd.f32 %v2247, %v2295
    %v2297 = vpop.f32.mrf.mxu0
    %v2298 = vadd.f32 %v2249, %v2297
    %2299 = vmatmul.bf16.gmra.mxu0 %v546
    %v2300 = vpop.f32.mrf.mxu0
    %v2301 = vadd.f32 %v2252, %v2300
    %v2302 = vpop.f32.mrf.mxu0
    %v2303 = vadd.f32 %v2254, %v2302
    %2304 = vdwg.mxu0
    %2305 = vmatpush.bf16.msra.mxu0 %v1521
    %2306 = vmatpush.bf16.msra.mxu0 %v1509
    %2307 = vmatpush.bf16.msra.mxu0 %v1497
    %2308 = vmatpush.bf16.msra.mxu0 %v1485
    %2309 = vmatpush.bf16.msra.mxu0 %v1473
    %2310 = vmatpush.bf16.msra.mxu0 %v1461
    %2311 = vmatpush.bf16.msra.mxu0 %v1449
    %2312 = vmatpush.bf16.msra.mxu0 %v1437
    %2313 = vmatmul.bf16.gmra.mxu0 %v523
    %v2314 = vpop.f32.mrf.mxu0
    %v2315 = vadd.f32 %v421, %v2314
    %v2316 = vpop.f32.mrf.mxu0
    %v2317 = vadd.f32 %v421, %v2316
    %2318 = vmatmul.bf16.gmra.mxu0 %v526
    %v2319 = vpop.f32.mrf.mxu0
    %v2320 = vadd.f32 %v421, %v2319
    %v2321 = vpop.f32.mrf.mxu0
    %v2322 = vadd.f32 %v421, %v2321
    %2323 = vmatmul.bf16.gmra.mxu0 %v529
    %v2324 = vpop.f32.mrf.mxu0
    %v2325 = vadd.f32 %v421, %v2324
    %v2326 = vpop.f32.mrf.mxu0
    %v2327 = vadd.f32 %v421, %v2326
    %2328 = vmatmul.bf16.gmra.mxu0 %v532
    %v2329 = vpop.f32.mrf.mxu0
    %v2330 = vadd.f32 %v421, %v2329
    %v2331 = vpop.f32.mrf.mxu0
    %v2332 = vadd.f32 %v421, %v2331
    %2333 = vmatmul.bf16.gmra.mxu0 %v535
    %v2334 = vpop.f32.mrf.mxu0
    %v2335 = vadd.f32 %v421, %v2334
    %v2336 = vpop.f32.mrf.mxu0
    %v2337 = vadd.f32 %v421, %v2336
    %2338 = vmatmul.bf16.gmra.mxu0 %v538
    %v2339 = vpop.f32.mrf.mxu0
    %v2340 = vadd.f32 %v421, %v2339
    %v2341 = vpop.f32.mrf.mxu0
    %v2342 = vadd.f32 %v421, %v2341
    %2343 = vmatmul.bf16.gmra.mxu0 %v541
    %v2344 = vpop.f32.mrf.mxu0
    %v2345 = vadd.f32 %v421, %v2344
    %v2346 = vpop.f32.mrf.mxu0
    %v2347 = vadd.f32 %v421, %v2346
    %2348 = vmatmul.bf16.gmra.mxu0 %v544
    %v2349 = vpop.f32.mrf.mxu0
    %v2350 = vadd.f32 %v421, %v2349
    %v2351 = vpop.f32.mrf.mxu0
    %v2352 = vadd.f32 %v421, %v2351
    %2353 = vdwg.mxu0
    %2354 = vmatpush.bf16.msra.mxu0 %v1617
    %2355 = vmatpush.bf16.msra.mxu0 %v1605
    %2356 = vmatpush.bf16.msra.mxu0 %v1593
    %2357 = vmatpush.bf16.msra.mxu0 %v1581
    %2358 = vmatpush.bf16.msra.mxu0 %v1569
    %2359 = vmatpush.bf16.msra.mxu0 %v1557
    %2360 = vmatpush.bf16.msra.mxu0 %v1545
    %2361 = vmatpush.bf16.msra.mxu0 %v1533
    %2362 = vmatmul.bf16.gmra.mxu0 %v524
    %v2363 = vpop.f32.mrf.mxu0
    %v2364 = vadd.f32 %v2315, %v2363
    %v2365 = vpop.f32.mrf.mxu0
    %v2366 = vadd.f32 %v2317, %v2365
    %2367 = vmatmul.bf16.gmra.mxu0 %v527
    %v2368 = vpop.f32.mrf.mxu0
    %v2369 = vadd.f32 %v2320, %v2368
    %v2370 = vpop.f32.mrf.mxu0
    %v2371 = vadd.f32 %v2322, %v2370
    %2372 = vmatmul.bf16.gmra.mxu0 %v530
    %v2373 = vpop.f32.mrf.mxu0
    %v2374 = vadd.f32 %v2325, %v2373
    %v2375 = vpop.f32.mrf.mxu0
    %v2376 = vadd.f32 %v2327, %v2375
    %2377 = vmatmul.bf16.gmra.mxu0 %v533
    %v2378 = vpop.f32.mrf.mxu0
    %v2379 = vadd.f32 %v2330, %v2378
    %v2380 = vpop.f32.mrf.mxu0
    %v2381 = vadd.f32 %v2332, %v2380
    %2382 = vmatmul.bf16.gmra.mxu0 %v536
    %v2383 = vpop.f32.mrf.mxu0
    %v2384 = vadd.f32 %v2335, %v2383
    %v2385 = vpop.f32.mrf.mxu0
    %v2386 = vadd.f32 %v2337, %v2385
    %2387 = vmatmul.bf16.gmra.mxu0 %v539
    %v2388 = vpop.f32.mrf.mxu0
    %v2389 = vadd.f32 %v2340, %v2388
    %v2390 = vpop.f32.mrf.mxu0
    %v2391 = vadd.f32 %v2342, %v2390
    %2392 = vmatmul.bf16.gmra.mxu0 %v542
    %v2393 = vpop.f32.mrf.mxu0
    %v2394 = vadd.f32 %v2345, %v2393
    %v2395 = vpop.f32.mrf.mxu0
    %v2396 = vadd.f32 %v2347, %v2395
    %2397 = vmatmul.bf16.gmra.mxu0 %v545
    %v2398 = vpop.f32.mrf.mxu0
    %v2399 = vadd.f32 %v2350, %v2398
    %v2400 = vpop.f32.mrf.mxu0
    %v2401 = vadd.f32 %v2352, %v2400
    %2402 = vdwg.mxu0
    %2403 = vmatpush.bf16.msra.mxu0 %v1713
    %2404 = vmatpush.bf16.msra.mxu0 %v1701
    %2405 = vmatpush.bf16.msra.mxu0 %v1689
    %2406 = vmatpush.bf16.msra.mxu0 %v1677
    %2407 = vmatpush.bf16.msra.mxu0 %v1665
    %2408 = vmatpush.bf16.msra.mxu0 %v1653
    %2409 = vmatpush.bf16.msra.mxu0 %v1641
    %2410 = vmatpush.bf16.msra.mxu0 %v1629
    %2411 = vmatmul.bf16.gmra.mxu0 %v525
    %v2412 = vpop.f32.mrf.mxu0
    %v2413 = vadd.f32 %v2364, %v2412
    %v2414 = vpop.f32.mrf.mxu0
    %v2415 = vadd.f32 %v2366, %v2414
    %2416 = vmatmul.bf16.gmra.mxu0 %v528
    %v2417 = vpop.f32.mrf.mxu0
    %v2418 = vadd.f32 %v2369, %v2417
    %v2419 = vpop.f32.mrf.mxu0
    %v2420 = vadd.f32 %v2371, %v2419
    %2421 = vmatmul.bf16.gmra.mxu0 %v531
    %v2422 = vpop.f32.mrf.mxu0
    %v2423 = vadd.f32 %v2374, %v2422
    %v2424 = vpop.f32.mrf.mxu0
    %v2425 = vadd.f32 %v2376, %v2424
    %2426 = vmatmul.bf16.gmra.mxu0 %v534
    %v2427 = vpop.f32.mrf.mxu0
    %v2428 = vadd.f32 %v2379, %v2427
    %v2429 = vpop.f32.mrf.mxu0
    %v2430 = vadd.f32 %v2381, %v2429
    %2431 = vmatmul.bf16.gmra.mxu0 %v537
    %v2432 = vpop.f32.mrf.mxu0
    %v2433 = vadd.f32 %v2384, %v2432
    %v2434 = vpop.f32.mrf.mxu0
    %v2435 = vadd.f32 %v2386, %v2434
    %2436 = vmatmul.bf16.gmra.mxu0 %v540
    %v2437 = vpop.f32.mrf.mxu0
    %v2438 = vadd.f32 %v2389, %v2437
    %v2439 = vpop.f32.mrf.mxu0
    %v2440 = vadd.f32 %v2391, %v2439
    %2441 = vmatmul.bf16.gmra.mxu0 %v543
    %v2442 = vpop.f32.mrf.mxu0
    %v2443 = vadd.f32 %v2394, %v2442
    %v2444 = vpop.f32.mrf.mxu0
    %v2445 = vadd.f32 %v2396, %v2444
    %2446 = vmatmul.bf16.gmra.mxu0 %v546
    %v2447 = vpop.f32.mrf.mxu0
    %v2448 = vadd.f32 %v2399, %v2447
    %v2449 = vpop.f32.mrf.mxu0
    %v2450 = vadd.f32 %v2401, %v2449
    %2451 = vdwg.mxu0
    %2452 = vmatpush.bf16.msra.mxu0 %v1522
    %2453 = vmatpush.bf16.msra.mxu0 %v1510
    %2454 = vmatpush.bf16.msra.mxu0 %v1498
    %2455 = vmatpush.bf16.msra.mxu0 %v1486
    %2456 = vmatpush.bf16.msra.mxu0 %v1474
    %2457 = vmatpush.bf16.msra.mxu0 %v1462
    %2458 = vmatpush.bf16.msra.mxu0 %v1450
    %2459 = vmatpush.bf16.msra.mxu0 %v1438
    %2460 = vmatmul.bf16.gmra.mxu0 %v523
    %v2461 = vpop.f32.mrf.mxu0
    %v2462 = vadd.f32 %v422, %v2461
    %v2463 = vpop.f32.mrf.mxu0
    %v2464 = vadd.f32 %v422, %v2463
    %2465 = vmatmul.bf16.gmra.mxu0 %v526
    %v2466 = vpop.f32.mrf.mxu0
    %v2467 = vadd.f32 %v422, %v2466
    %v2468 = vpop.f32.mrf.mxu0
    %v2469 = vadd.f32 %v422, %v2468
    %2470 = vmatmul.bf16.gmra.mxu0 %v529
    %v2471 = vpop.f32.mrf.mxu0
    %v2472 = vadd.f32 %v422, %v2471
    %v2473 = vpop.f32.mrf.mxu0
    %v2474 = vadd.f32 %v422, %v2473
    %2475 = vmatmul.bf16.gmra.mxu0 %v532
    %v2476 = vpop.f32.mrf.mxu0
    %v2477 = vadd.f32 %v422, %v2476
    %v2478 = vpop.f32.mrf.mxu0
    %v2479 = vadd.f32 %v422, %v2478
    %2480 = vmatmul.bf16.gmra.mxu0 %v535
    %v2481 = vpop.f32.mrf.mxu0
    %v2482 = vadd.f32 %v422, %v2481
    %v2483 = vpop.f32.mrf.mxu0
    %v2484 = vadd.f32 %v422, %v2483
    %2485 = vmatmul.bf16.gmra.mxu0 %v538
    %v2486 = vpop.f32.mrf.mxu0
    %v2487 = vadd.f32 %v422, %v2486
    %v2488 = vpop.f32.mrf.mxu0
    %v2489 = vadd.f32 %v422, %v2488
    %2490 = vmatmul.bf16.gmra.mxu0 %v541
    %v2491 = vpop.f32.mrf.mxu0
    %v2492 = vadd.f32 %v422, %v2491
    %v2493 = vpop.f32.mrf.mxu0
    %v2494 = vadd.f32 %v422, %v2493
    %2495 = vmatmul.bf16.gmra.mxu0 %v544
    %v2496 = vpop.f32.mrf.mxu0
    %v2497 = vadd.f32 %v422, %v2496
    %v2498 = vpop.f32.mrf.mxu0
    %v2499 = vadd.f32 %v422, %v2498
    %2500 = vdwg.mxu0
    %2501 = vmatpush.bf16.msra.mxu0 %v1618
    %2502 = vmatpush.bf16.msra.mxu0 %v1606
    %2503 = vmatpush.bf16.msra.mxu0 %v1594
    %2504 = vmatpush.bf16.msra.mxu0 %v1582
    %2505 = vmatpush.bf16.msra.mxu0 %v1570
    %2506 = vmatpush.bf16.msra.mxu0 %v1558
    %2507 = vmatpush.bf16.msra.mxu0 %v1546
    %2508 = vmatpush.bf16.msra.mxu0 %v1534
    %2509 = vmatmul.bf16.gmra.mxu0 %v524
    %v2510 = vpop.f32.mrf.mxu0
    %v2511 = vadd.f32 %v2462, %v2510
    %v2512 = vpop.f32.mrf.mxu0
    %v2513 = vadd.f32 %v2464, %v2512
    %2514 = vmatmul.bf16.gmra.mxu0 %v527
    %v2515 = vpop.f32.mrf.mxu0
    %v2516 = vadd.f32 %v2467, %v2515
    %v2517 = vpop.f32.mrf.mxu0
    %v2518 = vadd.f32 %v2469, %v2517
    %2519 = vmatmul.bf16.gmra.mxu0 %v530
    %v2520 = vpop.f32.mrf.mxu0
    %v2521 = vadd.f32 %v2472, %v2520
    %v2522 = vpop.f32.mrf.mxu0
    %v2523 = vadd.f32 %v2474, %v2522
    %2524 = vmatmul.bf16.gmra.mxu0 %v533
    %v2525 = vpop.f32.mrf.mxu0
    %v2526 = vadd.f32 %v2477, %v2525
    %v2527 = vpop.f32.mrf.mxu0
    %v2528 = vadd.f32 %v2479, %v2527
    %2529 = vmatmul.bf16.gmra.mxu0 %v536
    %v2530 = vpop.f32.mrf.mxu0
    %v2531 = vadd.f32 %v2482, %v2530
    %v2532 = vpop.f32.mrf.mxu0
    %v2533 = vadd.f32 %v2484, %v2532
    %2534 = vmatmul.bf16.gmra.mxu0 %v539
    %v2535 = vpop.f32.mrf.mxu0
    %v2536 = vadd.f32 %v2487, %v2535
    %v2537 = vpop.f32.mrf.mxu0
    %v2538 = vadd.f32 %v2489, %v2537
    %2539 = vmatmul.bf16.gmra.mxu0 %v542
    %v2540 = vpop.f32.mrf.mxu0
    %v2541 = vadd.f32 %v2492, %v2540
    %v2542 = vpop.f32.mrf.mxu0
    %v2543 = vadd.f32 %v2494, %v2542
    %2544 = vmatmul.bf16.gmra.mxu0 %v545
    %v2545 = vpop.f32.mrf.mxu0
    %v2546 = vadd.f32 %v2497, %v2545
    %v2547 = vpop.f32.mrf.mxu0
    %v2548 = vadd.f32 %v2499, %v2547
    %2549 = vdwg.mxu0
    %2550 = vmatpush.bf16.msra.mxu0 %v1714
    %2551 = vmatpush.bf16.msra.mxu0 %v1702
    %2552 = vmatpush.bf16.msra.mxu0 %v1690
    %2553 = vmatpush.bf16.msra.mxu0 %v1678
    %2554 = vmatpush.bf16.msra.mxu0 %v1666
    %2555 = vmatpush.bf16.msra.mxu0 %v1654
    %2556 = vmatpush.bf16.msra.mxu0 %v1642
    %2557 = vmatpush.bf16.msra.mxu0 %v1630
    %2558 = vmatmul.bf16.gmra.mxu0 %v525
    %v2559 = vpop.f32.mrf.mxu0
    %v2560 = vadd.f32 %v2511, %v2559
    %v2561 = vpop.f32.mrf.mxu0
    %v2562 = vadd.f32 %v2513, %v2561
    %2563 = vmatmul.bf16.gmra.mxu0 %v528
    %v2564 = vpop.f32.mrf.mxu0
    %v2565 = vadd.f32 %v2516, %v2564
    %v2566 = vpop.f32.mrf.mxu0
    %v2567 = vadd.f32 %v2518, %v2566
    %2568 = vmatmul.bf16.gmra.mxu0 %v531
    %v2569 = vpop.f32.mrf.mxu0
    %v2570 = vadd.f32 %v2521, %v2569
    %v2571 = vpop.f32.mrf.mxu0
    %v2572 = vadd.f32 %v2523, %v2571
    %2573 = vmatmul.bf16.gmra.mxu0 %v534
    %v2574 = vpop.f32.mrf.mxu0
    %v2575 = vadd.f32 %v2526, %v2574
    %v2576 = vpop.f32.mrf.mxu0
    %v2577 = vadd.f32 %v2528, %v2576
    %2578 = vmatmul.bf16.gmra.mxu0 %v537
    %v2579 = vpop.f32.mrf.mxu0
    %v2580 = vadd.f32 %v2531, %v2579
    %v2581 = vpop.f32.mrf.mxu0
    %v2582 = vadd.f32 %v2533, %v2581
    %2583 = vmatmul.bf16.gmra.mxu0 %v540
    %v2584 = vpop.f32.mrf.mxu0
    %v2585 = vadd.f32 %v2536, %v2584
    %v2586 = vpop.f32.mrf.mxu0
    %v2587 = vadd.f32 %v2538, %v2586
    %2588 = vmatmul.bf16.gmra.mxu0 %v543
    %v2589 = vpop.f32.mrf.mxu0
    %v2590 = vadd.f32 %v2541, %v2589
    %v2591 = vpop.f32.mrf.mxu0
    %v2592 = vadd.f32 %v2543, %v2591
    %2593 = vmatmul.bf16.gmra.mxu0 %v546
    %v2594 = vpop.f32.mrf.mxu0
    %v2595 = vadd.f32 %v2546, %v2594
    %v2596 = vpop.f32.mrf.mxu0
    %v2597 = vadd.f32 %v2548, %v2596
    %2598 = vdwg.mxu0
    %2599 = vmatpush.bf16.msra.mxu0 %v1523
    %2600 = vmatpush.bf16.msra.mxu0 %v1511
    %2601 = vmatpush.bf16.msra.mxu0 %v1499
    %2602 = vmatpush.bf16.msra.mxu0 %v1487
    %2603 = vmatpush.bf16.msra.mxu0 %v1475
    %2604 = vmatpush.bf16.msra.mxu0 %v1463
    %2605 = vmatpush.bf16.msra.mxu0 %v1451
    %2606 = vmatpush.bf16.msra.mxu0 %v1439
    %2607 = vmatmul.bf16.gmra.mxu0 %v523
    %v2608 = vpop.f32.mrf.mxu0
    %v2609 = vadd.f32 %v423, %v2608
    %v2610 = vpop.f32.mrf.mxu0
    %v2611 = vadd.f32 %v423, %v2610
    %2612 = vmatmul.bf16.gmra.mxu0 %v526
    %v2613 = vpop.f32.mrf.mxu0
    %v2614 = vadd.f32 %v423, %v2613
    %v2615 = vpop.f32.mrf.mxu0
    %v2616 = vadd.f32 %v423, %v2615
    %2617 = vmatmul.bf16.gmra.mxu0 %v529
    %v2618 = vpop.f32.mrf.mxu0
    %v2619 = vadd.f32 %v423, %v2618
    %v2620 = vpop.f32.mrf.mxu0
    %v2621 = vadd.f32 %v423, %v2620
    %2622 = vmatmul.bf16.gmra.mxu0 %v532
    %v2623 = vpop.f32.mrf.mxu0
    %v2624 = vadd.f32 %v423, %v2623
    %v2625 = vpop.f32.mrf.mxu0
    %v2626 = vadd.f32 %v423, %v2625
    %2627 = vmatmul.bf16.gmra.mxu0 %v535
    %v2628 = vpop.f32.mrf.mxu0
    %v2629 = vadd.f32 %v423, %v2628
    %v2630 = vpop.f32.mrf.mxu0
    %v2631 = vadd.f32 %v423, %v2630
    %2632 = vmatmul.bf16.gmra.mxu0 %v538
    %v2633 = vpop.f32.mrf.mxu0
    %v2634 = vadd.f32 %v423, %v2633
    %v2635 = vpop.f32.mrf.mxu0
    %v2636 = vadd.f32 %v423, %v2635
    %2637 = vmatmul.bf16.gmra.mxu0 %v541
    %v2638 = vpop.f32.mrf.mxu0
    %v2639 = vadd.f32 %v423, %v2638
    %v2640 = vpop.f32.mrf.mxu0
    %v2641 = vadd.f32 %v423, %v2640
    %2642 = vmatmul.bf16.gmra.mxu0 %v544
    %v2643 = vpop.f32.mrf.mxu0
    %v2644 = vadd.f32 %v423, %v2643
    %v2645 = vpop.f32.mrf.mxu0
    %v2646 = vadd.f32 %v423, %v2645
    %2647 = vdwg.mxu0
    %2648 = vmatpush.bf16.msra.mxu0 %v1619
    %2649 = vmatpush.bf16.msra.mxu0 %v1607
    %2650 = vmatpush.bf16.msra.mxu0 %v1595
    %2651 = vmatpush.bf16.msra.mxu0 %v1583
    %2652 = vmatpush.bf16.msra.mxu0 %v1571
    %2653 = vmatpush.bf16.msra.mxu0 %v1559
    %2654 = vmatpush.bf16.msra.mxu0 %v1547
    %2655 = vmatpush.bf16.msra.mxu0 %v1535
    %2656 = vmatmul.bf16.gmra.mxu0 %v524
    %v2657 = vpop.f32.mrf.mxu0
    %v2658 = vadd.f32 %v2609, %v2657
    %v2659 = vpop.f32.mrf.mxu0
    %v2660 = vadd.f32 %v2611, %v2659
    %2661 = vmatmul.bf16.gmra.mxu0 %v527
    %v2662 = vpop.f32.mrf.mxu0
    %v2663 = vadd.f32 %v2614, %v2662
    %v2664 = vpop.f32.mrf.mxu0
    %v2665 = vadd.f32 %v2616, %v2664
    %2666 = vmatmul.bf16.gmra.mxu0 %v530
    %v2667 = vpop.f32.mrf.mxu0
    %v2668 = vadd.f32 %v2619, %v2667
    %v2669 = vpop.f32.mrf.mxu0
    %v2670 = vadd.f32 %v2621, %v2669
    %2671 = vmatmul.bf16.gmra.mxu0 %v533
    %v2672 = vpop.f32.mrf.mxu0
    %v2673 = vadd.f32 %v2624, %v2672
    %v2674 = vpop.f32.mrf.mxu0
    %v2675 = vadd.f32 %v2626, %v2674
    %2676 = vmatmul.bf16.gmra.mxu0 %v536
    %v2677 = vpop.f32.mrf.mxu0
    %v2678 = vadd.f32 %v2629, %v2677
    %v2679 = vpop.f32.mrf.mxu0
    %v2680 = vadd.f32 %v2631, %v2679
    %2681 = vmatmul.bf16.gmra.mxu0 %v539
    %v2682 = vpop.f32.mrf.mxu0
    %v2683 = vadd.f32 %v2634, %v2682
    %v2684 = vpop.f32.mrf.mxu0
    %v2685 = vadd.f32 %v2636, %v2684
    %2686 = vmatmul.bf16.gmra.mxu0 %v542
    %v2687 = vpop.f32.mrf.mxu0
    %v2688 = vadd.f32 %v2639, %v2687
    %v2689 = vpop.f32.mrf.mxu0
    %v2690 = vadd.f32 %v2641, %v2689
    %2691 = vmatmul.bf16.gmra.mxu0 %v545
    %v2692 = vpop.f32.mrf.mxu0
    %v2693 = vadd.f32 %v2644, %v2692
    %v2694 = vpop.f32.mrf.mxu0
    %v2695 = vadd.f32 %v2646, %v2694
    %2696 = vdwg.mxu0
    %2697 = vmatpush.bf16.msra.mxu0 %v1715
    %2698 = vmatpush.bf16.msra.mxu0 %v1703
    %2699 = vmatpush.bf16.msra.mxu0 %v1691
    %2700 = vmatpush.bf16.msra.mxu0 %v1679
    %2701 = vmatpush.bf16.msra.mxu0 %v1667
    %2702 = vmatpush.bf16.msra.mxu0 %v1655
    %2703 = vmatpush.bf16.msra.mxu0 %v1643
    %2704 = vmatpush.bf16.msra.mxu0 %v1631
    %2705 = vmatmul.bf16.gmra.mxu0 %v525
    %v2706 = vpop.f32.mrf.mxu0
    %v2707 = vadd.f32 %v2658, %v2706
    %v2708 = vpop.f32.mrf.mxu0
    %v2709 = vadd.f32 %v2660, %v2708
    %2710 = vmatmul.bf16.gmra.mxu0 %v528
    %v2711 = vpop.f32.mrf.mxu0
    %v2712 = vadd.f32 %v2663, %v2711
    %v2713 = vpop.f32.mrf.mxu0
    %v2714 = vadd.f32 %v2665, %v2713
    %2715 = vmatmul.bf16.gmra.mxu0 %v531
    %v2716 = vpop.f32.mrf.mxu0
    %v2717 = vadd.f32 %v2668, %v2716
    %v2718 = vpop.f32.mrf.mxu0
    %v2719 = vadd.f32 %v2670, %v2718
    %2720 = vmatmul.bf16.gmra.mxu0 %v534
    %v2721 = vpop.f32.mrf.mxu0
    %v2722 = vadd.f32 %v2673, %v2721
    %v2723 = vpop.f32.mrf.mxu0
    %v2724 = vadd.f32 %v2675, %v2723
    %2725 = vmatmul.bf16.gmra.mxu0 %v537
    %v2726 = vpop.f32.mrf.mxu0
    %v2727 = vadd.f32 %v2678, %v2726
    %v2728 = vpop.f32.mrf.mxu0
    %v2729 = vadd.f32 %v2680, %v2728
    %2730 = vmatmul.bf16.gmra.mxu0 %v540
    %v2731 = vpop.f32.mrf.mxu0
    %v2732 = vadd.f32 %v2683, %v2731
    %v2733 = vpop.f32.mrf.mxu0
    %v2734 = vadd.f32 %v2685, %v2733
    %2735 = vmatmul.bf16.gmra.mxu0 %v543
    %v2736 = vpop.f32.mrf.mxu0
    %v2737 = vadd.f32 %v2688, %v2736
    %v2738 = vpop.f32.mrf.mxu0
    %v2739 = vadd.f32 %v2690, %v2738
    %2740 = vmatmul.bf16.gmra.mxu0 %v546
    %v2741 = vpop.f32.mrf.mxu0
    %v2742 = vadd.f32 %v2693, %v2741
    %v2743 = vpop.f32.mrf.mxu0
    %v2744 = vadd.f32 %v2695, %v2743
    %2745 = vdwg.mxu0
    %2746 = vmatpush.bf16.msra.mxu0 %v1524
    %2747 = vmatpush.bf16.msra.mxu0 %v1512
    %2748 = vmatpush.bf16.msra.mxu0 %v1500
    %2749 = vmatpush.bf16.msra.mxu0 %v1488
    %2750 = vmatpush.bf16.msra.mxu0 %v1476
    %2751 = vmatpush.bf16.msra.mxu0 %v1464
    %2752 = vmatpush.bf16.msra.mxu0 %v1452
    %2753 = vmatpush.bf16.msra.mxu0 %v1440
    %2754 = vmatmul.bf16.gmra.mxu0 %v523
    %v2755 = vpop.f32.mrf.mxu0
    %v2756 = vadd.f32 %v424, %v2755
    %v2757 = vpop.f32.mrf.mxu0
    %v2758 = vadd.f32 %v424, %v2757
    %2759 = vmatmul.bf16.gmra.mxu0 %v526
    %v2760 = vpop.f32.mrf.mxu0
    %v2761 = vadd.f32 %v424, %v2760
    %v2762 = vpop.f32.mrf.mxu0
    %v2763 = vadd.f32 %v424, %v2762
    %2764 = vmatmul.bf16.gmra.mxu0 %v529
    %v2765 = vpop.f32.mrf.mxu0
    %v2766 = vadd.f32 %v424, %v2765
    %v2767 = vpop.f32.mrf.mxu0
    %v2768 = vadd.f32 %v424, %v2767
    %2769 = vmatmul.bf16.gmra.mxu0 %v532
    %v2770 = vpop.f32.mrf.mxu0
    %v2771 = vadd.f32 %v424, %v2770
    %v2772 = vpop.f32.mrf.mxu0
    %v2773 = vadd.f32 %v424, %v2772
    %2774 = vmatmul.bf16.gmra.mxu0 %v535
    %v2775 = vpop.f32.mrf.mxu0
    %v2776 = vadd.f32 %v424, %v2775
    %v2777 = vpop.f32.mrf.mxu0
    %v2778 = vadd.f32 %v424, %v2777
    %2779 = vmatmul.bf16.gmra.mxu0 %v538
    %v2780 = vpop.f32.mrf.mxu0
    %v2781 = vadd.f32 %v424, %v2780
    %v2782 = vpop.f32.mrf.mxu0
    %v2783 = vadd.f32 %v424, %v2782
    %2784 = vmatmul.bf16.gmra.mxu0 %v541
    %v2785 = vpop.f32.mrf.mxu0
    %v2786 = vadd.f32 %v424, %v2785
    %v2787 = vpop.f32.mrf.mxu0
    %v2788 = vadd.f32 %v424, %v2787
    %2789 = vmatmul.bf16.gmra.mxu0 %v544
    %v2790 = vpop.f32.mrf.mxu0
    %v2791 = vadd.f32 %v424, %v2790
    %v2792 = vpop.f32.mrf.mxu0
    %v2793 = vadd.f32 %v424, %v2792
    %2794 = vdwg.mxu0
    %2795 = vmatpush.bf16.msra.mxu0 %v1620
    %2796 = vmatpush.bf16.msra.mxu0 %v1608
    %2797 = vmatpush.bf16.msra.mxu0 %v1596
    %2798 = vmatpush.bf16.msra.mxu0 %v1584
    %2799 = vmatpush.bf16.msra.mxu0 %v1572
    %2800 = vmatpush.bf16.msra.mxu0 %v1560
    %2801 = vmatpush.bf16.msra.mxu0 %v1548
    %2802 = vmatpush.bf16.msra.mxu0 %v1536
    %2803 = vmatmul.bf16.gmra.mxu0 %v524
    %v2804 = vpop.f32.mrf.mxu0
    %v2805 = vadd.f32 %v2756, %v2804
    %v2806 = vpop.f32.mrf.mxu0
    %v2807 = vadd.f32 %v2758, %v2806
    %2808 = vmatmul.bf16.gmra.mxu0 %v527
    %v2809 = vpop.f32.mrf.mxu0
    %v2810 = vadd.f32 %v2761, %v2809
    %v2811 = vpop.f32.mrf.mxu0
    %v2812 = vadd.f32 %v2763, %v2811
    %2813 = vmatmul.bf16.gmra.mxu0 %v530
    %v2814 = vpop.f32.mrf.mxu0
    %v2815 = vadd.f32 %v2766, %v2814
    %v2816 = vpop.f32.mrf.mxu0
    %v2817 = vadd.f32 %v2768, %v2816
    %2818 = vmatmul.bf16.gmra.mxu0 %v533
    %v2819 = vpop.f32.mrf.mxu0
    %v2820 = vadd.f32 %v2771, %v2819
    %v2821 = vpop.f32.mrf.mxu0
    %v2822 = vadd.f32 %v2773, %v2821
    %2823 = vmatmul.bf16.gmra.mxu0 %v536
    %v2824 = vpop.f32.mrf.mxu0
    %v2825 = vadd.f32 %v2776, %v2824
    %v2826 = vpop.f32.mrf.mxu0
    %v2827 = vadd.f32 %v2778, %v2826
    %2828 = vmatmul.bf16.gmra.mxu0 %v539
    %v2829 = vpop.f32.mrf.mxu0
    %v2830 = vadd.f32 %v2781, %v2829
    %v2831 = vpop.f32.mrf.mxu0
    %v2832 = vadd.f32 %v2783, %v2831
    %2833 = vmatmul.bf16.gmra.mxu0 %v542
    %v2834 = vpop.f32.mrf.mxu0
    %v2835 = vadd.f32 %v2786, %v2834
    %v2836 = vpop.f32.mrf.mxu0
    %v2837 = vadd.f32 %v2788, %v2836
    %2838 = vmatmul.bf16.gmra.mxu0 %v545
    %v2839 = vpop.f32.mrf.mxu0
    %v2840 = vadd.f32 %v2791, %v2839
    %v2841 = vpop.f32.mrf.mxu0
    %v2842 = vadd.f32 %v2793, %v2841
    %2843 = vdwg.mxu0
    %2844 = vmatpush.bf16.msra.mxu0 %v1716
    %2845 = vmatpush.bf16.msra.mxu0 %v1704
    %2846 = vmatpush.bf16.msra.mxu0 %v1692
    %2847 = vmatpush.bf16.msra.mxu0 %v1680
    %2848 = vmatpush.bf16.msra.mxu0 %v1668
    %2849 = vmatpush.bf16.msra.mxu0 %v1656
    %2850 = vmatpush.bf16.msra.mxu0 %v1644
    %2851 = vmatpush.bf16.msra.mxu0 %v1632
    %2852 = vmatmul.bf16.gmra.mxu0 %v525
    %v2853 = vpop.f32.mrf.mxu0
    %v2854 = vadd.f32 %v2805, %v2853
    %v2855 = vpop.f32.mrf.mxu0
    %v2856 = vadd.f32 %v2807, %v2855
    %2857 = vmatmul.bf16.gmra.mxu0 %v528
    %v2858 = vpop.f32.mrf.mxu0
    %v2859 = vadd.f32 %v2810, %v2858
    %v2860 = vpop.f32.mrf.mxu0
    %v2861 = vadd.f32 %v2812, %v2860
    %2862 = vmatmul.bf16.gmra.mxu0 %v531
    %v2863 = vpop.f32.mrf.mxu0
    %v2864 = vadd.f32 %v2815, %v2863
    %v2865 = vpop.f32.mrf.mxu0
    %v2866 = vadd.f32 %v2817, %v2865
    %2867 = vmatmul.bf16.gmra.mxu0 %v534
    %v2868 = vpop.f32.mrf.mxu0
    %v2869 = vadd.f32 %v2820, %v2868
    %v2870 = vpop.f32.mrf.mxu0
    %v2871 = vadd.f32 %v2822, %v2870
    %2872 = vmatmul.bf16.gmra.mxu0 %v537
    %v2873 = vpop.f32.mrf.mxu0
    %v2874 = vadd.f32 %v2825, %v2873
    %v2875 = vpop.f32.mrf.mxu0
    %v2876 = vadd.f32 %v2827, %v2875
    %2877 = vmatmul.bf16.gmra.mxu0 %v540
    %v2878 = vpop.f32.mrf.mxu0
    %v2879 = vadd.f32 %v2830, %v2878
    %v2880 = vpop.f32.mrf.mxu0
    %v2881 = vadd.f32 %v2832, %v2880
    %2882 = vmatmul.bf16.gmra.mxu0 %v543
    %v2883 = vpop.f32.mrf.mxu0
    %v2884 = vadd.f32 %v2835, %v2883
    %v2885 = vpop.f32.mrf.mxu0
    %v2886 = vadd.f32 %v2837, %v2885
    %2887 = vmatmul.bf16.gmra.mxu0 %v546
    %v2888 = vpop.f32.mrf.mxu0
    %v2889 = vadd.f32 %v2840, %v2888
    %v2890 = vpop.f32.mrf.mxu0
    %v2891 = vadd.f32 %v2842, %v2890
    %2892 = vdwg.mxu0
    %2893 = vmatpush.bf16.msra.mxu0 %v1525
    %2894 = vmatpush.bf16.msra.mxu0 %v1513
    %2895 = vmatpush.bf16.msra.mxu0 %v1501
    %2896 = vmatpush.bf16.msra.mxu0 %v1489
    %2897 = vmatpush.bf16.msra.mxu0 %v1477
    %2898 = vmatpush.bf16.msra.mxu0 %v1465
    %2899 = vmatpush.bf16.msra.mxu0 %v1453
    %2900 = vmatpush.bf16.msra.mxu0 %v1441
    %2901 = vmatmul.bf16.gmra.mxu0 %v523
    %v2902 = vpop.f32.mrf.mxu0
    %v2903 = vadd.f32 %v425, %v2902
    %v2904 = vpop.f32.mrf.mxu0
    %v2905 = vadd.f32 %v425, %v2904
    %2906 = vmatmul.bf16.gmra.mxu0 %v526
    %v2907 = vpop.f32.mrf.mxu0
    %v2908 = vadd.f32 %v425, %v2907
    %v2909 = vpop.f32.mrf.mxu0
    %v2910 = vadd.f32 %v425, %v2909
    %2911 = vmatmul.bf16.gmra.mxu0 %v529
    %v2912 = vpop.f32.mrf.mxu0
    %v2913 = vadd.f32 %v425, %v2912
    %v2914 = vpop.f32.mrf.mxu0
    %v2915 = vadd.f32 %v425, %v2914
    %2916 = vmatmul.bf16.gmra.mxu0 %v532
    %v2917 = vpop.f32.mrf.mxu0
    %v2918 = vadd.f32 %v425, %v2917
    %v2919 = vpop.f32.mrf.mxu0
    %v2920 = vadd.f32 %v425, %v2919
    %2921 = vmatmul.bf16.gmra.mxu0 %v535
    %v2922 = vpop.f32.mrf.mxu0
    %v2923 = vadd.f32 %v425, %v2922
    %v2924 = vpop.f32.mrf.mxu0
    %v2925 = vadd.f32 %v425, %v2924
    %2926 = vmatmul.bf16.gmra.mxu0 %v538
    %v2927 = vpop.f32.mrf.mxu0
    %v2928 = vadd.f32 %v425, %v2927
    %v2929 = vpop.f32.mrf.mxu0
    %v2930 = vadd.f32 %v425, %v2929
    %2931 = vmatmul.bf16.gmra.mxu0 %v541
    %v2932 = vpop.f32.mrf.mxu0
    %v2933 = vadd.f32 %v425, %v2932
    %v2934 = vpop.f32.mrf.mxu0
    %v2935 = vadd.f32 %v425, %v2934
    %2936 = vmatmul.bf16.gmra.mxu0 %v544
    %v2937 = vpop.f32.mrf.mxu0
    %v2938 = vadd.f32 %v425, %v2937
    %v2939 = vpop.f32.mrf.mxu0
    %v2940 = vadd.f32 %v425, %v2939
    %2941 = vdwg.mxu0
    %2942 = vmatpush.bf16.msra.mxu0 %v1621
    %2943 = vmatpush.bf16.msra.mxu0 %v1609
    %2944 = vmatpush.bf16.msra.mxu0 %v1597
    %2945 = vmatpush.bf16.msra.mxu0 %v1585
    %2946 = vmatpush.bf16.msra.mxu0 %v1573
    %2947 = vmatpush.bf16.msra.mxu0 %v1561
    %2948 = vmatpush.bf16.msra.mxu0 %v1549
    %2949 = vmatpush.bf16.msra.mxu0 %v1537
    %2950 = vmatmul.bf16.gmra.mxu0 %v524
    %v2951 = vpop.f32.mrf.mxu0
    %v2952 = vadd.f32 %v2903, %v2951
    %v2953 = vpop.f32.mrf.mxu0
    %v2954 = vadd.f32 %v2905, %v2953
    %2955 = vmatmul.bf16.gmra.mxu0 %v527
    %v2956 = vpop.f32.mrf.mxu0
    %v2957 = vadd.f32 %v2908, %v2956
    %v2958 = vpop.f32.mrf.mxu0
    %v2959 = vadd.f32 %v2910, %v2958
    %2960 = vmatmul.bf16.gmra.mxu0 %v530
    %v2961 = vpop.f32.mrf.mxu0
    %v2962 = vadd.f32 %v2913, %v2961
    %v2963 = vpop.f32.mrf.mxu0
    %v2964 = vadd.f32 %v2915, %v2963
    %2965 = vmatmul.bf16.gmra.mxu0 %v533
    %v2966 = vpop.f32.mrf.mxu0
    %v2967 = vadd.f32 %v2918, %v2966
    %v2968 = vpop.f32.mrf.mxu0
    %v2969 = vadd.f32 %v2920, %v2968
    %2970 = vmatmul.bf16.gmra.mxu0 %v536
    %v2971 = vpop.f32.mrf.mxu0
    %v2972 = vadd.f32 %v2923, %v2971
    %v2973 = vpop.f32.mrf.mxu0
    %v2974 = vadd.f32 %v2925, %v2973
    %2975 = vmatmul.bf16.gmra.mxu0 %v539
    %v2976 = vpop.f32.mrf.mxu0
    %v2977 = vadd.f32 %v2928, %v2976
    %v2978 = vpop.f32.mrf.mxu0
    %v2979 = vadd.f32 %v2930, %v2978
    %2980 = vmatmul.bf16.gmra.mxu0 %v542
    %v2981 = vpop.f32.mrf.mxu0
    %v2982 = vadd.f32 %v2933, %v2981
    %v2983 = vpop.f32.mrf.mxu0
    %v2984 = vadd.f32 %v2935, %v2983
    %2985 = vmatmul.bf16.gmra.mxu0 %v545
    %v2986 = vpop.f32.mrf.mxu0
    %v2987 = vadd.f32 %v2938, %v2986
    %v2988 = vpop.f32.mrf.mxu0
    %v2989 = vadd.f32 %v2940, %v2988
    %2990 = vdwg.mxu0
    %2991 = vmatpush.bf16.msra.mxu0 %v1717
    %2992 = vmatpush.bf16.msra.mxu0 %v1705
    %2993 = vmatpush.bf16.msra.mxu0 %v1693
    %2994 = vmatpush.bf16.msra.mxu0 %v1681
    %2995 = vmatpush.bf16.msra.mxu0 %v1669
    %2996 = vmatpush.bf16.msra.mxu0 %v1657
    %2997 = vmatpush.bf16.msra.mxu0 %v1645
    %2998 = vmatpush.bf16.msra.mxu0 %v1633
    %2999 = vmatmul.bf16.gmra.mxu0 %v525
    %v3000 = vpop.f32.mrf.mxu0
    %v3001 = vadd.f32 %v2952, %v3000
    %v3002 = vpop.f32.mrf.mxu0
    %v3003 = vadd.f32 %v2954, %v3002
    %3004 = vmatmul.bf16.gmra.mxu0 %v528
    %v3005 = vpop.f32.mrf.mxu0
    %v3006 = vadd.f32 %v2957, %v3005
    %v3007 = vpop.f32.mrf.mxu0
    %v3008 = vadd.f32 %v2959, %v3007
    %3009 = vmatmul.bf16.gmra.mxu0 %v531
    %v3010 = vpop.f32.mrf.mxu0
    %v3011 = vadd.f32 %v2962, %v3010
    %v3012 = vpop.f32.mrf.mxu0
    %v3013 = vadd.f32 %v2964, %v3012
    %3014 = vmatmul.bf16.gmra.mxu0 %v534
    %v3015 = vpop.f32.mrf.mxu0
    %v3016 = vadd.f32 %v2967, %v3015
    %v3017 = vpop.f32.mrf.mxu0
    %v3018 = vadd.f32 %v2969, %v3017
    %3019 = vmatmul.bf16.gmra.mxu0 %v537
    %v3020 = vpop.f32.mrf.mxu0
    %v3021 = vadd.f32 %v2972, %v3020
    %v3022 = vpop.f32.mrf.mxu0
    %v3023 = vadd.f32 %v2974, %v3022
    %3024 = vmatmul.bf16.gmra.mxu0 %v540
    %v3025 = vpop.f32.mrf.mxu0
    %v3026 = vadd.f32 %v2977, %v3025
    %v3027 = vpop.f32.mrf.mxu0
    %v3028 = vadd.f32 %v2979, %v3027
    %3029 = vmatmul.bf16.gmra.mxu0 %v543
    %v3030 = vpop.f32.mrf.mxu0
    %v3031 = vadd.f32 %v2982, %v3030
    %v3032 = vpop.f32.mrf.mxu0
    %v3033 = vadd.f32 %v2984, %v3032
    %3034 = vmatmul.bf16.gmra.mxu0 %v546
    %v3035 = vpop.f32.mrf.mxu0
    %v3036 = vadd.f32 %v2987, %v3035
    %v3037 = vpop.f32.mrf.mxu0
    %v3038 = vadd.f32 %v2989, %v3037
    %3039 = vdwg.mxu0
    %3040 = vmatpush.bf16.msra.mxu0 %v1526
    %3041 = vmatpush.bf16.msra.mxu0 %v1514
    %3042 = vmatpush.bf16.msra.mxu0 %v1502
    %3043 = vmatpush.bf16.msra.mxu0 %v1490
    %3044 = vmatpush.bf16.msra.mxu0 %v1478
    %3045 = vmatpush.bf16.msra.mxu0 %v1466
    %3046 = vmatpush.bf16.msra.mxu0 %v1454
    %3047 = vmatpush.bf16.msra.mxu0 %v1442
    %3048 = vmatmul.bf16.gmra.mxu0 %v523
    %v3049 = vpop.f32.mrf.mxu0
    %v3050 = vadd.f32 %v426, %v3049
    %v3051 = vpop.f32.mrf.mxu0
    %v3052 = vadd.f32 %v426, %v3051
    %3053 = vmatmul.bf16.gmra.mxu0 %v526
    %v3054 = vpop.f32.mrf.mxu0
    %v3055 = vadd.f32 %v426, %v3054
    %v3056 = vpop.f32.mrf.mxu0
    %v3057 = vadd.f32 %v426, %v3056
    %3058 = vmatmul.bf16.gmra.mxu0 %v529
    %v3059 = vpop.f32.mrf.mxu0
    %v3060 = vadd.f32 %v426, %v3059
    %v3061 = vpop.f32.mrf.mxu0
    %v3062 = vadd.f32 %v426, %v3061
    %3063 = vmatmul.bf16.gmra.mxu0 %v532
    %v3064 = vpop.f32.mrf.mxu0
    %v3065 = vadd.f32 %v426, %v3064
    %v3066 = vpop.f32.mrf.mxu0
    %v3067 = vadd.f32 %v426, %v3066
    %3068 = vmatmul.bf16.gmra.mxu0 %v535
    %v3069 = vpop.f32.mrf.mxu0
    %v3070 = vadd.f32 %v426, %v3069
    %v3071 = vpop.f32.mrf.mxu0
    %v3072 = vadd.f32 %v426, %v3071
    %3073 = vmatmul.bf16.gmra.mxu0 %v538
    %v3074 = vpop.f32.mrf.mxu0
    %v3075 = vadd.f32 %v426, %v3074
    %v3076 = vpop.f32.mrf.mxu0
    %v3077 = vadd.f32 %v426, %v3076
    %3078 = vmatmul.bf16.gmra.mxu0 %v541
    %v3079 = vpop.f32.mrf.mxu0
    %v3080 = vadd.f32 %v426, %v3079
    %v3081 = vpop.f32.mrf.mxu0
    %v3082 = vadd.f32 %v426, %v3081
    %3083 = vmatmul.bf16.gmra.mxu0 %v544
    %v3084 = vpop.f32.mrf.mxu0
    %v3085 = vadd.f32 %v426, %v3084
    %v3086 = vpop.f32.mrf.mxu0
    %v3087 = vadd.f32 %v426, %v3086
    %3088 = vdwg.mxu0
    %3089 = vmatpush.bf16.msra.mxu0 %v1622
    %3090 = vmatpush.bf16.msra.mxu0 %v1610
    %3091 = vmatpush.bf16.msra.mxu0 %v1598
    %3092 = vmatpush.bf16.msra.mxu0 %v1586
    %3093 = vmatpush.bf16.msra.mxu0 %v1574
    %3094 = vmatpush.bf16.msra.mxu0 %v1562
    %3095 = vmatpush.bf16.msra.mxu0 %v1550
    %3096 = vmatpush.bf16.msra.mxu0 %v1538
    %3097 = vmatmul.bf16.gmra.mxu0 %v524
    %v3098 = vpop.f32.mrf.mxu0
    %v3099 = vadd.f32 %v3050, %v3098
    %v3100 = vpop.f32.mrf.mxu0
    %v3101 = vadd.f32 %v3052, %v3100
    %3102 = vmatmul.bf16.gmra.mxu0 %v527
    %v3103 = vpop.f32.mrf.mxu0
    %v3104 = vadd.f32 %v3055, %v3103
    %v3105 = vpop.f32.mrf.mxu0
    %v3106 = vadd.f32 %v3057, %v3105
    %3107 = vmatmul.bf16.gmra.mxu0 %v530
    %v3108 = vpop.f32.mrf.mxu0
    %v3109 = vadd.f32 %v3060, %v3108
    %v3110 = vpop.f32.mrf.mxu0
    %v3111 = vadd.f32 %v3062, %v3110
    %3112 = vmatmul.bf16.gmra.mxu0 %v533
    %v3113 = vpop.f32.mrf.mxu0
    %v3114 = vadd.f32 %v3065, %v3113
    %v3115 = vpop.f32.mrf.mxu0
    %v3116 = vadd.f32 %v3067, %v3115
    %3117 = vmatmul.bf16.gmra.mxu0 %v536
    %v3118 = vpop.f32.mrf.mxu0
    %v3119 = vadd.f32 %v3070, %v3118
    %v3120 = vpop.f32.mrf.mxu0
    %v3121 = vadd.f32 %v3072, %v3120
    %3122 = vmatmul.bf16.gmra.mxu0 %v539
    %v3123 = vpop.f32.mrf.mxu0
    %v3124 = vadd.f32 %v3075, %v3123
    %v3125 = vpop.f32.mrf.mxu0
    %v3126 = vadd.f32 %v3077, %v3125
    %3127 = vmatmul.bf16.gmra.mxu0 %v542
    %v3128 = vpop.f32.mrf.mxu0
    %v3129 = vadd.f32 %v3080, %v3128
    %v3130 = vpop.f32.mrf.mxu0
    %v3131 = vadd.f32 %v3082, %v3130
    %3132 = vmatmul.bf16.gmra.mxu0 %v545
    %v3133 = vpop.f32.mrf.mxu0
    %v3134 = vadd.f32 %v3085, %v3133
    %v3135 = vpop.f32.mrf.mxu0
    %v3136 = vadd.f32 %v3087, %v3135
    %3137 = vdwg.mxu0
    %3138 = vmatpush.bf16.msra.mxu0 %v1718
    %3139 = vmatpush.bf16.msra.mxu0 %v1706
    %3140 = vmatpush.bf16.msra.mxu0 %v1694
    %3141 = vmatpush.bf16.msra.mxu0 %v1682
    %3142 = vmatpush.bf16.msra.mxu0 %v1670
    %3143 = vmatpush.bf16.msra.mxu0 %v1658
    %3144 = vmatpush.bf16.msra.mxu0 %v1646
    %3145 = vmatpush.bf16.msra.mxu0 %v1634
    %3146 = vmatmul.bf16.gmra.mxu0 %v525
    %v3147 = vpop.f32.mrf.mxu0
    %v3148 = vadd.f32 %v3099, %v3147
    %v3149 = vpop.f32.mrf.mxu0
    %v3150 = vadd.f32 %v3101, %v3149
    %3151 = vmatmul.bf16.gmra.mxu0 %v528
    %v3152 = vpop.f32.mrf.mxu0
    %v3153 = vadd.f32 %v3104, %v3152
    %v3154 = vpop.f32.mrf.mxu0
    %v3155 = vadd.f32 %v3106, %v3154
    %3156 = vmatmul.bf16.gmra.mxu0 %v531
    %v3157 = vpop.f32.mrf.mxu0
    %v3158 = vadd.f32 %v3109, %v3157
    %v3159 = vpop.f32.mrf.mxu0
    %v3160 = vadd.f32 %v3111, %v3159
    %3161 = vmatmul.bf16.gmra.mxu0 %v534
    %v3162 = vpop.f32.mrf.mxu0
    %v3163 = vadd.f32 %v3114, %v3162
    %v3164 = vpop.f32.mrf.mxu0
    %v3165 = vadd.f32 %v3116, %v3164
    %3166 = vmatmul.bf16.gmra.mxu0 %v537
    %v3167 = vpop.f32.mrf.mxu0
    %v3168 = vadd.f32 %v3119, %v3167
    %v3169 = vpop.f32.mrf.mxu0
    %v3170 = vadd.f32 %v3121, %v3169
    %3171 = vmatmul.bf16.gmra.mxu0 %v540
    %v3172 = vpop.f32.mrf.mxu0
    %v3173 = vadd.f32 %v3124, %v3172
    %v3174 = vpop.f32.mrf.mxu0
    %v3175 = vadd.f32 %v3126, %v3174
    %3176 = vmatmul.bf16.gmra.mxu0 %v543
    %v3177 = vpop.f32.mrf.mxu0
    %v3178 = vadd.f32 %v3129, %v3177
    %v3179 = vpop.f32.mrf.mxu0
    %v3180 = vadd.f32 %v3131, %v3179
    %3181 = vmatmul.bf16.gmra.mxu0 %v546
    %v3182 = vpop.f32.mrf.mxu0
    %v3183 = vadd.f32 %v3134, %v3182
    %v3184 = vpop.f32.mrf.mxu0
    %v3185 = vadd.f32 %v3136, %v3184
    %3186 = vdwg.mxu0
    %3187 = vmatpush.bf16.msra.mxu0 %v1527
    %3188 = vmatpush.bf16.msra.mxu0 %v1515
    %3189 = vmatpush.bf16.msra.mxu0 %v1503
    %3190 = vmatpush.bf16.msra.mxu0 %v1491
    %3191 = vmatpush.bf16.msra.mxu0 %v1479
    %3192 = vmatpush.bf16.msra.mxu0 %v1467
    %3193 = vmatpush.bf16.msra.mxu0 %v1455
    %3194 = vmatpush.bf16.msra.mxu0 %v1443
    %3195 = vmatmul.bf16.gmra.mxu0 %v523
    %v3196 = vpop.f32.mrf.mxu0
    %v3197 = vadd.f32 %v427, %v3196
    %v3198 = vpop.f32.mrf.mxu0
    %v3199 = vadd.f32 %v427, %v3198
    %3200 = vmatmul.bf16.gmra.mxu0 %v526
    %v3201 = vpop.f32.mrf.mxu0
    %v3202 = vadd.f32 %v427, %v3201
    %v3203 = vpop.f32.mrf.mxu0
    %v3204 = vadd.f32 %v427, %v3203
    %3205 = vmatmul.bf16.gmra.mxu0 %v529
    %v3206 = vpop.f32.mrf.mxu0
    %v3207 = vadd.f32 %v427, %v3206
    %v3208 = vpop.f32.mrf.mxu0
    %v3209 = vadd.f32 %v427, %v3208
    %3210 = vmatmul.bf16.gmra.mxu0 %v532
    %v3211 = vpop.f32.mrf.mxu0
    %v3212 = vadd.f32 %v427, %v3211
    %v3213 = vpop.f32.mrf.mxu0
    %v3214 = vadd.f32 %v427, %v3213
    %3215 = vmatmul.bf16.gmra.mxu0 %v535
    %v3216 = vpop.f32.mrf.mxu0
    %v3217 = vadd.f32 %v427, %v3216
    %v3218 = vpop.f32.mrf.mxu0
    %v3219 = vadd.f32 %v427, %v3218
    %3220 = vmatmul.bf16.gmra.mxu0 %v538
    %v3221 = vpop.f32.mrf.mxu0
    %v3222 = vadd.f32 %v427, %v3221
    %v3223 = vpop.f32.mrf.mxu0
    %v3224 = vadd.f32 %v427, %v3223
    %3225 = vmatmul.bf16.gmra.mxu0 %v541
    %v3226 = vpop.f32.mrf.mxu0
    %v3227 = vadd.f32 %v427, %v3226
    %v3228 = vpop.f32.mrf.mxu0
    %v3229 = vadd.f32 %v427, %v3228
    %3230 = vmatmul.bf16.gmra.mxu0 %v544
    %v3231 = vpop.f32.mrf.mxu0
    %v3232 = vadd.f32 %v427, %v3231
    %v3233 = vpop.f32.mrf.mxu0
    %v3234 = vadd.f32 %v427, %v3233
    %3235 = vdwg.mxu0
    %3236 = vmatpush.bf16.msra.mxu0 %v1623
    %3237 = vmatpush.bf16.msra.mxu0 %v1611
    %3238 = vmatpush.bf16.msra.mxu0 %v1599
    %3239 = vmatpush.bf16.msra.mxu0 %v1587
    %3240 = vmatpush.bf16.msra.mxu0 %v1575
    %3241 = vmatpush.bf16.msra.mxu0 %v1563
    %3242 = vmatpush.bf16.msra.mxu0 %v1551
    %3243 = vmatpush.bf16.msra.mxu0 %v1539
    %3244 = vmatmul.bf16.gmra.mxu0 %v524
    %v3245 = vpop.f32.mrf.mxu0
    %v3246 = vadd.f32 %v3197, %v3245
    %v3247 = vpop.f32.mrf.mxu0
    %v3248 = vadd.f32 %v3199, %v3247
    %3249 = vmatmul.bf16.gmra.mxu0 %v527
    %v3250 = vpop.f32.mrf.mxu0
    %v3251 = vadd.f32 %v3202, %v3250
    %v3252 = vpop.f32.mrf.mxu0
    %v3253 = vadd.f32 %v3204, %v3252
    %3254 = vmatmul.bf16.gmra.mxu0 %v530
    %v3255 = vpop.f32.mrf.mxu0
    %v3256 = vadd.f32 %v3207, %v3255
    %v3257 = vpop.f32.mrf.mxu0
    %v3258 = vadd.f32 %v3209, %v3257
    %3259 = vmatmul.bf16.gmra.mxu0 %v533
    %v3260 = vpop.f32.mrf.mxu0
    %v3261 = vadd.f32 %v3212, %v3260
    %v3262 = vpop.f32.mrf.mxu0
    %v3263 = vadd.f32 %v3214, %v3262
    %3264 = vmatmul.bf16.gmra.mxu0 %v536
    %v3265 = vpop.f32.mrf.mxu0
    %v3266 = vadd.f32 %v3217, %v3265
    %v3267 = vpop.f32.mrf.mxu0
    %v3268 = vadd.f32 %v3219, %v3267
    %3269 = vmatmul.bf16.gmra.mxu0 %v539
    %v3270 = vpop.f32.mrf.mxu0
    %v3271 = vadd.f32 %v3222, %v3270
    %v3272 = vpop.f32.mrf.mxu0
    %v3273 = vadd.f32 %v3224, %v3272
    %3274 = vmatmul.bf16.gmra.mxu0 %v542
    %v3275 = vpop.f32.mrf.mxu0
    %v3276 = vadd.f32 %v3227, %v3275
    %v3277 = vpop.f32.mrf.mxu0
    %v3278 = vadd.f32 %v3229, %v3277
    %3279 = vmatmul.bf16.gmra.mxu0 %v545
    %v3280 = vpop.f32.mrf.mxu0
    %v3281 = vadd.f32 %v3232, %v3280
    %v3282 = vpop.f32.mrf.mxu0
    %v3283 = vadd.f32 %v3234, %v3282
    %3284 = vdwg.mxu0
    %3285 = vmatpush.bf16.msra.mxu0 %v1719
    %3286 = vmatpush.bf16.msra.mxu0 %v1707
    %3287 = vmatpush.bf16.msra.mxu0 %v1695
    %3288 = vmatpush.bf16.msra.mxu0 %v1683
    %3289 = vmatpush.bf16.msra.mxu0 %v1671
    %3290 = vmatpush.bf16.msra.mxu0 %v1659
    %3291 = vmatpush.bf16.msra.mxu0 %v1647
    %3292 = vmatpush.bf16.msra.mxu0 %v1635
    %3293 = vmatmul.bf16.gmra.mxu0 %v525
    %v3294 = vpop.f32.mrf.mxu0
    %v3295 = vadd.f32 %v3246, %v3294
    %v3296 = vpop.f32.mrf.mxu0
    %v3297 = vadd.f32 %v3248, %v3296
    %3298 = vmatmul.bf16.gmra.mxu0 %v528
    %v3299 = vpop.f32.mrf.mxu0
    %v3300 = vadd.f32 %v3251, %v3299
    %v3301 = vpop.f32.mrf.mxu0
    %v3302 = vadd.f32 %v3253, %v3301
    %3303 = vmatmul.bf16.gmra.mxu0 %v531
    %v3304 = vpop.f32.mrf.mxu0
    %v3305 = vadd.f32 %v3256, %v3304
    %v3306 = vpop.f32.mrf.mxu0
    %v3307 = vadd.f32 %v3258, %v3306
    %3308 = vmatmul.bf16.gmra.mxu0 %v534
    %v3309 = vpop.f32.mrf.mxu0
    %v3310 = vadd.f32 %v3261, %v3309
    %v3311 = vpop.f32.mrf.mxu0
    %v3312 = vadd.f32 %v3263, %v3311
    %3313 = vmatmul.bf16.gmra.mxu0 %v537
    %v3314 = vpop.f32.mrf.mxu0
    %v3315 = vadd.f32 %v3266, %v3314
    %v3316 = vpop.f32.mrf.mxu0
    %v3317 = vadd.f32 %v3268, %v3316
    %3318 = vmatmul.bf16.gmra.mxu0 %v540
    %v3319 = vpop.f32.mrf.mxu0
    %v3320 = vadd.f32 %v3271, %v3319
    %v3321 = vpop.f32.mrf.mxu0
    %v3322 = vadd.f32 %v3273, %v3321
    %3323 = vmatmul.bf16.gmra.mxu0 %v543
    %v3324 = vpop.f32.mrf.mxu0
    %v3325 = vadd.f32 %v3276, %v3324
    %v3326 = vpop.f32.mrf.mxu0
    %v3327 = vadd.f32 %v3278, %v3326
    %3328 = vmatmul.bf16.gmra.mxu0 %v546
    %v3329 = vpop.f32.mrf.mxu0
    %v3330 = vadd.f32 %v3281, %v3329
    %v3331 = vpop.f32.mrf.mxu0
    %v3332 = vadd.f32 %v3283, %v3331
    %3333 = vdwg.mxu0
    %3334 = vmatpush.bf16.msra.mxu0 %v1528
    %3335 = vmatpush.bf16.msra.mxu0 %v1516
    %3336 = vmatpush.bf16.msra.mxu0 %v1504
    %3337 = vmatpush.bf16.msra.mxu0 %v1492
    %3338 = vmatpush.bf16.msra.mxu0 %v1480
    %3339 = vmatpush.bf16.msra.mxu0 %v1468
    %3340 = vmatpush.bf16.msra.mxu0 %v1456
    %3341 = vmatpush.bf16.msra.mxu0 %v1444
    %3342 = vmatmul.bf16.gmra.mxu0 %v523
    %v3343 = vpop.f32.mrf.mxu0
    %v3344 = vadd.f32 %v428, %v3343
    %v3345 = vpop.f32.mrf.mxu0
    %v3346 = vadd.f32 %v428, %v3345
    %3347 = vmatmul.bf16.gmra.mxu0 %v526
    %v3348 = vpop.f32.mrf.mxu0
    %v3349 = vadd.f32 %v428, %v3348
    %v3350 = vpop.f32.mrf.mxu0
    %v3351 = vadd.f32 %v428, %v3350
    %3352 = vmatmul.bf16.gmra.mxu0 %v529
    %v3353 = vpop.f32.mrf.mxu0
    %v3354 = vadd.f32 %v428, %v3353
    %v3355 = vpop.f32.mrf.mxu0
    %v3356 = vadd.f32 %v428, %v3355
    %3357 = vmatmul.bf16.gmra.mxu0 %v532
    %v3358 = vpop.f32.mrf.mxu0
    %v3359 = vadd.f32 %v428, %v3358
    %v3360 = vpop.f32.mrf.mxu0
    %v3361 = vadd.f32 %v428, %v3360
    %3362 = vmatmul.bf16.gmra.mxu0 %v535
    %v3363 = vpop.f32.mrf.mxu0
    %v3364 = vadd.f32 %v428, %v3363
    %v3365 = vpop.f32.mrf.mxu0
    %v3366 = vadd.f32 %v428, %v3365
    %3367 = vmatmul.bf16.gmra.mxu0 %v538
    %v3368 = vpop.f32.mrf.mxu0
    %v3369 = vadd.f32 %v428, %v3368
    %v3370 = vpop.f32.mrf.mxu0
    %v3371 = vadd.f32 %v428, %v3370
    %3372 = vmatmul.bf16.gmra.mxu0 %v541
    %v3373 = vpop.f32.mrf.mxu0
    %v3374 = vadd.f32 %v428, %v3373
    %v3375 = vpop.f32.mrf.mxu0
    %v3376 = vadd.f32 %v428, %v3375
    %3377 = vmatmul.bf16.gmra.mxu0 %v544
    %v3378 = vpop.f32.mrf.mxu0
    %v3379 = vadd.f32 %v428, %v3378
    %v3380 = vpop.f32.mrf.mxu0
    %v3381 = vadd.f32 %v428, %v3380
    %3382 = vdwg.mxu0
    %3383 = vmatpush.bf16.msra.mxu0 %v1624
    %3384 = vmatpush.bf16.msra.mxu0 %v1612
    %3385 = vmatpush.bf16.msra.mxu0 %v1600
    %3386 = vmatpush.bf16.msra.mxu0 %v1588
    %3387 = vmatpush.bf16.msra.mxu0 %v1576
    %3388 = vmatpush.bf16.msra.mxu0 %v1564
    %3389 = vmatpush.bf16.msra.mxu0 %v1552
    %3390 = vmatpush.bf16.msra.mxu0 %v1540
    %3391 = vmatmul.bf16.gmra.mxu0 %v524
    %v3392 = vpop.f32.mrf.mxu0
    %v3393 = vadd.f32 %v3344, %v3392
    %v3394 = vpop.f32.mrf.mxu0
    %v3395 = vadd.f32 %v3346, %v3394
    %3396 = vmatmul.bf16.gmra.mxu0 %v527
    %v3397 = vpop.f32.mrf.mxu0
    %v3398 = vadd.f32 %v3349, %v3397
    %v3399 = vpop.f32.mrf.mxu0
    %v3400 = vadd.f32 %v3351, %v3399
    %3401 = vmatmul.bf16.gmra.mxu0 %v530
    %v3402 = vpop.f32.mrf.mxu0
    %v3403 = vadd.f32 %v3354, %v3402
    %v3404 = vpop.f32.mrf.mxu0
    %v3405 = vadd.f32 %v3356, %v3404
    %3406 = vmatmul.bf16.gmra.mxu0 %v533
    %v3407 = vpop.f32.mrf.mxu0
    %v3408 = vadd.f32 %v3359, %v3407
    %v3409 = vpop.f32.mrf.mxu0
    %v3410 = vadd.f32 %v3361, %v3409
    %3411 = vmatmul.bf16.gmra.mxu0 %v536
    %v3412 = vpop.f32.mrf.mxu0
    %v3413 = vadd.f32 %v3364, %v3412
    %v3414 = vpop.f32.mrf.mxu0
    %v3415 = vadd.f32 %v3366, %v3414
    %3416 = vmatmul.bf16.gmra.mxu0 %v539
    %v3417 = vpop.f32.mrf.mxu0
    %v3418 = vadd.f32 %v3369, %v3417
    %v3419 = vpop.f32.mrf.mxu0
    %v3420 = vadd.f32 %v3371, %v3419
    %3421 = vmatmul.bf16.gmra.mxu0 %v542
    %v3422 = vpop.f32.mrf.mxu0
    %v3423 = vadd.f32 %v3374, %v3422
    %v3424 = vpop.f32.mrf.mxu0
    %v3425 = vadd.f32 %v3376, %v3424
    %3426 = vmatmul.bf16.gmra.mxu0 %v545
    %v3427 = vpop.f32.mrf.mxu0
    %v3428 = vadd.f32 %v3379, %v3427
    %v3429 = vpop.f32.mrf.mxu0
    %v3430 = vadd.f32 %v3381, %v3429
    %3431 = vdwg.mxu0
    %3432 = vmatpush.bf16.msra.mxu0 %v1720
    %3433 = vmatpush.bf16.msra.mxu0 %v1708
    %3434 = vmatpush.bf16.msra.mxu0 %v1696
    %3435 = vmatpush.bf16.msra.mxu0 %v1684
    %3436 = vmatpush.bf16.msra.mxu0 %v1672
    %3437 = vmatpush.bf16.msra.mxu0 %v1660
    %3438 = vmatpush.bf16.msra.mxu0 %v1648
    %3439 = vmatpush.bf16.msra.mxu0 %v1636
    %3440 = vmatmul.bf16.gmra.mxu0 %v525
    %v3441 = vpop.f32.mrf.mxu0
    %v3442 = vadd.f32 %v3393, %v3441
    %v3443 = vpop.f32.mrf.mxu0
    %v3444 = vadd.f32 %v3395, %v3443
    %3445 = vmatmul.bf16.gmra.mxu0 %v528
    %v3446 = vpop.f32.mrf.mxu0
    %v3447 = vadd.f32 %v3398, %v3446
    %v3448 = vpop.f32.mrf.mxu0
    %v3449 = vadd.f32 %v3400, %v3448
    %3450 = vmatmul.bf16.gmra.mxu0 %v531
    %v3451 = vpop.f32.mrf.mxu0
    %v3452 = vadd.f32 %v3403, %v3451
    %v3453 = vpop.f32.mrf.mxu0
    %v3454 = vadd.f32 %v3405, %v3453
    %3455 = vmatmul.bf16.gmra.mxu0 %v534
    %v3456 = vpop.f32.mrf.mxu0
    %v3457 = vadd.f32 %v3408, %v3456
    %v3458 = vpop.f32.mrf.mxu0
    %v3459 = vadd.f32 %v3410, %v3458
    %3460 = vmatmul.bf16.gmra.mxu0 %v537
    %v3461 = vpop.f32.mrf.mxu0
    %v3462 = vadd.f32 %v3413, %v3461
    %v3463 = vpop.f32.mrf.mxu0
    %v3464 = vadd.f32 %v3415, %v3463
    %3465 = vmatmul.bf16.gmra.mxu0 %v540
    %v3466 = vpop.f32.mrf.mxu0
    %v3467 = vadd.f32 %v3418, %v3466
    %v3468 = vpop.f32.mrf.mxu0
    %v3469 = vadd.f32 %v3420, %v3468
    %3470 = vmatmul.bf16.gmra.mxu0 %v543
    %v3471 = vpop.f32.mrf.mxu0
    %v3472 = vadd.f32 %v3423, %v3471
    %v3473 = vpop.f32.mrf.mxu0
    %v3474 = vadd.f32 %v3425, %v3473
    %3475 = vmatmul.bf16.gmra.mxu0 %v546
    %v3476 = vpop.f32.mrf.mxu0
    %v3477 = vadd.f32 %v3428, %v3476
    %v3478 = vpop.f32.mrf.mxu0
    %v3479 = vadd.f32 %v3430, %v3478
    %3480 = vdwg.mxu0
    %3481 = vmatpush.bf16.msra.mxu0 %v1529
    %3482 = vmatpush.bf16.msra.mxu0 %v1517
    %3483 = vmatpush.bf16.msra.mxu0 %v1505
    %3484 = vmatpush.bf16.msra.mxu0 %v1493
    %3485 = vmatpush.bf16.msra.mxu0 %v1481
    %3486 = vmatpush.bf16.msra.mxu0 %v1469
    %3487 = vmatpush.bf16.msra.mxu0 %v1457
    %3488 = vmatpush.bf16.msra.mxu0 %v1445
    %3489 = vmatmul.bf16.gmra.mxu0 %v523
    %v3490 = vpop.f32.mrf.mxu0
    %v3491 = vadd.f32 %v429, %v3490
    %v3492 = vpop.f32.mrf.mxu0
    %v3493 = vadd.f32 %v429, %v3492
    %3494 = vmatmul.bf16.gmra.mxu0 %v526
    %v3495 = vpop.f32.mrf.mxu0
    %v3496 = vadd.f32 %v429, %v3495
    %v3497 = vpop.f32.mrf.mxu0
    %v3498 = vadd.f32 %v429, %v3497
    %3499 = vmatmul.bf16.gmra.mxu0 %v529
    %v3500 = vpop.f32.mrf.mxu0
    %v3501 = vadd.f32 %v429, %v3500
    %v3502 = vpop.f32.mrf.mxu0
    %v3503 = vadd.f32 %v429, %v3502
    %3504 = vmatmul.bf16.gmra.mxu0 %v532
    %v3505 = vpop.f32.mrf.mxu0
    %v3506 = vadd.f32 %v429, %v3505
    %v3507 = vpop.f32.mrf.mxu0
    %v3508 = vadd.f32 %v429, %v3507
    %3509 = vmatmul.bf16.gmra.mxu0 %v535
    %v3510 = vpop.f32.mrf.mxu0
    %v3511 = vadd.f32 %v429, %v3510
    %v3512 = vpop.f32.mrf.mxu0
    %v3513 = vadd.f32 %v429, %v3512
    %3514 = vmatmul.bf16.gmra.mxu0 %v538
    %v3515 = vpop.f32.mrf.mxu0
    %v3516 = vadd.f32 %v429, %v3515
    %v3517 = vpop.f32.mrf.mxu0
    %v3518 = vadd.f32 %v429, %v3517
    %3519 = vmatmul.bf16.gmra.mxu0 %v541
    %v3520 = vpop.f32.mrf.mxu0
    %v3521 = vadd.f32 %v429, %v3520
    %v3522 = vpop.f32.mrf.mxu0
    %v3523 = vadd.f32 %v429, %v3522
    %3524 = vmatmul.bf16.gmra.mxu0 %v544
    %v3525 = vpop.f32.mrf.mxu0
    %v3526 = vadd.f32 %v429, %v3525
    %v3527 = vpop.f32.mrf.mxu0
    %v3528 = vadd.f32 %v429, %v3527
    %3529 = vdwg.mxu0
    %3530 = vmatpush.bf16.msra.mxu0 %v1625
    %3531 = vmatpush.bf16.msra.mxu0 %v1613
    %3532 = vmatpush.bf16.msra.mxu0 %v1601
    %3533 = vmatpush.bf16.msra.mxu0 %v1589
    %3534 = vmatpush.bf16.msra.mxu0 %v1577
    %3535 = vmatpush.bf16.msra.mxu0 %v1565
    %3536 = vmatpush.bf16.msra.mxu0 %v1553
    %3537 = vmatpush.bf16.msra.mxu0 %v1541
    %3538 = vmatmul.bf16.gmra.mxu0 %v524
    %v3539 = vpop.f32.mrf.mxu0
    %v3540 = vadd.f32 %v3491, %v3539
    %v3541 = vpop.f32.mrf.mxu0
    %v3542 = vadd.f32 %v3493, %v3541
    %3543 = vmatmul.bf16.gmra.mxu0 %v527
    %v3544 = vpop.f32.mrf.mxu0
    %v3545 = vadd.f32 %v3496, %v3544
    %v3546 = vpop.f32.mrf.mxu0
    %v3547 = vadd.f32 %v3498, %v3546
    %3548 = vmatmul.bf16.gmra.mxu0 %v530
    %v3549 = vpop.f32.mrf.mxu0
    %v3550 = vadd.f32 %v3501, %v3549
    %v3551 = vpop.f32.mrf.mxu0
    %v3552 = vadd.f32 %v3503, %v3551
    %3553 = vmatmul.bf16.gmra.mxu0 %v533
    %v3554 = vpop.f32.mrf.mxu0
    %v3555 = vadd.f32 %v3506, %v3554
    %v3556 = vpop.f32.mrf.mxu0
    %v3557 = vadd.f32 %v3508, %v3556
    %3558 = vmatmul.bf16.gmra.mxu0 %v536
    %v3559 = vpop.f32.mrf.mxu0
    %v3560 = vadd.f32 %v3511, %v3559
    %v3561 = vpop.f32.mrf.mxu0
    %v3562 = vadd.f32 %v3513, %v3561
    %3563 = vmatmul.bf16.gmra.mxu0 %v539
    %v3564 = vpop.f32.mrf.mxu0
    %v3565 = vadd.f32 %v3516, %v3564
    %v3566 = vpop.f32.mrf.mxu0
    %v3567 = vadd.f32 %v3518, %v3566
    %3568 = vmatmul.bf16.gmra.mxu0 %v542
    %v3569 = vpop.f32.mrf.mxu0
    %v3570 = vadd.f32 %v3521, %v3569
    %v3571 = vpop.f32.mrf.mxu0
    %v3572 = vadd.f32 %v3523, %v3571
    %3573 = vmatmul.bf16.gmra.mxu0 %v545
    %v3574 = vpop.f32.mrf.mxu0
    %v3575 = vadd.f32 %v3526, %v3574
    %v3576 = vpop.f32.mrf.mxu0
    %v3577 = vadd.f32 %v3528, %v3576
    %3578 = vdwg.mxu0
    %3579 = vmatpush.bf16.msra.mxu0 %v1721
    %3580 = vmatpush.bf16.msra.mxu0 %v1709
    %3581 = vmatpush.bf16.msra.mxu0 %v1697
    %3582 = vmatpush.bf16.msra.mxu0 %v1685
    %3583 = vmatpush.bf16.msra.mxu0 %v1673
    %3584 = vmatpush.bf16.msra.mxu0 %v1661
    %3585 = vmatpush.bf16.msra.mxu0 %v1649
    %3586 = vmatpush.bf16.msra.mxu0 %v1637
    %3587 = vmatmul.bf16.gmra.mxu0 %v525
    %v3588 = vpop.f32.mrf.mxu0
    %v3589 = vadd.f32 %v3540, %v3588
    %v3590 = vpop.f32.mrf.mxu0
    %v3591 = vadd.f32 %v3542, %v3590
    %3592 = vmatmul.bf16.gmra.mxu0 %v528
    %v3593 = vpop.f32.mrf.mxu0
    %v3594 = vadd.f32 %v3545, %v3593
    %v3595 = vpop.f32.mrf.mxu0
    %v3596 = vadd.f32 %v3547, %v3595
    %3597 = vmatmul.bf16.gmra.mxu0 %v531
    %v3598 = vpop.f32.mrf.mxu0
    %v3599 = vadd.f32 %v3550, %v3598
    %v3600 = vpop.f32.mrf.mxu0
    %v3601 = vadd.f32 %v3552, %v3600
    %3602 = vmatmul.bf16.gmra.mxu0 %v534
    %v3603 = vpop.f32.mrf.mxu0
    %v3604 = vadd.f32 %v3555, %v3603
    %v3605 = vpop.f32.mrf.mxu0
    %v3606 = vadd.f32 %v3557, %v3605
    %3607 = vmatmul.bf16.gmra.mxu0 %v537
    %v3608 = vpop.f32.mrf.mxu0
    %v3609 = vadd.f32 %v3560, %v3608
    %v3610 = vpop.f32.mrf.mxu0
    %v3611 = vadd.f32 %v3562, %v3610
    %3612 = vmatmul.bf16.gmra.mxu0 %v540
    %v3613 = vpop.f32.mrf.mxu0
    %v3614 = vadd.f32 %v3565, %v3613
    %v3615 = vpop.f32.mrf.mxu0
    %v3616 = vadd.f32 %v3567, %v3615
    %3617 = vmatmul.bf16.gmra.mxu0 %v543
    %v3618 = vpop.f32.mrf.mxu0
    %v3619 = vadd.f32 %v3570, %v3618
    %v3620 = vpop.f32.mrf.mxu0
    %v3621 = vadd.f32 %v3572, %v3620
    %3622 = vmatmul.bf16.gmra.mxu0 %v546
    %v3623 = vpop.f32.mrf.mxu0
    %v3624 = vadd.f32 %v3575, %v3623
    %v3625 = vpop.f32.mrf.mxu0
    %v3626 = vadd.f32 %v3577, %v3625
    %3627 = vdwg.mxu0
    %3628 = vmatpush.bf16.msra.mxu0 %v1530
    %3629 = vmatpush.bf16.msra.mxu0 %v1518
    %3630 = vmatpush.bf16.msra.mxu0 %v1506
    %3631 = vmatpush.bf16.msra.mxu0 %v1494
    %3632 = vmatpush.bf16.msra.mxu0 %v1482
    %3633 = vmatpush.bf16.msra.mxu0 %v1470
    %3634 = vmatpush.bf16.msra.mxu0 %v1458
    %3635 = vmatpush.bf16.msra.mxu0 %v1446
    %3636 = vmatmul.bf16.gmra.mxu0 %v523
    %v3637 = vpop.f32.mrf.mxu0
    %v3638 = vadd.f32 %v430, %v3637
    %v3639 = vpop.f32.mrf.mxu0
    %v3640 = vadd.f32 %v430, %v3639
    %3641 = vmatmul.bf16.gmra.mxu0 %v526
    %v3642 = vpop.f32.mrf.mxu0
    %v3643 = vadd.f32 %v430, %v3642
    %v3644 = vpop.f32.mrf.mxu0
    %v3645 = vadd.f32 %v430, %v3644
    %3646 = vmatmul.bf16.gmra.mxu0 %v529
    %v3647 = vpop.f32.mrf.mxu0
    %v3648 = vadd.f32 %v430, %v3647
    %v3649 = vpop.f32.mrf.mxu0
    %v3650 = vadd.f32 %v430, %v3649
    %3651 = vmatmul.bf16.gmra.mxu0 %v532
    %v3652 = vpop.f32.mrf.mxu0
    %v3653 = vadd.f32 %v430, %v3652
    %v3654 = vpop.f32.mrf.mxu0
    %v3655 = vadd.f32 %v430, %v3654
    %3656 = vmatmul.bf16.gmra.mxu0 %v535
    %v3657 = vpop.f32.mrf.mxu0
    %v3658 = vadd.f32 %v430, %v3657
    %v3659 = vpop.f32.mrf.mxu0
    %v3660 = vadd.f32 %v430, %v3659
    %3661 = vmatmul.bf16.gmra.mxu0 %v538
    %v3662 = vpop.f32.mrf.mxu0
    %v3663 = vadd.f32 %v430, %v3662
    %v3664 = vpop.f32.mrf.mxu0
    %v3665 = vadd.f32 %v430, %v3664
    %3666 = vmatmul.bf16.gmra.mxu0 %v541
    %v3667 = vpop.f32.mrf.mxu0
    %v3668 = vadd.f32 %v430, %v3667
    %v3669 = vpop.f32.mrf.mxu0
    %v3670 = vadd.f32 %v430, %v3669
    %3671 = vmatmul.bf16.gmra.mxu0 %v544
    %v3672 = vpop.f32.mrf.mxu0
    %v3673 = vadd.f32 %v430, %v3672
    %v3674 = vpop.f32.mrf.mxu0
    %v3675 = vadd.f32 %v430, %v3674
    %3676 = vdwg.mxu0
    %3677 = vmatpush.bf16.msra.mxu0 %v1626
    %3678 = vmatpush.bf16.msra.mxu0 %v1614
    %3679 = vmatpush.bf16.msra.mxu0 %v1602
    %3680 = vmatpush.bf16.msra.mxu0 %v1590
    %3681 = vmatpush.bf16.msra.mxu0 %v1578
    %3682 = vmatpush.bf16.msra.mxu0 %v1566
    %3683 = vmatpush.bf16.msra.mxu0 %v1554
    %3684 = vmatpush.bf16.msra.mxu0 %v1542
    %3685 = vmatmul.bf16.gmra.mxu0 %v524
    %v3686 = vpop.f32.mrf.mxu0
    %v3687 = vadd.f32 %v3638, %v3686
    %v3688 = vpop.f32.mrf.mxu0
    %v3689 = vadd.f32 %v3640, %v3688
    %3690 = vmatmul.bf16.gmra.mxu0 %v527
    %v3691 = vpop.f32.mrf.mxu0
    %v3692 = vadd.f32 %v3643, %v3691
    %v3693 = vpop.f32.mrf.mxu0
    %v3694 = vadd.f32 %v3645, %v3693
    %3695 = vmatmul.bf16.gmra.mxu0 %v530
    %v3696 = vpop.f32.mrf.mxu0
    %v3697 = vadd.f32 %v3648, %v3696
    %v3698 = vpop.f32.mrf.mxu0
    %v3699 = vadd.f32 %v3650, %v3698
    %3700 = vmatmul.bf16.gmra.mxu0 %v533
    %v3701 = vpop.f32.mrf.mxu0
    %v3702 = vadd.f32 %v3653, %v3701
    %v3703 = vpop.f32.mrf.mxu0
    %v3704 = vadd.f32 %v3655, %v3703
    %3705 = vmatmul.bf16.gmra.mxu0 %v536
    %v3706 = vpop.f32.mrf.mxu0
    %v3707 = vadd.f32 %v3658, %v3706
    %v3708 = vpop.f32.mrf.mxu0
    %v3709 = vadd.f32 %v3660, %v3708
    %3710 = vmatmul.bf16.gmra.mxu0 %v539
    %v3711 = vpop.f32.mrf.mxu0
    %v3712 = vadd.f32 %v3663, %v3711
    %v3713 = vpop.f32.mrf.mxu0
    %v3714 = vadd.f32 %v3665, %v3713
    %3715 = vmatmul.bf16.gmra.mxu0 %v542
    %v3716 = vpop.f32.mrf.mxu0
    %v3717 = vadd.f32 %v3668, %v3716
    %v3718 = vpop.f32.mrf.mxu0
    %v3719 = vadd.f32 %v3670, %v3718
    %3720 = vmatmul.bf16.gmra.mxu0 %v545
    %v3721 = vpop.f32.mrf.mxu0
    %v3722 = vadd.f32 %v3673, %v3721
    %v3723 = vpop.f32.mrf.mxu0
    %v3724 = vadd.f32 %v3675, %v3723
    %3725 = vdwg.mxu0
    %3726 = vmatpush.bf16.msra.mxu0 %v1722
    %3727 = vmatpush.bf16.msra.mxu0 %v1710
    %3728 = vmatpush.bf16.msra.mxu0 %v1698
    %3729 = vmatpush.bf16.msra.mxu0 %v1686
    %3730 = vmatpush.bf16.msra.mxu0 %v1674
    %3731 = vmatpush.bf16.msra.mxu0 %v1662
    %3732 = vmatpush.bf16.msra.mxu0 %v1650
    %3733 = vmatpush.bf16.msra.mxu0 %v1638
    %3734 = vmatmul.bf16.gmra.mxu0 %v525
    %v3735 = vpop.f32.mrf.mxu0
    %v3736 = vadd.f32 %v3687, %v3735
    %v3737 = vpop.f32.mrf.mxu0
    %v3738 = vadd.f32 %v3689, %v3737
    %3739 = vmatmul.bf16.gmra.mxu0 %v528
    %v3740 = vpop.f32.mrf.mxu0
    %v3741 = vadd.f32 %v3692, %v3740
    %v3742 = vpop.f32.mrf.mxu0
    %v3743 = vadd.f32 %v3694, %v3742
    %3744 = vmatmul.bf16.gmra.mxu0 %v531
    %v3745 = vpop.f32.mrf.mxu0
    %v3746 = vadd.f32 %v3697, %v3745
    %v3747 = vpop.f32.mrf.mxu0
    %v3748 = vadd.f32 %v3699, %v3747
    %3749 = vmatmul.bf16.gmra.mxu0 %v534
    %v3750 = vpop.f32.mrf.mxu0
    %v3751 = vadd.f32 %v3702, %v3750
    %v3752 = vpop.f32.mrf.mxu0
    %v3753 = vadd.f32 %v3704, %v3752
    %3754 = vmatmul.bf16.gmra.mxu0 %v537
    %v3755 = vpop.f32.mrf.mxu0
    %v3756 = vadd.f32 %v3707, %v3755
    %v3757 = vpop.f32.mrf.mxu0
    %v3758 = vadd.f32 %v3709, %v3757
    %3759 = vmatmul.bf16.gmra.mxu0 %v540
    %v3760 = vpop.f32.mrf.mxu0
    %v3761 = vadd.f32 %v3712, %v3760
    %v3762 = vpop.f32.mrf.mxu0
    %v3763 = vadd.f32 %v3714, %v3762
    %3764 = vmatmul.bf16.gmra.mxu0 %v543
    %v3765 = vpop.f32.mrf.mxu0
    %v3766 = vadd.f32 %v3717, %v3765
    %v3767 = vpop.f32.mrf.mxu0
    %v3768 = vadd.f32 %v3719, %v3767
    %3769 = vmatmul.bf16.gmra.mxu0 %v546
    %v3770 = vpop.f32.mrf.mxu0
    %v3771 = vadd.f32 %v3722, %v3770
    %v3772 = vpop.f32.mrf.mxu0
    %v3773 = vadd.f32 %v3724, %v3772
    %3774 = vdwg.mxu0
    %v3775 = vmax.f32 %v2119, 0.0
    %v3776 = vmax.f32 %v2266, 0.0
    %v3777 = vmax.f32 %v2413, 0.0
    %v3778 = vmax.f32 %v2560, 0.0
    %v3779 = vmax.f32 %v2707, 0.0
    %v3780 = vmax.f32 %v2854, 0.0
    %v3781 = vmax.f32 %v3001, 0.0
    %v3782 = vmax.f32 %v3148, 0.0
    %v3783 = vmax.f32 %v3295, 0.0
    %v3784 = vmax.f32 %v3442, 0.0
    %v3785 = vmax.f32 %v3589, 0.0
    %v3786 = vmax.f32 %v3736, 0.0
    %v3787 = vmax.f32 %v2121, 0.0
    %v3788 = vmax.f32 %v2268, 0.0
    %v3789 = vmax.f32 %v2415, 0.0
    %v3790 = vmax.f32 %v2562, 0.0
    %v3791 = vmax.f32 %v2709, 0.0
    %v3792 = vmax.f32 %v2856, 0.0
    %v3793 = vmax.f32 %v3003, 0.0
    %v3794 = vmax.f32 %v3150, 0.0
    %v3795 = vmax.f32 %v3297, 0.0
    %v3796 = vmax.f32 %v3444, 0.0
    %v3797 = vmax.f32 %v3591, 0.0
    %v3798 = vmax.f32 %v3738, 0.0
    %v3799 = vmax.f32 %v2124, 0.0
    %v3800 = vmax.f32 %v2271, 0.0
    %v3801 = vmax.f32 %v2418, 0.0
    %v3802 = vmax.f32 %v2565, 0.0
    %v3803 = vmax.f32 %v2712, 0.0
    %v3804 = vmax.f32 %v2859, 0.0
    %v3805 = vmax.f32 %v3006, 0.0
    %v3806 = vmax.f32 %v3153, 0.0
    %v3807 = vmax.f32 %v3300, 0.0
    %v3808 = vmax.f32 %v3447, 0.0
    %v3809 = vmax.f32 %v3594, 0.0
    %v3810 = vmax.f32 %v3741, 0.0
    %v3811 = vmax.f32 %v2126, 0.0
    %v3812 = vmax.f32 %v2273, 0.0
    %v3813 = vmax.f32 %v2420, 0.0
    %v3814 = vmax.f32 %v2567, 0.0
    %v3815 = vmax.f32 %v2714, 0.0
    %v3816 = vmax.f32 %v2861, 0.0
    %v3817 = vmax.f32 %v3008, 0.0
    %v3818 = vmax.f32 %v3155, 0.0
    %v3819 = vmax.f32 %v3302, 0.0
    %v3820 = vmax.f32 %v3449, 0.0
    %v3821 = vmax.f32 %v3596, 0.0
    %v3822 = vmax.f32 %v3743, 0.0
    %v3823 = vmax.f32 %v2129, 0.0
    %v3824 = vmax.f32 %v2276, 0.0
    %v3825 = vmax.f32 %v2423, 0.0
    %v3826 = vmax.f32 %v2570, 0.0
    %v3827 = vmax.f32 %v2717, 0.0
    %v3828 = vmax.f32 %v2864, 0.0
    %v3829 = vmax.f32 %v3011, 0.0
    %v3830 = vmax.f32 %v3158, 0.0
    %v3831 = vmax.f32 %v3305, 0.0
    %v3832 = vmax.f32 %v3452, 0.0
    %v3833 = vmax.f32 %v3599, 0.0
    %v3834 = vmax.f32 %v3746, 0.0
    %v3835 = vmax.f32 %v2131, 0.0
    %v3836 = vmax.f32 %v2278, 0.0
    %v3837 = vmax.f32 %v2425, 0.0
    %v3838 = vmax.f32 %v2572, 0.0
    %v3839 = vmax.f32 %v2719, 0.0
    %v3840 = vmax.f32 %v2866, 0.0
    %v3841 = vmax.f32 %v3013, 0.0
    %v3842 = vmax.f32 %v3160, 0.0
    %v3843 = vmax.f32 %v3307, 0.0
    %v3844 = vmax.f32 %v3454, 0.0
    %v3845 = vmax.f32 %v3601, 0.0
    %v3846 = vmax.f32 %v3748, 0.0
    %v3847 = vmax.f32 %v2134, 0.0
    %v3848 = vmax.f32 %v2281, 0.0
    %v3849 = vmax.f32 %v2428, 0.0
    %v3850 = vmax.f32 %v2575, 0.0
    %v3851 = vmax.f32 %v2722, 0.0
    %v3852 = vmax.f32 %v2869, 0.0
    %v3853 = vmax.f32 %v3016, 0.0
    %v3854 = vmax.f32 %v3163, 0.0
    %v3855 = vmax.f32 %v3310, 0.0
    %v3856 = vmax.f32 %v3457, 0.0
    %v3857 = vmax.f32 %v3604, 0.0
    %v3858 = vmax.f32 %v3751, 0.0
    %v3859 = vmax.f32 %v2136, 0.0
    %v3860 = vmax.f32 %v2283, 0.0
    %v3861 = vmax.f32 %v2430, 0.0
    %v3862 = vmax.f32 %v2577, 0.0
    %v3863 = vmax.f32 %v2724, 0.0
    %v3864 = vmax.f32 %v2871, 0.0
    %v3865 = vmax.f32 %v3018, 0.0
    %v3866 = vmax.f32 %v3165, 0.0
    %v3867 = vmax.f32 %v3312, 0.0
    %v3868 = vmax.f32 %v3459, 0.0
    %v3869 = vmax.f32 %v3606, 0.0
    %v3870 = vmax.f32 %v3753, 0.0
    %v3871 = vmax.f32 %v2139, 0.0
    %v3872 = vmax.f32 %v2286, 0.0
    %v3873 = vmax.f32 %v2433, 0.0
    %v3874 = vmax.f32 %v2580, 0.0
    %v3875 = vmax.f32 %v2727, 0.0
    %v3876 = vmax.f32 %v2874, 0.0
    %v3877 = vmax.f32 %v3021, 0.0
    %v3878 = vmax.f32 %v3168, 0.0
    %v3879 = vmax.f32 %v3315, 0.0
    %v3880 = vmax.f32 %v3462, 0.0
    %v3881 = vmax.f32 %v3609, 0.0
    %v3882 = vmax.f32 %v3756, 0.0
    %v3883 = vmax.f32 %v2141, 0.0
    %v3884 = vmax.f32 %v2288, 0.0
    %v3885 = vmax.f32 %v2435, 0.0
    %v3886 = vmax.f32 %v2582, 0.0
    %v3887 = vmax.f32 %v2729, 0.0
    %v3888 = vmax.f32 %v2876, 0.0
    %v3889 = vmax.f32 %v3023, 0.0
    %v3890 = vmax.f32 %v3170, 0.0
    %v3891 = vmax.f32 %v3317, 0.0
    %v3892 = vmax.f32 %v3464, 0.0
    %v3893 = vmax.f32 %v3611, 0.0
    %v3894 = vmax.f32 %v3758, 0.0
    %v3895 = vmax.f32 %v2144, 0.0
    %v3896 = vmax.f32 %v2291, 0.0
    %v3897 = vmax.f32 %v2438, 0.0
    %v3898 = vmax.f32 %v2585, 0.0
    %v3899 = vmax.f32 %v2732, 0.0
    %v3900 = vmax.f32 %v2879, 0.0
    %v3901 = vmax.f32 %v3026, 0.0
    %v3902 = vmax.f32 %v3173, 0.0
    %v3903 = vmax.f32 %v3320, 0.0
    %v3904 = vmax.f32 %v3467, 0.0
    %v3905 = vmax.f32 %v3614, 0.0
    %v3906 = vmax.f32 %v3761, 0.0
    %v3907 = vmax.f32 %v2146, 0.0
    %v3908 = vmax.f32 %v2293, 0.0
    %v3909 = vmax.f32 %v2440, 0.0
    %v3910 = vmax.f32 %v2587, 0.0
    %v3911 = vmax.f32 %v2734, 0.0
    %v3912 = vmax.f32 %v2881, 0.0
    %v3913 = vmax.f32 %v3028, 0.0
    %v3914 = vmax.f32 %v3175, 0.0
    %v3915 = vmax.f32 %v3322, 0.0
    %v3916 = vmax.f32 %v3469, 0.0
    %v3917 = vmax.f32 %v3616, 0.0
    %v3918 = vmax.f32 %v3763, 0.0
    %v3919 = vmax.f32 %v2149, 0.0
    %v3920 = vmax.f32 %v2296, 0.0
    %v3921 = vmax.f32 %v2443, 0.0
    %v3922 = vmax.f32 %v2590, 0.0
    %v3923 = vmax.f32 %v2737, 0.0
    %v3924 = vmax.f32 %v2884, 0.0
    %v3925 = vmax.f32 %v3031, 0.0
    %v3926 = vmax.f32 %v3178, 0.0
    %v3927 = vmax.f32 %v3325, 0.0
    %v3928 = vmax.f32 %v3472, 0.0
    %v3929 = vmax.f32 %v3619, 0.0
    %v3930 = vmax.f32 %v3766, 0.0
    %v3931 = vmax.f32 %v2151, 0.0
    %v3932 = vmax.f32 %v2298, 0.0
    %v3933 = vmax.f32 %v2445, 0.0
    %v3934 = vmax.f32 %v2592, 0.0
    %v3935 = vmax.f32 %v2739, 0.0
    %v3936 = vmax.f32 %v2886, 0.0
    %v3937 = vmax.f32 %v3033, 0.0
    %v3938 = vmax.f32 %v3180, 0.0
    %v3939 = vmax.f32 %v3327, 0.0
    %v3940 = vmax.f32 %v3474, 0.0
    %v3941 = vmax.f32 %v3621, 0.0
    %v3942 = vmax.f32 %v3768, 0.0
    %v3943 = vmax.f32 %v2154, 0.0
    %v3944 = vmax.f32 %v2301, 0.0
    %v3945 = vmax.f32 %v2448, 0.0
    %v3946 = vmax.f32 %v2595, 0.0
    %v3947 = vmax.f32 %v2742, 0.0
    %v3948 = vmax.f32 %v2889, 0.0
    %v3949 = vmax.f32 %v3036, 0.0
    %v3950 = vmax.f32 %v3183, 0.0
    %v3951 = vmax.f32 %v3330, 0.0
    %v3952 = vmax.f32 %v3477, 0.0
    %v3953 = vmax.f32 %v3624, 0.0
    %v3954 = vmax.f32 %v3771, 0.0
    %v3955 = vmax.f32 %v2156, 0.0
    %v3956 = vmax.f32 %v2303, 0.0
    %v3957 = vmax.f32 %v2450, 0.0
    %v3958 = vmax.f32 %v2597, 0.0
    %v3959 = vmax.f32 %v2744, 0.0
    %v3960 = vmax.f32 %v2891, 0.0
    %v3961 = vmax.f32 %v3038, 0.0
    %v3962 = vmax.f32 %v3185, 0.0
    %v3963 = vmax.f32 %v3332, 0.0
    %v3964 = vmax.f32 %v3479, 0.0
    %v3965 = vmax.f32 %v3626, 0.0
    %v3966 = vmax.f32 %v3773, 0.0
    %v3967 = vpack.c.bf16 %v3787, %v3775
    %v3968 = vpack.c.bf16 %v3788, %v3776
    %v3969 = vpack.c.bf16 %v3789, %v3777
    %v3970 = vpack.c.bf16 %v3790, %v3778
    %v3971 = vpack.c.bf16 %v3791, %v3779
    %v3972 = vpack.c.bf16 %v3792, %v3780
    %v3973 = vpack.c.bf16 %v3793, %v3781
    %v3974 = vpack.c.bf16 %v3794, %v3782
    %v3975 = vpack.c.bf16 %v3795, %v3783
    %v3976 = vpack.c.bf16 %v3796, %v3784
    %v3977 = vpack.c.bf16 %v3797, %v3785
    %v3978 = vpack.c.bf16 %v3798, %v3786
    %v3979 = vpack.c.bf16 %v3811, %v3799
    %v3980 = vpack.c.bf16 %v3812, %v3800
    %v3981 = vpack.c.bf16 %v3813, %v3801
    %v3982 = vpack.c.bf16 %v3814, %v3802
    %v3983 = vpack.c.bf16 %v3815, %v3803
    %v3984 = vpack.c.bf16 %v3816, %v3804
    %v3985 = vpack.c.bf16 %v3817, %v3805
    %v3986 = vpack.c.bf16 %v3818, %v3806
    %v3987 = vpack.c.bf16 %v3819, %v3807
    %v3988 = vpack.c.bf16 %v3820, %v3808
    %v3989 = vpack.c.bf16 %v3821, %v3809
    %v3990 = vpack.c.bf16 %v3822, %v3810
    %v3991 = vpack.c.bf16 %v3835, %v3823
    %v3992 = vpack.c.bf16 %v3836, %v3824
    %v3993 = vpack.c.bf16 %v3837, %v3825
    %v3994 = vpack.c.bf16 %v3838, %v3826
    %v3995 = vpack.c.bf16 %v3839, %v3827
    %v3996 = vpack.c.bf16 %v3840, %v3828
    %v3997 = vpack.c.bf16 %v3841, %v3829
    %v3998 = vpack.c.bf16 %v3842, %v3830
    %v3999 = vpack.c.bf16 %v3843, %v3831
    %v4000 = vpack.c.bf16 %v3844, %v3832
    %v4001 = vpack.c.bf16 %v3845, %v3833
    %v4002 = vpack.c.bf16 %v3846, %v3834
    %v4003 = vpack.c.bf16 %v3859, %v3847
    %v4004 = vpack.c.bf16 %v3860, %v3848
    %v4005 = vpack.c.bf16 %v3861, %v3849
    %v4006 = vpack.c.bf16 %v3862, %v3850
    %v4007 = vpack.c.bf16 %v3863, %v3851
    %v4008 = vpack.c.bf16 %v3864, %v3852
    %v4009 = vpack.c.bf16 %v3865, %v3853
    %v4010 = vpack.c.bf16 %v3866, %v3854
    %v4011 = vpack.c.bf16 %v3867, %v3855
    %v4012 = vpack.c.bf16 %v3868, %v3856
    %v4013 = vpack.c.bf16 %v3869, %v3857
    %v4014 = vpack.c.bf16 %v3870, %v3858
    %v4015 = vpack.c.bf16 %v3883, %v3871
    %v4016 = vpack.c.bf16 %v3884, %v3872
    %v4017 = vpack.c.bf16 %v3885, %v3873
    %v4018 = vpack.c.bf16 %v3886, %v3874
    %v4019 = vpack.c.bf16 %v3887, %v3875
    %v4020 = vpack.c.bf16 %v3888, %v3876
    %v4021 = vpack.c.bf16 %v3889, %v3877
    %v4022 = vpack.c.bf16 %v3890, %v3878
    %v4023 = vpack.c.bf16 %v3891, %v3879
    %v4024 = vpack.c.bf16 %v3892, %v3880
    %v4025 = vpack.c.bf16 %v3893, %v3881
    %v4026 = vpack.c.bf16 %v3894, %v3882
    %v4027 = vpack.c.bf16 %v3907, %v3895
    %v4028 = vpack.c.bf16 %v3908, %v3896
    %v4029 = vpack.c.bf16 %v3909, %v3897
    %v4030 = vpack.c.bf16 %v3910, %v3898
    %v4031 = vpack.c.bf16 %v3911, %v3899
    %v4032 = vpack.c.bf16 %v3912, %v3900
    %v4033 = vpack.c.bf16 %v3913, %v3901
    %v4034 = vpack.c.bf16 %v3914, %v3902
    %v4035 = vpack.c.bf16 %v3915, %v3903
    %v4036 = vpack.c.bf16 %v3916, %v3904
    %v4037 = vpack.c.bf16 %v3917, %v3905
    %v4038 = vpack.c.bf16 %v3918, %v3906
    %v4039 = vpack.c.bf16 %v3931, %v3919
    %v4040 = vpack.c.bf16 %v3932, %v3920
    %v4041 = vpack.c.bf16 %v3933, %v3921
    %v4042 = vpack.c.bf16 %v3934, %v3922
    %v4043 = vpack.c.bf16 %v3935, %v3923
    %v4044 = vpack.c.bf16 %v3936, %v3924
    %v4045 = vpack.c.bf16 %v3937, %v3925
    %v4046 = vpack.c.bf16 %v3938, %v3926
    %v4047 = vpack.c.bf16 %v3939, %v3927
    %v4048 = vpack.c.bf16 %v3940, %v3928
    %v4049 = vpack.c.bf16 %v3941, %v3929
    %v4050 = vpack.c.bf16 %v3942, %v3930
    %v4051 = vpack.c.bf16 %v3955, %v3943
    %v4052 = vpack.c.bf16 %v3956, %v3944
    %v4053 = vpack.c.bf16 %v3957, %v3945
    %v4054 = vpack.c.bf16 %v3958, %v3946
    %v4055 = vpack.c.bf16 %v3959, %v3947
    %v4056 = vpack.c.bf16 %v3960, %v3948
    %v4057 = vpack.c.bf16 %v3961, %v3949
    %v4058 = vpack.c.bf16 %v3962, %v3950
    %v4059 = vpack.c.bf16 %v3963, %v3951
    %v4060 = vpack.c.bf16 %v3964, %v3952
    %v4061 = vpack.c.bf16 %v3965, %v3953
    %v4062 = vpack.c.bf16 %v3966, %v3954
    %v4063 = vld [vmem:[#allocation8] sm:$0xff]
    %v4064 = vld [vmem:[#allocation8 + $0x8] sm:$0xf]
    %v4065 = vld [vmem:[#allocation8 + $0xc] sm:$0xff]
    %v4066 = vld [vmem:[#allocation8 + $0x14] sm:$0xf]
    %v4067 = vld [vmem:[#allocation8 + $0x18] sm:$0xff]
    %v4068 = vld [vmem:[#allocation8 + $0x20] sm:$0xf]
    %v4069 = vld [vmem:[#allocation8 + $0x24] sm:$0xff]
    %v4070 = vld [vmem:[#allocation8 + $0x2c] sm:$0xf]
    %v4071 = vld [vmem:[#allocation8 + $0x30] sm:$0xff]
    %v4072 = vld [vmem:[#allocation8 + $0x38] sm:$0xf]
    %v4073 = vld [vmem:[#allocation8 + $0x3c] sm:$0xff]
    %v4074 = vld [vmem:[#allocation8 + $0x44] sm:$0xf]
    %v4075 = vld [vmem:[#allocation8 + $0x48] sm:$0xff]
    %v4076 = vld [vmem:[#allocation8 + $0x50] sm:$0xf]
    %v4077 = vld [vmem:[#allocation8 + $0x54] sm:$0xff]
    %v4078 = vld [vmem:[#allocation8 + $0x5c] sm:$0xf]
    %v4079 = vld [vmem:[#allocation8 + $0x60] sm:$0xff]
    %v4080 = vld [vmem:[#allocation8 + $0x68] sm:$0xf]
    %v4081 = vld [vmem:[#allocation8 + $0x6c] sm:$0xff]
    %v4082 = vld [vmem:[#allocation8 + $0x74] sm:$0xf]
    %v4083 = vld [vmem:[#allocation8 + $0x78] sm:$0xff]
    %v4084 = vld [vmem:[#allocation8 + $0x80] sm:$0xf]
    %v4085 = vld [vmem:[#allocation8 + $0x84] sm:$0xff]
    %v4086 = vld [vmem:[#allocation8 + $0x8c] sm:$0xf]
    %v4087 = vld [vmem:[#allocation8 + $0x90] sm:$0xff]
    %v4088 = vld [vmem:[#allocation8 + $0x98] sm:$0xf]
    %v4089 = vld [vmem:[#allocation8 + $0x9c] sm:$0xff]
    %v4090 = vld [vmem:[#allocation8 + $0xa4] sm:$0xf]
    %v4091 = vld [vmem:[#allocation8 + $0xa8] sm:$0xff]
    %v4092 = vld [vmem:[#allocation8 + $0xb0] sm:$0xf]
    %v4093 = vld [vmem:[#allocation8 + $0xb4] sm:$0xff]
    %v4094 = vld [vmem:[#allocation8 + $0xbc] sm:$0xf]
    %v4095 = vld [vmem:[#allocation8 + $0xc0] sm:$0xff]
    %v4096 = vld [vmem:[#allocation8 + $0xc8] sm:$0xf]
    %v4097 = vld [vmem:[#allocation8 + $0xcc] sm:$0xff]
    %v4098 = vld [vmem:[#allocation8 + $0xd4] sm:$0xf]
    %v4099 = vld [vmem:[#allocation8 + $0xd8] sm:$0xff]
    %v4100 = vld [vmem:[#allocation8 + $0xe0] sm:$0xf]
    %v4101 = vld [vmem:[#allocation8 + $0xe4] sm:$0xff]
    %v4102 = vld [vmem:[#allocation8 + $0xec] sm:$0xf]
    %v4103 = vld [vmem:[#allocation8 + $0xf0] sm:$0xff]
    %v4104 = vld [vmem:[#allocation8 + $0xf8] sm:$0xf]
    %v4105 = vld [vmem:[#allocation8 + $0xfc] sm:$0xff]
    %v4106 = vld [vmem:[#allocation8 + $0x104] sm:$0xf]
    %v4107 = vld [vmem:[#allocation8 + $0x108] sm:$0xff]
    %v4108 = vld [vmem:[#allocation8 + $0x110] sm:$0xf]
    %v4109 = vld [vmem:[#allocation8 + $0x114] sm:$0xff]
    %v4110 = vld [vmem:[#allocation8 + $0x11c] sm:$0xf]
    %v4111 = vld [vmem:[#allocation8 + $0x120] sm:$0xff]
    %v4112 = vld [vmem:[#allocation8 + $0x128] sm:$0xf]
    %v4113 = vld [vmem:[#allocation8 + $0x12c] sm:$0xff]
    %v4114 = vld [vmem:[#allocation8 + $0x134] sm:$0xf]
    %v4115 = vld [vmem:[#allocation8 + $0x138] sm:$0xff]
    %v4116 = vld [vmem:[#allocation8 + $0x140] sm:$0xf]
    %v4117 = vld [vmem:[#allocation8 + $0x144] sm:$0xff]
    %v4118 = vld [vmem:[#allocation8 + $0x14c] sm:$0xf]
    %v4119 = vld [vmem:[#allocation8 + $0x150] sm:$0xff]
    %v4120 = vld [vmem:[#allocation8 + $0x158] sm:$0xf]
    %v4121 = vld [vmem:[#allocation8 + $0x15c] sm:$0xff]
    %v4122 = vld [vmem:[#allocation8 + $0x164] sm:$0xf]
    %v4123 = vld [vmem:[#allocation8 + $0x168] sm:$0xff]
    %v4124 = vld [vmem:[#allocation8 + $0x170] sm:$0xf]
    %v4125 = vld [vmem:[#allocation8 + $0x174] sm:$0xff]
    %v4126 = vld [vmem:[#allocation8 + $0x17c] sm:$0xf]
    %v4127 = vld [vmem:[#allocation8 + $0x180] sm:$0xff]
    %v4128 = vld [vmem:[#allocation8 + $0x188] sm:$0xf]
    %v4129 = vld [vmem:[#allocation8 + $0x18c] sm:$0xff]
    %v4130 = vld [vmem:[#allocation8 + $0x194] sm:$0xf]
    %v4131 = vld [vmem:[#allocation8 + $0x198] sm:$0xff]
    %v4132 = vld [vmem:[#allocation8 + $0x1a0] sm:$0xf]
    %v4133 = vld [vmem:[#allocation8 + $0x1a4] sm:$0xff]
    %v4134 = vld [vmem:[#allocation8 + $0x1ac] sm:$0xf]
    %v4135 = vld [vmem:[#allocation8 + $0x1b0] sm:$0xff]
    %v4136 = vld [vmem:[#allocation8 + $0x1b8] sm:$0xf]
    %v4137 = vld [vmem:[#allocation8 + $0x1bc] sm:$0xff]
    %v4138 = vld [vmem:[#allocation8 + $0x1c4] sm:$0xf]
    %v4139 = vld [vmem:[#allocation8 + $0x1c8] sm:$0xff]
    %v4140 = vld [vmem:[#allocation8 + $0x1d0] sm:$0xf]
    %v4141 = vld [vmem:[#allocation8 + $0x1d4] sm:$0xff]
    %v4142 = vld [vmem:[#allocation8 + $0x1dc] sm:$0xf]
    %v4143 = vld [vmem:[#allocation8 + $0x1e0] sm:$0xff]
    %v4144 = vld [vmem:[#allocation8 + $0x1e8] sm:$0xf]
    %v4145 = vld [vmem:[#allocation8 + $0x1ec] sm:$0xff]
    %v4146 = vld [vmem:[#allocation8 + $0x1f4] sm:$0xf]
    %v4147 = vld [vmem:[#allocation8 + $0x1f8] sm:$0xff]
    %v4148 = vld [vmem:[#allocation8 + $0x200] sm:$0xf]
    %v4149 = vld [vmem:[#allocation8 + $0x204] sm:$0xff]
    %v4150 = vld [vmem:[#allocation8 + $0x20c] sm:$0xf]
    %v4151 = vld [vmem:[#allocation8 + $0x210] sm:$0xff]
    %v4152 = vld [vmem:[#allocation8 + $0x218] sm:$0xf]
    %v4153 = vld [vmem:[#allocation8 + $0x21c] sm:$0xff]
    %v4154 = vld [vmem:[#allocation8 + $0x224] sm:$0xf]
    %v4155 = vld [vmem:[#allocation8 + $0x228] sm:$0xff]
    %v4156 = vld [vmem:[#allocation8 + $0x230] sm:$0xf]
    %v4157 = vld [vmem:[#allocation8 + $0x234] sm:$0xff]
    %v4158 = vld [vmem:[#allocation8 + $0x23c] sm:$0xf]
    %v4159 = vld [vmem:[#allocation8 + $0x240] sm:$0xff]
    %v4160 = vld [vmem:[#allocation8 + $0x248] sm:$0xf]
    %v4161 = vld [vmem:[#allocation8 + $0x24c] sm:$0xff]
    %v4162 = vld [vmem:[#allocation8 + $0x254] sm:$0xf]
    %v4163 = vld [vmem:[#allocation8 + $0x258] sm:$0xff]
    %v4164 = vld [vmem:[#allocation8 + $0x260] sm:$0xf]
    %v4165 = vld [vmem:[#allocation8 + $0x264] sm:$0xff]
    %v4166 = vld [vmem:[#allocation8 + $0x26c] sm:$0xf]
    %v4167 = vld [vmem:[#allocation8 + $0x270] sm:$0xff]
    %v4168 = vld [vmem:[#allocation8 + $0x278] sm:$0xf]
    %v4169 = vld [vmem:[#allocation8 + $0x27c] sm:$0xff]
    %v4170 = vld [vmem:[#allocation8 + $0x284] sm:$0xf]
    %v4171 = vld [vmem:[#allocation8 + $0x288] sm:$0xff]
    %v4172 = vld [vmem:[#allocation8 + $0x290] sm:$0xf]
    %v4173 = vld [vmem:[#allocation8 + $0x294] sm:$0xff]
    %v4174 = vld [vmem:[#allocation8 + $0x29c] sm:$0xf]
    %v4175 = vld [vmem:[#allocation8 + $0x2a0] sm:$0xff]
    %v4176 = vld [vmem:[#allocation8 + $0x2a8] sm:$0xf]
    %v4177 = vld [vmem:[#allocation8 + $0x2ac] sm:$0xff]
    %v4178 = vld [vmem:[#allocation8 + $0x2b4] sm:$0xf]
    %v4179 = vld [vmem:[#allocation8 + $0x2b8] sm:$0xff]
    %v4180 = vld [vmem:[#allocation8 + $0x2c0] sm:$0xf]
    %v4181 = vld [vmem:[#allocation8 + $0x2c4] sm:$0xff]
    %v4182 = vld [vmem:[#allocation8 + $0x2cc] sm:$0xf]
    %v4183 = vld [vmem:[#allocation8 + $0x2d0] sm:$0xff]
    %v4184 = vld [vmem:[#allocation8 + $0x2d8] sm:$0xf]
    %v4185 = vld [vmem:[#allocation8 + $0x2dc] sm:$0xff]
    %v4186 = vld [vmem:[#allocation8 + $0x2e4] sm:$0xf]
    %v4187 = vld [vmem:[#allocation8 + $0x2e8] sm:$0xff]
    %v4188 = vld [vmem:[#allocation8 + $0x2f0] sm:$0xf]
    %v4189 = vld [vmem:[#allocation8 + $0x2f4] sm:$0xff]
    %v4190 = vld [vmem:[#allocation8 + $0x2fc] sm:$0xf]
    %v4191 = vld [vmem:[#allocation8 + $0x300] sm:$0xff]
    %v4192 = vld [vmem:[#allocation8 + $0x308] sm:$0xf]
    %v4193 = vld [vmem:[#allocation8 + $0x30c] sm:$0xff]
    %v4194 = vld [vmem:[#allocation8 + $0x314] sm:$0xf]
    %v4195 = vld [vmem:[#allocation8 + $0x318] sm:$0xff]
    %v4196 = vld [vmem:[#allocation8 + $0x320] sm:$0xf]
    %v4197 = vld [vmem:[#allocation8 + $0x324] sm:$0xff]
    %v4198 = vld [vmem:[#allocation8 + $0x32c] sm:$0xf]
    %v4199 = vld [vmem:[#allocation8 + $0x330] sm:$0xff]
    %v4200 = vld [vmem:[#allocation8 + $0x338] sm:$0xf]
    %v4201 = vld [vmem:[#allocation8 + $0x33c] sm:$0xff]
    %v4202 = vld [vmem:[#allocation8 + $0x344] sm:$0xf]
    %v4203 = vld [vmem:[#allocation8 + $0x348] sm:$0xff]
    %v4204 = vld [vmem:[#allocation8 + $0x350] sm:$0xf]
    %v4205 = vld [vmem:[#allocation8 + $0x354] sm:$0xff]
    %v4206 = vld [vmem:[#allocation8 + $0x35c] sm:$0xf]
    %v4207 = vld [vmem:[#allocation8 + $0x360] sm:$0xff]
    %v4208 = vld [vmem:[#allocation8 + $0x368] sm:$0xf]
    %v4209 = vld [vmem:[#allocation8 + $0x36c] sm:$0xff]
    %v4210 = vld [vmem:[#allocation8 + $0x374] sm:$0xf]
    %v4211 = vld [vmem:[#allocation8 + $0x378] sm:$0xff]
    %v4212 = vld [vmem:[#allocation8 + $0x380] sm:$0xf]
    %v4213 = vld [vmem:[#allocation8 + $0x384] sm:$0xff]
    %v4214 = vld [vmem:[#allocation8 + $0x38c] sm:$0xf]
    %v4215 = vld [vmem:[#allocation8 + $0x390] sm:$0xff]
    %v4216 = vld [vmem:[#allocation8 + $0x398] sm:$0xf]
    %v4217 = vld [vmem:[#allocation8 + $0x39c] sm:$0xff]
    %v4218 = vld [vmem:[#allocation8 + $0x3a4] sm:$0xf]
    %v4219 = vld [vmem:[#allocation8 + $0x3a8] sm:$0xff]
    %v4220 = vld [vmem:[#allocation8 + $0x3b0] sm:$0xf]
    %v4221 = vld [vmem:[#allocation8 + $0x3b4] sm:$0xff]
    %v4222 = vld [vmem:[#allocation8 + $0x3bc] sm:$0xf]
    %v4223 = vld [vmem:[#allocation8 + $0x3c0] sm:$0xff]
    %v4224 = vld [vmem:[#allocation8 + $0x3c8] sm:$0xf]
    %v4225 = vld [vmem:[#allocation8 + $0x3cc] sm:$0xff]
    %v4226 = vld [vmem:[#allocation8 + $0x3d4] sm:$0xf]
    %v4227 = vld [vmem:[#allocation8 + $0x3d8] sm:$0xff]
    %v4228 = vld [vmem:[#allocation8 + $0x3e0] sm:$0xf]
    %v4229 = vld [vmem:[#allocation8 + $0x3e4] sm:$0xff]
    %v4230 = vld [vmem:[#allocation8 + $0x3ec] sm:$0xf]
    %v4231 = vld [vmem:[#allocation8 + $0x3f0] sm:$0xff]
    %v4232 = vld [vmem:[#allocation8 + $0x3f8] sm:$0xf]
    %v4233 = vld [vmem:[#allocation8 + $0x3fc] sm:$0xff]
    %v4234 = vld [vmem:[#allocation8 + $0x404] sm:$0xf]
    %v4235 = vld [vmem:[#allocation8 + $0x408] sm:$0xff]
    %v4236 = vld [vmem:[#allocation8 + $0x410] sm:$0xf]
    %v4237 = vld [vmem:[#allocation8 + $0x414] sm:$0xff]
    %v4238 = vld [vmem:[#allocation8 + $0x41c] sm:$0xf]
    %v4239 = vld [vmem:[#allocation8 + $0x420] sm:$0xff]
    %v4240 = vld [vmem:[#allocation8 + $0x428] sm:$0xf]
    %v4241 = vld [vmem:[#allocation8 + $0x42c] sm:$0xff]
    %v4242 = vld [vmem:[#allocation8 + $0x434] sm:$0xf]
    %v4243 = vld [vmem:[#allocation8 + $0x438] sm:$0xff]
    %v4244 = vld [vmem:[#allocation8 + $0x440] sm:$0xf]
    %v4245 = vld [vmem:[#allocation8 + $0x444] sm:$0xff]
    %v4246 = vld [vmem:[#allocation8 + $0x44c] sm:$0xf]
    %v4247 = vld [vmem:[#allocation8 + $0x450] sm:$0xff]
    %v4248 = vld [vmem:[#allocation8 + $0x458] sm:$0xf]
    %v4249 = vld [vmem:[#allocation8 + $0x45c] sm:$0xff]
    %v4250 = vld [vmem:[#allocation8 + $0x464] sm:$0xf]
    %v4251 = vld [vmem:[#allocation8 + $0x468] sm:$0xff]
    %v4252 = vld [vmem:[#allocation8 + $0x470] sm:$0xf]
    %v4253 = vld [vmem:[#allocation8 + $0x474] sm:$0xff]
    %v4254 = vld [vmem:[#allocation8 + $0x47c] sm:$0xf]
    %v4255 = vld [vmem:[#allocation8 + $0x480] sm:$0xff]
    %v4256 = vld [vmem:[#allocation8 + $0x488] sm:$0xf]
    %v4257 = vld [vmem:[#allocation8 + $0x48c] sm:$0xff]
    %v4258 = vld [vmem:[#allocation8 + $0x494] sm:$0xf]
    %v4259 = vld [vmem:[#allocation8 + $0x498] sm:$0xff]
    %v4260 = vld [vmem:[#allocation8 + $0x4a0] sm:$0xf]
    %v4261 = vld [vmem:[#allocation8 + $0x4a4] sm:$0xff]
    %v4262 = vld [vmem:[#allocation8 + $0x4ac] sm:$0xf]
    %v4263 = vld [vmem:[#allocation8 + $0x4b0] sm:$0xff]
    %v4264 = vld [vmem:[#allocation8 + $0x4b8] sm:$0xf]
    %v4265 = vld [vmem:[#allocation8 + $0x4bc] sm:$0xff]
    %v4266 = vld [vmem:[#allocation8 + $0x4c4] sm:$0xf]
    %v4267 = vld [vmem:[#allocation8 + $0x4c8] sm:$0xff]
    %v4268 = vld [vmem:[#allocation8 + $0x4d0] sm:$0xf]
    %v4269 = vld [vmem:[#allocation8 + $0x4d4] sm:$0xff]
    %v4270 = vld [vmem:[#allocation8 + $0x4dc] sm:$0xf]
    %v4271 = vld [vmem:[#allocation8 + $0x4e0] sm:$0xff]
    %v4272 = vld [vmem:[#allocation8 + $0x4e8] sm:$0xf]
    %v4273 = vld [vmem:[#allocation8 + $0x4ec] sm:$0xff]
    %v4274 = vld [vmem:[#allocation8 + $0x4f4] sm:$0xf]
    %v4275 = vld [vmem:[#allocation8 + $0x4f8] sm:$0xff]
    %v4276 = vld [vmem:[#allocation8 + $0x500] sm:$0xf]
    %v4277 = vld [vmem:[#allocation8 + $0x504] sm:$0xff]
    %v4278 = vld [vmem:[#allocation8 + $0x50c] sm:$0xf]
    %v4279 = vld [vmem:[#allocation8 + $0x510] sm:$0xff]
    %v4280 = vld [vmem:[#allocation8 + $0x518] sm:$0xf]
    %v4281 = vld [vmem:[#allocation8 + $0x51c] sm:$0xff]
    %v4282 = vld [vmem:[#allocation8 + $0x524] sm:$0xf]
    %v4283 = vld [vmem:[#allocation8 + $0x528] sm:$0xff]
    %v4284 = vld [vmem:[#allocation8 + $0x530] sm:$0xf]
    %v4285 = vld [vmem:[#allocation8 + $0x534] sm:$0xff]
    %v4286 = vld [vmem:[#allocation8 + $0x53c] sm:$0xf]
    %v4287 = vld [vmem:[#allocation8 + $0x540] sm:$0xff]
    %v4288 = vld [vmem:[#allocation8 + $0x548] sm:$0xf]
    %v4289 = vld [vmem:[#allocation8 + $0x54c] sm:$0xff]
    %v4290 = vld [vmem:[#allocation8 + $0x554] sm:$0xf]
    %v4291 = vld [vmem:[#allocation8 + $0x558] sm:$0xff]
    %v4292 = vld [vmem:[#allocation8 + $0x560] sm:$0xf]
    %v4293 = vld [vmem:[#allocation8 + $0x564] sm:$0xff]
    %v4294 = vld [vmem:[#allocation8 + $0x56c] sm:$0xf]
    %v4295 = vld [vmem:[#allocation8 + $0x570] sm:$0xff]
    %v4296 = vld [vmem:[#allocation8 + $0x578] sm:$0xf]
    %v4297 = vld [vmem:[#allocation8 + $0x57c] sm:$0xff]
    %v4298 = vld [vmem:[#allocation8 + $0x584] sm:$0xf]
    %v4299 = vld [vmem:[#allocation8 + $0x588] sm:$0xff]
    %v4300 = vld [vmem:[#allocation8 + $0x590] sm:$0xf]
    %v4301 = vld [vmem:[#allocation8 + $0x594] sm:$0xff]
    %v4302 = vld [vmem:[#allocation8 + $0x59c] sm:$0xf]
    %v4303 = vld [vmem:[#allocation8 + $0x5a0] sm:$0xff]
    %v4304 = vld [vmem:[#allocation8 + $0x5a8] sm:$0xf]
    %v4305 = vld [vmem:[#allocation8 + $0x5ac] sm:$0xff]
    %v4306 = vld [vmem:[#allocation8 + $0x5b4] sm:$0xf]
    %v4307 = vld [vmem:[#allocation8 + $0x5b8] sm:$0xff]
    %v4308 = vld [vmem:[#allocation8 + $0x5c0] sm:$0xf]
    %v4309 = vld [vmem:[#allocation8 + $0x5c4] sm:$0xff]
    %v4310 = vld [vmem:[#allocation8 + $0x5cc] sm:$0xf]
    %v4311 = vld [vmem:[#allocation8 + $0x5d0] sm:$0xff]
    %v4312 = vld [vmem:[#allocation8 + $0x5d8] sm:$0xf]
    %v4313 = vld [vmem:[#allocation8 + $0x5dc] sm:$0xff]
    %v4314 = vld [vmem:[#allocation8 + $0x5e4] sm:$0xf]
    %v4315 = vld [vmem:[#allocation8 + $0x5e8] sm:$0xff]
    %v4316 = vld [vmem:[#allocation8 + $0x5f0] sm:$0xf]
    %v4317 = vld [vmem:[#allocation8 + $0x5f4] sm:$0xff]
    %v4318 = vld [vmem:[#allocation8 + $0x5fc] sm:$0xf]
    %v4319 = vld [vmem:[#allocation8 + $0x600] sm:$0xff]
    %v4320 = vld [vmem:[#allocation8 + $0x608] sm:$0xf]
    %v4321 = vld [vmem:[#allocation8 + $0x60c] sm:$0xff]
    %v4322 = vld [vmem:[#allocation8 + $0x614] sm:$0xf]
    %v4323 = vld [vmem:[#allocation8 + $0x618] sm:$0xff]
    %v4324 = vld [vmem:[#allocation8 + $0x620] sm:$0xf]
    %v4325 = vld [vmem:[#allocation8 + $0x624] sm:$0xff]
    %v4326 = vld [vmem:[#allocation8 + $0x62c] sm:$0xf]
    %v4327 = vld [vmem:[#allocation8 + $0x630] sm:$0xff]
    %v4328 = vld [vmem:[#allocation8 + $0x638] sm:$0xf]
    %v4329 = vld [vmem:[#allocation8 + $0x63c] sm:$0xff]
    %v4330 = vld [vmem:[#allocation8 + $0x644] sm:$0xf]
    %v4331 = vld [vmem:[#allocation8 + $0x648] sm:$0xff]
    %v4332 = vld [vmem:[#allocation8 + $0x650] sm:$0xf]
    %v4333 = vld [vmem:[#allocation8 + $0x654] sm:$0xff]
    %v4334 = vld [vmem:[#allocation8 + $0x65c] sm:$0xf]
    %v4335 = vld [vmem:[#allocation8 + $0x660] sm:$0xff]
    %v4336 = vld [vmem:[#allocation8 + $0x668] sm:$0xf]
    %v4337 = vld [vmem:[#allocation8 + $0x66c] sm:$0xff]
    %v4338 = vld [vmem:[#allocation8 + $0x674] sm:$0xf]
    %v4339 = vld [vmem:[#allocation8 + $0x678] sm:$0xff]
    %v4340 = vld [vmem:[#allocation8 + $0x680] sm:$0xf]
    %v4341 = vld [vmem:[#allocation8 + $0x684] sm:$0xff]
    %v4342 = vld [vmem:[#allocation8 + $0x68c] sm:$0xf]
    %v4343 = vld [vmem:[#allocation8 + $0x690] sm:$0xff]
    %v4344 = vld [vmem:[#allocation8 + $0x698] sm:$0xf]
    %v4345 = vld [vmem:[#allocation8 + $0x69c] sm:$0xff]
    %v4346 = vld [vmem:[#allocation8 + $0x6a4] sm:$0xf]
    %v4347 = vld [vmem:[#allocation8 + $0x6a8] sm:$0xff]
    %v4348 = vld [vmem:[#allocation8 + $0x6b0] sm:$0xf]
    %v4349 = vld [vmem:[#allocation8 + $0x6b4] sm:$0xff]
    %v4350 = vld [vmem:[#allocation8 + $0x6bc] sm:$0xf]
    %v4351 = vld [vmem:[#allocation8 + $0x6c0] sm:$0xff]
    %v4352 = vld [vmem:[#allocation8 + $0x6c8] sm:$0xf]
    %v4353 = vld [vmem:[#allocation8 + $0x6cc] sm:$0xff]
    %v4354 = vld [vmem:[#allocation8 + $0x6d4] sm:$0xf]
    %v4355 = vld [vmem:[#allocation8 + $0x6d8] sm:$0xff]
    %v4356 = vld [vmem:[#allocation8 + $0x6e0] sm:$0xf]
    %v4357 = vld [vmem:[#allocation8 + $0x6e4] sm:$0xff]
    %v4358 = vld [vmem:[#allocation8 + $0x6ec] sm:$0xf]
    %v4359 = vld [vmem:[#allocation8 + $0x6f0] sm:$0xff]
    %v4360 = vld [vmem:[#allocation8 + $0x6f8] sm:$0xf]
    %v4361 = vld [vmem:[#allocation8 + $0x6fc] sm:$0xff]
    %v4362 = vld [vmem:[#allocation8 + $0x704] sm:$0xf]
    %v4363 = vld [vmem:[#allocation8 + $0x708] sm:$0xff]
    %v4364 = vld [vmem:[#allocation8 + $0x710] sm:$0xf]
    %v4365 = vld [vmem:[#allocation8 + $0x714] sm:$0xff]
    %v4366 = vld [vmem:[#allocation8 + $0x71c] sm:$0xf]
    %v4367 = vld [vmem:[#allocation8 + $0x720] sm:$0xff]
    %v4368 = vld [vmem:[#allocation8 + $0x728] sm:$0xf]
    %v4369 = vld [vmem:[#allocation8 + $0x72c] sm:$0xff]
    %v4370 = vld [vmem:[#allocation8 + $0x734] sm:$0xf]
    %v4371 = vld [vmem:[#allocation8 + $0x738] sm:$0xff]
    %v4372 = vld [vmem:[#allocation8 + $0x740] sm:$0xf]
    %v4373 = vld [vmem:[#allocation8 + $0x744] sm:$0xff]
    %v4374 = vld [vmem:[#allocation8 + $0x74c] sm:$0xf]
    %v4375 = vld [vmem:[#allocation8 + $0x750] sm:$0xff]
    %v4376 = vld [vmem:[#allocation8 + $0x758] sm:$0xf]
    %v4377 = vld [vmem:[#allocation8 + $0x75c] sm:$0xff]
    %v4378 = vld [vmem:[#allocation8 + $0x764] sm:$0xf]
    %v4379 = vld [vmem:[#allocation8 + $0x768] sm:$0xff]
    %v4380 = vld [vmem:[#allocation8 + $0x770] sm:$0xf]
    %v4381 = vld [vmem:[#allocation8 + $0x774] sm:$0xff]
    %v4382 = vld [vmem:[#allocation8 + $0x77c] sm:$0xf]
    %v4383 = vld [vmem:[#allocation8 + $0x780] sm:$0xff]
    %v4384 = vld [vmem:[#allocation8 + $0x788] sm:$0xf]
    %v4385 = vld [vmem:[#allocation8 + $0x78c] sm:$0xff]
    %v4386 = vld [vmem:[#allocation8 + $0x794] sm:$0xf]
    %v4387 = vld [vmem:[#allocation8 + $0x798] sm:$0xff]
    %v4388 = vld [vmem:[#allocation8 + $0x7a0] sm:$0xf]
    %v4389 = vld [vmem:[#allocation8 + $0x7a4] sm:$0xff]
    %v4390 = vld [vmem:[#allocation8 + $0x7ac] sm:$0xf]
    %v4391 = vld [vmem:[#allocation8 + $0x7b0] sm:$0xff]
    %v4392 = vld [vmem:[#allocation8 + $0x7b8] sm:$0xf]
    %v4393 = vld [vmem:[#allocation8 + $0x7bc] sm:$0xff]
    %v4394 = vld [vmem:[#allocation8 + $0x7c4] sm:$0xf]
    %v4395 = vld [vmem:[#allocation8 + $0x7c8] sm:$0xff]
    %v4396 = vld [vmem:[#allocation8 + $0x7d0] sm:$0xf]
    %v4397 = vld [vmem:[#allocation8 + $0x7d4] sm:$0xff]
    %v4398 = vld [vmem:[#allocation8 + $0x7dc] sm:$0xf]
    %v4399 = vld [vmem:[#allocation8 + $0x7e0] sm:$0xff]
    %v4400 = vld [vmem:[#allocation8 + $0x7e8] sm:$0xf]
    %v4401 = vld [vmem:[#allocation8 + $0x7ec] sm:$0xff]
    %v4402 = vld [vmem:[#allocation8 + $0x7f4] sm:$0xf]
    %v4403 = vld [vmem:[#allocation8 + $0x7f8] sm:$0xff]
    %v4404 = vld [vmem:[#allocation8 + $0x800] sm:$0xf]
    %v4405 = vld [vmem:[#allocation8 + $0x804] sm:$0xff]
    %v4406 = vld [vmem:[#allocation8 + $0x80c] sm:$0xf]
    %v4407 = vld [vmem:[#allocation8 + $0x810] sm:$0xff]
    %v4408 = vld [vmem:[#allocation8 + $0x818] sm:$0xf]
    %v4409 = vld [vmem:[#allocation8 + $0x81c] sm:$0xff]
    %v4410 = vld [vmem:[#allocation8 + $0x824] sm:$0xf]
    %v4411 = vld [vmem:[#allocation8 + $0x828] sm:$0xff]
    %v4412 = vld [vmem:[#allocation8 + $0x830] sm:$0xf]
    %v4413 = vld [vmem:[#allocation8 + $0x834] sm:$0xff]
    %v4414 = vld [vmem:[#allocation8 + $0x83c] sm:$0xf]
    %v4415 = vld [vmem:[#allocation8 + $0x840] sm:$0xff]
    %v4416 = vld [vmem:[#allocation8 + $0x848] sm:$0xf]
    %v4417 = vld [vmem:[#allocation8 + $0x84c] sm:$0xff]
    %v4418 = vld [vmem:[#allocation8 + $0x854] sm:$0xf]
    %v4419 = vld [vmem:[#allocation8 + $0x858] sm:$0xff]
    %v4420 = vld [vmem:[#allocation8 + $0x860] sm:$0xf]
    %v4421 = vld [vmem:[#allocation8 + $0x864] sm:$0xff]
    %v4422 = vld [vmem:[#allocation8 + $0x86c] sm:$0xf]
    %v4423 = vld [vmem:[#allocation8 + $0x870] sm:$0xff]
    %v4424 = vld [vmem:[#allocation8 + $0x878] sm:$0xf]
    %v4425 = vld [vmem:[#allocation8 + $0x87c] sm:$0xff]
    %v4426 = vld [vmem:[#allocation8 + $0x884] sm:$0xf]
    %v4427 = vld [vmem:[#allocation8 + $0x888] sm:$0xff]
    %v4428 = vld [vmem:[#allocation8 + $0x890] sm:$0xf]
    %v4429 = vld [vmem:[#allocation8 + $0x894] sm:$0xff]
    %v4430 = vld [vmem:[#allocation8 + $0x89c] sm:$0xf]
    %v4431 = vld [vmem:[#allocation8 + $0x8a0] sm:$0xff]
    %v4432 = vld [vmem:[#allocation8 + $0x8a8] sm:$0xf]
    %v4433 = vld [vmem:[#allocation8 + $0x8ac] sm:$0xff]
    %v4434 = vld [vmem:[#allocation8 + $0x8b4] sm:$0xf]
    %v4435 = vld [vmem:[#allocation8 + $0x8b8] sm:$0xff]
    %v4436 = vld [vmem:[#allocation8 + $0x8c0] sm:$0xf]
    %v4437 = vld [vmem:[#allocation8 + $0x8c4] sm:$0xff]
    %v4438 = vld [vmem:[#allocation8 + $0x8cc] sm:$0xf]
    %v4439 = vld [vmem:[#allocation8 + $0x8d0] sm:$0xff]
    %v4440 = vld [vmem:[#allocation8 + $0x8d8] sm:$0xf]
    %v4441 = vld [vmem:[#allocation8 + $0x8dc] sm:$0xff]
    %v4442 = vld [vmem:[#allocation8 + $0x8e4] sm:$0xf]
    %v4443 = vld [vmem:[#allocation8 + $0x8e8] sm:$0xff]
    %v4444 = vld [vmem:[#allocation8 + $0x8f0] sm:$0xf]
    %v4445 = vld [vmem:[#allocation8 + $0x8f4] sm:$0xff]
    %v4446 = vld [vmem:[#allocation8 + $0x8fc] sm:$0xf]
    %v4447 = vld [vmem:[#allocation10] sm:$0x7]
    %v4449 = vperm.slane %v4447, 0
    %v4450 = vperm.slane %v4447, 1
    %v4451 = vperm.slane %v4447, 2
    %v4839 = vunpack.c.l.b16 %v4063
    %v4840 = vunpack.c.h.b16 %v4063
    %v4841 = vunpack.c.l.b16 %v4064
    %v4842 = vunpack.c.l.b16 %v4065
    %v4843 = vunpack.c.h.b16 %v4065
    %v4844 = vunpack.c.l.b16 %v4066
    %v4845 = vunpack.c.l.b16 %v4067
    %v4846 = vunpack.c.h.b16 %v4067
    %v4847 = vunpack.c.l.b16 %v4068
    %v4848 = vunpack.c.l.b16 %v4069
    %v4849 = vunpack.c.h.b16 %v4069
    %v4850 = vunpack.c.l.b16 %v4070
    %v4851 = vunpack.c.l.b16 %v4071
    %v4852 = vunpack.c.h.b16 %v4071
    %v4853 = vunpack.c.l.b16 %v4072
    %v4854 = vunpack.c.l.b16 %v4073
    %v4855 = vunpack.c.h.b16 %v4073
    %v4856 = vunpack.c.l.b16 %v4074
    %v4857 = vunpack.c.l.b16 %v4075
    %v4858 = vunpack.c.h.b16 %v4075
    %v4859 = vunpack.c.l.b16 %v4076
    %v4860 = vunpack.c.l.b16 %v4077
    %v4861 = vunpack.c.h.b16 %v4077
    %v4862 = vunpack.c.l.b16 %v4078
    %v4863 = vunpack.c.l.b16 %v4079
    %v4864 = vunpack.c.h.b16 %v4079
    %v4865 = vunpack.c.l.b16 %v4080
    %v4866 = vunpack.c.l.b16 %v4081
    %v4867 = vunpack.c.h.b16 %v4081
    %v4868 = vunpack.c.l.b16 %v4082
    %v4869 = vunpack.c.l.b16 %v4083
    %v4870 = vunpack.c.h.b16 %v4083
    %v4871 = vunpack.c.l.b16 %v4084
    %v4872 = vunpack.c.l.b16 %v4085
    %v4873 = vunpack.c.h.b16 %v4085
    %v4874 = vunpack.c.l.b16 %v4086
    %v4875 = vunpack.c.l.b16 %v4087
    %v4876 = vunpack.c.h.b16 %v4087
    %v4877 = vunpack.c.l.b16 %v4088
    %v4878 = vunpack.c.l.b16 %v4089
    %v4879 = vunpack.c.h.b16 %v4089
    %v4880 = vunpack.c.l.b16 %v4090
    %v4881 = vunpack.c.l.b16 %v4091
    %v4882 = vunpack.c.h.b16 %v4091
    %v4883 = vunpack.c.l.b16 %v4092
    %v4884 = vunpack.c.l.b16 %v4093
    %v4885 = vunpack.c.h.b16 %v4093
    %v4886 = vunpack.c.l.b16 %v4094
    %v4887 = vunpack.c.l.b16 %v4095
    %v4888 = vunpack.c.h.b16 %v4095
    %v4889 = vunpack.c.l.b16 %v4096
    %v4890 = vunpack.c.l.b16 %v4097
    %v4891 = vunpack.c.h.b16 %v4097
    %v4892 = vunpack.c.l.b16 %v4098
    %v4893 = vunpack.c.l.b16 %v4099
    %v4894 = vunpack.c.h.b16 %v4099
    %v4895 = vunpack.c.l.b16 %v4100
    %v4896 = vunpack.c.l.b16 %v4101
    %v4897 = vunpack.c.h.b16 %v4101
    %v4898 = vunpack.c.l.b16 %v4102
    %v4899 = vunpack.c.l.b16 %v4103
    %v4900 = vunpack.c.h.b16 %v4103
    %v4901 = vunpack.c.l.b16 %v4104
    %v4902 = vunpack.c.l.b16 %v4105
    %v4903 = vunpack.c.h.b16 %v4105
    %v4904 = vunpack.c.l.b16 %v4106
    %v4905 = vunpack.c.l.b16 %v4107
    %v4906 = vunpack.c.h.b16 %v4107
    %v4907 = vunpack.c.l.b16 %v4108
    %v4908 = vunpack.c.l.b16 %v4109
    %v4909 = vunpack.c.h.b16 %v4109
    %v4910 = vunpack.c.l.b16 %v4110
    %v4911 = vunpack.c.l.b16 %v4111
    %v4912 = vunpack.c.h.b16 %v4111
    %v4913 = vunpack.c.l.b16 %v4112
    %v4914 = vunpack.c.l.b16 %v4113
    %v4915 = vunpack.c.h.b16 %v4113
    %v4916 = vunpack.c.l.b16 %v4114
    %v4917 = vunpack.c.l.b16 %v4115
    %v4918 = vunpack.c.h.b16 %v4115
    %v4919 = vunpack.c.l.b16 %v4116
    %v4920 = vunpack.c.l.b16 %v4117
    %v4921 = vunpack.c.h.b16 %v4117
    %v4922 = vunpack.c.l.b16 %v4118
    %v4923 = vunpack.c.l.b16 %v4119
    %v4924 = vunpack.c.h.b16 %v4119
    %v4925 = vunpack.c.l.b16 %v4120
    %v4926 = vunpack.c.l.b16 %v4121
    %v4927 = vunpack.c.h.b16 %v4121
    %v4928 = vunpack.c.l.b16 %v4122
    %v4929 = vunpack.c.l.b16 %v4123
    %v4930 = vunpack.c.h.b16 %v4123
    %v4931 = vunpack.c.l.b16 %v4124
    %v4932 = vunpack.c.l.b16 %v4125
    %v4933 = vunpack.c.h.b16 %v4125
    %v4934 = vunpack.c.l.b16 %v4126
    %v4935 = vunpack.c.l.b16 %v4127
    %v4936 = vunpack.c.h.b16 %v4127
    %v4937 = vunpack.c.l.b16 %v4128
    %v4938 = vunpack.c.l.b16 %v4129
    %v4939 = vunpack.c.h.b16 %v4129
    %v4940 = vunpack.c.l.b16 %v4130
    %v4941 = vunpack.c.l.b16 %v4131
    %v4942 = vunpack.c.h.b16 %v4131
    %v4943 = vunpack.c.l.b16 %v4132
    %v4944 = vunpack.c.l.b16 %v4133
    %v4945 = vunpack.c.h.b16 %v4133
    %v4946 = vunpack.c.l.b16 %v4134
    %v4947 = vunpack.c.l.b16 %v4135
    %v4948 = vunpack.c.h.b16 %v4135
    %v4949 = vunpack.c.l.b16 %v4136
    %v4950 = vunpack.c.l.b16 %v4137
    %v4951 = vunpack.c.h.b16 %v4137
    %v4952 = vunpack.c.l.b16 %v4138
    %v4953 = vunpack.c.l.b16 %v4139
    %v4954 = vunpack.c.h.b16 %v4139
    %v4955 = vunpack.c.l.b16 %v4140
    %v4956 = vunpack.c.l.b16 %v4141
    %v4957 = vunpack.c.h.b16 %v4141
    %v4958 = vunpack.c.l.b16 %v4142
    %v4959 = vunpack.c.l.b16 %v4143
    %v4960 = vunpack.c.h.b16 %v4143
    %v4961 = vunpack.c.l.b16 %v4144
    %v4962 = vunpack.c.l.b16 %v4145
    %v4963 = vunpack.c.h.b16 %v4145
    %v4964 = vunpack.c.l.b16 %v4146
    %v4965 = vunpack.c.l.b16 %v4147
    %v4966 = vunpack.c.h.b16 %v4147
    %v4967 = vunpack.c.l.b16 %v4148
    %v4968 = vunpack.c.l.b16 %v4149
    %v4969 = vunpack.c.h.b16 %v4149
    %v4970 = vunpack.c.l.b16 %v4150
    %v4971 = vunpack.c.l.b16 %v4151
    %v4972 = vunpack.c.h.b16 %v4151
    %v4973 = vunpack.c.l.b16 %v4152
    %v4974 = vunpack.c.l.b16 %v4153
    %v4975 = vunpack.c.h.b16 %v4153
    %v4976 = vunpack.c.l.b16 %v4154
    %v4977 = vunpack.c.l.b16 %v4155
    %v4978 = vunpack.c.h.b16 %v4155
    %v4979 = vunpack.c.l.b16 %v4156
    %v4980 = vunpack.c.l.b16 %v4157
    %v4981 = vunpack.c.h.b16 %v4157
    %v4982 = vunpack.c.l.b16 %v4158
    %v4983 = vunpack.c.l.b16 %v4159
    %v4984 = vunpack.c.h.b16 %v4159
    %v4985 = vunpack.c.l.b16 %v4160
    %v4986 = vunpack.c.l.b16 %v4161
    %v4987 = vunpack.c.h.b16 %v4161
    %v4988 = vunpack.c.l.b16 %v4162
    %v4989 = vunpack.c.l.b16 %v4163
    %v4990 = vunpack.c.h.b16 %v4163
    %v4991 = vunpack.c.l.b16 %v4164
    %v4992 = vunpack.c.l.b16 %v4165
    %v4993 = vunpack.c.h.b16 %v4165
    %v4994 = vunpack.c.l.b16 %v4166
    %v4995 = vunpack.c.l.b16 %v4167
    %v4996 = vunpack.c.h.b16 %v4167
    %v4997 = vunpack.c.l.b16 %v4168
    %v4998 = vunpack.c.l.b16 %v4169
    %v4999 = vunpack.c.h.b16 %v4169
    %v5000 = vunpack.c.l.b16 %v4170
    %v5001 = vunpack.c.l.b16 %v4171
    %v5002 = vunpack.c.h.b16 %v4171
    %v5003 = vunpack.c.l.b16 %v4172
    %v5004 = vunpack.c.l.b16 %v4173
    %v5005 = vunpack.c.h.b16 %v4173
    %v5006 = vunpack.c.l.b16 %v4174
    %v5007 = vunpack.c.l.b16 %v4175
    %v5008 = vunpack.c.h.b16 %v4175
    %v5009 = vunpack.c.l.b16 %v4176
    %v5010 = vunpack.c.l.b16 %v4177
    %v5011 = vunpack.c.h.b16 %v4177
    %v5012 = vunpack.c.l.b16 %v4178
    %v5013 = vunpack.c.l.b16 %v4179
    %v5014 = vunpack.c.h.b16 %v4179
    %v5015 = vunpack.c.l.b16 %v4180
    %v5016 = vunpack.c.l.b16 %v4181
    %v5017 = vunpack.c.h.b16 %v4181
    %v5018 = vunpack.c.l.b16 %v4182
    %v5019 = vunpack.c.l.b16 %v4183
    %v5020 = vunpack.c.h.b16 %v4183
    %v5021 = vunpack.c.l.b16 %v4184
    %v5022 = vunpack.c.l.b16 %v4185
    %v5023 = vunpack.c.h.b16 %v4185
    %v5024 = vunpack.c.l.b16 %v4186
    %v5025 = vunpack.c.l.b16 %v4187
    %v5026 = vunpack.c.h.b16 %v4187
    %v5027 = vunpack.c.l.b16 %v4188
    %v5028 = vunpack.c.l.b16 %v4189
    %v5029 = vunpack.c.h.b16 %v4189
    %v5030 = vunpack.c.l.b16 %v4190
    %v5031 = vunpack.c.l.b16 %v4191
    %v5032 = vunpack.c.h.b16 %v4191
    %v5033 = vunpack.c.l.b16 %v4192
    %v5034 = vunpack.c.l.b16 %v4193
    %v5035 = vunpack.c.h.b16 %v4193
    %v5036 = vunpack.c.l.b16 %v4194
    %v5037 = vunpack.c.l.b16 %v4195
    %v5038 = vunpack.c.h.b16 %v4195
    %v5039 = vunpack.c.l.b16 %v4196
    %v5040 = vunpack.c.l.b16 %v4197
    %v5041 = vunpack.c.h.b16 %v4197
    %v5042 = vunpack.c.l.b16 %v4198
    %v5043 = vunpack.c.l.b16 %v4199
    %v5044 = vunpack.c.h.b16 %v4199
    %v5045 = vunpack.c.l.b16 %v4200
    %v5046 = vunpack.c.l.b16 %v4201
    %v5047 = vunpack.c.h.b16 %v4201
    %v5048 = vunpack.c.l.b16 %v4202
    %v5049 = vunpack.c.l.b16 %v4203
    %v5050 = vunpack.c.h.b16 %v4203
    %v5051 = vunpack.c.l.b16 %v4204
    %v5052 = vunpack.c.l.b16 %v4205
    %v5053 = vunpack.c.h.b16 %v4205
    %v5054 = vunpack.c.l.b16 %v4206
    %v5055 = vunpack.c.l.b16 %v4207
    %v5056 = vunpack.c.h.b16 %v4207
    %v5057 = vunpack.c.l.b16 %v4208
    %v5058 = vunpack.c.l.b16 %v4209
    %v5059 = vunpack.c.h.b16 %v4209
    %v5060 = vunpack.c.l.b16 %v4210
    %v5061 = vunpack.c.l.b16 %v4211
    %v5062 = vunpack.c.h.b16 %v4211
    %v5063 = vunpack.c.l.b16 %v4212
    %v5064 = vunpack.c.l.b16 %v4213
    %v5065 = vunpack.c.h.b16 %v4213
    %v5066 = vunpack.c.l.b16 %v4214
    %v5067 = vunpack.c.l.b16 %v4215
    %v5068 = vunpack.c.h.b16 %v4215
    %v5069 = vunpack.c.l.b16 %v4216
    %v5070 = vunpack.c.l.b16 %v4217
    %v5071 = vunpack.c.h.b16 %v4217
    %v5072 = vunpack.c.l.b16 %v4218
    %v5073 = vunpack.c.l.b16 %v4219
    %v5074 = vunpack.c.h.b16 %v4219
    %v5075 = vunpack.c.l.b16 %v4220
    %v5076 = vunpack.c.l.b16 %v4221
    %v5077 = vunpack.c.h.b16 %v4221
    %v5078 = vunpack.c.l.b16 %v4222
    %v5079 = vunpack.c.l.b16 %v4223
    %v5080 = vunpack.c.h.b16 %v4223
    %v5081 = vunpack.c.l.b16 %v4224
    %v5082 = vunpack.c.l.b16 %v4225
    %v5083 = vunpack.c.h.b16 %v4225
    %v5084 = vunpack.c.l.b16 %v4226
    %v5085 = vunpack.c.l.b16 %v4227
    %v5086 = vunpack.c.h.b16 %v4227
    %v5087 = vunpack.c.l.b16 %v4228
    %v5088 = vunpack.c.l.b16 %v4229
    %v5089 = vunpack.c.h.b16 %v4229
    %v5090 = vunpack.c.l.b16 %v4230
    %v5091 = vunpack.c.l.b16 %v4231
    %v5092 = vunpack.c.h.b16 %v4231
    %v5093 = vunpack.c.l.b16 %v4232
    %v5094 = vunpack.c.l.b16 %v4233
    %v5095 = vunpack.c.h.b16 %v4233
    %v5096 = vunpack.c.l.b16 %v4234
    %v5097 = vunpack.c.l.b16 %v4235
    %v5098 = vunpack.c.h.b16 %v4235
    %v5099 = vunpack.c.l.b16 %v4236
    %v5100 = vunpack.c.l.b16 %v4237
    %v5101 = vunpack.c.h.b16 %v4237
    %v5102 = vunpack.c.l.b16 %v4238
    %v5103 = vunpack.c.l.b16 %v4239
    %v5104 = vunpack.c.h.b16 %v4239
    %v5105 = vunpack.c.l.b16 %v4240
    %v5106 = vunpack.c.l.b16 %v4241
    %v5107 = vunpack.c.h.b16 %v4241
    %v5108 = vunpack.c.l.b16 %v4242
    %v5109 = vunpack.c.l.b16 %v4243
    %v5110 = vunpack.c.h.b16 %v4243
    %v5111 = vunpack.c.l.b16 %v4244
    %v5112 = vunpack.c.l.b16 %v4245
    %v5113 = vunpack.c.h.b16 %v4245
    %v5114 = vunpack.c.l.b16 %v4246
    %v5115 = vunpack.c.l.b16 %v4247
    %v5116 = vunpack.c.h.b16 %v4247
    %v5117 = vunpack.c.l.b16 %v4248
    %v5118 = vunpack.c.l.b16 %v4249
    %v5119 = vunpack.c.h.b16 %v4249
    %v5120 = vunpack.c.l.b16 %v4250
    %v5121 = vunpack.c.l.b16 %v4251
    %v5122 = vunpack.c.h.b16 %v4251
    %v5123 = vunpack.c.l.b16 %v4252
    %v5124 = vunpack.c.l.b16 %v4253
    %v5125 = vunpack.c.h.b16 %v4253
    %v5126 = vunpack.c.l.b16 %v4254
    %v5127 = vunpack.c.l.b16 %v4255
    %v5128 = vunpack.c.h.b16 %v4255
    %v5129 = vunpack.c.l.b16 %v4256
    %v5130 = vunpack.c.l.b16 %v4257
    %v5131 = vunpack.c.h.b16 %v4257
    %v5132 = vunpack.c.l.b16 %v4258
    %v5133 = vunpack.c.l.b16 %v4259
    %v5134 = vunpack.c.h.b16 %v4259
    %v5135 = vunpack.c.l.b16 %v4260
    %v5136 = vunpack.c.l.b16 %v4261
    %v5137 = vunpack.c.h.b16 %v4261
    %v5138 = vunpack.c.l.b16 %v4262
    %v5139 = vunpack.c.l.b16 %v4263
    %v5140 = vunpack.c.h.b16 %v4263
    %v5141 = vunpack.c.l.b16 %v4264
    %v5142 = vunpack.c.l.b16 %v4265
    %v5143 = vunpack.c.h.b16 %v4265
    %v5144 = vunpack.c.l.b16 %v4266
    %v5145 = vunpack.c.l.b16 %v4267
    %v5146 = vunpack.c.h.b16 %v4267
    %v5147 = vunpack.c.l.b16 %v4268
    %v5148 = vunpack.c.l.b16 %v4269
    %v5149 = vunpack.c.h.b16 %v4269
    %v5150 = vunpack.c.l.b16 %v4270
    %v5151 = vunpack.c.l.b16 %v4271
    %v5152 = vunpack.c.h.b16 %v4271
    %v5153 = vunpack.c.l.b16 %v4272
    %v5154 = vunpack.c.l.b16 %v4273
    %v5155 = vunpack.c.h.b16 %v4273
    %v5156 = vunpack.c.l.b16 %v4274
    %v5157 = vunpack.c.l.b16 %v4275
    %v5158 = vunpack.c.h.b16 %v4275
    %v5159 = vunpack.c.l.b16 %v4276
    %v5160 = vunpack.c.l.b16 %v4277
    %v5161 = vunpack.c.h.b16 %v4277
    %v5162 = vunpack.c.l.b16 %v4278
    %v5163 = vunpack.c.l.b16 %v4279
    %v5164 = vunpack.c.h.b16 %v4279
    %v5165 = vunpack.c.l.b16 %v4280
    %v5166 = vunpack.c.l.b16 %v4281
    %v5167 = vunpack.c.h.b16 %v4281
    %v5168 = vunpack.c.l.b16 %v4282
    %v5169 = vunpack.c.l.b16 %v4283
    %v5170 = vunpack.c.h.b16 %v4283
    %v5171 = vunpack.c.l.b16 %v4284
    %v5172 = vunpack.c.l.b16 %v4285
    %v5173 = vunpack.c.h.b16 %v4285
    %v5174 = vunpack.c.l.b16 %v4286
    %v5175 = vunpack.c.l.b16 %v4287
    %v5176 = vunpack.c.h.b16 %v4287
    %v5177 = vunpack.c.l.b16 %v4288
    %v5178 = vunpack.c.l.b16 %v4289
    %v5179 = vunpack.c.h.b16 %v4289
    %v5180 = vunpack.c.l.b16 %v4290
    %v5181 = vunpack.c.l.b16 %v4291
    %v5182 = vunpack.c.h.b16 %v4291
    %v5183 = vunpack.c.l.b16 %v4292
    %v5184 = vunpack.c.l.b16 %v4293
    %v5185 = vunpack.c.h.b16 %v4293
    %v5186 = vunpack.c.l.b16 %v4294
    %v5187 = vunpack.c.l.b16 %v4295
    %v5188 = vunpack.c.h.b16 %v4295
    %v5189 = vunpack.c.l.b16 %v4296
    %v5190 = vunpack.c.l.b16 %v4297
    %v5191 = vunpack.c.h.b16 %v4297
    %v5192 = vunpack.c.l.b16 %v4298
    %v5193 = vunpack.c.l.b16 %v4299
    %v5194 = vunpack.c.h.b16 %v4299
    %v5195 = vunpack.c.l.b16 %v4300
    %v5196 = vunpack.c.l.b16 %v4301
    %v5197 = vunpack.c.h.b16 %v4301
    %v5198 = vunpack.c.l.b16 %v4302
    %v5199 = vunpack.c.l.b16 %v4303
    %v5200 = vunpack.c.h.b16 %v4303
    %v5201 = vunpack.c.l.b16 %v4304
    %v5202 = vunpack.c.l.b16 %v4305
    %v5203 = vunpack.c.h.b16 %v4305
    %v5204 = vunpack.c.l.b16 %v4306
    %v5205 = vunpack.c.l.b16 %v4307
    %v5206 = vunpack.c.h.b16 %v4307
    %v5207 = vunpack.c.l.b16 %v4308
    %v5208 = vunpack.c.l.b16 %v4309
    %v5209 = vunpack.c.h.b16 %v4309
    %v5210 = vunpack.c.l.b16 %v4310
    %v5211 = vunpack.c.l.b16 %v4311
    %v5212 = vunpack.c.h.b16 %v4311
    %v5213 = vunpack.c.l.b16 %v4312
    %v5214 = vunpack.c.l.b16 %v4313
    %v5215 = vunpack.c.h.b16 %v4313
    %v5216 = vunpack.c.l.b16 %v4314
    %v5217 = vunpack.c.l.b16 %v4315
    %v5218 = vunpack.c.h.b16 %v4315
    %v5219 = vunpack.c.l.b16 %v4316
    %v5220 = vunpack.c.l.b16 %v4317
    %v5221 = vunpack.c.h.b16 %v4317
    %v5222 = vunpack.c.l.b16 %v4318
    %v5223 = vunpack.c.l.b16 %v4319
    %v5224 = vunpack.c.h.b16 %v4319
    %v5225 = vunpack.c.l.b16 %v4320
    %v5226 = vunpack.c.l.b16 %v4321
    %v5227 = vunpack.c.h.b16 %v4321
    %v5228 = vunpack.c.l.b16 %v4322
    %v5229 = vunpack.c.l.b16 %v4323
    %v5230 = vunpack.c.h.b16 %v4323
    %v5231 = vunpack.c.l.b16 %v4324
    %v5232 = vunpack.c.l.b16 %v4325
    %v5233 = vunpack.c.h.b16 %v4325
    %v5234 = vunpack.c.l.b16 %v4326
    %v5235 = vunpack.c.l.b16 %v4327
    %v5236 = vunpack.c.h.b16 %v4327
    %v5237 = vunpack.c.l.b16 %v4328
    %v5238 = vunpack.c.l.b16 %v4329
    %v5239 = vunpack.c.h.b16 %v4329
    %v5240 = vunpack.c.l.b16 %v4330
    %v5241 = vunpack.c.l.b16 %v4331
    %v5242 = vunpack.c.h.b16 %v4331
    %v5243 = vunpack.c.l.b16 %v4332
    %v5244 = vunpack.c.l.b16 %v4333
    %v5245 = vunpack.c.h.b16 %v4333
    %v5246 = vunpack.c.l.b16 %v4334
    %v5247 = vunpack.c.l.b16 %v4335
    %v5248 = vunpack.c.h.b16 %v4335
    %v5249 = vunpack.c.l.b16 %v4336
    %v5250 = vunpack.c.l.b16 %v4337
    %v5251 = vunpack.c.h.b16 %v4337
    %v5252 = vunpack.c.l.b16 %v4338
    %v5253 = vunpack.c.l.b16 %v4339
    %v5254 = vunpack.c.h.b16 %v4339
    %v5255 = vunpack.c.l.b16 %v4340
    %v5256 = vunpack.c.l.b16 %v4341
    %v5257 = vunpack.c.h.b16 %v4341
    %v5258 = vunpack.c.l.b16 %v4342
    %v5259 = vunpack.c.l.b16 %v4343
    %v5260 = vunpack.c.h.b16 %v4343
    %v5261 = vunpack.c.l.b16 %v4344
    %v5262 = vunpack.c.l.b16 %v4345
    %v5263 = vunpack.c.h.b16 %v4345
    %v5264 = vunpack.c.l.b16 %v4346
    %v5265 = vunpack.c.l.b16 %v4347
    %v5266 = vunpack.c.h.b16 %v4347
    %v5267 = vunpack.c.l.b16 %v4348
    %v5268 = vunpack.c.l.b16 %v4349
    %v5269 = vunpack.c.h.b16 %v4349
    %v5270 = vunpack.c.l.b16 %v4350
    %v5271 = vunpack.c.l.b16 %v4351
    %v5272 = vunpack.c.h.b16 %v4351
    %v5273 = vunpack.c.l.b16 %v4352
    %v5274 = vunpack.c.l.b16 %v4353
    %v5275 = vunpack.c.h.b16 %v4353
    %v5276 = vunpack.c.l.b16 %v4354
    %v5277 = vunpack.c.l.b16 %v4355
    %v5278 = vunpack.c.h.b16 %v4355
    %v5279 = vunpack.c.l.b16 %v4356
    %v5280 = vunpack.c.l.b16 %v4357
    %v5281 = vunpack.c.h.b16 %v4357
    %v5282 = vunpack.c.l.b16 %v4358
    %v5283 = vunpack.c.l.b16 %v4359
    %v5284 = vunpack.c.h.b16 %v4359
    %v5285 = vunpack.c.l.b16 %v4360
    %v5286 = vunpack.c.l.b16 %v4361
    %v5287 = vunpack.c.h.b16 %v4361
    %v5288 = vunpack.c.l.b16 %v4362
    %v5289 = vunpack.c.l.b16 %v4363
    %v5290 = vunpack.c.h.b16 %v4363
    %v5291 = vunpack.c.l.b16 %v4364
    %v5292 = vunpack.c.l.b16 %v4365
    %v5293 = vunpack.c.h.b16 %v4365
    %v5294 = vunpack.c.l.b16 %v4366
    %v5295 = vunpack.c.l.b16 %v4367
    %v5296 = vunpack.c.h.b16 %v4367
    %v5297 = vunpack.c.l.b16 %v4368
    %v5298 = vunpack.c.l.b16 %v4369
    %v5299 = vunpack.c.h.b16 %v4369
    %v5300 = vunpack.c.l.b16 %v4370
    %v5301 = vunpack.c.l.b16 %v4371
    %v5302 = vunpack.c.h.b16 %v4371
    %v5303 = vunpack.c.l.b16 %v4372
    %v5304 = vunpack.c.l.b16 %v4373
    %v5305 = vunpack.c.h.b16 %v4373
    %v5306 = vunpack.c.l.b16 %v4374
    %v5307 = vunpack.c.l.b16 %v4375
    %v5308 = vunpack.c.h.b16 %v4375
    %v5309 = vunpack.c.l.b16 %v4376
    %v5310 = vunpack.c.l.b16 %v4377
    %v5311 = vunpack.c.h.b16 %v4377
    %v5312 = vunpack.c.l.b16 %v4378
    %v5313 = vunpack.c.l.b16 %v4379
    %v5314 = vunpack.c.h.b16 %v4379
    %v5315 = vunpack.c.l.b16 %v4380
    %v5316 = vunpack.c.l.b16 %v4381
    %v5317 = vunpack.c.h.b16 %v4381
    %v5318 = vunpack.c.l.b16 %v4382
    %v5319 = vunpack.c.l.b16 %v4383
    %v5320 = vunpack.c.h.b16 %v4383
    %v5321 = vunpack.c.l.b16 %v4384
    %v5322 = vunpack.c.l.b16 %v4385
    %v5323 = vunpack.c.h.b16 %v4385
    %v5324 = vunpack.c.l.b16 %v4386
    %v5325 = vunpack.c.l.b16 %v4387
    %v5326 = vunpack.c.h.b16 %v4387
    %v5327 = vunpack.c.l.b16 %v4388
    %v5328 = vunpack.c.l.b16 %v4389
    %v5329 = vunpack.c.h.b16 %v4389
    %v5330 = vunpack.c.l.b16 %v4390
    %v5331 = vunpack.c.l.b16 %v4391
    %v5332 = vunpack.c.h.b16 %v4391
    %v5333 = vunpack.c.l.b16 %v4392
    %v5334 = vunpack.c.l.b16 %v4393
    %v5335 = vunpack.c.h.b16 %v4393
    %v5336 = vunpack.c.l.b16 %v4394
    %v5337 = vunpack.c.l.b16 %v4395
    %v5338 = vunpack.c.h.b16 %v4395
    %v5339 = vunpack.c.l.b16 %v4396
    %v5340 = vunpack.c.l.b16 %v4397
    %v5341 = vunpack.c.h.b16 %v4397
    %v5342 = vunpack.c.l.b16 %v4398
    %v5343 = vunpack.c.l.b16 %v4399
    %v5344 = vunpack.c.h.b16 %v4399
    %v5345 = vunpack.c.l.b16 %v4400
    %v5346 = vunpack.c.l.b16 %v4401
    %v5347 = vunpack.c.h.b16 %v4401
    %v5348 = vunpack.c.l.b16 %v4402
    %v5349 = vunpack.c.l.b16 %v4403
    %v5350 = vunpack.c.h.b16 %v4403
    %v5351 = vunpack.c.l.b16 %v4404
    %v5352 = vunpack.c.l.b16 %v4405
    %v5353 = vunpack.c.h.b16 %v4405
    %v5354 = vunpack.c.l.b16 %v4406
    %v5355 = vunpack.c.l.b16 %v4407
    %v5356 = vunpack.c.h.b16 %v4407
    %v5357 = vunpack.c.l.b16 %v4408
    %v5358 = vunpack.c.l.b16 %v4409
    %v5359 = vunpack.c.h.b16 %v4409
    %v5360 = vunpack.c.l.b16 %v4410
    %v5361 = vunpack.c.l.b16 %v4411
    %v5362 = vunpack.c.h.b16 %v4411
    %v5363 = vunpack.c.l.b16 %v4412
    %v5364 = vunpack.c.l.b16 %v4413
    %v5365 = vunpack.c.h.b16 %v4413
    %v5366 = vunpack.c.l.b16 %v4414
    %v5367 = vunpack.c.l.b16 %v4415
    %v5368 = vunpack.c.h.b16 %v4415
    %v5369 = vunpack.c.l.b16 %v4416
    %v5370 = vunpack.c.l.b16 %v4417
    %v5371 = vunpack.c.h.b16 %v4417
    %v5372 = vunpack.c.l.b16 %v4418
    %v5373 = vunpack.c.l.b16 %v4419
    %v5374 = vunpack.c.h.b16 %v4419
    %v5375 = vunpack.c.l.b16 %v4420
    %v5376 = vunpack.c.l.b16 %v4421
    %v5377 = vunpack.c.h.b16 %v4421
    %v5378 = vunpack.c.l.b16 %v4422
    %v5379 = vunpack.c.l.b16 %v4423
    %v5380 = vunpack.c.h.b16 %v4423
    %v5381 = vunpack.c.l.b16 %v4424
    %v5382 = vunpack.c.l.b16 %v4425
    %v5383 = vunpack.c.h.b16 %v4425
    %v5384 = vunpack.c.l.b16 %v4426
    %v5385 = vunpack.c.l.b16 %v4427
    %v5386 = vunpack.c.h.b16 %v4427
    %v5387 = vunpack.c.l.b16 %v4428
    %v5388 = vunpack.c.l.b16 %v4429
    %v5389 = vunpack.c.h.b16 %v4429
    %v5390 = vunpack.c.l.b16 %v4430
    %v5391 = vunpack.c.l.b16 %v4431
    %v5392 = vunpack.c.h.b16 %v4431
    %v5393 = vunpack.c.l.b16 %v4432
    %v5394 = vunpack.c.l.b16 %v4433
    %v5395 = vunpack.c.h.b16 %v4433
    %v5396 = vunpack.c.l.b16 %v4434
    %v5397 = vunpack.c.l.b16 %v4435
    %v5398 = vunpack.c.h.b16 %v4435
    %v5399 = vunpack.c.l.b16 %v4436
    %v5400 = vunpack.c.l.b16 %v4437
    %v5401 = vunpack.c.h.b16 %v4437
    %v5402 = vunpack.c.l.b16 %v4438
    %v5403 = vunpack.c.l.b16 %v4439
    %v5404 = vunpack.c.h.b16 %v4439
    %v5405 = vunpack.c.l.b16 %v4440
    %v5406 = vunpack.c.l.b16 %v4441
    %v5407 = vunpack.c.h.b16 %v4441
    %v5408 = vunpack.c.l.b16 %v4442
    %v5409 = vunpack.c.l.b16 %v4443
    %v5410 = vunpack.c.h.b16 %v4443
    %v5411 = vunpack.c.l.b16 %v4444
    %v5412 = vunpack.c.l.b16 %v4445
    %v5413 = vunpack.c.h.b16 %v4445
    %v5414 = vunpack.c.l.b16 %v4446
    %v5415 = vpack.c.b16 %v4842, %v4839
    %v5416 = vpack.c.b16 %v4843, %v4840
    %v5417 = vpack.c.b16 %v4844, %v4841
    %v5418 = vpack.c.b16 %v4848, %v4845
    %v5419 = vpack.c.b16 %v4849, %v4846
    %v5420 = vpack.c.b16 %v4850, %v4847
    %v5421 = vpack.c.b16 %v4854, %v4851
    %v5422 = vpack.c.b16 %v4855, %v4852
    %v5423 = vpack.c.b16 %v4856, %v4853
    %v5424 = vpack.c.b16 %v4860, %v4857
    %v5425 = vpack.c.b16 %v4861, %v4858
    %v5426 = vpack.c.b16 %v4862, %v4859
    %v5427 = vpack.c.b16 %v4866, %v4863
    %v5428 = vpack.c.b16 %v4867, %v4864
    %v5429 = vpack.c.b16 %v4868, %v4865
    %v5430 = vpack.c.b16 %v4872, %v4869
    %v5431 = vpack.c.b16 %v4873, %v4870
    %v5432 = vpack.c.b16 %v4874, %v4871
    %v5433 = vpack.c.b16 %v4878, %v4875
    %v5434 = vpack.c.b16 %v4879, %v4876
    %v5435 = vpack.c.b16 %v4880, %v4877
    %v5436 = vpack.c.b16 %v4884, %v4881
    %v5437 = vpack.c.b16 %v4885, %v4882
    %v5438 = vpack.c.b16 %v4886, %v4883
    %v5439 = vpack.c.b16 %v4890, %v4887
    %v5440 = vpack.c.b16 %v4891, %v4888
    %v5441 = vpack.c.b16 %v4892, %v4889
    %v5442 = vpack.c.b16 %v4896, %v4893
    %v5443 = vpack.c.b16 %v4897, %v4894
    %v5444 = vpack.c.b16 %v4898, %v4895
    %v5445 = vpack.c.b16 %v4902, %v4899
    %v5446 = vpack.c.b16 %v4903, %v4900
    %v5447 = vpack.c.b16 %v4904, %v4901
    %v5448 = vpack.c.b16 %v4908, %v4905
    %v5449 = vpack.c.b16 %v4909, %v4906
    %v5450 = vpack.c.b16 %v4910, %v4907
    %v5451 = vpack.c.b16 %v4914, %v4911
    %v5452 = vpack.c.b16 %v4915, %v4912
    %v5453 = vpack.c.b16 %v4916, %v4913
    %v5454 = vpack.c.b16 %v4920, %v4917
    %v5455 = vpack.c.b16 %v4921, %v4918
    %v5456 = vpack.c.b16 %v4922, %v4919
    %v5457 = vpack.c.b16 %v4926, %v4923
    %v5458 = vpack.c.b16 %v4927, %v4924
    %v5459 = vpack.c.b16 %v4928, %v4925
    %v5460 = vpack.c.b16 %v4932, %v4929
    %v5461 = vpack.c.b16 %v4933, %v4930
    %v5462 = vpack.c.b16 %v4934, %v4931
    %v5463 = vpack.c.b16 %v4938, %v4935
    %v5464 = vpack.c.b16 %v4939, %v4936
    %v5465 = vpack.c.b16 %v4940, %v4937
    %v5466 = vpack.c.b16 %v4944, %v4941
    %v5467 = vpack.c.b16 %v4945, %v4942
    %v5468 = vpack.c.b16 %v4946, %v4943
    %v5469 = vpack.c.b16 %v4950, %v4947
    %v5470 = vpack.c.b16 %v4951, %v4948
    %v5471 = vpack.c.b16 %v4952, %v4949
    %v5472 = vpack.c.b16 %v4956, %v4953
    %v5473 = vpack.c.b16 %v4957, %v4954
    %v5474 = vpack.c.b16 %v4958, %v4955
    %v5475 = vpack.c.b16 %v4962, %v4959
    %v5476 = vpack.c.b16 %v4963, %v4960
    %v5477 = vpack.c.b16 %v4964, %v4961
    %v5478 = vpack.c.b16 %v4968, %v4965
    %v5479 = vpack.c.b16 %v4969, %v4966
    %v5480 = vpack.c.b16 %v4970, %v4967
    %v5481 = vpack.c.b16 %v4974, %v4971
    %v5482 = vpack.c.b16 %v4975, %v4972
    %v5483 = vpack.c.b16 %v4976, %v4973
    %v5484 = vpack.c.b16 %v4980, %v4977
    %v5485 = vpack.c.b16 %v4981, %v4978
    %v5486 = vpack.c.b16 %v4982, %v4979
    %v5487 = vpack.c.b16 %v4986, %v4983
    %v5488 = vpack.c.b16 %v4987, %v4984
    %v5489 = vpack.c.b16 %v4988, %v4985
    %v5490 = vpack.c.b16 %v4992, %v4989
    %v5491 = vpack.c.b16 %v4993, %v4990
    %v5492 = vpack.c.b16 %v4994, %v4991
    %v5493 = vpack.c.b16 %v4998, %v4995
    %v5494 = vpack.c.b16 %v4999, %v4996
    %v5495 = vpack.c.b16 %v5000, %v4997
    %v5496 = vpack.c.b16 %v5004, %v5001
    %v5497 = vpack.c.b16 %v5005, %v5002
    %v5498 = vpack.c.b16 %v5006, %v5003
    %v5499 = vpack.c.b16 %v5010, %v5007
    %v5500 = vpack.c.b16 %v5011, %v5008
    %v5501 = vpack.c.b16 %v5012, %v5009
    %v5502 = vpack.c.b16 %v5016, %v5013
    %v5503 = vpack.c.b16 %v5017, %v5014
    %v5504 = vpack.c.b16 %v5018, %v5015
    %v5505 = vpack.c.b16 %v5022, %v5019
    %v5506 = vpack.c.b16 %v5023, %v5020
    %v5507 = vpack.c.b16 %v5024, %v5021
    %v5508 = vpack.c.b16 %v5028, %v5025
    %v5509 = vpack.c.b16 %v5029, %v5026
    %v5510 = vpack.c.b16 %v5030, %v5027
    %v5511 = vpack.c.b16 %v5034, %v5031
    %v5512 = vpack.c.b16 %v5035, %v5032
    %v5513 = vpack.c.b16 %v5036, %v5033
    %v5514 = vpack.c.b16 %v5040, %v5037
    %v5515 = vpack.c.b16 %v5041, %v5038
    %v5516 = vpack.c.b16 %v5042, %v5039
    %v5517 = vpack.c.b16 %v5046, %v5043
    %v5518 = vpack.c.b16 %v5047, %v5044
    %v5519 = vpack.c.b16 %v5048, %v5045
    %v5520 = vpack.c.b16 %v5052, %v5049
    %v5521 = vpack.c.b16 %v5053, %v5050
    %v5522 = vpack.c.b16 %v5054, %v5051
    %v5523 = vpack.c.b16 %v5058, %v5055
    %v5524 = vpack.c.b16 %v5059, %v5056
    %v5525 = vpack.c.b16 %v5060, %v5057
    %v5526 = vpack.c.b16 %v5064, %v5061
    %v5527 = vpack.c.b16 %v5065, %v5062
    %v5528 = vpack.c.b16 %v5066, %v5063
    %v5529 = vpack.c.b16 %v5070, %v5067
    %v5530 = vpack.c.b16 %v5071, %v5068
    %v5531 = vpack.c.b16 %v5072, %v5069
    %v5532 = vpack.c.b16 %v5076, %v5073
    %v5533 = vpack.c.b16 %v5077, %v5074
    %v5534 = vpack.c.b16 %v5078, %v5075
    %v5535 = vpack.c.b16 %v5082, %v5079
    %v5536 = vpack.c.b16 %v5083, %v5080
    %v5537 = vpack.c.b16 %v5084, %v5081
    %v5538 = vpack.c.b16 %v5088, %v5085
    %v5539 = vpack.c.b16 %v5089, %v5086
    %v5540 = vpack.c.b16 %v5090, %v5087
    %v5541 = vpack.c.b16 %v5094, %v5091
    %v5542 = vpack.c.b16 %v5095, %v5092
    %v5543 = vpack.c.b16 %v5096, %v5093
    %v5544 = vpack.c.b16 %v5100, %v5097
    %v5545 = vpack.c.b16 %v5101, %v5098
    %v5546 = vpack.c.b16 %v5102, %v5099
    %v5547 = vpack.c.b16 %v5106, %v5103
    %v5548 = vpack.c.b16 %v5107, %v5104
    %v5549 = vpack.c.b16 %v5108, %v5105
    %v5550 = vpack.c.b16 %v5112, %v5109
    %v5551 = vpack.c.b16 %v5113, %v5110
    %v5552 = vpack.c.b16 %v5114, %v5111
    %v5553 = vpack.c.b16 %v5118, %v5115
    %v5554 = vpack.c.b16 %v5119, %v5116
    %v5555 = vpack.c.b16 %v5120, %v5117
    %v5556 = vpack.c.b16 %v5124, %v5121
    %v5557 = vpack.c.b16 %v5125, %v5122
    %v5558 = vpack.c.b16 %v5126, %v5123
    %v5559 = vpack.c.b16 %v5130, %v5127
    %v5560 = vpack.c.b16 %v5131, %v5128
    %v5561 = vpack.c.b16 %v5132, %v5129
    %v5562 = vpack.c.b16 %v5136, %v5133
    %v5563 = vpack.c.b16 %v5137, %v5134
    %v5564 = vpack.c.b16 %v5138, %v5135
    %v5565 = vpack.c.b16 %v5142, %v5139
    %v5566 = vpack.c.b16 %v5143, %v5140
    %v5567 = vpack.c.b16 %v5144, %v5141
    %v5568 = vpack.c.b16 %v5148, %v5145
    %v5569 = vpack.c.b16 %v5149, %v5146
    %v5570 = vpack.c.b16 %v5150, %v5147
    %v5571 = vpack.c.b16 %v5154, %v5151
    %v5572 = vpack.c.b16 %v5155, %v5152
    %v5573 = vpack.c.b16 %v5156, %v5153
    %v5574 = vpack.c.b16 %v5160, %v5157
    %v5575 = vpack.c.b16 %v5161, %v5158
    %v5576 = vpack.c.b16 %v5162, %v5159
    %v5577 = vpack.c.b16 %v5166, %v5163
    %v5578 = vpack.c.b16 %v5167, %v5164
    %v5579 = vpack.c.b16 %v5168, %v5165
    %v5580 = vpack.c.b16 %v5172, %v5169
    %v5581 = vpack.c.b16 %v5173, %v5170
    %v5582 = vpack.c.b16 %v5174, %v5171
    %v5583 = vpack.c.b16 %v5178, %v5175
    %v5584 = vpack.c.b16 %v5179, %v5176
    %v5585 = vpack.c.b16 %v5180, %v5177
    %v5586 = vpack.c.b16 %v5184, %v5181
    %v5587 = vpack.c.b16 %v5185, %v5182
    %v5588 = vpack.c.b16 %v5186, %v5183
    %v5589 = vpack.c.b16 %v5190, %v5187
    %v5590 = vpack.c.b16 %v5191, %v5188
    %v5591 = vpack.c.b16 %v5192, %v5189
    %v5592 = vpack.c.b16 %v5196, %v5193
    %v5593 = vpack.c.b16 %v5197, %v5194
    %v5594 = vpack.c.b16 %v5198, %v5195
    %v5595 = vpack.c.b16 %v5202, %v5199
    %v5596 = vpack.c.b16 %v5203, %v5200
    %v5597 = vpack.c.b16 %v5204, %v5201
    %v5598 = vpack.c.b16 %v5208, %v5205
    %v5599 = vpack.c.b16 %v5209, %v5206
    %v5600 = vpack.c.b16 %v5210, %v5207
    %v5601 = vpack.c.b16 %v5214, %v5211
    %v5602 = vpack.c.b16 %v5215, %v5212
    %v5603 = vpack.c.b16 %v5216, %v5213
    %v5604 = vpack.c.b16 %v5220, %v5217
    %v5605 = vpack.c.b16 %v5221, %v5218
    %v5606 = vpack.c.b16 %v5222, %v5219
    %v5607 = vpack.c.b16 %v5226, %v5223
    %v5608 = vpack.c.b16 %v5227, %v5224
    %v5609 = vpack.c.b16 %v5228, %v5225
    %v5610 = vpack.c.b16 %v5232, %v5229
    %v5611 = vpack.c.b16 %v5233, %v5230
    %v5612 = vpack.c.b16 %v5234, %v5231
    %v5613 = vpack.c.b16 %v5238, %v5235
    %v5614 = vpack.c.b16 %v5239, %v5236
    %v5615 = vpack.c.b16 %v5240, %v5237
    %v5616 = vpack.c.b16 %v5244, %v5241
    %v5617 = vpack.c.b16 %v5245, %v5242
    %v5618 = vpack.c.b16 %v5246, %v5243
    %v5619 = vpack.c.b16 %v5250, %v5247
    %v5620 = vpack.c.b16 %v5251, %v5248
    %v5621 = vpack.c.b16 %v5252, %v5249
    %v5622 = vpack.c.b16 %v5256, %v5253
    %v5623 = vpack.c.b16 %v5257, %v5254
    %v5624 = vpack.c.b16 %v5258, %v5255
    %v5625 = vpack.c.b16 %v5262, %v5259
    %v5626 = vpack.c.b16 %v5263, %v5260
    %v5627 = vpack.c.b16 %v5264, %v5261
    %v5628 = vpack.c.b16 %v5268, %v5265
    %v5629 = vpack.c.b16 %v5269, %v5266
    %v5630 = vpack.c.b16 %v5270, %v5267
    %v5631 = vpack.c.b16 %v5274, %v5271
    %v5632 = vpack.c.b16 %v5275, %v5272
    %v5633 = vpack.c.b16 %v5276, %v5273
    %v5634 = vpack.c.b16 %v5280, %v5277
    %v5635 = vpack.c.b16 %v5281, %v5278
    %v5636 = vpack.c.b16 %v5282, %v5279
    %v5637 = vpack.c.b16 %v5286, %v5283
    %v5638 = vpack.c.b16 %v5287, %v5284
    %v5639 = vpack.c.b16 %v5288, %v5285
    %v5640 = vpack.c.b16 %v5292, %v5289
    %v5641 = vpack.c.b16 %v5293, %v5290
    %v5642 = vpack.c.b16 %v5294, %v5291
    %v5643 = vpack.c.b16 %v5298, %v5295
    %v5644 = vpack.c.b16 %v5299, %v5296
    %v5645 = vpack.c.b16 %v5300, %v5297
    %v5646 = vpack.c.b16 %v5304, %v5301
    %v5647 = vpack.c.b16 %v5305, %v5302
    %v5648 = vpack.c.b16 %v5306, %v5303
    %v5649 = vpack.c.b16 %v5310, %v5307
    %v5650 = vpack.c.b16 %v5311, %v5308
    %v5651 = vpack.c.b16 %v5312, %v5309
    %v5652 = vpack.c.b16 %v5316, %v5313
    %v5653 = vpack.c.b16 %v5317, %v5314
    %v5654 = vpack.c.b16 %v5318, %v5315
    %v5655 = vpack.c.b16 %v5322, %v5319
    %v5656 = vpack.c.b16 %v5323, %v5320
    %v5657 = vpack.c.b16 %v5324, %v5321
    %v5658 = vpack.c.b16 %v5328, %v5325
    %v5659 = vpack.c.b16 %v5329, %v5326
    %v5660 = vpack.c.b16 %v5330, %v5327
    %v5661 = vpack.c.b16 %v5334, %v5331
    %v5662 = vpack.c.b16 %v5335, %v5332
    %v5663 = vpack.c.b16 %v5336, %v5333
    %v5664 = vpack.c.b16 %v5340, %v5337
    %v5665 = vpack.c.b16 %v5341, %v5338
    %v5666 = vpack.c.b16 %v5342, %v5339
    %v5667 = vpack.c.b16 %v5346, %v5343
    %v5668 = vpack.c.b16 %v5347, %v5344
    %v5669 = vpack.c.b16 %v5348, %v5345
    %v5670 = vpack.c.b16 %v5352, %v5349
    %v5671 = vpack.c.b16 %v5353, %v5350
    %v5672 = vpack.c.b16 %v5354, %v5351
    %v5673 = vpack.c.b16 %v5358, %v5355
    %v5674 = vpack.c.b16 %v5359, %v5356
    %v5675 = vpack.c.b16 %v5360, %v5357
    %v5676 = vpack.c.b16 %v5364, %v5361
    %v5677 = vpack.c.b16 %v5365, %v5362
    %v5678 = vpack.c.b16 %v5366, %v5363
    %v5679 = vpack.c.b16 %v5370, %v5367
    %v5680 = vpack.c.b16 %v5371, %v5368
    %v5681 = vpack.c.b16 %v5372, %v5369
    %v5682 = vpack.c.b16 %v5376, %v5373
    %v5683 = vpack.c.b16 %v5377, %v5374
    %v5684 = vpack.c.b16 %v5378, %v5375
    %v5685 = vpack.c.b16 %v5382, %v5379
    %v5686 = vpack.c.b16 %v5383, %v5380
    %v5687 = vpack.c.b16 %v5384, %v5381
    %v5688 = vpack.c.b16 %v5388, %v5385
    %v5689 = vpack.c.b16 %v5389, %v5386
    %v5690 = vpack.c.b16 %v5390, %v5387
    %v5691 = vpack.c.b16 %v5394, %v5391
    %v5692 = vpack.c.b16 %v5395, %v5392
    %v5693 = vpack.c.b16 %v5396, %v5393
    %v5694 = vpack.c.b16 %v5400, %v5397
    %v5695 = vpack.c.b16 %v5401, %v5398
    %v5696 = vpack.c.b16 %v5402, %v5399
    %v5697 = vpack.c.b16 %v5406, %v5403
    %v5698 = vpack.c.b16 %v5407, %v5404
    %v5699 = vpack.c.b16 %v5408, %v5405
    %v5700 = vpack.c.b16 %v5412, %v5409
    %v5701 = vpack.c.b16 %v5413, %v5410
    %v5702 = vpack.c.b16 %v5414, %v5411
    %5991 = vmatpush.bf16.msra.mxu0 %v5436
    %5992 = vmatpush.bf16.msra.mxu0 %v5433
    %5993 = vmatpush.bf16.msra.mxu0 %v5430
    %5994 = vmatpush.bf16.msra.mxu0 %v5427
    %5995 = vmatpush.bf16.msra.mxu0 %v5424
    %5996 = vmatpush.bf16.msra.mxu0 %v5421
    %5997 = vmatpush.bf16.msra.mxu0 %v5418
    %5998 = vmatpush.bf16.msra.mxu0 %v5415
    %5999 = vmatmul.bf16.gmra.mxu0 %v3967
    %v6000 = vpop.f32.mrf.mxu0
    %v6001 = vadd.f32 %v4449, %v6000
    %v6002 = vpop.f32.mrf.mxu0
    %v6003 = vadd.f32 %v4449, %v6002
    %6004 = vmatmul.bf16.gmra.mxu0 %v3979
    %v6005 = vpop.f32.mrf.mxu0
    %v6006 = vadd.f32 %v4449, %v6005
    %v6007 = vpop.f32.mrf.mxu0
    %v6008 = vadd.f32 %v4449, %v6007
    %6009 = vmatmul.bf16.gmra.mxu0 %v3991
    %v6010 = vpop.f32.mrf.mxu0
    %v6011 = vadd.f32 %v4449, %v6010
    %v6012 = vpop.f32.mrf.mxu0
    %v6013 = vadd.f32 %v4449, %v6012
    %6014 = vmatmul.bf16.gmra.mxu0 %v4003
    %v6015 = vpop.f32.mrf.mxu0
    %v6016 = vadd.f32 %v4449, %v6015
    %v6017 = vpop.f32.mrf.mxu0
    %v6018 = vadd.f32 %v4449, %v6017
    %6019 = vmatmul.bf16.gmra.mxu0 %v4015
    %v6020 = vpop.f32.mrf.mxu0
    %v6021 = vadd.f32 %v4449, %v6020
    %v6022 = vpop.f32.mrf.mxu0
    %v6023 = vadd.f32 %v4449, %v6022
    %6024 = vmatmul.bf16.gmra.mxu0 %v4027
    %v6025 = vpop.f32.mrf.mxu0
    %v6026 = vadd.f32 %v4449, %v6025
    %v6027 = vpop.f32.mrf.mxu0
    %v6028 = vadd.f32 %v4449, %v6027
    %6029 = vmatmul.bf16.gmra.mxu0 %v4039
    %v6030 = vpop.f32.mrf.mxu0
    %v6031 = vadd.f32 %v4449, %v6030
    %v6032 = vpop.f32.mrf.mxu0
    %v6033 = vadd.f32 %v4449, %v6032
    %6034 = vmatmul.bf16.gmra.mxu0 %v4051
    %v6035 = vpop.f32.mrf.mxu0
    %v6036 = vadd.f32 %v4449, %v6035
    %v6037 = vpop.f32.mrf.mxu0
    %v6038 = vadd.f32 %v4449, %v6037
    %6039 = vdwg.mxu0
    %6040 = vmatpush.bf16.msra.mxu0 %v5460
    %6041 = vmatpush.bf16.msra.mxu0 %v5457
    %6042 = vmatpush.bf16.msra.mxu0 %v5454
    %6043 = vmatpush.bf16.msra.mxu0 %v5451
    %6044 = vmatpush.bf16.msra.mxu0 %v5448
    %6045 = vmatpush.bf16.msra.mxu0 %v5445
    %6046 = vmatpush.bf16.msra.mxu0 %v5442
    %6047 = vmatpush.bf16.msra.mxu0 %v5439
    %6048 = vmatmul.bf16.gmra.mxu0 %v3968
    %v6049 = vpop.f32.mrf.mxu0
    %v6050 = vadd.f32 %v6001, %v6049
    %v6051 = vpop.f32.mrf.mxu0
    %v6052 = vadd.f32 %v6003, %v6051
    %6053 = vmatmul.bf16.gmra.mxu0 %v3980
    %v6054 = vpop.f32.mrf.mxu0
    %v6055 = vadd.f32 %v6006, %v6054
    %v6056 = vpop.f32.mrf.mxu0
    %v6057 = vadd.f32 %v6008, %v6056
    %6058 = vmatmul.bf16.gmra.mxu0 %v3992
    %v6059 = vpop.f32.mrf.mxu0
    %v6060 = vadd.f32 %v6011, %v6059
    %v6061 = vpop.f32.mrf.mxu0
    %v6062 = vadd.f32 %v6013, %v6061
    %6063 = vmatmul.bf16.gmra.mxu0 %v4004
    %v6064 = vpop.f32.mrf.mxu0
    %v6065 = vadd.f32 %v6016, %v6064
    %v6066 = vpop.f32.mrf.mxu0
    %v6067 = vadd.f32 %v6018, %v6066
    %6068 = vmatmul.bf16.gmra.mxu0 %v4016
    %v6069 = vpop.f32.mrf.mxu0
    %v6070 = vadd.f32 %v6021, %v6069
    %v6071 = vpop.f32.mrf.mxu0
    %v6072 = vadd.f32 %v6023, %v6071
    %6073 = vmatmul.bf16.gmra.mxu0 %v4028
    %v6074 = vpop.f32.mrf.mxu0
    %v6075 = vadd.f32 %v6026, %v6074
    %v6076 = vpop.f32.mrf.mxu0
    %v6077 = vadd.f32 %v6028, %v6076
    %6078 = vmatmul.bf16.gmra.mxu0 %v4040
    %v6079 = vpop.f32.mrf.mxu0
    %v6080 = vadd.f32 %v6031, %v6079
    %v6081 = vpop.f32.mrf.mxu0
    %v6082 = vadd.f32 %v6033, %v6081
    %6083 = vmatmul.bf16.gmra.mxu0 %v4052
    %v6084 = vpop.f32.mrf.mxu0
    %v6085 = vadd.f32 %v6036, %v6084
    %v6086 = vpop.f32.mrf.mxu0
    %v6087 = vadd.f32 %v6038, %v6086
    %6088 = vdwg.mxu0
    %6089 = vmatpush.bf16.msra.mxu0 %v5484
    %6090 = vmatpush.bf16.msra.mxu0 %v5481
    %6091 = vmatpush.bf16.msra.mxu0 %v5478
    %6092 = vmatpush.bf16.msra.mxu0 %v5475
    %6093 = vmatpush.bf16.msra.mxu0 %v5472
    %6094 = vmatpush.bf16.msra.mxu0 %v5469
    %6095 = vmatpush.bf16.msra.mxu0 %v5466
    %6096 = vmatpush.bf16.msra.mxu0 %v5463
    %6097 = vmatmul.bf16.gmra.mxu0 %v3969
    %v6098 = vpop.f32.mrf.mxu0
    %v6099 = vadd.f32 %v6050, %v6098
    %v6100 = vpop.f32.mrf.mxu0
    %v6101 = vadd.f32 %v6052, %v6100
    %6102 = vmatmul.bf16.gmra.mxu0 %v3981
    %v6103 = vpop.f32.mrf.mxu0
    %v6104 = vadd.f32 %v6055, %v6103
    %v6105 = vpop.f32.mrf.mxu0
    %v6106 = vadd.f32 %v6057, %v6105
    %6107 = vmatmul.bf16.gmra.mxu0 %v3993
    %v6108 = vpop.f32.mrf.mxu0
    %v6109 = vadd.f32 %v6060, %v6108
    %v6110 = vpop.f32.mrf.mxu0
    %v6111 = vadd.f32 %v6062, %v6110
    %6112 = vmatmul.bf16.gmra.mxu0 %v4005
    %v6113 = vpop.f32.mrf.mxu0
    %v6114 = vadd.f32 %v6065, %v6113
    %v6115 = vpop.f32.mrf.mxu0
    %v6116 = vadd.f32 %v6067, %v6115
    %6117 = vmatmul.bf16.gmra.mxu0 %v4017
    %v6118 = vpop.f32.mrf.mxu0
    %v6119 = vadd.f32 %v6070, %v6118
    %v6120 = vpop.f32.mrf.mxu0
    %v6121 = vadd.f32 %v6072, %v6120
    %6122 = vmatmul.bf16.gmra.mxu0 %v4029
    %v6123 = vpop.f32.mrf.mxu0
    %v6124 = vadd.f32 %v6075, %v6123
    %v6125 = vpop.f32.mrf.mxu0
    %v6126 = vadd.f32 %v6077, %v6125
    %6127 = vmatmul.bf16.gmra.mxu0 %v4041
    %v6128 = vpop.f32.mrf.mxu0
    %v6129 = vadd.f32 %v6080, %v6128
    %v6130 = vpop.f32.mrf.mxu0
    %v6131 = vadd.f32 %v6082, %v6130
    %6132 = vmatmul.bf16.gmra.mxu0 %v4053
    %v6133 = vpop.f32.mrf.mxu0
    %v6134 = vadd.f32 %v6085, %v6133
    %v6135 = vpop.f32.mrf.mxu0
    %v6136 = vadd.f32 %v6087, %v6135
    %6137 = vdwg.mxu0
    %6138 = vmatpush.bf16.msra.mxu0 %v5508
    %6139 = vmatpush.bf16.msra.mxu0 %v5505
    %6140 = vmatpush.bf16.msra.mxu0 %v5502
    %6141 = vmatpush.bf16.msra.mxu0 %v5499
    %6142 = vmatpush.bf16.msra.mxu0 %v5496
    %6143 = vmatpush.bf16.msra.mxu0 %v5493
    %6144 = vmatpush.bf16.msra.mxu0 %v5490
    %6145 = vmatpush.bf16.msra.mxu0 %v5487
    %6146 = vmatmul.bf16.gmra.mxu0 %v3970
    %v6147 = vpop.f32.mrf.mxu0
    %v6148 = vadd.f32 %v6099, %v6147
    %v6149 = vpop.f32.mrf.mxu0
    %v6150 = vadd.f32 %v6101, %v6149
    %6151 = vmatmul.bf16.gmra.mxu0 %v3982
    %v6152 = vpop.f32.mrf.mxu0
    %v6153 = vadd.f32 %v6104, %v6152
    %v6154 = vpop.f32.mrf.mxu0
    %v6155 = vadd.f32 %v6106, %v6154
    %6156 = vmatmul.bf16.gmra.mxu0 %v3994
    %v6157 = vpop.f32.mrf.mxu0
    %v6158 = vadd.f32 %v6109, %v6157
    %v6159 = vpop.f32.mrf.mxu0
    %v6160 = vadd.f32 %v6111, %v6159
    %6161 = vmatmul.bf16.gmra.mxu0 %v4006
    %v6162 = vpop.f32.mrf.mxu0
    %v6163 = vadd.f32 %v6114, %v6162
    %v6164 = vpop.f32.mrf.mxu0
    %v6165 = vadd.f32 %v6116, %v6164
    %6166 = vmatmul.bf16.gmra.mxu0 %v4018
    %v6167 = vpop.f32.mrf.mxu0
    %v6168 = vadd.f32 %v6119, %v6167
    %v6169 = vpop.f32.mrf.mxu0
    %v6170 = vadd.f32 %v6121, %v6169
    %6171 = vmatmul.bf16.gmra.mxu0 %v4030
    %v6172 = vpop.f32.mrf.mxu0
    %v6173 = vadd.f32 %v6124, %v6172
    %v6174 = vpop.f32.mrf.mxu0
    %v6175 = vadd.f32 %v6126, %v6174
    %6176 = vmatmul.bf16.gmra.mxu0 %v4042
    %v6177 = vpop.f32.mrf.mxu0
    %v6178 = vadd.f32 %v6129, %v6177
    %v6179 = vpop.f32.mrf.mxu0
    %v6180 = vadd.f32 %v6131, %v6179
    %6181 = vmatmul.bf16.gmra.mxu0 %v4054
    %v6182 = vpop.f32.mrf.mxu0
    %v6183 = vadd.f32 %v6134, %v6182
    %v6184 = vpop.f32.mrf.mxu0
    %v6185 = vadd.f32 %v6136, %v6184
    %6186 = vdwg.mxu0
    %6187 = vmatpush.bf16.msra.mxu0 %v5532
    %6188 = vmatpush.bf16.msra.mxu0 %v5529
    %6189 = vmatpush.bf16.msra.mxu0 %v5526
    %6190 = vmatpush.bf16.msra.mxu0 %v5523
    %6191 = vmatpush.bf16.msra.mxu0 %v5520
    %6192 = vmatpush.bf16.msra.mxu0 %v5517
    %6193 = vmatpush.bf16.msra.mxu0 %v5514
    %6194 = vmatpush.bf16.msra.mxu0 %v5511
    %6195 = vmatmul.bf16.gmra.mxu0 %v3971
    %v6196 = vpop.f32.mrf.mxu0
    %v6197 = vadd.f32 %v6148, %v6196
    %v6198 = vpop.f32.mrf.mxu0
    %v6199 = vadd.f32 %v6150, %v6198
    %6200 = vmatmul.bf16.gmra.mxu0 %v3983
    %v6201 = vpop.f32.mrf.mxu0
    %v6202 = vadd.f32 %v6153, %v6201
    %v6203 = vpop.f32.mrf.mxu0
    %v6204 = vadd.f32 %v6155, %v6203
    %6205 = vmatmul.bf16.gmra.mxu0 %v3995
    %v6206 = vpop.f32.mrf.mxu0
    %v6207 = vadd.f32 %v6158, %v6206
    %v6208 = vpop.f32.mrf.mxu0
    %v6209 = vadd.f32 %v6160, %v6208
    %6210 = vmatmul.bf16.gmra.mxu0 %v4007
    %v6211 = vpop.f32.mrf.mxu0
    %v6212 = vadd.f32 %v6163, %v6211
    %v6213 = vpop.f32.mrf.mxu0
    %v6214 = vadd.f32 %v6165, %v6213
    %6215 = vmatmul.bf16.gmra.mxu0 %v4019
    %v6216 = vpop.f32.mrf.mxu0
    %v6217 = vadd.f32 %v6168, %v6216
    %v6218 = vpop.f32.mrf.mxu0
    %v6219 = vadd.f32 %v6170, %v6218
    %6220 = vmatmul.bf16.gmra.mxu0 %v4031
    %v6221 = vpop.f32.mrf.mxu0
    %v6222 = vadd.f32 %v6173, %v6221
    %v6223 = vpop.f32.mrf.mxu0
    %v6224 = vadd.f32 %v6175, %v6223
    %6225 = vmatmul.bf16.gmra.mxu0 %v4043
    %v6226 = vpop.f32.mrf.mxu0
    %v6227 = vadd.f32 %v6178, %v6226
    %v6228 = vpop.f32.mrf.mxu0
    %v6229 = vadd.f32 %v6180, %v6228
    %6230 = vmatmul.bf16.gmra.mxu0 %v4055
    %v6231 = vpop.f32.mrf.mxu0
    %v6232 = vadd.f32 %v6183, %v6231
    %v6233 = vpop.f32.mrf.mxu0
    %v6234 = vadd.f32 %v6185, %v6233
    %6235 = vdwg.mxu0
    %6236 = vmatpush.bf16.msra.mxu0 %v5556
    %6237 = vmatpush.bf16.msra.mxu0 %v5553
    %6238 = vmatpush.bf16.msra.mxu0 %v5550
    %6239 = vmatpush.bf16.msra.mxu0 %v5547
    %6240 = vmatpush.bf16.msra.mxu0 %v5544
    %6241 = vmatpush.bf16.msra.mxu0 %v5541
    %6242 = vmatpush.bf16.msra.mxu0 %v5538
    %6243 = vmatpush.bf16.msra.mxu0 %v5535
    %6244 = vmatmul.bf16.gmra.mxu0 %v3972
    %v6245 = vpop.f32.mrf.mxu0
    %v6246 = vadd.f32 %v6197, %v6245
    %v6247 = vpop.f32.mrf.mxu0
    %v6248 = vadd.f32 %v6199, %v6247
    %6249 = vmatmul.bf16.gmra.mxu0 %v3984
    %v6250 = vpop.f32.mrf.mxu0
    %v6251 = vadd.f32 %v6202, %v6250
    %v6252 = vpop.f32.mrf.mxu0
    %v6253 = vadd.f32 %v6204, %v6252
    %6254 = vmatmul.bf16.gmra.mxu0 %v3996
    %v6255 = vpop.f32.mrf.mxu0
    %v6256 = vadd.f32 %v6207, %v6255
    %v6257 = vpop.f32.mrf.mxu0
    %v6258 = vadd.f32 %v6209, %v6257
    %6259 = vmatmul.bf16.gmra.mxu0 %v4008
    %v6260 = vpop.f32.mrf.mxu0
    %v6261 = vadd.f32 %v6212, %v6260
    %v6262 = vpop.f32.mrf.mxu0
    %v6263 = vadd.f32 %v6214, %v6262
    %6264 = vmatmul.bf16.gmra.mxu0 %v4020
    %v6265 = vpop.f32.mrf.mxu0
    %v6266 = vadd.f32 %v6217, %v6265
    %v6267 = vpop.f32.mrf.mxu0
    %v6268 = vadd.f32 %v6219, %v6267
    %6269 = vmatmul.bf16.gmra.mxu0 %v4032
    %v6270 = vpop.f32.mrf.mxu0
    %v6271 = vadd.f32 %v6222, %v6270
    %v6272 = vpop.f32.mrf.mxu0
    %v6273 = vadd.f32 %v6224, %v6272
    %6274 = vmatmul.bf16.gmra.mxu0 %v4044
    %v6275 = vpop.f32.mrf.mxu0
    %v6276 = vadd.f32 %v6227, %v6275
    %v6277 = vpop.f32.mrf.mxu0
    %v6278 = vadd.f32 %v6229, %v6277
    %6279 = vmatmul.bf16.gmra.mxu0 %v4056
    %v6280 = vpop.f32.mrf.mxu0
    %v6281 = vadd.f32 %v6232, %v6280
    %v6282 = vpop.f32.mrf.mxu0
    %v6283 = vadd.f32 %v6234, %v6282
    %6284 = vdwg.mxu0
    %6285 = vmatpush.bf16.msra.mxu0 %v5580
    %6286 = vmatpush.bf16.msra.mxu0 %v5577
    %6287 = vmatpush.bf16.msra.mxu0 %v5574
    %6288 = vmatpush.bf16.msra.mxu0 %v5571
    %6289 = vmatpush.bf16.msra.mxu0 %v5568
    %6290 = vmatpush.bf16.msra.mxu0 %v5565
    %6291 = vmatpush.bf16.msra.mxu0 %v5562
    %6292 = vmatpush.bf16.msra.mxu0 %v5559
    %6293 = vmatmul.bf16.gmra.mxu0 %v3973
    %v6294 = vpop.f32.mrf.mxu0
    %v6295 = vadd.f32 %v6246, %v6294
    %v6296 = vpop.f32.mrf.mxu0
    %v6297 = vadd.f32 %v6248, %v6296
    %6298 = vmatmul.bf16.gmra.mxu0 %v3985
    %v6299 = vpop.f32.mrf.mxu0
    %v6300 = vadd.f32 %v6251, %v6299
    %v6301 = vpop.f32.mrf.mxu0
    %v6302 = vadd.f32 %v6253, %v6301
    %6303 = vmatmul.bf16.gmra.mxu0 %v3997
    %v6304 = vpop.f32.mrf.mxu0
    %v6305 = vadd.f32 %v6256, %v6304
    %v6306 = vpop.f32.mrf.mxu0
    %v6307 = vadd.f32 %v6258, %v6306
    %6308 = vmatmul.bf16.gmra.mxu0 %v4009
    %v6309 = vpop.f32.mrf.mxu0
    %v6310 = vadd.f32 %v6261, %v6309
    %v6311 = vpop.f32.mrf.mxu0
    %v6312 = vadd.f32 %v6263, %v6311
    %6313 = vmatmul.bf16.gmra.mxu0 %v4021
    %v6314 = vpop.f32.mrf.mxu0
    %v6315 = vadd.f32 %v6266, %v6314
    %v6316 = vpop.f32.mrf.mxu0
    %v6317 = vadd.f32 %v6268, %v6316
    %6318 = vmatmul.bf16.gmra.mxu0 %v4033
    %v6319 = vpop.f32.mrf.mxu0
    %v6320 = vadd.f32 %v6271, %v6319
    %v6321 = vpop.f32.mrf.mxu0
    %v6322 = vadd.f32 %v6273, %v6321
    %6323 = vmatmul.bf16.gmra.mxu0 %v4045
    %v6324 = vpop.f32.mrf.mxu0
    %v6325 = vadd.f32 %v6276, %v6324
    %v6326 = vpop.f32.mrf.mxu0
    %v6327 = vadd.f32 %v6278, %v6326
    %6328 = vmatmul.bf16.gmra.mxu0 %v4057
    %v6329 = vpop.f32.mrf.mxu0
    %v6330 = vadd.f32 %v6281, %v6329
    %v6331 = vpop.f32.mrf.mxu0
    %v6332 = vadd.f32 %v6283, %v6331
    %6333 = vdwg.mxu0
    %6334 = vmatpush.bf16.msra.mxu0 %v5604
    %6335 = vmatpush.bf16.msra.mxu0 %v5601
    %6336 = vmatpush.bf16.msra.mxu0 %v5598
    %6337 = vmatpush.bf16.msra.mxu0 %v5595
    %6338 = vmatpush.bf16.msra.mxu0 %v5592
    %6339 = vmatpush.bf16.msra.mxu0 %v5589
    %6340 = vmatpush.bf16.msra.mxu0 %v5586
    %6341 = vmatpush.bf16.msra.mxu0 %v5583
    %6342 = vmatmul.bf16.gmra.mxu0 %v3974
    %v6343 = vpop.f32.mrf.mxu0
    %v6344 = vadd.f32 %v6295, %v6343
    %v6345 = vpop.f32.mrf.mxu0
    %v6346 = vadd.f32 %v6297, %v6345
    %6347 = vmatmul.bf16.gmra.mxu0 %v3986
    %v6348 = vpop.f32.mrf.mxu0
    %v6349 = vadd.f32 %v6300, %v6348
    %v6350 = vpop.f32.mrf.mxu0
    %v6351 = vadd.f32 %v6302, %v6350
    %6352 = vmatmul.bf16.gmra.mxu0 %v3998
    %v6353 = vpop.f32.mrf.mxu0
    %v6354 = vadd.f32 %v6305, %v6353
    %v6355 = vpop.f32.mrf.mxu0
    %v6356 = vadd.f32 %v6307, %v6355
    %6357 = vmatmul.bf16.gmra.mxu0 %v4010
    %v6358 = vpop.f32.mrf.mxu0
    %v6359 = vadd.f32 %v6310, %v6358
    %v6360 = vpop.f32.mrf.mxu0
    %v6361 = vadd.f32 %v6312, %v6360
    %6362 = vmatmul.bf16.gmra.mxu0 %v4022
    %v6363 = vpop.f32.mrf.mxu0
    %v6364 = vadd.f32 %v6315, %v6363
    %v6365 = vpop.f32.mrf.mxu0
    %v6366 = vadd.f32 %v6317, %v6365
    %6367 = vmatmul.bf16.gmra.mxu0 %v4034
    %v6368 = vpop.f32.mrf.mxu0
    %v6369 = vadd.f32 %v6320, %v6368
    %v6370 = vpop.f32.mrf.mxu0
    %v6371 = vadd.f32 %v6322, %v6370
    %6372 = vmatmul.bf16.gmra.mxu0 %v4046
    %v6373 = vpop.f32.mrf.mxu0
    %v6374 = vadd.f32 %v6325, %v6373
    %v6375 = vpop.f32.mrf.mxu0
    %v6376 = vadd.f32 %v6327, %v6375
    %6377 = vmatmul.bf16.gmra.mxu0 %v4058
    %v6378 = vpop.f32.mrf.mxu0
    %v6379 = vadd.f32 %v6330, %v6378
    %v6380 = vpop.f32.mrf.mxu0
    %v6381 = vadd.f32 %v6332, %v6380
    %6382 = vdwg.mxu0
    %6383 = vmatpush.bf16.msra.mxu0 %v5628
    %6384 = vmatpush.bf16.msra.mxu0 %v5625
    %6385 = vmatpush.bf16.msra.mxu0 %v5622
    %6386 = vmatpush.bf16.msra.mxu0 %v5619
    %6387 = vmatpush.bf16.msra.mxu0 %v5616
    %6388 = vmatpush.bf16.msra.mxu0 %v5613
    %6389 = vmatpush.bf16.msra.mxu0 %v5610
    %6390 = vmatpush.bf16.msra.mxu0 %v5607
    %6391 = vmatmul.bf16.gmra.mxu0 %v3975
    %v6392 = vpop.f32.mrf.mxu0
    %v6393 = vadd.f32 %v6344, %v6392
    %v6394 = vpop.f32.mrf.mxu0
    %v6395 = vadd.f32 %v6346, %v6394
    %6396 = vmatmul.bf16.gmra.mxu0 %v3987
    %v6397 = vpop.f32.mrf.mxu0
    %v6398 = vadd.f32 %v6349, %v6397
    %v6399 = vpop.f32.mrf.mxu0
    %v6400 = vadd.f32 %v6351, %v6399
    %6401 = vmatmul.bf16.gmra.mxu0 %v3999
    %v6402 = vpop.f32.mrf.mxu0
    %v6403 = vadd.f32 %v6354, %v6402
    %v6404 = vpop.f32.mrf.mxu0
    %v6405 = vadd.f32 %v6356, %v6404
    %6406 = vmatmul.bf16.gmra.mxu0 %v4011
    %v6407 = vpop.f32.mrf.mxu0
    %v6408 = vadd.f32 %v6359, %v6407
    %v6409 = vpop.f32.mrf.mxu0
    %v6410 = vadd.f32 %v6361, %v6409
    %6411 = vmatmul.bf16.gmra.mxu0 %v4023
    %v6412 = vpop.f32.mrf.mxu0
    %v6413 = vadd.f32 %v6364, %v6412
    %v6414 = vpop.f32.mrf.mxu0
    %v6415 = vadd.f32 %v6366, %v6414
    %6416 = vmatmul.bf16.gmra.mxu0 %v4035
    %v6417 = vpop.f32.mrf.mxu0
    %v6418 = vadd.f32 %v6369, %v6417
    %v6419 = vpop.f32.mrf.mxu0
    %v6420 = vadd.f32 %v6371, %v6419
    %6421 = vmatmul.bf16.gmra.mxu0 %v4047
    %v6422 = vpop.f32.mrf.mxu0
    %v6423 = vadd.f32 %v6374, %v6422
    %v6424 = vpop.f32.mrf.mxu0
    %v6425 = vadd.f32 %v6376, %v6424
    %6426 = vmatmul.bf16.gmra.mxu0 %v4059
    %v6427 = vpop.f32.mrf.mxu0
    %v6428 = vadd.f32 %v6379, %v6427
    %v6429 = vpop.f32.mrf.mxu0
    %v6430 = vadd.f32 %v6381, %v6429
    %6431 = vdwg.mxu0
    %6432 = vmatpush.bf16.msra.mxu0 %v5652
    %6433 = vmatpush.bf16.msra.mxu0 %v5649
    %6434 = vmatpush.bf16.msra.mxu0 %v5646
    %6435 = vmatpush.bf16.msra.mxu0 %v5643
    %6436 = vmatpush.bf16.msra.mxu0 %v5640
    %6437 = vmatpush.bf16.msra.mxu0 %v5637
    %6438 = vmatpush.bf16.msra.mxu0 %v5634
    %6439 = vmatpush.bf16.msra.mxu0 %v5631
    %6440 = vmatmul.bf16.gmra.mxu0 %v3976
    %v6441 = vpop.f32.mrf.mxu0
    %v6442 = vadd.f32 %v6393, %v6441
    %v6443 = vpop.f32.mrf.mxu0
    %v6444 = vadd.f32 %v6395, %v6443
    %6445 = vmatmul.bf16.gmra.mxu0 %v3988
    %v6446 = vpop.f32.mrf.mxu0
    %v6447 = vadd.f32 %v6398, %v6446
    %v6448 = vpop.f32.mrf.mxu0
    %v6449 = vadd.f32 %v6400, %v6448
    %6450 = vmatmul.bf16.gmra.mxu0 %v4000
    %v6451 = vpop.f32.mrf.mxu0
    %v6452 = vadd.f32 %v6403, %v6451
    %v6453 = vpop.f32.mrf.mxu0
    %v6454 = vadd.f32 %v6405, %v6453
    %6455 = vmatmul.bf16.gmra.mxu0 %v4012
    %v6456 = vpop.f32.mrf.mxu0
    %v6457 = vadd.f32 %v6408, %v6456
    %v6458 = vpop.f32.mrf.mxu0
    %v6459 = vadd.f32 %v6410, %v6458
    %6460 = vmatmul.bf16.gmra.mxu0 %v4024
    %v6461 = vpop.f32.mrf.mxu0
    %v6462 = vadd.f32 %v6413, %v6461
    %v6463 = vpop.f32.mrf.mxu0
    %v6464 = vadd.f32 %v6415, %v6463
    %6465 = vmatmul.bf16.gmra.mxu0 %v4036
    %v6466 = vpop.f32.mrf.mxu0
    %v6467 = vadd.f32 %v6418, %v6466
    %v6468 = vpop.f32.mrf.mxu0
    %v6469 = vadd.f32 %v6420, %v6468
    %6470 = vmatmul.bf16.gmra.mxu0 %v4048
    %v6471 = vpop.f32.mrf.mxu0
    %v6472 = vadd.f32 %v6423, %v6471
    %v6473 = vpop.f32.mrf.mxu0
    %v6474 = vadd.f32 %v6425, %v6473
    %6475 = vmatmul.bf16.gmra.mxu0 %v4060
    %v6476 = vpop.f32.mrf.mxu0
    %v6477 = vadd.f32 %v6428, %v6476
    %v6478 = vpop.f32.mrf.mxu0
    %v6479 = vadd.f32 %v6430, %v6478
    %6480 = vdwg.mxu0
    %6481 = vmatpush.bf16.msra.mxu0 %v5676
    %6482 = vmatpush.bf16.msra.mxu0 %v5673
    %6483 = vmatpush.bf16.msra.mxu0 %v5670
    %6484 = vmatpush.bf16.msra.mxu0 %v5667
    %6485 = vmatpush.bf16.msra.mxu0 %v5664
    %6486 = vmatpush.bf16.msra.mxu0 %v5661
    %6487 = vmatpush.bf16.msra.mxu0 %v5658
    %6488 = vmatpush.bf16.msra.mxu0 %v5655
    %6489 = vmatmul.bf16.gmra.mxu0 %v3977
    %v6490 = vpop.f32.mrf.mxu0
    %v6491 = vadd.f32 %v6442, %v6490
    %v6492 = vpop.f32.mrf.mxu0
    %v6493 = vadd.f32 %v6444, %v6492
    %6494 = vmatmul.bf16.gmra.mxu0 %v3989
    %v6495 = vpop.f32.mrf.mxu0
    %v6496 = vadd.f32 %v6447, %v6495
    %v6497 = vpop.f32.mrf.mxu0
    %v6498 = vadd.f32 %v6449, %v6497
    %6499 = vmatmul.bf16.gmra.mxu0 %v4001
    %v6500 = vpop.f32.mrf.mxu0
    %v6501 = vadd.f32 %v6452, %v6500
    %v6502 = vpop.f32.mrf.mxu0
    %v6503 = vadd.f32 %v6454, %v6502
    %6504 = vmatmul.bf16.gmra.mxu0 %v4013
    %v6505 = vpop.f32.mrf.mxu0
    %v6506 = vadd.f32 %v6457, %v6505
    %v6507 = vpop.f32.mrf.mxu0
    %v6508 = vadd.f32 %v6459, %v6507
    %6509 = vmatmul.bf16.gmra.mxu0 %v4025
    %v6510 = vpop.f32.mrf.mxu0
    %v6511 = vadd.f32 %v6462, %v6510
    %v6512 = vpop.f32.mrf.mxu0
    %v6513 = vadd.f32 %v6464, %v6512
    %6514 = vmatmul.bf16.gmra.mxu0 %v4037
    %v6515 = vpop.f32.mrf.mxu0
    %v6516 = vadd.f32 %v6467, %v6515
    %v6517 = vpop.f32.mrf.mxu0
    %v6518 = vadd.f32 %v6469, %v6517
    %6519 = vmatmul.bf16.gmra.mxu0 %v4049
    %v6520 = vpop.f32.mrf.mxu0
    %v6521 = vadd.f32 %v6472, %v6520
    %v6522 = vpop.f32.mrf.mxu0
    %v6523 = vadd.f32 %v6474, %v6522
    %6524 = vmatmul.bf16.gmra.mxu0 %v4061
    %v6525 = vpop.f32.mrf.mxu0
    %v6526 = vadd.f32 %v6477, %v6525
    %v6527 = vpop.f32.mrf.mxu0
    %v6528 = vadd.f32 %v6479, %v6527
    %6529 = vdwg.mxu0
    %6530 = vmatpush.bf16.msra.mxu0 %v5700
    %6531 = vmatpush.bf16.msra.mxu0 %v5697
    %6532 = vmatpush.bf16.msra.mxu0 %v5694
    %6533 = vmatpush.bf16.msra.mxu0 %v5691
    %6534 = vmatpush.bf16.msra.mxu0 %v5688
    %6535 = vmatpush.bf16.msra.mxu0 %v5685
    %6536 = vmatpush.bf16.msra.mxu0 %v5682
    %6537 = vmatpush.bf16.msra.mxu0 %v5679
    %6538 = vmatmul.bf16.gmra.mxu0 %v3978
    %v6539 = vpop.f32.mrf.mxu0
    %v6540 = vadd.f32 %v6491, %v6539
    %v6541 = vpop.f32.mrf.mxu0
    %v6542 = vadd.f32 %v6493, %v6541
    %6543 = vmatmul.bf16.gmra.mxu0 %v3990
    %v6544 = vpop.f32.mrf.mxu0
    %v6545 = vadd.f32 %v6496, %v6544
    %v6546 = vpop.f32.mrf.mxu0
    %v6547 = vadd.f32 %v6498, %v6546
    %6548 = vmatmul.bf16.gmra.mxu0 %v4002
    %v6549 = vpop.f32.mrf.mxu0
    %v6550 = vadd.f32 %v6501, %v6549
    %v6551 = vpop.f32.mrf.mxu0
    %v6552 = vadd.f32 %v6503, %v6551
    %6553 = vmatmul.bf16.gmra.mxu0 %v4014
    %v6554 = vpop.f32.mrf.mxu0
    %v6555 = vadd.f32 %v6506, %v6554
    %v6556 = vpop.f32.mrf.mxu0
    %v6557 = vadd.f32 %v6508, %v6556
    %6558 = vmatmul.bf16.gmra.mxu0 %v4026
    %v6559 = vpop.f32.mrf.mxu0
    %v6560 = vadd.f32 %v6511, %v6559
    %v6561 = vpop.f32.mrf.mxu0
    %v6562 = vadd.f32 %v6513, %v6561
    %6563 = vmatmul.bf16.gmra.mxu0 %v4038
    %v6564 = vpop.f32.mrf.mxu0
    %v6565 = vadd.f32 %v6516, %v6564
    %v6566 = vpop.f32.mrf.mxu0
    %v6567 = vadd.f32 %v6518, %v6566
    %6568 = vmatmul.bf16.gmra.mxu0 %v4050
    %v6569 = vpop.f32.mrf.mxu0
    %v6570 = vadd.f32 %v6521, %v6569
    %v6571 = vpop.f32.mrf.mxu0
    %v6572 = vadd.f32 %v6523, %v6571
    %6573 = vmatmul.bf16.gmra.mxu0 %v4062
    %v6574 = vpop.f32.mrf.mxu0
    %v6575 = vadd.f32 %v6526, %v6574
    %v6576 = vpop.f32.mrf.mxu0
    %v6577 = vadd.f32 %v6528, %v6576
    %6578 = vdwg.mxu0
    %6579 = vmatpush.bf16.msra.mxu0 %v5437
    %6580 = vmatpush.bf16.msra.mxu0 %v5434
    %6581 = vmatpush.bf16.msra.mxu0 %v5431
    %6582 = vmatpush.bf16.msra.mxu0 %v5428
    %6583 = vmatpush.bf16.msra.mxu0 %v5425
    %6584 = vmatpush.bf16.msra.mxu0 %v5422
    %6585 = vmatpush.bf16.msra.mxu0 %v5419
    %6586 = vmatpush.bf16.msra.mxu0 %v5416
    %6587 = vmatmul.bf16.gmra.mxu0 %v3967
    %v6588 = vpop.f32.mrf.mxu0
    %v6589 = vadd.f32 %v4450, %v6588
    %v6590 = vpop.f32.mrf.mxu0
    %v6591 = vadd.f32 %v4450, %v6590
    %6592 = vmatmul.bf16.gmra.mxu0 %v3979
    %v6593 = vpop.f32.mrf.mxu0
    %v6594 = vadd.f32 %v4450, %v6593
    %v6595 = vpop.f32.mrf.mxu0
    %v6596 = vadd.f32 %v4450, %v6595
    %6597 = vmatmul.bf16.gmra.mxu0 %v3991
    %v6598 = vpop.f32.mrf.mxu0
    %v6599 = vadd.f32 %v4450, %v6598
    %v6600 = vpop.f32.mrf.mxu0
    %v6601 = vadd.f32 %v4450, %v6600
    %6602 = vmatmul.bf16.gmra.mxu0 %v4003
    %v6603 = vpop.f32.mrf.mxu0
    %v6604 = vadd.f32 %v4450, %v6603
    %v6605 = vpop.f32.mrf.mxu0
    %v6606 = vadd.f32 %v4450, %v6605
    %6607 = vmatmul.bf16.gmra.mxu0 %v4015
    %v6608 = vpop.f32.mrf.mxu0
    %v6609 = vadd.f32 %v4450, %v6608
    %v6610 = vpop.f32.mrf.mxu0
    %v6611 = vadd.f32 %v4450, %v6610
    %6612 = vmatmul.bf16.gmra.mxu0 %v4027
    %v6613 = vpop.f32.mrf.mxu0
    %v6614 = vadd.f32 %v4450, %v6613
    %v6615 = vpop.f32.mrf.mxu0
    %v6616 = vadd.f32 %v4450, %v6615
    %6617 = vmatmul.bf16.gmra.mxu0 %v4039
    %v6618 = vpop.f32.mrf.mxu0
    %v6619 = vadd.f32 %v4450, %v6618
    %v6620 = vpop.f32.mrf.mxu0
    %v6621 = vadd.f32 %v4450, %v6620
    %6622 = vmatmul.bf16.gmra.mxu0 %v4051
    %v6623 = vpop.f32.mrf.mxu0
    %v6624 = vadd.f32 %v4450, %v6623
    %v6625 = vpop.f32.mrf.mxu0
    %v6626 = vadd.f32 %v4450, %v6625
    %6627 = vdwg.mxu0
    %6628 = vmatpush.bf16.msra.mxu0 %v5461
    %6629 = vmatpush.bf16.msra.mxu0 %v5458
    %6630 = vmatpush.bf16.msra.mxu0 %v5455
    %6631 = vmatpush.bf16.msra.mxu0 %v5452
    %6632 = vmatpush.bf16.msra.mxu0 %v5449
    %6633 = vmatpush.bf16.msra.mxu0 %v5446
    %6634 = vmatpush.bf16.msra.mxu0 %v5443
    %6635 = vmatpush.bf16.msra.mxu0 %v5440
    %6636 = vmatmul.bf16.gmra.mxu0 %v3968
    %v6637 = vpop.f32.mrf.mxu0
    %v6638 = vadd.f32 %v6589, %v6637
    %v6639 = vpop.f32.mrf.mxu0
    %v6640 = vadd.f32 %v6591, %v6639
    %6641 = vmatmul.bf16.gmra.mxu0 %v3980
    %v6642 = vpop.f32.mrf.mxu0
    %v6643 = vadd.f32 %v6594, %v6642
    %v6644 = vpop.f32.mrf.mxu0
    %v6645 = vadd.f32 %v6596, %v6644
    %6646 = vmatmul.bf16.gmra.mxu0 %v3992
    %v6647 = vpop.f32.mrf.mxu0
    %v6648 = vadd.f32 %v6599, %v6647
    %v6649 = vpop.f32.mrf.mxu0
    %v6650 = vadd.f32 %v6601, %v6649
    %6651 = vmatmul.bf16.gmra.mxu0 %v4004
    %v6652 = vpop.f32.mrf.mxu0
    %v6653 = vadd.f32 %v6604, %v6652
    %v6654 = vpop.f32.mrf.mxu0
    %v6655 = vadd.f32 %v6606, %v6654
    %6656 = vmatmul.bf16.gmra.mxu0 %v4016
    %v6657 = vpop.f32.mrf.mxu0
    %v6658 = vadd.f32 %v6609, %v6657
    %v6659 = vpop.f32.mrf.mxu0
    %v6660 = vadd.f32 %v6611, %v6659
    %6661 = vmatmul.bf16.gmra.mxu0 %v4028
    %v6662 = vpop.f32.mrf.mxu0
    %v6663 = vadd.f32 %v6614, %v6662
    %v6664 = vpop.f32.mrf.mxu0
    %v6665 = vadd.f32 %v6616, %v6664
    %6666 = vmatmul.bf16.gmra.mxu0 %v4040
    %v6667 = vpop.f32.mrf.mxu0
    %v6668 = vadd.f32 %v6619, %v6667
    %v6669 = vpop.f32.mrf.mxu0
    %v6670 = vadd.f32 %v6621, %v6669
    %6671 = vmatmul.bf16.gmra.mxu0 %v4052
    %v6672 = vpop.f32.mrf.mxu0
    %v6673 = vadd.f32 %v6624, %v6672
    %v6674 = vpop.f32.mrf.mxu0
    %v6675 = vadd.f32 %v6626, %v6674
    %6676 = vdwg.mxu0
    %6677 = vmatpush.bf16.msra.mxu0 %v5485
    %6678 = vmatpush.bf16.msra.mxu0 %v5482
    %6679 = vmatpush.bf16.msra.mxu0 %v5479
    %6680 = vmatpush.bf16.msra.mxu0 %v5476
    %6681 = vmatpush.bf16.msra.mxu0 %v5473
    %6682 = vmatpush.bf16.msra.mxu0 %v5470
    %6683 = vmatpush.bf16.msra.mxu0 %v5467
    %6684 = vmatpush.bf16.msra.mxu0 %v5464
    %6685 = vmatmul.bf16.gmra.mxu0 %v3969
    %v6686 = vpop.f32.mrf.mxu0
    %v6687 = vadd.f32 %v6638, %v6686
    %v6688 = vpop.f32.mrf.mxu0
    %v6689 = vadd.f32 %v6640, %v6688
    %6690 = vmatmul.bf16.gmra.mxu0 %v3981
    %v6691 = vpop.f32.mrf.mxu0
    %v6692 = vadd.f32 %v6643, %v6691
    %v6693 = vpop.f32.mrf.mxu0
    %v6694 = vadd.f32 %v6645, %v6693
    %6695 = vmatmul.bf16.gmra.mxu0 %v3993
    %v6696 = vpop.f32.mrf.mxu0
    %v6697 = vadd.f32 %v6648, %v6696
    %v6698 = vpop.f32.mrf.mxu0
    %v6699 = vadd.f32 %v6650, %v6698
    %6700 = vmatmul.bf16.gmra.mxu0 %v4005
    %v6701 = vpop.f32.mrf.mxu0
    %v6702 = vadd.f32 %v6653, %v6701
    %v6703 = vpop.f32.mrf.mxu0
    %v6704 = vadd.f32 %v6655, %v6703
    %6705 = vmatmul.bf16.gmra.mxu0 %v4017
    %v6706 = vpop.f32.mrf.mxu0
    %v6707 = vadd.f32 %v6658, %v6706
    %v6708 = vpop.f32.mrf.mxu0
    %v6709 = vadd.f32 %v6660, %v6708
    %6710 = vmatmul.bf16.gmra.mxu0 %v4029
    %v6711 = vpop.f32.mrf.mxu0
    %v6712 = vadd.f32 %v6663, %v6711
    %v6713 = vpop.f32.mrf.mxu0
    %v6714 = vadd.f32 %v6665, %v6713
    %6715 = vmatmul.bf16.gmra.mxu0 %v4041
    %v6716 = vpop.f32.mrf.mxu0
    %v6717 = vadd.f32 %v6668, %v6716
    %v6718 = vpop.f32.mrf.mxu0
    %v6719 = vadd.f32 %v6670, %v6718
    %6720 = vmatmul.bf16.gmra.mxu0 %v4053
    %v6721 = vpop.f32.mrf.mxu0
    %v6722 = vadd.f32 %v6673, %v6721
    %v6723 = vpop.f32.mrf.mxu0
    %v6724 = vadd.f32 %v6675, %v6723
    %6725 = vdwg.mxu0
    %6726 = vmatpush.bf16.msra.mxu0 %v5509
    %6727 = vmatpush.bf16.msra.mxu0 %v5506
    %6728 = vmatpush.bf16.msra.mxu0 %v5503
    %6729 = vmatpush.bf16.msra.mxu0 %v5500
    %6730 = vmatpush.bf16.msra.mxu0 %v5497
    %6731 = vmatpush.bf16.msra.mxu0 %v5494
    %6732 = vmatpush.bf16.msra.mxu0 %v5491
    %6733 = vmatpush.bf16.msra.mxu0 %v5488
    %6734 = vmatmul.bf16.gmra.mxu0 %v3970
    %v6735 = vpop.f32.mrf.mxu0
    %v6736 = vadd.f32 %v6687, %v6735
    %v6737 = vpop.f32.mrf.mxu0
    %v6738 = vadd.f32 %v6689, %v6737
    %6739 = vmatmul.bf16.gmra.mxu0 %v3982
    %v6740 = vpop.f32.mrf.mxu0
    %v6741 = vadd.f32 %v6692, %v6740
    %v6742 = vpop.f32.mrf.mxu0
    %v6743 = vadd.f32 %v6694, %v6742
    %6744 = vmatmul.bf16.gmra.mxu0 %v3994
    %v6745 = vpop.f32.mrf.mxu0
    %v6746 = vadd.f32 %v6697, %v6745
    %v6747 = vpop.f32.mrf.mxu0
    %v6748 = vadd.f32 %v6699, %v6747
    %6749 = vmatmul.bf16.gmra.mxu0 %v4006
    %v6750 = vpop.f32.mrf.mxu0
    %v6751 = vadd.f32 %v6702, %v6750
    %v6752 = vpop.f32.mrf.mxu0
    %v6753 = vadd.f32 %v6704, %v6752
    %6754 = vmatmul.bf16.gmra.mxu0 %v4018
    %v6755 = vpop.f32.mrf.mxu0
    %v6756 = vadd.f32 %v6707, %v6755
    %v6757 = vpop.f32.mrf.mxu0
    %v6758 = vadd.f32 %v6709, %v6757
    %6759 = vmatmul.bf16.gmra.mxu0 %v4030
    %v6760 = vpop.f32.mrf.mxu0
    %v6761 = vadd.f32 %v6712, %v6760
    %v6762 = vpop.f32.mrf.mxu0
    %v6763 = vadd.f32 %v6714, %v6762
    %6764 = vmatmul.bf16.gmra.mxu0 %v4042
    %v6765 = vpop.f32.mrf.mxu0
    %v6766 = vadd.f32 %v6717, %v6765
    %v6767 = vpop.f32.mrf.mxu0
    %v6768 = vadd.f32 %v6719, %v6767
    %6769 = vmatmul.bf16.gmra.mxu0 %v4054
    %v6770 = vpop.f32.mrf.mxu0
    %v6771 = vadd.f32 %v6722, %v6770
    %v6772 = vpop.f32.mrf.mxu0
    %v6773 = vadd.f32 %v6724, %v6772
    %6774 = vdwg.mxu0
    %6775 = vmatpush.bf16.msra.mxu0 %v5533
    %6776 = vmatpush.bf16.msra.mxu0 %v5530
    %6777 = vmatpush.bf16.msra.mxu0 %v5527
    %6778 = vmatpush.bf16.msra.mxu0 %v5524
    %6779 = vmatpush.bf16.msra.mxu0 %v5521
    %6780 = vmatpush.bf16.msra.mxu0 %v5518
    %6781 = vmatpush.bf16.msra.mxu0 %v5515
    %6782 = vmatpush.bf16.msra.mxu0 %v5512
    %6783 = vmatmul.bf16.gmra.mxu0 %v3971
    %v6784 = vpop.f32.mrf.mxu0
    %v6785 = vadd.f32 %v6736, %v6784
    %v6786 = vpop.f32.mrf.mxu0
    %v6787 = vadd.f32 %v6738, %v6786
    %6788 = vmatmul.bf16.gmra.mxu0 %v3983
    %v6789 = vpop.f32.mrf.mxu0
    %v6790 = vadd.f32 %v6741, %v6789
    %v6791 = vpop.f32.mrf.mxu0
    %v6792 = vadd.f32 %v6743, %v6791
    %6793 = vmatmul.bf16.gmra.mxu0 %v3995
    %v6794 = vpop.f32.mrf.mxu0
    %v6795 = vadd.f32 %v6746, %v6794
    %v6796 = vpop.f32.mrf.mxu0
    %v6797 = vadd.f32 %v6748, %v6796
    %6798 = vmatmul.bf16.gmra.mxu0 %v4007
    %v6799 = vpop.f32.mrf.mxu0
    %v6800 = vadd.f32 %v6751, %v6799
    %v6801 = vpop.f32.mrf.mxu0
    %v6802 = vadd.f32 %v6753, %v6801
    %6803 = vmatmul.bf16.gmra.mxu0 %v4019
    %v6804 = vpop.f32.mrf.mxu0
    %v6805 = vadd.f32 %v6756, %v6804
    %v6806 = vpop.f32.mrf.mxu0
    %v6807 = vadd.f32 %v6758, %v6806
    %6808 = vmatmul.bf16.gmra.mxu0 %v4031
    %v6809 = vpop.f32.mrf.mxu0
    %v6810 = vadd.f32 %v6761, %v6809
    %v6811 = vpop.f32.mrf.mxu0
    %v6812 = vadd.f32 %v6763, %v6811
    %6813 = vmatmul.bf16.gmra.mxu0 %v4043
    %v6814 = vpop.f32.mrf.mxu0
    %v6815 = vadd.f32 %v6766, %v6814
    %v6816 = vpop.f32.mrf.mxu0
    %v6817 = vadd.f32 %v6768, %v6816
    %6818 = vmatmul.bf16.gmra.mxu0 %v4055
    %v6819 = vpop.f32.mrf.mxu0
    %v6820 = vadd.f32 %v6771, %v6819
    %v6821 = vpop.f32.mrf.mxu0
    %v6822 = vadd.f32 %v6773, %v6821
    %6823 = vdwg.mxu0
    %6824 = vmatpush.bf16.msra.mxu0 %v5557
    %6825 = vmatpush.bf16.msra.mxu0 %v5554
    %6826 = vmatpush.bf16.msra.mxu0 %v5551
    %6827 = vmatpush.bf16.msra.mxu0 %v5548
    %6828 = vmatpush.bf16.msra.mxu0 %v5545
    %6829 = vmatpush.bf16.msra.mxu0 %v5542
    %6830 = vmatpush.bf16.msra.mxu0 %v5539
    %6831 = vmatpush.bf16.msra.mxu0 %v5536
    %6832 = vmatmul.bf16.gmra.mxu0 %v3972
    %v6833 = vpop.f32.mrf.mxu0
    %v6834 = vadd.f32 %v6785, %v6833
    %v6835 = vpop.f32.mrf.mxu0
    %v6836 = vadd.f32 %v6787, %v6835
    %6837 = vmatmul.bf16.gmra.mxu0 %v3984
    %v6838 = vpop.f32.mrf.mxu0
    %v6839 = vadd.f32 %v6790, %v6838
    %v6840 = vpop.f32.mrf.mxu0
    %v6841 = vadd.f32 %v6792, %v6840
    %6842 = vmatmul.bf16.gmra.mxu0 %v3996
    %v6843 = vpop.f32.mrf.mxu0
    %v6844 = vadd.f32 %v6795, %v6843
    %v6845 = vpop.f32.mrf.mxu0
    %v6846 = vadd.f32 %v6797, %v6845
    %6847 = vmatmul.bf16.gmra.mxu0 %v4008
    %v6848 = vpop.f32.mrf.mxu0
    %v6849 = vadd.f32 %v6800, %v6848
    %v6850 = vpop.f32.mrf.mxu0
    %v6851 = vadd.f32 %v6802, %v6850
    %6852 = vmatmul.bf16.gmra.mxu0 %v4020
    %v6853 = vpop.f32.mrf.mxu0
    %v6854 = vadd.f32 %v6805, %v6853
    %v6855 = vpop.f32.mrf.mxu0
    %v6856 = vadd.f32 %v6807, %v6855
    %6857 = vmatmul.bf16.gmra.mxu0 %v4032
    %v6858 = vpop.f32.mrf.mxu0
    %v6859 = vadd.f32 %v6810, %v6858
    %v6860 = vpop.f32.mrf.mxu0
    %v6861 = vadd.f32 %v6812, %v6860
    %6862 = vmatmul.bf16.gmra.mxu0 %v4044
    %v6863 = vpop.f32.mrf.mxu0
    %v6864 = vadd.f32 %v6815, %v6863
    %v6865 = vpop.f32.mrf.mxu0
    %v6866 = vadd.f32 %v6817, %v6865
    %6867 = vmatmul.bf16.gmra.mxu0 %v4056
    %v6868 = vpop.f32.mrf.mxu0
    %v6869 = vadd.f32 %v6820, %v6868
    %v6870 = vpop.f32.mrf.mxu0
    %v6871 = vadd.f32 %v6822, %v6870
    %6872 = vdwg.mxu0
    %6873 = vmatpush.bf16.msra.mxu0 %v5581
    %6874 = vmatpush.bf16.msra.mxu0 %v5578
    %6875 = vmatpush.bf16.msra.mxu0 %v5575
    %6876 = vmatpush.bf16.msra.mxu0 %v5572
    %6877 = vmatpush.bf16.msra.mxu0 %v5569
    %6878 = vmatpush.bf16.msra.mxu0 %v5566
    %6879 = vmatpush.bf16.msra.mxu0 %v5563
    %6880 = vmatpush.bf16.msra.mxu0 %v5560
    %6881 = vmatmul.bf16.gmra.mxu0 %v3973
    %v6882 = vpop.f32.mrf.mxu0
    %v6883 = vadd.f32 %v6834, %v6882
    %v6884 = vpop.f32.mrf.mxu0
    %v6885 = vadd.f32 %v6836, %v6884
    %6886 = vmatmul.bf16.gmra.mxu0 %v3985
    %v6887 = vpop.f32.mrf.mxu0
    %v6888 = vadd.f32 %v6839, %v6887
    %v6889 = vpop.f32.mrf.mxu0
    %v6890 = vadd.f32 %v6841, %v6889
    %6891 = vmatmul.bf16.gmra.mxu0 %v3997
    %v6892 = vpop.f32.mrf.mxu0
    %v6893 = vadd.f32 %v6844, %v6892
    %v6894 = vpop.f32.mrf.mxu0
    %v6895 = vadd.f32 %v6846, %v6894
    %6896 = vmatmul.bf16.gmra.mxu0 %v4009
    %v6897 = vpop.f32.mrf.mxu0
    %v6898 = vadd.f32 %v6849, %v6897
    %v6899 = vpop.f32.mrf.mxu0
    %v6900 = vadd.f32 %v6851, %v6899
    %6901 = vmatmul.bf16.gmra.mxu0 %v4021
    %v6902 = vpop.f32.mrf.mxu0
    %v6903 = vadd.f32 %v6854, %v6902
    %v6904 = vpop.f32.mrf.mxu0
    %v6905 = vadd.f32 %v6856, %v6904
    %6906 = vmatmul.bf16.gmra.mxu0 %v4033
    %v6907 = vpop.f32.mrf.mxu0
    %v6908 = vadd.f32 %v6859, %v6907
    %v6909 = vpop.f32.mrf.mxu0
    %v6910 = vadd.f32 %v6861, %v6909
    %6911 = vmatmul.bf16.gmra.mxu0 %v4045
    %v6912 = vpop.f32.mrf.mxu0
    %v6913 = vadd.f32 %v6864, %v6912
    %v6914 = vpop.f32.mrf.mxu0
    %v6915 = vadd.f32 %v6866, %v6914
    %6916 = vmatmul.bf16.gmra.mxu0 %v4057
    %v6917 = vpop.f32.mrf.mxu0
    %v6918 = vadd.f32 %v6869, %v6917
    %v6919 = vpop.f32.mrf.mxu0
    %v6920 = vadd.f32 %v6871, %v6919
    %6921 = vdwg.mxu0
    %6922 = vmatpush.bf16.msra.mxu0 %v5605
    %6923 = vmatpush.bf16.msra.mxu0 %v5602
    %6924 = vmatpush.bf16.msra.mxu0 %v5599
    %6925 = vmatpush.bf16.msra.mxu0 %v5596
    %6926 = vmatpush.bf16.msra.mxu0 %v5593
    %6927 = vmatpush.bf16.msra.mxu0 %v5590
    %6928 = vmatpush.bf16.msra.mxu0 %v5587
    %6929 = vmatpush.bf16.msra.mxu0 %v5584
    %6930 = vmatmul.bf16.gmra.mxu0 %v3974
    %v6931 = vpop.f32.mrf.mxu0
    %v6932 = vadd.f32 %v6883, %v6931
    %v6933 = vpop.f32.mrf.mxu0
    %v6934 = vadd.f32 %v6885, %v6933
    %6935 = vmatmul.bf16.gmra.mxu0 %v3986
    %v6936 = vpop.f32.mrf.mxu0
    %v6937 = vadd.f32 %v6888, %v6936
    %v6938 = vpop.f32.mrf.mxu0
    %v6939 = vadd.f32 %v6890, %v6938
    %6940 = vmatmul.bf16.gmra.mxu0 %v3998
    %v6941 = vpop.f32.mrf.mxu0
    %v6942 = vadd.f32 %v6893, %v6941
    %v6943 = vpop.f32.mrf.mxu0
    %v6944 = vadd.f32 %v6895, %v6943
    %6945 = vmatmul.bf16.gmra.mxu0 %v4010
    %v6946 = vpop.f32.mrf.mxu0
    %v6947 = vadd.f32 %v6898, %v6946
    %v6948 = vpop.f32.mrf.mxu0
    %v6949 = vadd.f32 %v6900, %v6948
    %6950 = vmatmul.bf16.gmra.mxu0 %v4022
    %v6951 = vpop.f32.mrf.mxu0
    %v6952 = vadd.f32 %v6903, %v6951
    %v6953 = vpop.f32.mrf.mxu0
    %v6954 = vadd.f32 %v6905, %v6953
    %6955 = vmatmul.bf16.gmra.mxu0 %v4034
    %v6956 = vpop.f32.mrf.mxu0
    %v6957 = vadd.f32 %v6908, %v6956
    %v6958 = vpop.f32.mrf.mxu0
    %v6959 = vadd.f32 %v6910, %v6958
    %6960 = vmatmul.bf16.gmra.mxu0 %v4046
    %v6961 = vpop.f32.mrf.mxu0
    %v6962 = vadd.f32 %v6913, %v6961
    %v6963 = vpop.f32.mrf.mxu0
    %v6964 = vadd.f32 %v6915, %v6963
    %6965 = vmatmul.bf16.gmra.mxu0 %v4058
    %v6966 = vpop.f32.mrf.mxu0
    %v6967 = vadd.f32 %v6918, %v6966
    %v6968 = vpop.f32.mrf.mxu0
    %v6969 = vadd.f32 %v6920, %v6968
    %6970 = vdwg.mxu0
    %6971 = vmatpush.bf16.msra.mxu0 %v5629
    %6972 = vmatpush.bf16.msra.mxu0 %v5626
    %6973 = vmatpush.bf16.msra.mxu0 %v5623
    %6974 = vmatpush.bf16.msra.mxu0 %v5620
    %6975 = vmatpush.bf16.msra.mxu0 %v5617
    %6976 = vmatpush.bf16.msra.mxu0 %v5614
    %6977 = vmatpush.bf16.msra.mxu0 %v5611
    %6978 = vmatpush.bf16.msra.mxu0 %v5608
    %6979 = vmatmul.bf16.gmra.mxu0 %v3975
    %v6980 = vpop.f32.mrf.mxu0
    %v6981 = vadd.f32 %v6932, %v6980
    %v6982 = vpop.f32.mrf.mxu0
    %v6983 = vadd.f32 %v6934, %v6982
    %6984 = vmatmul.bf16.gmra.mxu0 %v3987
    %v6985 = vpop.f32.mrf.mxu0
    %v6986 = vadd.f32 %v6937, %v6985
    %v6987 = vpop.f32.mrf.mxu0
    %v6988 = vadd.f32 %v6939, %v6987
    %6989 = vmatmul.bf16.gmra.mxu0 %v3999
    %v6990 = vpop.f32.mrf.mxu0
    %v6991 = vadd.f32 %v6942, %v6990
    %v6992 = vpop.f32.mrf.mxu0
    %v6993 = vadd.f32 %v6944, %v6992
    %6994 = vmatmul.bf16.gmra.mxu0 %v4011
    %v6995 = vpop.f32.mrf.mxu0
    %v6996 = vadd.f32 %v6947, %v6995
    %v6997 = vpop.f32.mrf.mxu0
    %v6998 = vadd.f32 %v6949, %v6997
    %6999 = vmatmul.bf16.gmra.mxu0 %v4023
    %v7000 = vpop.f32.mrf.mxu0
    %v7001 = vadd.f32 %v6952, %v7000
    %v7002 = vpop.f32.mrf.mxu0
    %v7003 = vadd.f32 %v6954, %v7002
    %7004 = vmatmul.bf16.gmra.mxu0 %v4035
    %v7005 = vpop.f32.mrf.mxu0
    %v7006 = vadd.f32 %v6957, %v7005
    %v7007 = vpop.f32.mrf.mxu0
    %v7008 = vadd.f32 %v6959, %v7007
    %7009 = vmatmul.bf16.gmra.mxu0 %v4047
    %v7010 = vpop.f32.mrf.mxu0
    %v7011 = vadd.f32 %v6962, %v7010
    %v7012 = vpop.f32.mrf.mxu0
    %v7013 = vadd.f32 %v6964, %v7012
    %7014 = vmatmul.bf16.gmra.mxu0 %v4059
    %v7015 = vpop.f32.mrf.mxu0
    %v7016 = vadd.f32 %v6967, %v7015
    %v7017 = vpop.f32.mrf.mxu0
    %v7018 = vadd.f32 %v6969, %v7017
    %7019 = vdwg.mxu0
    %7020 = vmatpush.bf16.msra.mxu0 %v5653
    %7021 = vmatpush.bf16.msra.mxu0 %v5650
    %7022 = vmatpush.bf16.msra.mxu0 %v5647
    %7023 = vmatpush.bf16.msra.mxu0 %v5644
    %7024 = vmatpush.bf16.msra.mxu0 %v5641
    %7025 = vmatpush.bf16.msra.mxu0 %v5638
    %7026 = vmatpush.bf16.msra.mxu0 %v5635
    %7027 = vmatpush.bf16.msra.mxu0 %v5632
    %7028 = vmatmul.bf16.gmra.mxu0 %v3976
    %v7029 = vpop.f32.mrf.mxu0
    %v7030 = vadd.f32 %v6981, %v7029
    %v7031 = vpop.f32.mrf.mxu0
    %v7032 = vadd.f32 %v6983, %v7031
    %7033 = vmatmul.bf16.gmra.mxu0 %v3988
    %v7034 = vpop.f32.mrf.mxu0
    %v7035 = vadd.f32 %v6986, %v7034
    %v7036 = vpop.f32.mrf.mxu0
    %v7037 = vadd.f32 %v6988, %v7036
    %7038 = vmatmul.bf16.gmra.mxu0 %v4000
    %v7039 = vpop.f32.mrf.mxu0
    %v7040 = vadd.f32 %v6991, %v7039
    %v7041 = vpop.f32.mrf.mxu0
    %v7042 = vadd.f32 %v6993, %v7041
    %7043 = vmatmul.bf16.gmra.mxu0 %v4012
    %v7044 = vpop.f32.mrf.mxu0
    %v7045 = vadd.f32 %v6996, %v7044
    %v7046 = vpop.f32.mrf.mxu0
    %v7047 = vadd.f32 %v6998, %v7046
    %7048 = vmatmul.bf16.gmra.mxu0 %v4024
    %v7049 = vpop.f32.mrf.mxu0
    %v7050 = vadd.f32 %v7001, %v7049
    %v7051 = vpop.f32.mrf.mxu0
    %v7052 = vadd.f32 %v7003, %v7051
    %7053 = vmatmul.bf16.gmra.mxu0 %v4036
    %v7054 = vpop.f32.mrf.mxu0
    %v7055 = vadd.f32 %v7006, %v7054
    %v7056 = vpop.f32.mrf.mxu0
    %v7057 = vadd.f32 %v7008, %v7056
    %7058 = vmatmul.bf16.gmra.mxu0 %v4048
    %v7059 = vpop.f32.mrf.mxu0
    %v7060 = vadd.f32 %v7011, %v7059
    %v7061 = vpop.f32.mrf.mxu0
    %v7062 = vadd.f32 %v7013, %v7061
    %7063 = vmatmul.bf16.gmra.mxu0 %v4060
    %v7064 = vpop.f32.mrf.mxu0
    %v7065 = vadd.f32 %v7016, %v7064
    %v7066 = vpop.f32.mrf.mxu0
    %v7067 = vadd.f32 %v7018, %v7066
    %7068 = vdwg.mxu0
    %7069 = vmatpush.bf16.msra.mxu0 %v5677
    %7070 = vmatpush.bf16.msra.mxu0 %v5674
    %7071 = vmatpush.bf16.msra.mxu0 %v5671
    %7072 = vmatpush.bf16.msra.mxu0 %v5668
    %7073 = vmatpush.bf16.msra.mxu0 %v5665
    %7074 = vmatpush.bf16.msra.mxu0 %v5662
    %7075 = vmatpush.bf16.msra.mxu0 %v5659
    %7076 = vmatpush.bf16.msra.mxu0 %v5656
    %7077 = vmatmul.bf16.gmra.mxu0 %v3977
    %v7078 = vpop.f32.mrf.mxu0
    %v7079 = vadd.f32 %v7030, %v7078
    %v7080 = vpop.f32.mrf.mxu0
    %v7081 = vadd.f32 %v7032, %v7080
    %7082 = vmatmul.bf16.gmra.mxu0 %v3989
    %v7083 = vpop.f32.mrf.mxu0
    %v7084 = vadd.f32 %v7035, %v7083
    %v7085 = vpop.f32.mrf.mxu0
    %v7086 = vadd.f32 %v7037, %v7085
    %7087 = vmatmul.bf16.gmra.mxu0 %v4001
    %v7088 = vpop.f32.mrf.mxu0
    %v7089 = vadd.f32 %v7040, %v7088
    %v7090 = vpop.f32.mrf.mxu0
    %v7091 = vadd.f32 %v7042, %v7090
    %7092 = vmatmul.bf16.gmra.mxu0 %v4013
    %v7093 = vpop.f32.mrf.mxu0
    %v7094 = vadd.f32 %v7045, %v7093
    %v7095 = vpop.f32.mrf.mxu0
    %v7096 = vadd.f32 %v7047, %v7095
    %7097 = vmatmul.bf16.gmra.mxu0 %v4025
    %v7098 = vpop.f32.mrf.mxu0
    %v7099 = vadd.f32 %v7050, %v7098
    %v7100 = vpop.f32.mrf.mxu0
    %v7101 = vadd.f32 %v7052, %v7100
    %7102 = vmatmul.bf16.gmra.mxu0 %v4037
    %v7103 = vpop.f32.mrf.mxu0
    %v7104 = vadd.f32 %v7055, %v7103
    %v7105 = vpop.f32.mrf.mxu0
    %v7106 = vadd.f32 %v7057, %v7105
    %7107 = vmatmul.bf16.gmra.mxu0 %v4049
    %v7108 = vpop.f32.mrf.mxu0
    %v7109 = vadd.f32 %v7060, %v7108
    %v7110 = vpop.f32.mrf.mxu0
    %v7111 = vadd.f32 %v7062, %v7110
    %7112 = vmatmul.bf16.gmra.mxu0 %v4061
    %v7113 = vpop.f32.mrf.mxu0
    %v7114 = vadd.f32 %v7065, %v7113
    %v7115 = vpop.f32.mrf.mxu0
    %v7116 = vadd.f32 %v7067, %v7115
    %7117 = vdwg.mxu0
    %7118 = vmatpush.bf16.msra.mxu0 %v5701
    %7119 = vmatpush.bf16.msra.mxu0 %v5698
    %7120 = vmatpush.bf16.msra.mxu0 %v5695
    %7121 = vmatpush.bf16.msra.mxu0 %v5692
    %7122 = vmatpush.bf16.msra.mxu0 %v5689
    %7123 = vmatpush.bf16.msra.mxu0 %v5686
    %7124 = vmatpush.bf16.msra.mxu0 %v5683
    %7125 = vmatpush.bf16.msra.mxu0 %v5680
    %7126 = vmatmul.bf16.gmra.mxu0 %v3978
    %v7127 = vpop.f32.mrf.mxu0
    %v7128 = vadd.f32 %v7079, %v7127
    %v7129 = vpop.f32.mrf.mxu0
    %v7130 = vadd.f32 %v7081, %v7129
    %7131 = vmatmul.bf16.gmra.mxu0 %v3990
    %v7132 = vpop.f32.mrf.mxu0
    %v7133 = vadd.f32 %v7084, %v7132
    %v7134 = vpop.f32.mrf.mxu0
    %v7135 = vadd.f32 %v7086, %v7134
    %7136 = vmatmul.bf16.gmra.mxu0 %v4002
    %v7137 = vpop.f32.mrf.mxu0
    %v7138 = vadd.f32 %v7089, %v7137
    %v7139 = vpop.f32.mrf.mxu0
    %v7140 = vadd.f32 %v7091, %v7139
    %7141 = vmatmul.bf16.gmra.mxu0 %v4014
    %v7142 = vpop.f32.mrf.mxu0
    %v7143 = vadd.f32 %v7094, %v7142
    %v7144 = vpop.f32.mrf.mxu0
    %v7145 = vadd.f32 %v7096, %v7144
    %7146 = vmatmul.bf16.gmra.mxu0 %v4026
    %v7147 = vpop.f32.mrf.mxu0
    %v7148 = vadd.f32 %v7099, %v7147
    %v7149 = vpop.f32.mrf.mxu0
    %v7150 = vadd.f32 %v7101, %v7149
    %7151 = vmatmul.bf16.gmra.mxu0 %v4038
    %v7152 = vpop.f32.mrf.mxu0
    %v7153 = vadd.f32 %v7104, %v7152
    %v7154 = vpop.f32.mrf.mxu0
    %v7155 = vadd.f32 %v7106, %v7154
    %7156 = vmatmul.bf16.gmra.mxu0 %v4050
    %v7157 = vpop.f32.mrf.mxu0
    %v7158 = vadd.f32 %v7109, %v7157
    %v7159 = vpop.f32.mrf.mxu0
    %v7160 = vadd.f32 %v7111, %v7159
    %7161 = vmatmul.bf16.gmra.mxu0 %v4062
    %v7162 = vpop.f32.mrf.mxu0
    %v7163 = vadd.f32 %v7114, %v7162
    %v7164 = vpop.f32.mrf.mxu0
    %v7165 = vadd.f32 %v7116, %v7164
    %7166 = vdwg.mxu0
    %7167 = vmatpush.bf16.msra.mxu0 %v5438
    %7168 = vmatpush.bf16.msra.mxu0 %v5435
    %7169 = vmatpush.bf16.msra.mxu0 %v5432
    %7170 = vmatpush.bf16.msra.mxu0 %v5429
    %7171 = vmatpush.bf16.msra.mxu0 %v5426
    %7172 = vmatpush.bf16.msra.mxu0 %v5423
    %7173 = vmatpush.bf16.msra.mxu0 %v5420
    %7174 = vmatpush.bf16.msra.mxu0 %v5417
    %7175 = vmatmul.bf16.gmra.mxu0 %v3967
    %v7176 = vpop.f32.mrf.mxu0
    %v7177 = vadd.f32 %v4451, %v7176
    %v7178 = vpop.f32.mrf.mxu0
    %v7179 = vadd.f32 %v4451, %v7178
    %7180 = vmatmul.bf16.gmra.mxu0 %v3979
    %v7181 = vpop.f32.mrf.mxu0
    %v7182 = vadd.f32 %v4451, %v7181
    %v7183 = vpop.f32.mrf.mxu0
    %v7184 = vadd.f32 %v4451, %v7183
    %7185 = vmatmul.bf16.gmra.mxu0 %v3991
    %v7186 = vpop.f32.mrf.mxu0
    %v7187 = vadd.f32 %v4451, %v7186
    %v7188 = vpop.f32.mrf.mxu0
    %v7189 = vadd.f32 %v4451, %v7188
    %7190 = vmatmul.bf16.gmra.mxu0 %v4003
    %v7191 = vpop.f32.mrf.mxu0
    %v7192 = vadd.f32 %v4451, %v7191
    %v7193 = vpop.f32.mrf.mxu0
    %v7194 = vadd.f32 %v4451, %v7193
    %7195 = vmatmul.bf16.gmra.mxu0 %v4015
    %v7196 = vpop.f32.mrf.mxu0
    %v7197 = vadd.f32 %v4451, %v7196
    %v7198 = vpop.f32.mrf.mxu0
    %v7199 = vadd.f32 %v4451, %v7198
    %7200 = vmatmul.bf16.gmra.mxu0 %v4027
    %v7201 = vpop.f32.mrf.mxu0
    %v7202 = vadd.f32 %v4451, %v7201
    %v7203 = vpop.f32.mrf.mxu0
    %v7204 = vadd.f32 %v4451, %v7203
    %7205 = vmatmul.bf16.gmra.mxu0 %v4039
    %v7206 = vpop.f32.mrf.mxu0
    %v7207 = vadd.f32 %v4451, %v7206
    %v7208 = vpop.f32.mrf.mxu0
    %v7209 = vadd.f32 %v4451, %v7208
    %7210 = vmatmul.bf16.gmra.mxu0 %v4051
    %v7211 = vpop.f32.mrf.mxu0
    %v7212 = vadd.f32 %v4451, %v7211
    %v7213 = vpop.f32.mrf.mxu0
    %v7214 = vadd.f32 %v4451, %v7213
    %7215 = vdwg.mxu0
    %7216 = vmatpush.bf16.msra.mxu0 %v5462
    %7217 = vmatpush.bf16.msra.mxu0 %v5459
    %7218 = vmatpush.bf16.msra.mxu0 %v5456
    %7219 = vmatpush.bf16.msra.mxu0 %v5453
    %7220 = vmatpush.bf16.msra.mxu0 %v5450
    %7221 = vmatpush.bf16.msra.mxu0 %v5447
    %7222 = vmatpush.bf16.msra.mxu0 %v5444
    %7223 = vmatpush.bf16.msra.mxu0 %v5441
    %7224 = vmatmul.bf16.gmra.mxu0 %v3968
    %v7225 = vpop.f32.mrf.mxu0
    %v7226 = vadd.f32 %v7177, %v7225
    %v7227 = vpop.f32.mrf.mxu0
    %v7228 = vadd.f32 %v7179, %v7227
    %7229 = vmatmul.bf16.gmra.mxu0 %v3980
    %v7230 = vpop.f32.mrf.mxu0
    %v7231 = vadd.f32 %v7182, %v7230
    %v7232 = vpop.f32.mrf.mxu0
    %v7233 = vadd.f32 %v7184, %v7232
    %7234 = vmatmul.bf16.gmra.mxu0 %v3992
    %v7235 = vpop.f32.mrf.mxu0
    %v7236 = vadd.f32 %v7187, %v7235
    %v7237 = vpop.f32.mrf.mxu0
    %v7238 = vadd.f32 %v7189, %v7237
    %7239 = vmatmul.bf16.gmra.mxu0 %v4004
    %v7240 = vpop.f32.mrf.mxu0
    %v7241 = vadd.f32 %v7192, %v7240
    %v7242 = vpop.f32.mrf.mxu0
    %v7243 = vadd.f32 %v7194, %v7242
    %7244 = vmatmul.bf16.gmra.mxu0 %v4016
    %v7245 = vpop.f32.mrf.mxu0
    %v7246 = vadd.f32 %v7197, %v7245
    %v7247 = vpop.f32.mrf.mxu0
    %v7248 = vadd.f32 %v7199, %v7247
    %7249 = vmatmul.bf16.gmra.mxu0 %v4028
    %v7250 = vpop.f32.mrf.mxu0
    %v7251 = vadd.f32 %v7202, %v7250
    %v7252 = vpop.f32.mrf.mxu0
    %v7253 = vadd.f32 %v7204, %v7252
    %7254 = vmatmul.bf16.gmra.mxu0 %v4040
    %v7255 = vpop.f32.mrf.mxu0
    %v7256 = vadd.f32 %v7207, %v7255
    %v7257 = vpop.f32.mrf.mxu0
    %v7258 = vadd.f32 %v7209, %v7257
    %7259 = vmatmul.bf16.gmra.mxu0 %v4052
    %v7260 = vpop.f32.mrf.mxu0
    %v7261 = vadd.f32 %v7212, %v7260
    %v7262 = vpop.f32.mrf.mxu0
    %v7263 = vadd.f32 %v7214, %v7262
    %7264 = vdwg.mxu0
    %7265 = vmatpush.bf16.msra.mxu0 %v5486
    %7266 = vmatpush.bf16.msra.mxu0 %v5483
    %7267 = vmatpush.bf16.msra.mxu0 %v5480
    %7268 = vmatpush.bf16.msra.mxu0 %v5477
    %7269 = vmatpush.bf16.msra.mxu0 %v5474
    %7270 = vmatpush.bf16.msra.mxu0 %v5471
    %7271 = vmatpush.bf16.msra.mxu0 %v5468
    %7272 = vmatpush.bf16.msra.mxu0 %v5465
    %7273 = vmatmul.bf16.gmra.mxu0 %v3969
    %v7274 = vpop.f32.mrf.mxu0
    %v7275 = vadd.f32 %v7226, %v7274
    %v7276 = vpop.f32.mrf.mxu0
    %v7277 = vadd.f32 %v7228, %v7276
    %7278 = vmatmul.bf16.gmra.mxu0 %v3981
    %v7279 = vpop.f32.mrf.mxu0
    %v7280 = vadd.f32 %v7231, %v7279
    %v7281 = vpop.f32.mrf.mxu0
    %v7282 = vadd.f32 %v7233, %v7281
    %7283 = vmatmul.bf16.gmra.mxu0 %v3993
    %v7284 = vpop.f32.mrf.mxu0
    %v7285 = vadd.f32 %v7236, %v7284
    %v7286 = vpop.f32.mrf.mxu0
    %v7287 = vadd.f32 %v7238, %v7286
    %7288 = vmatmul.bf16.gmra.mxu0 %v4005
    %v7289 = vpop.f32.mrf.mxu0
    %v7290 = vadd.f32 %v7241, %v7289
    %v7291 = vpop.f32.mrf.mxu0
    %v7292 = vadd.f32 %v7243, %v7291
    %7293 = vmatmul.bf16.gmra.mxu0 %v4017
    %v7294 = vpop.f32.mrf.mxu0
    %v7295 = vadd.f32 %v7246, %v7294
    %v7296 = vpop.f32.mrf.mxu0
    %v7297 = vadd.f32 %v7248, %v7296
    %7298 = vmatmul.bf16.gmra.mxu0 %v4029
    %v7299 = vpop.f32.mrf.mxu0
    %v7300 = vadd.f32 %v7251, %v7299
    %v7301 = vpop.f32.mrf.mxu0
    %v7302 = vadd.f32 %v7253, %v7301
    %7303 = vmatmul.bf16.gmra.mxu0 %v4041
    %v7304 = vpop.f32.mrf.mxu0
    %v7305 = vadd.f32 %v7256, %v7304
    %v7306 = vpop.f32.mrf.mxu0
    %v7307 = vadd.f32 %v7258, %v7306
    %7308 = vmatmul.bf16.gmra.mxu0 %v4053
    %v7309 = vpop.f32.mrf.mxu0
    %v7310 = vadd.f32 %v7261, %v7309
    %v7311 = vpop.f32.mrf.mxu0
    %v7312 = vadd.f32 %v7263, %v7311
    %7313 = vdwg.mxu0
    %7314 = vmatpush.bf16.msra.mxu0 %v5510
    %7315 = vmatpush.bf16.msra.mxu0 %v5507
    %7316 = vmatpush.bf16.msra.mxu0 %v5504
    %7317 = vmatpush.bf16.msra.mxu0 %v5501
    %7318 = vmatpush.bf16.msra.mxu0 %v5498
    %7319 = vmatpush.bf16.msra.mxu0 %v5495
    %7320 = vmatpush.bf16.msra.mxu0 %v5492
    %7321 = vmatpush.bf16.msra.mxu0 %v5489
    %7322 = vmatmul.bf16.gmra.mxu0 %v3970
    %v7323 = vpop.f32.mrf.mxu0
    %v7324 = vadd.f32 %v7275, %v7323
    %v7325 = vpop.f32.mrf.mxu0
    %v7326 = vadd.f32 %v7277, %v7325
    %7327 = vmatmul.bf16.gmra.mxu0 %v3982
    %v7328 = vpop.f32.mrf.mxu0
    %v7329 = vadd.f32 %v7280, %v7328
    %v7330 = vpop.f32.mrf.mxu0
    %v7331 = vadd.f32 %v7282, %v7330
    %7332 = vmatmul.bf16.gmra.mxu0 %v3994
    %v7333 = vpop.f32.mrf.mxu0
    %v7334 = vadd.f32 %v7285, %v7333
    %v7335 = vpop.f32.mrf.mxu0
    %v7336 = vadd.f32 %v7287, %v7335
    %7337 = vmatmul.bf16.gmra.mxu0 %v4006
    %v7338 = vpop.f32.mrf.mxu0
    %v7339 = vadd.f32 %v7290, %v7338
    %v7340 = vpop.f32.mrf.mxu0
    %v7341 = vadd.f32 %v7292, %v7340
    %7342 = vmatmul.bf16.gmra.mxu0 %v4018
    %v7343 = vpop.f32.mrf.mxu0
    %v7344 = vadd.f32 %v7295, %v7343
    %v7345 = vpop.f32.mrf.mxu0
    %v7346 = vadd.f32 %v7297, %v7345
    %7347 = vmatmul.bf16.gmra.mxu0 %v4030
    %v7348 = vpop.f32.mrf.mxu0
    %v7349 = vadd.f32 %v7300, %v7348
    %v7350 = vpop.f32.mrf.mxu0
    %v7351 = vadd.f32 %v7302, %v7350
    %7352 = vmatmul.bf16.gmra.mxu0 %v4042
    %v7353 = vpop.f32.mrf.mxu0
    %v7354 = vadd.f32 %v7305, %v7353
    %v7355 = vpop.f32.mrf.mxu0
    %v7356 = vadd.f32 %v7307, %v7355
    %7357 = vmatmul.bf16.gmra.mxu0 %v4054
    %v7358 = vpop.f32.mrf.mxu0
    %v7359 = vadd.f32 %v7310, %v7358
    %v7360 = vpop.f32.mrf.mxu0
    %v7361 = vadd.f32 %v7312, %v7360
    %7362 = vdwg.mxu0
    %7363 = vmatpush.bf16.msra.mxu0 %v5534
    %7364 = vmatpush.bf16.msra.mxu0 %v5531
    %7365 = vmatpush.bf16.msra.mxu0 %v5528
    %7366 = vmatpush.bf16.msra.mxu0 %v5525
    %7367 = vmatpush.bf16.msra.mxu0 %v5522
    %7368 = vmatpush.bf16.msra.mxu0 %v5519
    %7369 = vmatpush.bf16.msra.mxu0 %v5516
    %7370 = vmatpush.bf16.msra.mxu0 %v5513
    %7371 = vmatmul.bf16.gmra.mxu0 %v3971
    %v7372 = vpop.f32.mrf.mxu0
    %v7373 = vadd.f32 %v7324, %v7372
    %v7374 = vpop.f32.mrf.mxu0
    %v7375 = vadd.f32 %v7326, %v7374
    %7376 = vmatmul.bf16.gmra.mxu0 %v3983
    %v7377 = vpop.f32.mrf.mxu0
    %v7378 = vadd.f32 %v7329, %v7377
    %v7379 = vpop.f32.mrf.mxu0
    %v7380 = vadd.f32 %v7331, %v7379
    %7381 = vmatmul.bf16.gmra.mxu0 %v3995
    %v7382 = vpop.f32.mrf.mxu0
    %v7383 = vadd.f32 %v7334, %v7382
    %v7384 = vpop.f32.mrf.mxu0
    %v7385 = vadd.f32 %v7336, %v7384
    %7386 = vmatmul.bf16.gmra.mxu0 %v4007
    %v7387 = vpop.f32.mrf.mxu0
    %v7388 = vadd.f32 %v7339, %v7387
    %v7389 = vpop.f32.mrf.mxu0
    %v7390 = vadd.f32 %v7341, %v7389
    %7391 = vmatmul.bf16.gmra.mxu0 %v4019
    %v7392 = vpop.f32.mrf.mxu0
    %v7393 = vadd.f32 %v7344, %v7392
    %v7394 = vpop.f32.mrf.mxu0
    %v7395 = vadd.f32 %v7346, %v7394
    %7396 = vmatmul.bf16.gmra.mxu0 %v4031
    %v7397 = vpop.f32.mrf.mxu0
    %v7398 = vadd.f32 %v7349, %v7397
    %v7399 = vpop.f32.mrf.mxu0
    %v7400 = vadd.f32 %v7351, %v7399
    %7401 = vmatmul.bf16.gmra.mxu0 %v4043
    %v7402 = vpop.f32.mrf.mxu0
    %v7403 = vadd.f32 %v7354, %v7402
    %v7404 = vpop.f32.mrf.mxu0
    %v7405 = vadd.f32 %v7356, %v7404
    %7406 = vmatmul.bf16.gmra.mxu0 %v4055
    %v7407 = vpop.f32.mrf.mxu0
    %v7408 = vadd.f32 %v7359, %v7407
    %v7409 = vpop.f32.mrf.mxu0
    %v7410 = vadd.f32 %v7361, %v7409
    %7411 = vdwg.mxu0
    %7412 = vmatpush.bf16.msra.mxu0 %v5558
    %7413 = vmatpush.bf16.msra.mxu0 %v5555
    %7414 = vmatpush.bf16.msra.mxu0 %v5552
    %7415 = vmatpush.bf16.msra.mxu0 %v5549
    %7416 = vmatpush.bf16.msra.mxu0 %v5546
    %7417 = vmatpush.bf16.msra.mxu0 %v5543
    %7418 = vmatpush.bf16.msra.mxu0 %v5540
    %7419 = vmatpush.bf16.msra.mxu0 %v5537
    %7420 = vmatmul.bf16.gmra.mxu0 %v3972
    %v7421 = vpop.f32.mrf.mxu0
    %v7422 = vadd.f32 %v7373, %v7421
    %v7423 = vpop.f32.mrf.mxu0
    %v7424 = vadd.f32 %v7375, %v7423
    %7425 = vmatmul.bf16.gmra.mxu0 %v3984
    %v7426 = vpop.f32.mrf.mxu0
    %v7427 = vadd.f32 %v7378, %v7426
    %v7428 = vpop.f32.mrf.mxu0
    %v7429 = vadd.f32 %v7380, %v7428
    %7430 = vmatmul.bf16.gmra.mxu0 %v3996
    %v7431 = vpop.f32.mrf.mxu0
    %v7432 = vadd.f32 %v7383, %v7431
    %v7433 = vpop.f32.mrf.mxu0
    %v7434 = vadd.f32 %v7385, %v7433
    %7435 = vmatmul.bf16.gmra.mxu0 %v4008
    %v7436 = vpop.f32.mrf.mxu0
    %v7437 = vadd.f32 %v7388, %v7436
    %v7438 = vpop.f32.mrf.mxu0
    %v7439 = vadd.f32 %v7390, %v7438
    %7440 = vmatmul.bf16.gmra.mxu0 %v4020
    %v7441 = vpop.f32.mrf.mxu0
    %v7442 = vadd.f32 %v7393, %v7441
    %v7443 = vpop.f32.mrf.mxu0
    %v7444 = vadd.f32 %v7395, %v7443
    %7445 = vmatmul.bf16.gmra.mxu0 %v4032
    %v7446 = vpop.f32.mrf.mxu0
    %v7447 = vadd.f32 %v7398, %v7446
    %v7448 = vpop.f32.mrf.mxu0
    %v7449 = vadd.f32 %v7400, %v7448
    %7450 = vmatmul.bf16.gmra.mxu0 %v4044
    %v7451 = vpop.f32.mrf.mxu0
    %v7452 = vadd.f32 %v7403, %v7451
    %v7453 = vpop.f32.mrf.mxu0
    %v7454 = vadd.f32 %v7405, %v7453
    %7455 = vmatmul.bf16.gmra.mxu0 %v4056
    %v7456 = vpop.f32.mrf.mxu0
    %v7457 = vadd.f32 %v7408, %v7456
    %v7458 = vpop.f32.mrf.mxu0
    %v7459 = vadd.f32 %v7410, %v7458
    %7460 = vdwg.mxu0
    %7461 = vmatpush.bf16.msra.mxu0 %v5582
    %7462 = vmatpush.bf16.msra.mxu0 %v5579
    %7463 = vmatpush.bf16.msra.mxu0 %v5576
    %7464 = vmatpush.bf16.msra.mxu0 %v5573
    %7465 = vmatpush.bf16.msra.mxu0 %v5570
    %7466 = vmatpush.bf16.msra.mxu0 %v5567
    %7467 = vmatpush.bf16.msra.mxu0 %v5564
    %7468 = vmatpush.bf16.msra.mxu0 %v5561
    %7469 = vmatmul.bf16.gmra.mxu0 %v3973
    %v7470 = vpop.f32.mrf.mxu0
    %v7471 = vadd.f32 %v7422, %v7470
    %v7472 = vpop.f32.mrf.mxu0
    %v7473 = vadd.f32 %v7424, %v7472
    %7474 = vmatmul.bf16.gmra.mxu0 %v3985
    %v7475 = vpop.f32.mrf.mxu0
    %v7476 = vadd.f32 %v7427, %v7475
    %v7477 = vpop.f32.mrf.mxu0
    %v7478 = vadd.f32 %v7429, %v7477
    %7479 = vmatmul.bf16.gmra.mxu0 %v3997
    %v7480 = vpop.f32.mrf.mxu0
    %v7481 = vadd.f32 %v7432, %v7480
    %v7482 = vpop.f32.mrf.mxu0
    %v7483 = vadd.f32 %v7434, %v7482
    %7484 = vmatmul.bf16.gmra.mxu0 %v4009
    %v7485 = vpop.f32.mrf.mxu0
    %v7486 = vadd.f32 %v7437, %v7485
    %v7487 = vpop.f32.mrf.mxu0
    %v7488 = vadd.f32 %v7439, %v7487
    %7489 = vmatmul.bf16.gmra.mxu0 %v4021
    %v7490 = vpop.f32.mrf.mxu0
    %v7491 = vadd.f32 %v7442, %v7490
    %v7492 = vpop.f32.mrf.mxu0
    %v7493 = vadd.f32 %v7444, %v7492
    %7494 = vmatmul.bf16.gmra.mxu0 %v4033
    %v7495 = vpop.f32.mrf.mxu0
    %v7496 = vadd.f32 %v7447, %v7495
    %v7497 = vpop.f32.mrf.mxu0
    %v7498 = vadd.f32 %v7449, %v7497
    %7499 = vmatmul.bf16.gmra.mxu0 %v4045
    %v7500 = vpop.f32.mrf.mxu0
    %v7501 = vadd.f32 %v7452, %v7500
    %v7502 = vpop.f32.mrf.mxu0
    %v7503 = vadd.f32 %v7454, %v7502
    %7504 = vmatmul.bf16.gmra.mxu0 %v4057
    %v7505 = vpop.f32.mrf.mxu0
    %v7506 = vadd.f32 %v7457, %v7505
    %v7507 = vpop.f32.mrf.mxu0
    %v7508 = vadd.f32 %v7459, %v7507
    %7509 = vdwg.mxu0
    %7510 = vmatpush.bf16.msra.mxu0 %v5606
    %7511 = vmatpush.bf16.msra.mxu0 %v5603
    %7512 = vmatpush.bf16.msra.mxu0 %v5600
    %7513 = vmatpush.bf16.msra.mxu0 %v5597
    %7514 = vmatpush.bf16.msra.mxu0 %v5594
    %7515 = vmatpush.bf16.msra.mxu0 %v5591
    %7516 = vmatpush.bf16.msra.mxu0 %v5588
    %7517 = vmatpush.bf16.msra.mxu0 %v5585
    %7518 = vmatmul.bf16.gmra.mxu0 %v3974
    %v7519 = vpop.f32.mrf.mxu0
    %v7520 = vadd.f32 %v7471, %v7519
    %v7521 = vpop.f32.mrf.mxu0
    %v7522 = vadd.f32 %v7473, %v7521
    %7523 = vmatmul.bf16.gmra.mxu0 %v3986
    %v7524 = vpop.f32.mrf.mxu0
    %v7525 = vadd.f32 %v7476, %v7524
    %v7526 = vpop.f32.mrf.mxu0
    %v7527 = vadd.f32 %v7478, %v7526
    %7528 = vmatmul.bf16.gmra.mxu0 %v3998
    %v7529 = vpop.f32.mrf.mxu0
    %v7530 = vadd.f32 %v7481, %v7529
    %v7531 = vpop.f32.mrf.mxu0
    %v7532 = vadd.f32 %v7483, %v7531
    %7533 = vmatmul.bf16.gmra.mxu0 %v4010
    %v7534 = vpop.f32.mrf.mxu0
    %v7535 = vadd.f32 %v7486, %v7534
    %v7536 = vpop.f32.mrf.mxu0
    %v7537 = vadd.f32 %v7488, %v7536
    %7538 = vmatmul.bf16.gmra.mxu0 %v4022
    %v7539 = vpop.f32.mrf.mxu0
    %v7540 = vadd.f32 %v7491, %v7539
    %v7541 = vpop.f32.mrf.mxu0
    %v7542 = vadd.f32 %v7493, %v7541
    %7543 = vmatmul.bf16.gmra.mxu0 %v4034
    %v7544 = vpop.f32.mrf.mxu0
    %v7545 = vadd.f32 %v7496, %v7544
    %v7546 = vpop.f32.mrf.mxu0
    %v7547 = vadd.f32 %v7498, %v7546
    %7548 = vmatmul.bf16.gmra.mxu0 %v4046
    %v7549 = vpop.f32.mrf.mxu0
    %v7550 = vadd.f32 %v7501, %v7549
    %v7551 = vpop.f32.mrf.mxu0
    %v7552 = vadd.f32 %v7503, %v7551
    %7553 = vmatmul.bf16.gmra.mxu0 %v4058
    %v7554 = vpop.f32.mrf.mxu0
    %v7555 = vadd.f32 %v7506, %v7554
    %v7556 = vpop.f32.mrf.mxu0
    %v7557 = vadd.f32 %v7508, %v7556
    %7558 = vdwg.mxu0
    %7559 = vmatpush.bf16.msra.mxu0 %v5630
    %7560 = vmatpush.bf16.msra.mxu0 %v5627
    %7561 = vmatpush.bf16.msra.mxu0 %v5624
    %7562 = vmatpush.bf16.msra.mxu0 %v5621
    %7563 = vmatpush.bf16.msra.mxu0 %v5618
    %7564 = vmatpush.bf16.msra.mxu0 %v5615
    %7565 = vmatpush.bf16.msra.mxu0 %v5612
    %7566 = vmatpush.bf16.msra.mxu0 %v5609
    %7567 = vmatmul.bf16.gmra.mxu0 %v3975
    %v7568 = vpop.f32.mrf.mxu0
    %v7569 = vadd.f32 %v7520, %v7568
    %v7570 = vpop.f32.mrf.mxu0
    %v7571 = vadd.f32 %v7522, %v7570
    %7572 = vmatmul.bf16.gmra.mxu0 %v3987
    %v7573 = vpop.f32.mrf.mxu0
    %v7574 = vadd.f32 %v7525, %v7573
    %v7575 = vpop.f32.mrf.mxu0
    %v7576 = vadd.f32 %v7527, %v7575
    %7577 = vmatmul.bf16.gmra.mxu0 %v3999
    %v7578 = vpop.f32.mrf.mxu0
    %v7579 = vadd.f32 %v7530, %v7578
    %v7580 = vpop.f32.mrf.mxu0
    %v7581 = vadd.f32 %v7532, %v7580
    %7582 = vmatmul.bf16.gmra.mxu0 %v4011
    %v7583 = vpop.f32.mrf.mxu0
    %v7584 = vadd.f32 %v7535, %v7583
    %v7585 = vpop.f32.mrf.mxu0
    %v7586 = vadd.f32 %v7537, %v7585
    %7587 = vmatmul.bf16.gmra.mxu0 %v4023
    %v7588 = vpop.f32.mrf.mxu0
    %v7589 = vadd.f32 %v7540, %v7588
    %v7590 = vpop.f32.mrf.mxu0
    %v7591 = vadd.f32 %v7542, %v7590
    %7592 = vmatmul.bf16.gmra.mxu0 %v4035
    %v7593 = vpop.f32.mrf.mxu0
    %v7594 = vadd.f32 %v7545, %v7593
    %v7595 = vpop.f32.mrf.mxu0
    %v7596 = vadd.f32 %v7547, %v7595
    %7597 = vmatmul.bf16.gmra.mxu0 %v4047
    %v7598 = vpop.f32.mrf.mxu0
    %v7599 = vadd.f32 %v7550, %v7598
    %v7600 = vpop.f32.mrf.mxu0
    %v7601 = vadd.f32 %v7552, %v7600
    %7602 = vmatmul.bf16.gmra.mxu0 %v4059
    %v7603 = vpop.f32.mrf.mxu0
    %v7604 = vadd.f32 %v7555, %v7603
    %v7605 = vpop.f32.mrf.mxu0
    %v7606 = vadd.f32 %v7557, %v7605
    %7607 = vdwg.mxu0
    %7608 = vmatpush.bf16.msra.mxu0 %v5654
    %7609 = vmatpush.bf16.msra.mxu0 %v5651
    %7610 = vmatpush.bf16.msra.mxu0 %v5648
    %7611 = vmatpush.bf16.msra.mxu0 %v5645
    %7612 = vmatpush.bf16.msra.mxu0 %v5642
    %7613 = vmatpush.bf16.msra.mxu0 %v5639
    %7614 = vmatpush.bf16.msra.mxu0 %v5636
    %7615 = vmatpush.bf16.msra.mxu0 %v5633
    %7616 = vmatmul.bf16.gmra.mxu0 %v3976
    %v7617 = vpop.f32.mrf.mxu0
    %v7618 = vadd.f32 %v7569, %v7617
    %v7619 = vpop.f32.mrf.mxu0
    %v7620 = vadd.f32 %v7571, %v7619
    %7621 = vmatmul.bf16.gmra.mxu0 %v3988
    %v7622 = vpop.f32.mrf.mxu0
    %v7623 = vadd.f32 %v7574, %v7622
    %v7624 = vpop.f32.mrf.mxu0
    %v7625 = vadd.f32 %v7576, %v7624
    %7626 = vmatmul.bf16.gmra.mxu0 %v4000
    %v7627 = vpop.f32.mrf.mxu0
    %v7628 = vadd.f32 %v7579, %v7627
    %v7629 = vpop.f32.mrf.mxu0
    %v7630 = vadd.f32 %v7581, %v7629
    %7631 = vmatmul.bf16.gmra.mxu0 %v4012
    %v7632 = vpop.f32.mrf.mxu0
    %v7633 = vadd.f32 %v7584, %v7632
    %v7634 = vpop.f32.mrf.mxu0
    %v7635 = vadd.f32 %v7586, %v7634
    %7636 = vmatmul.bf16.gmra.mxu0 %v4024
    %v7637 = vpop.f32.mrf.mxu0
    %v7638 = vadd.f32 %v7589, %v7637
    %v7639 = vpop.f32.mrf.mxu0
    %v7640 = vadd.f32 %v7591, %v7639
    %7641 = vmatmul.bf16.gmra.mxu0 %v4036
    %v7642 = vpop.f32.mrf.mxu0
    %v7643 = vadd.f32 %v7594, %v7642
    %v7644 = vpop.f32.mrf.mxu0
    %v7645 = vadd.f32 %v7596, %v7644
    %7646 = vmatmul.bf16.gmra.mxu0 %v4048
    %v7647 = vpop.f32.mrf.mxu0
    %v7648 = vadd.f32 %v7599, %v7647
    %v7649 = vpop.f32.mrf.mxu0
    %v7650 = vadd.f32 %v7601, %v7649
    %7651 = vmatmul.bf16.gmra.mxu0 %v4060
    %v7652 = vpop.f32.mrf.mxu0
    %v7653 = vadd.f32 %v7604, %v7652
    %v7654 = vpop.f32.mrf.mxu0
    %v7655 = vadd.f32 %v7606, %v7654
    %7656 = vdwg.mxu0
    %7657 = vmatpush.bf16.msra.mxu0 %v5678
    %7658 = vmatpush.bf16.msra.mxu0 %v5675
    %7659 = vmatpush.bf16.msra.mxu0 %v5672
    %7660 = vmatpush.bf16.msra.mxu0 %v5669
    %7661 = vmatpush.bf16.msra.mxu0 %v5666
    %7662 = vmatpush.bf16.msra.mxu0 %v5663
    %7663 = vmatpush.bf16.msra.mxu0 %v5660
    %7664 = vmatpush.bf16.msra.mxu0 %v5657
    %7665 = vmatmul.bf16.gmra.mxu0 %v3977
    %v7666 = vpop.f32.mrf.mxu0
    %v7667 = vadd.f32 %v7618, %v7666
    %v7668 = vpop.f32.mrf.mxu0
    %v7669 = vadd.f32 %v7620, %v7668
    %7670 = vmatmul.bf16.gmra.mxu0 %v3989
    %v7671 = vpop.f32.mrf.mxu0
    %v7672 = vadd.f32 %v7623, %v7671
    %v7673 = vpop.f32.mrf.mxu0
    %v7674 = vadd.f32 %v7625, %v7673
    %7675 = vmatmul.bf16.gmra.mxu0 %v4001
    %v7676 = vpop.f32.mrf.mxu0
    %v7677 = vadd.f32 %v7628, %v7676
    %v7678 = vpop.f32.mrf.mxu0
    %v7679 = vadd.f32 %v7630, %v7678
    %7680 = vmatmul.bf16.gmra.mxu0 %v4013
    %v7681 = vpop.f32.mrf.mxu0
    %v7682 = vadd.f32 %v7633, %v7681
    %v7683 = vpop.f32.mrf.mxu0
    %v7684 = vadd.f32 %v7635, %v7683
    %7685 = vmatmul.bf16.gmra.mxu0 %v4025
    %v7686 = vpop.f32.mrf.mxu0
    %v7687 = vadd.f32 %v7638, %v7686
    %v7688 = vpop.f32.mrf.mxu0
    %v7689 = vadd.f32 %v7640, %v7688
    %7690 = vmatmul.bf16.gmra.mxu0 %v4037
    %v7691 = vpop.f32.mrf.mxu0
    %v7692 = vadd.f32 %v7643, %v7691
    %v7693 = vpop.f32.mrf.mxu0
    %v7694 = vadd.f32 %v7645, %v7693
    %7695 = vmatmul.bf16.gmra.mxu0 %v4049
    %v7696 = vpop.f32.mrf.mxu0
    %v7697 = vadd.f32 %v7648, %v7696
    %v7698 = vpop.f32.mrf.mxu0
    %v7699 = vadd.f32 %v7650, %v7698
    %7700 = vmatmul.bf16.gmra.mxu0 %v4061
    %v7701 = vpop.f32.mrf.mxu0
    %v7702 = vadd.f32 %v7653, %v7701
    %v7703 = vpop.f32.mrf.mxu0
    %v7704 = vadd.f32 %v7655, %v7703
    %7705 = vdwg.mxu0
    %7706 = vmatpush.bf16.msra.mxu0 %v5702
    %7707 = vmatpush.bf16.msra.mxu0 %v5699
    %7708 = vmatpush.bf16.msra.mxu0 %v5696
    %7709 = vmatpush.bf16.msra.mxu0 %v5693
    %7710 = vmatpush.bf16.msra.mxu0 %v5690
    %7711 = vmatpush.bf16.msra.mxu0 %v5687
    %7712 = vmatpush.bf16.msra.mxu0 %v5684
    %7713 = vmatpush.bf16.msra.mxu0 %v5681
    %7714 = vmatmul.bf16.gmra.mxu0 %v3978
    %v7715 = vpop.f32.mrf.mxu0
    %v7716 = vadd.f32 %v7667, %v7715
    %v7717 = vpop.f32.mrf.mxu0
    %v7718 = vadd.f32 %v7669, %v7717
    %7719 = vmatmul.bf16.gmra.mxu0 %v3990
    %v7720 = vpop.f32.mrf.mxu0
    %v7721 = vadd.f32 %v7672, %v7720
    %v7722 = vpop.f32.mrf.mxu0
    %v7723 = vadd.f32 %v7674, %v7722
    %7724 = vmatmul.bf16.gmra.mxu0 %v4002
    %v7725 = vpop.f32.mrf.mxu0
    %v7726 = vadd.f32 %v7677, %v7725
    %v7727 = vpop.f32.mrf.mxu0
    %v7728 = vadd.f32 %v7679, %v7727
    %7729 = vmatmul.bf16.gmra.mxu0 %v4014
    %v7730 = vpop.f32.mrf.mxu0
    %v7731 = vadd.f32 %v7682, %v7730
    %v7732 = vpop.f32.mrf.mxu0
    %v7733 = vadd.f32 %v7684, %v7732
    %7734 = vmatmul.bf16.gmra.mxu0 %v4026
    %v7735 = vpop.f32.mrf.mxu0
    %v7736 = vadd.f32 %v7687, %v7735
    %v7737 = vpop.f32.mrf.mxu0
    %v7738 = vadd.f32 %v7689, %v7737
    %7739 = vmatmul.bf16.gmra.mxu0 %v4038
    %v7740 = vpop.f32.mrf.mxu0
    %v7741 = vadd.f32 %v7692, %v7740
    %v7742 = vpop.f32.mrf.mxu0
    %v7743 = vadd.f32 %v7694, %v7742
    %7744 = vmatmul.bf16.gmra.mxu0 %v4050
    %v7745 = vpop.f32.mrf.mxu0
    %v7746 = vadd.f32 %v7697, %v7745
    %v7747 = vpop.f32.mrf.mxu0
    %v7748 = vadd.f32 %v7699, %v7747
    %7749 = vmatmul.bf16.gmra.mxu0 %v4062
    %v7750 = vpop.f32.mrf.mxu0
    %v7751 = vadd.f32 %v7702, %v7750
    %v7752 = vpop.f32.mrf.mxu0
    %v7753 = vadd.f32 %v7704, %v7752
    %7754 = vdwg.mxu0
    %7755 = vst [vmem:[#allocation11] sm:$0xff] %v6540
    %7756 = vst [vmem:[#allocation11 + $0x8] sm:$0xff] %v7128
    %7757 = vst [vmem:[#allocation11 + $0x10] sm:$0xff] %v7716
    %7758 = vst [vmem:[#allocation11 + $0x18] sm:$0xff] %v6542
    %7759 = vst [vmem:[#allocation11 + $0x20] sm:$0xff] %v7130
    %7760 = vst [vmem:[#allocation11 + $0x28] sm:$0xff] %v7718
    %7761 = vst [vmem:[#allocation11 + $0x30] sm:$0xff] %v6545
    %7762 = vst [vmem:[#allocation11 + $0x38] sm:$0xff] %v7133
    %7763 = vst [vmem:[#allocation11 + $0x40] sm:$0xff] %v7721
    %7764 = vst [vmem:[#allocation11 + $0x48] sm:$0xff] %v6547
    %7765 = vst [vmem:[#allocation11 + $0x50] sm:$0xff] %v7135
    %7766 = vst [vmem:[#allocation11 + $0x58] sm:$0xff] %v7723
    %7767 = vst [vmem:[#allocation11 + $0x60] sm:$0xff] %v6550
    %7768 = vst [vmem:[#allocation11 + $0x68] sm:$0xff] %v7138
    %7769 = vst [vmem:[#allocation11 + $0x70] sm:$0xff] %v7726
    %7770 = vst [vmem:[#allocation11 + $0x78] sm:$0xff] %v6552
    %7771 = vst [vmem:[#allocation11 + $0x80] sm:$0xff] %v7140
    %7772 = vst [vmem:[#allocation11 + $0x88] sm:$0xff] %v7728
    %7773 = vst [vmem:[#allocation11 + $0x90] sm:$0xff] %v6555
    %7774 = vst [vmem:[#allocation11 + $0x98] sm:$0xff] %v7143
    %7775 = vst [vmem:[#allocation11 + $0xa0] sm:$0xff] %v7731
    %7776 = vst [vmem:[#allocation11 + $0xa8] sm:$0xff] %v6557
    %7777 = vst [vmem:[#allocation11 + $0xb0] sm:$0xff] %v7145
    %7778 = vst [vmem:[#allocation11 + $0xb8] sm:$0xff] %v7733
    %7779 = vst [vmem:[#allocation11 + $0xc0] sm:$0xff] %v6560
    %7780 = vst [vmem:[#allocation11 + $0xc8] sm:$0xff] %v7148
    %7781 = vst [vmem:[#allocation11 + $0xd0] sm:$0xff] %v7736
    %7782 = vst [vmem:[#allocation11 + $0xd8] sm:$0xff] %v6562
    %7783 = vst [vmem:[#allocation11 + $0xe0] sm:$0xff] %v7150
    %7784 = vst [vmem:[#allocation11 + $0xe8] sm:$0xff] %v7738
    %7785 = vst [vmem:[#allocation11 + $0xf0] sm:$0xff] %v6565
    %7786 = vst [vmem:[#allocation11 + $0xf8] sm:$0xff] %v7153
    %7787 = vst [vmem:[#allocation11 + $0x100] sm:$0xff] %v7741
    %7788 = vst [vmem:[#allocation11 + $0x108] sm:$0xff] %v6567
    %7789 = vst [vmem:[#allocation11 + $0x110] sm:$0xff] %v7155
    %7790 = vst [vmem:[#allocation11 + $0x118] sm:$0xff] %v7743
    %7791 = vst [vmem:[#allocation11 + $0x120] sm:$0xff] %v6570
    %7792 = vst [vmem:[#allocation11 + $0x128] sm:$0xff] %v7158
    %7793 = vst [vmem:[#allocation11 + $0x130] sm:$0xff] %v7746
    %7794 = vst [vmem:[#allocation11 + $0x138] sm:$0xff] %v6572
    %7795 = vst [vmem:[#allocation11 + $0x140] sm:$0xff] %v7160
    %7796 = vst [vmem:[#allocation11 + $0x148] sm:$0xff] %v7748
    %7797 = vst [vmem:[#allocation11 + $0x150] sm:$0xff] %v6575
    %7798 = vst [vmem:[#allocation11 + $0x158] sm:$0xff] %v7163
    %7799 = vst [vmem:[#allocation11 + $0x160] sm:$0xff] %v7751
    %7800 = vst [vmem:[#allocation11 + $0x168] sm:$0xff] %v6577
    %7801 = vst [vmem:[#allocation11 + $0x170] sm:$0xff] %v7165
    %7802 = vst [vmem:[#allocation11 + $0x178] sm:$0xff] %v7753
    // Predicated region
    $region42: #{tpu_custom_call.1} parent=1 // pred_check
      _
    $region43: #{tpu_custom_call.1} parent=1 // pred_check_branch
      %7804 = sbr.rel (0) target = $region45
    $region44: #{tpu_custom_call.1} parent=1 // pred_region
      %7806 = vsyncadd [#allocation4], 0
      %s7807 = sshll.u32 [#allocation11], 4
      %s7808 = int_to_ptr.vmem [resolvable:$true] %s7807
      %s7809 = sshll.u32 %s5, 4
      %s7810 = int_to_ptr.hbm [resolvable:$true] %s7809
      %7815 = dma.vmem_to_hbm [thread:$0]  %s7808, 6144, %s7810, [#allocation4], 384, 384, 24
    $region45: #{tpu_custom_call.1} parent=1 // pred_fallthru
      _
    // Predicated region
    $region46: #{tpu_custom_call.1} parent=1 // pred_check
      _
    $region47: #{tpu_custom_call.1} parent=1 // pred_check_branch
      %7817 = sbr.rel (0) target = $region49
    $region48: #{tpu_custom_call.1} parent=1 // pred_region
      %7819 = dma.done [#allocation4], 6144
    $region49: #{tpu_custom_call.1} parent=1 // pred_fallthru
      _
    %7820 = vsyncpa [#allocation3], 1
    %7821 = vsyncpa [#allocation6], 1
    %7822 = vsyncpa [#allocation9], 1
    %7823 = vsyncpa [#allocation4], 1

</llo_original>
